<compile_context>
chip_gen: v7x
topology: tpu7x:2x2x1
jax: 0.10.0
libtpu: 0.0.40
codegen_flags: <defaults>
</compile_context>

<pallas_src>
import functools
import math

import jax
import jax.numpy as jnp
from jax import lax
from jax.experimental import pallas as pl
from jax.experimental.pallas import tpu as pltpu


# ----------------------------------------------------------------------------
# Fused kernel: conv1 -> conv2 -> conv3 -> flatten -> fc_h -> ReLU -> fc_a
# All refs are whole-array VMEM blocks; no grid.
# ----------------------------------------------------------------------------
def _action_net_kernel(x_ref, w1_ref, b1_ref, w2_ref, b2_ref, w3_ref, b3_ref,
                       wfh_ref, bfh_ref, wfa_ref, bfa_ref, out_ref,
                       patch1, act1, patch2, act2, patch3, act3, feat,
                       *, batch, c1_blk):
    # ---- conv1: output-blocked 2x2 stride-1 conv on the 8x8 x (64*Cin) grid ----
    # patch1 rows = (b, p, q) blocked output positions (7x7 per batch),
    # cols = (tap E,F) x blocked input channels.
    for b in range(batch):
        for p in range(7):
            dst = (b * 7 + p) * 7
            for E in range(2):
                for F in range(2):
                    src = b * 64 + (p + E) * 8 + F
                    col = (E * 2 + F) * c1_blk
                    patch1[dst:dst + 7, col:col + c1_blk] = x_ref[src:src + 7, :]
    a1 = jnp.dot(patch1[...], w1_ref[...], preferred_element_type=jnp.float32)
    a1 = jnp.maximum(a1 + b1_ref[...], 0.0)
    act1[...] = a1.astype(act1.dtype)   # (B*49, 128): rows=(b,p,q), ch=(a,bq,o)

    # ---- conv2: 2x2 stride-1 conv on the blocked 7x7x128 map -> 6x6x64 ----
    for b in range(batch):
        for ho in range(6):
            dst = (b * 6 + ho) * 6
            for dH in range(2):
                for dW in range(2):
                    src = b * 49 + (ho + dH) * 7 + dW
                    col = (dH * 2 + dW) * 128
                    patch2[dst:dst + 6, col:col + 128] = act1[src:src + 6, :]
    a2 = jnp.dot(patch2[...], w2_ref[...], preferred_element_type=jnp.float32)
    a2 = jnp.maximum(a2 + b2_ref[...], 0.0)
    act2[...] = a2.astype(act2.dtype)   # (B*36, 64): rows=(b,h,w)

    # ---- conv3: 3x3 stride-1 conv on 6x6x64 -> 4x4x64 ----
    for b in range(batch):
        for h3 in range(4):
            dst = (b * 4 + h3) * 4
            for kh in range(3):
                for kw in range(3):
                    src = b * 36 + (h3 + kh) * 6 + kw
                    col = (kh * 3 + kw) * 64
                    patch3[dst:dst + 4, col:col + 64] = act2[src:src + 4, :]
    a3 = jnp.dot(patch3[...], w3_ref[...], preferred_element_type=jnp.float32)
    a3 = jnp.maximum(a3 + b3_ref[...], 0.0)
    act3[...] = a3.astype(act3.dtype)   # (B*16, 64): rows=(b,h,w), ch=c

    # ---- flatten to (B, 16*64) in (h, w, c) order; PyTorch's (c, h, w) order
    #      was folded into wfh at parameter-prep time ----
    for b in range(batch):
        for hw in range(16):
            feat[b:b + 1, hw * 64:(hw + 1) * 64] = \
                act3[b * 16 + hw:b * 16 + hw + 1, :]

    # ---- fc_h_a -> ReLU -> fc_a (output padded to 128 lanes) ----
    h = jnp.dot(feat[...], wfh_ref[...], preferred_element_type=jnp.float32)
    h = jnp.maximum(h + bfh_ref[...], 0.0)
    logits = jnp.dot(h.astype(wfa_ref.dtype), wfa_ref[...],
                     preferred_element_type=jnp.float32)
    out_ref[...] = logits + bfa_ref[...]


# ----------------------------------------------------------------------------
# Parameter prep: PyTorch-layout weights -> fused-kernel layout (done once).
# ----------------------------------------------------------------------------
def _conv1_blocked_weight(w1):
    """(32, Cin, 8, 8) OIHW -> (4*64*Cin, 128) GEMM weight for the output-blocked
    2x2 stride-1 formulation of the 8x8 stride-4 conv.

    Input channel index (per tap E,F): (e2, f2, rh, rw, c);
    output channel index: (a, bq, o) where (a, bq) are the output-spatial
    residues mod 2.  Entry = W1[o, c, 4*dh + rh, 4*dw + rw] with
    dh = 2E + e2 - a, dw = 2F + f2 - bq when both are in {0, 1}, else 0.
    """
    cout, cin = w1.shape[0], w1.shape[1]
    # (kh, kw, c, o) with kh = 4*dh + rh, kw = 4*dw + rw
    w = jnp.transpose(w1, (2, 3, 1, 0)).reshape(2, 4, 2, 4, cin, cout)
    zero = jnp.zeros((4, 4, cin, cout), w1.dtype)
    taps = []
    for E in range(2):
        for F in range(2):
            out_blocks = []
            for a in range(2):
                for bq in range(2):
                    e_blocks = []
                    for e2 in range(2):
                        dh = 2 * E + e2 - a
                        f_blocks = []
                        for f2 in range(2):
                            dw = 2 * F + f2 - bq
                            valid = (0 <= dh <= 1) and (0 <= dw <= 1)
                            f_blocks.append(w[dh, :, dw, :, :, :] if valid else zero)
                        e_blocks.append(jnp.stack(f_blocks, axis=0))
                    blk = jnp.stack(e_blocks, axis=0)            # (e2,f2,rh,rw,c,o)
                    out_blocks.append(blk.reshape(64 * cin, cout))
            taps.append(jnp.concatenate(out_blocks, axis=1))     # (64*cin, 4*cout)
    return jnp.concatenate(taps, axis=0)                          # (256*cin, 4*cout)


def prepare_params(tp):
    """Convert PyTorch-layout parameters into the fused-kernel layout."""
    hidden = tp["fc_h_w"].shape[0]
    n_actions = tp["fc_a_w"].shape[0]
    hid_pad = -(-hidden // 128) * 128
    act_pad = -(-n_actions // 128) * 128
    bf16 = jnp.bfloat16

    wg1 = _conv1_blocked_weight(tp["c1_w"])
    b1 = jnp.tile(tp["c1_b"], 4).reshape(1, 128)

    # conv2: rows ordered (dH, dW, rH, rW, c2) with kh = 2*dH + rH, kw = 2*dW + rW
    w2 = jnp.transpose(tp["c2_w"], (2, 3, 1, 0)).reshape(2, 2, 2, 2, 32, 64)
    wg2 = jnp.transpose(w2, (0, 2, 1, 3, 4, 5)).reshape(512, 64)
    b2 = tp["c2_b"].reshape(1, 64)

    # conv3: rows ordered (kh, kw, c3)
    wg3 = jnp.transpose(tp["c3_w"], (2, 3, 1, 0)).reshape(576, 64)
    b3 = tp["c3_b"].reshape(1, 64)

    # fc_h: fold PyTorch's (c, h, w) flatten order into the weight; our in-kernel
    # feature order is (h*4+w, c) -> row index hw*64 + c.
    wfh = jnp.transpose(tp["fc_h_w"].reshape(hidden, 64, 16), (2, 1, 0))
    wfh = wfh.reshape(1024, hidden)
    wfh = jnp.pad(wfh, ((0, 0), (0, hid_pad - hidden)))
    bfh = jnp.pad(tp["fc_h_b"], (0, hid_pad - hidden)).reshape(1, hid_pad)

    # fc_a: (in, out) layout, padded to 128 lanes on both dims (zeros are inert).
    wfa = jnp.pad(tp["fc_a_w"].T,
                  ((0, hid_pad - hidden), (0, act_pad - n_actions)))
    bfa = jnp.pad(tp["fc_a_b"], (0, act_pad - n_actions)).reshape(1, act_pad)

    return {
        "wg1": wg1.astype(bf16), "b1": b1.astype(jnp.float32),
        "wg2": wg2.astype(bf16), "b2": b2.astype(jnp.float32),
        "wg3": wg3.astype(bf16), "b3": b3.astype(jnp.float32),
        "wfh": wfh.astype(bf16), "bfh": bfh.astype(jnp.float32),
        "wfa": wfa.astype(bf16), "bfa": bfa.astype(jnp.float32),
    }


# ----------------------------------------------------------------------------
# Forward wrapper: host-side layout plumbing + single pallas_call.
# ----------------------------------------------------------------------------
def action_network_forward(kparams, x_nchw, n_actions):
    B, cin, H, W = x_nchw.shape
    assert H == 60 and W == 60, "AtariCNN spatial math assumes 60x60 inputs"
    c1_blk = 64 * cin

    # NCHW -> NHWC, pad 60 -> 64, then block h = ((u*2 + e2)*4 + rh) (same for w)
    # so conv1 becomes a 2x2 stride-1 conv on an 8x8 grid with 64*Cin channels
    # whose output lands directly in conv2's space-to-depth layout.
    x = jnp.transpose(x_nchw, (0, 2, 3, 1)).astype(jnp.float32)
    x = jnp.pad(x, ((0, 0), (0, 4), (0, 4), (0, 0)))
    x = x.reshape(B, 8, 2, 4, 8, 2, 4, cin)
    x = jnp.transpose(x, (0, 1, 4, 2, 5, 3, 6, 7))       # (B,u,v,e2,f2,rh,rw,c)
    x_bb = x.reshape(B * 64, c1_blk).astype(jnp.bfloat16)

    out = pl.pallas_call(
        functools.partial(_action_net_kernel, batch=B, c1_blk=c1_blk),
        out_shape=jax.ShapeDtypeStruct((B, kparams["wfa"].shape[1]), jnp.float32),
        in_specs=[pl.BlockSpec(memory_space=pltpu.MemorySpace.VMEM)] * 11,
        out_specs=pl.BlockSpec(memory_space=pltpu.MemorySpace.VMEM),
        scratch_shapes=[
            pltpu.VMEM((B * 49, 4 * c1_blk), jnp.bfloat16),  # conv1 im2col patches
            pltpu.VMEM((B * 49, 128), jnp.bfloat16),         # conv1 output (blocked)
            pltpu.VMEM((B * 36, 512), jnp.bfloat16),         # conv2 im2col patches
            pltpu.VMEM((B * 36, 64), jnp.bfloat16),          # conv2 output
            pltpu.VMEM((B * 16, 576), jnp.bfloat16),         # conv3 im2col patches
            pltpu.VMEM((B * 16, 64), jnp.bfloat16),          # conv3 output
            pltpu.VMEM((B, 1024), jnp.bfloat16),             # flattened features
        ],
    )(x_bb,
      kparams["wg1"], kparams["b1"], kparams["wg2"], kparams["b2"],
      kparams["wg3"], kparams["b3"], kparams["wfh"], kparams["bfh"],
      kparams["wfa"], kparams["bfa"])
    return out[:, :n_actions]


# ----------------------------------------------------------------------------
# Deterministic init (He-uniform; init scale is arbitrary for the forward pass,
# chosen so activations stay O(1) and the numerics check below is meaningful).
# ----------------------------------------------------------------------------
def _uniform(key, shape, fan_in):
    bound = math.sqrt(6.0 / fan_in)
    return jax.random.uniform(key, shape, jnp.float32, -bound, bound)


def init_torch_params(key, input_channels, n_actions, hidden_size):
    ks = jax.random.split(key, 10)
    conv_out = 64 * 4 * 4
    return {
        "c1_w": _uniform(ks[0], (32, input_channels, 8, 8), input_channels * 64),
        "c1_b": _uniform(ks[1], (32,), input_channels * 64),
        "c2_w": _uniform(ks[2], (64, 32, 4, 4), 32 * 16),
        "c2_b": _uniform(ks[3], (64,), 32 * 16),
        "c3_w": _uniform(ks[4], (64, 64, 3, 3), 64 * 9),
        "c3_b": _uniform(ks[5], (64,), 64 * 9),
        "fc_h_w": _uniform(ks[6], (hidden_size, conv_out), conv_out),
        "fc_h_b": _uniform(ks[7], (hidden_size,), conv_out),
        "fc_a_w": _uniform(ks[8], (n_actions, hidden_size), hidden_size),
        "fc_a_b": _uniform(ks[9], (n_actions,), hidden_size),
    }


# Pure-JAX f32 reference of the PyTorch forward (for the numerics check).
def reference_forward(tp, x_nchw):
    dn = ("NCHW", "OIHW", "NCHW")
    y = lax.conv_general_dilated(x_nchw, tp["c1_w"], (4, 4), "VALID",
                                 dimension_numbers=dn)
    y = jnp.maximum(y + tp["c1_b"][None, :, None, None], 0.0)
    y = lax.conv_general_dilated(y, tp["c2_w"], (2, 2), "VALID",
                                 dimension_numbers=dn)
    y = jnp.maximum(y + tp["c2_b"][None, :, None, None], 0.0)
    y = lax.conv_general_dilated(y, tp["c3_w"], (1, 1), "VALID",
                                 dimension_numbers=dn)
    y = jnp.maximum(y + tp["c3_b"][None, :, None, None], 0.0)
    feat = y.reshape(y.shape[0], -1)              # PyTorch x.view(-1, 1024)
    h = jnp.maximum(feat @ tp["fc_h_w"].T + tp["fc_h_b"], 0.0)
    return h @ tp["fc_a_w"].T + tp["fc_a_b"]


if __name__ == "__main__":
    key = jax.random.PRNGKey(0)
    k_param, k_x = jax.random.split(key)

    batch = 2
    input_channels = 4    # stacked Atari frames
    spatial = 60          # 60 -> 14 -> 6 -> 4, matches output_size = 64*4*4
    n_actions = 6
    hidden_size = 32

    torch_params = init_torch_params(k_param, input_channels, n_actions, hidden_size)
    kparams = prepare_params(torch_params)

    x = jax.random.normal(k_x, (batch, input_channels, spatial, spatial), jnp.float32)

    fwd = jax.jit(action_network_forward, static_argnums=2)
    logits = fwd(kparams, x, n_actions)
    jax.block_until_ready(logits)

    assert logits.shape == (batch, n_actions), logits.shape
    assert bool(jnp.all(jnp.isfinite(logits)))

    # Correctness vs the pure-JAX f32 reference (bf16 matmul operands -> relaxed tol).
    ref = reference_forward(torch_params, x)
    scale = float(jnp.max(jnp.abs(ref)))
    max_err = float(jnp.max(jnp.abs(logits - ref)))
    assert max_err <= 0.05 * scale + 0.05, (max_err, scale)

    print("KERNEL_OK")
</pallas_src>

<mosaic_0001>
module attributes {stable_mosaic.version = 11 : i64} {
  func.func @_action_net_kernel(%arg0: memref<128x256xbf16, #tpu.memory_space<vmem>>, %arg1: memref<1024x128xbf16, #tpu.memory_space<vmem>>, %arg2: memref<1x128xf32, #tpu.memory_space<vmem>>, %arg3: memref<512x64xbf16, #tpu.memory_space<vmem>>, %arg4: memref<1x64xf32, #tpu.memory_space<vmem>>, %arg5: memref<576x64xbf16, #tpu.memory_space<vmem>>, %arg6: memref<1x64xf32, #tpu.memory_space<vmem>>, %arg7: memref<1024x128xbf16, #tpu.memory_space<vmem>>, %arg8: memref<1x128xf32, #tpu.memory_space<vmem>>, %arg9: memref<128x128xbf16, #tpu.memory_space<vmem>>, %arg10: memref<1x128xf32, #tpu.memory_space<vmem>>, %arg11: memref<2x128xf32, #tpu.memory_space<vmem>>, %arg12: memref<98x1024xbf16, #tpu.memory_space<vmem>>, %arg13: memref<98x128xbf16, #tpu.memory_space<vmem>>, %arg14: memref<72x512xbf16, #tpu.memory_space<vmem>>, %arg15: memref<72x64xbf16, #tpu.memory_space<vmem>>, %arg16: memref<32x576xbf16, #tpu.memory_space<vmem>>, %arg17: memref<32x64xbf16, #tpu.memory_space<vmem>>, %arg18: memref<2x1024xbf16, #tpu.memory_space<vmem>>) attributes {dimension_semantics = [], scalar_prefetch = 0 : i64, scratch_operands = 7 : i64, tpu.core_type = #tpu.core_type<tc>} {
    %c0 = arith.constant 0 : index
    %c0_0 = arith.constant 0 : index
    %0 = vector.load %arg0[%c0, %c0_0] : memref<128x256xbf16, #tpu.memory_space<vmem>>, vector<7x256xbf16>
    %c0_1 = arith.constant 0 : index
    %c0_2 = arith.constant 0 : index
    %1 = vector.load %arg12[%c0_1, %c0_2] : memref<98x1024xbf16, #tpu.memory_space<vmem>>, vector<7x256xbf16>
    tpu.vector_store %arg12[%c0_1, %c0_2], %0 {strides = array<i32>} : memref<98x1024xbf16, #tpu.memory_space<vmem>>, vector<7x256xbf16>,
    %c1 = arith.constant 1 : index
    %c0_3 = arith.constant 0 : index
    %2 = vector.load %arg0[%c1, %c0_3] : memref<128x256xbf16, #tpu.memory_space<vmem>>, vector<7x256xbf16>
    %c0_4 = arith.constant 0 : index
    %c256 = arith.constant 256 : index
    %3 = vector.load %arg12[%c0_4, %c256] : memref<98x1024xbf16, #tpu.memory_space<vmem>>, vector<7x256xbf16>
    tpu.vector_store %arg12[%c0_4, %c256], %2 {strides = array<i32>} : memref<98x1024xbf16, #tpu.memory_space<vmem>>, vector<7x256xbf16>,
    %c8 = arith.constant 8 : index
    %c0_5 = arith.constant 0 : index
    %4 = vector.load %arg0[%c8, %c0_5] : memref<128x256xbf16, #tpu.memory_space<vmem>>, vector<7x256xbf16>
    %c0_6 = arith.constant 0 : index
    %c512 = arith.constant 512 : index
    %5 = vector.load %arg12[%c0_6, %c512] : memref<98x1024xbf16, #tpu.memory_space<vmem>>, vector<7x256xbf16>
    tpu.vector_store %arg12[%c0_6, %c512], %4 {strides = array<i32>} : memref<98x1024xbf16, #tpu.memory_space<vmem>>, vector<7x256xbf16>,
    %c9 = arith.constant 9 : index
    %c0_7 = arith.constant 0 : index
    %6 = vector.load %arg0[%c9, %c0_7] : memref<128x256xbf16, #tpu.memory_space<vmem>>, vector<7x256xbf16>
    %c0_8 = arith.constant 0 : index
    %c768 = arith.constant 768 : index
    %7 = vector.load %arg12[%c0_8, %c768] : memref<98x1024xbf16, #tpu.memory_space<vmem>>, vector<7x256xbf16>
    tpu.vector_store %arg12[%c0_8, %c768], %6 {strides = array<i32>} : memref<98x1024xbf16, #tpu.memory_space<vmem>>, vector<7x256xbf16>,
    %c8_9 = arith.constant 8 : index
    %c0_10 = arith.constant 0 : index
    %8 = vector.load %arg0[%c8_9, %c0_10] : memref<128x256xbf16, #tpu.memory_space<vmem>>, vector<7x256xbf16>
    %c7 = arith.constant 7 : index
    %c0_11 = arith.constant 0 : index
    %9 = vector.load %arg12[%c7, %c0_11] : memref<98x1024xbf16, #tpu.memory_space<vmem>>, vector<7x256xbf16>
    tpu.vector_store %arg12[%c7, %c0_11], %8 {strides = array<i32>} : memref<98x1024xbf16, #tpu.memory_space<vmem>>, vector<7x256xbf16>,
    %c9_12 = arith.constant 9 : index
    %c0_13 = arith.constant 0 : index
    %10 = vector.load %arg0[%c9_12, %c0_13] : memref<128x256xbf16, #tpu.memory_space<vmem>>, vector<7x256xbf16>
    %c7_14 = arith.constant 7 : index
    %c256_15 = arith.constant 256 : index
    %11 = vector.load %arg12[%c7_14, %c256_15] : memref<98x1024xbf16, #tpu.memory_space<vmem>>, vector<7x256xbf16>
    tpu.vector_store %arg12[%c7_14, %c256_15], %10 {strides = array<i32>} : memref<98x1024xbf16, #tpu.memory_space<vmem>>, vector<7x256xbf16>,
    %c16 = arith.constant 16 : index
    %c0_16 = arith.constant 0 : index
    %12 = vector.load %arg0[%c16, %c0_16] : memref<128x256xbf16, #tpu.memory_space<vmem>>, vector<7x256xbf16>
    %c7_17 = arith.constant 7 : index
    %c512_18 = arith.constant 512 : index
    %13 = vector.load %arg12[%c7_17, %c512_18] : memref<98x1024xbf16, #tpu.memory_space<vmem>>, vector<7x256xbf16>
    tpu.vector_store %arg12[%c7_17, %c512_18], %12 {strides = array<i32>} : memref<98x1024xbf16, #tpu.memory_space<vmem>>, vector<7x256xbf16>,
    %c17 = arith.constant 17 : index
    %c0_19 = arith.constant 0 : index
    %14 = vector.load %arg0[%c17, %c0_19] : memref<128x256xbf16, #tpu.memory_space<vmem>>, vector<7x256xbf16>
    %c7_20 = arith.constant 7 : index
    %c768_21 = arith.constant 768 : index
    %15 = vector.load %arg12[%c7_20, %c768_21] : memref<98x1024xbf16, #tpu.memory_space<vmem>>, vector<7x256xbf16>
    tpu.vector_store %arg12[%c7_20, %c768_21], %14 {strides = array<i32>} : memref<98x1024xbf16, #tpu.memory_space<vmem>>, vector<7x256xbf16>,
    %c16_22 = arith.constant 16 : index
    %c0_23 = arith.constant 0 : index
    %16 = vector.load %arg0[%c16_22, %c0_23] : memref<128x256xbf16, #tpu.memory_space<vmem>>, vector<7x256xbf16>
    %c14 = arith.constant 14 : index
    %c0_24 = arith.constant 0 : index
    %17 = vector.load %arg12[%c14, %c0_24] : memref<98x1024xbf16, #tpu.memory_space<vmem>>, vector<7x256xbf16>
    tpu.vector_store %arg12[%c14, %c0_24], %16 {strides = array<i32>} : memref<98x1024xbf16, #tpu.memory_space<vmem>>, vector<7x256xbf16>,
    %c17_25 = arith.constant 17 : index
    %c0_26 = arith.constant 0 : index
    %18 = vector.load %arg0[%c17_25, %c0_26] : memref<128x256xbf16, #tpu.memory_space<vmem>>, vector<7x256xbf16>
    %c14_27 = arith.constant 14 : index
    %c256_28 = arith.constant 256 : index
    %19 = vector.load %arg12[%c14_27, %c256_28] : memref<98x1024xbf16, #tpu.memory_space<vmem>>, vector<7x256xbf16>
    tpu.vector_store %arg12[%c14_27, %c256_28], %18 {strides = array<i32>} : memref<98x1024xbf16, #tpu.memory_space<vmem>>, vector<7x256xbf16>,
    %c24 = arith.constant 24 : index
    %c0_29 = arith.constant 0 : index
    %20 = vector.load %arg0[%c24, %c0_29] : memref<128x256xbf16, #tpu.memory_space<vmem>>, vector<7x256xbf16>
    %c14_30 = arith.constant 14 : index
    %c512_31 = arith.constant 512 : index
    %21 = vector.load %arg12[%c14_30, %c512_31] : memref<98x1024xbf16, #tpu.memory_space<vmem>>, vector<7x256xbf16>
    tpu.vector_store %arg12[%c14_30, %c512_31], %20 {strides = array<i32>} : memref<98x1024xbf16, #tpu.memory_space<vmem>>, vector<7x256xbf16>,
    %c25 = arith.constant 25 : index
    %c0_32 = arith.constant 0 : index
    %22 = vector.load %arg0[%c25, %c0_32] : memref<128x256xbf16, #tpu.memory_space<vmem>>, vector<7x256xbf16>
    %c14_33 = arith.constant 14 : index
    %c768_34 = arith.constant 768 : index
    %23 = vector.load %arg12[%c14_33, %c768_34] : memref<98x1024xbf16, #tpu.memory_space<vmem>>, vector<7x256xbf16>
    tpu.vector_store %arg12[%c14_33, %c768_34], %22 {strides = array<i32>} : memref<98x1024xbf16, #tpu.memory_space<vmem>>, vector<7x256xbf16>,
    %c24_35 = arith.constant 24 : index
    %c0_36 = arith.constant 0 : index
    %24 = vector.load %arg0[%c24_35, %c0_36] : memref<128x256xbf16, #tpu.memory_space<vmem>>, vector<7x256xbf16>
    %c21 = arith.constant 21 : index
    %c0_37 = arith.constant 0 : index
    %25 = vector.load %arg12[%c21, %c0_37] : memref<98x1024xbf16, #tpu.memory_space<vmem>>, vector<7x256xbf16>
    tpu.vector_store %arg12[%c21, %c0_37], %24 {strides = array<i32>} : memref<98x1024xbf16, #tpu.memory_space<vmem>>, vector<7x256xbf16>,
    %c25_38 = arith.constant 25 : index
    %c0_39 = arith.constant 0 : index
    %26 = vector.load %arg0[%c25_38, %c0_39] : memref<128x256xbf16, #tpu.memory_space<vmem>>, vector<7x256xbf16>
    %c21_40 = arith.constant 21 : index
    %c256_41 = arith.constant 256 : index
    %27 = vector.load %arg12[%c21_40, %c256_41] : memref<98x1024xbf16, #tpu.memory_space<vmem>>, vector<7x256xbf16>
    tpu.vector_store %arg12[%c21_40, %c256_41], %26 {strides = array<i32>} : memref<98x1024xbf16, #tpu.memory_space<vmem>>, vector<7x256xbf16>,
    %c32 = arith.constant 32 : index
    %c0_42 = arith.constant 0 : index
    %28 = vector.load %arg0[%c32, %c0_42] : memref<128x256xbf16, #tpu.memory_space<vmem>>, vector<7x256xbf16>
    %c21_43 = arith.constant 21 : index
    %c512_44 = arith.constant 512 : index
    %29 = vector.load %arg12[%c21_43, %c512_44] : memref<98x1024xbf16, #tpu.memory_space<vmem>>, vector<7x256xbf16>
    tpu.vector_store %arg12[%c21_43, %c512_44], %28 {strides = array<i32>} : memref<98x1024xbf16, #tpu.memory_space<vmem>>, vector<7x256xbf16>,
    %c33 = arith.constant 33 : index
    %c0_45 = arith.constant 0 : index
    %30 = vector.load %arg0[%c33, %c0_45] : memref<128x256xbf16, #tpu.memory_space<vmem>>, vector<7x256xbf16>
    %c21_46 = arith.constant 21 : index
    %c768_47 = arith.constant 768 : index
    %31 = vector.load %arg12[%c21_46, %c768_47] : memref<98x1024xbf16, #tpu.memory_space<vmem>>, vector<7x256xbf16>
    tpu.vector_store %arg12[%c21_46, %c768_47], %30 {strides = array<i32>} : memref<98x1024xbf16, #tpu.memory_space<vmem>>, vector<7x256xbf16>,
    %c32_48 = arith.constant 32 : index
    %c0_49 = arith.constant 0 : index
    %32 = vector.load %arg0[%c32_48, %c0_49] : memref<128x256xbf16, #tpu.memory_space<vmem>>, vector<7x256xbf16>
    %c28 = arith.constant 28 : index
    %c0_50 = arith.constant 0 : index
    %33 = vector.load %arg12[%c28, %c0_50] : memref<98x1024xbf16, #tpu.memory_space<vmem>>, vector<7x256xbf16>
    tpu.vector_store %arg12[%c28, %c0_50], %32 {strides = array<i32>} : memref<98x1024xbf16, #tpu.memory_space<vmem>>, vector<7x256xbf16>,
    %c33_51 = arith.constant 33 : index
    %c0_52 = arith.constant 0 : index
    %34 = vector.load %arg0[%c33_51, %c0_52] : memref<128x256xbf16, #tpu.memory_space<vmem>>, vector<7x256xbf16>
    %c28_53 = arith.constant 28 : index
    %c256_54 = arith.constant 256 : index
    %35 = vector.load %arg12[%c28_53, %c256_54] : memref<98x1024xbf16, #tpu.memory_space<vmem>>, vector<7x256xbf16>
    tpu.vector_store %arg12[%c28_53, %c256_54], %34 {strides = array<i32>} : memref<98x1024xbf16, #tpu.memory_space<vmem>>, vector<7x256xbf16>,
    %c40 = arith.constant 40 : index
    %c0_55 = arith.constant 0 : index
    %36 = vector.load %arg0[%c40, %c0_55] : memref<128x256xbf16, #tpu.memory_space<vmem>>, vector<7x256xbf16>
    %c28_56 = arith.constant 28 : index
    %c512_57 = arith.constant 512 : index
    %37 = vector.load %arg12[%c28_56, %c512_57] : memref<98x1024xbf16, #tpu.memory_space<vmem>>, vector<7x256xbf16>
    tpu.vector_store %arg12[%c28_56, %c512_57], %36 {strides = array<i32>} : memref<98x1024xbf16, #tpu.memory_space<vmem>>, vector<7x256xbf16>,
    %c41 = arith.constant 41 : index
    %c0_58 = arith.constant 0 : index
    %38 = vector.load %arg0[%c41, %c0_58] : memref<128x256xbf16, #tpu.memory_space<vmem>>, vector<7x256xbf16>
    %c28_59 = arith.constant 28 : index
    %c768_60 = arith.constant 768 : index
    %39 = vector.load %arg12[%c28_59, %c768_60] : memref<98x1024xbf16, #tpu.memory_space<vmem>>, vector<7x256xbf16>
    tpu.vector_store %arg12[%c28_59, %c768_60], %38 {strides = array<i32>} : memref<98x1024xbf16, #tpu.memory_space<vmem>>, vector<7x256xbf16>,
    %c40_61 = arith.constant 40 : index
    %c0_62 = arith.constant 0 : index
    %40 = vector.load %arg0[%c40_61, %c0_62] : memref<128x256xbf16, #tpu.memory_space<vmem>>, vector<7x256xbf16>
    %c35 = arith.constant 35 : index
    %c0_63 = arith.constant 0 : index
    %41 = vector.load %arg12[%c35, %c0_63] : memref<98x1024xbf16, #tpu.memory_space<vmem>>, vector<7x256xbf16>
    tpu.vector_store %arg12[%c35, %c0_63], %40 {strides = array<i32>} : memref<98x1024xbf16, #tpu.memory_space<vmem>>, vector<7x256xbf16>,
    %c41_64 = arith.constant 41 : index
    %c0_65 = arith.constant 0 : index
    %42 = vector.load %arg0[%c41_64, %c0_65] : memref<128x256xbf16, #tpu.memory_space<vmem>>, vector<7x256xbf16>
    %c35_66 = arith.constant 35 : index
    %c256_67 = arith.constant 256 : index
    %43 = vector.load %arg12[%c35_66, %c256_67] : memref<98x1024xbf16, #tpu.memory_space<vmem>>, vector<7x256xbf16>
    tpu.vector_store %arg12[%c35_66, %c256_67], %42 {strides = array<i32>} : memref<98x1024xbf16, #tpu.memory_space<vmem>>, vector<7x256xbf16>,
    %c48 = arith.constant 48 : index
    %c0_68 = arith.constant 0 : index
    %44 = vector.load %arg0[%c48, %c0_68] : memref<128x256xbf16, #tpu.memory_space<vmem>>, vector<7x256xbf16>
    %c35_69 = arith.constant 35 : index
    %c512_70 = arith.constant 512 : index
    %45 = vector.load %arg12[%c35_69, %c512_70] : memref<98x1024xbf16, #tpu.memory_space<vmem>>, vector<7x256xbf16>
    tpu.vector_store %arg12[%c35_69, %c512_70], %44 {strides = array<i32>} : memref<98x1024xbf16, #tpu.memory_space<vmem>>, vector<7x256xbf16>,
    %c49 = arith.constant 49 : index
    %c0_71 = arith.constant 0 : index
    %46 = vector.load %arg0[%c49, %c0_71] : memref<128x256xbf16, #tpu.memory_space<vmem>>, vector<7x256xbf16>
    %c35_72 = arith.constant 35 : index
    %c768_73 = arith.constant 768 : index
    %47 = vector.load %arg12[%c35_72, %c768_73] : memref<98x1024xbf16, #tpu.memory_space<vmem>>, vector<7x256xbf16>
    tpu.vector_store %arg12[%c35_72, %c768_73], %46 {strides = array<i32>} : memref<98x1024xbf16, #tpu.memory_space<vmem>>, vector<7x256xbf16>,
    %c48_74 = arith.constant 48 : index
    %c0_75 = arith.constant 0 : index
    %48 = vector.load %arg0[%c48_74, %c0_75] : memref<128x256xbf16, #tpu.memory_space<vmem>>, vector<7x256xbf16>
    %c42 = arith.constant 42 : index
    %c0_76 = arith.constant 0 : index
    %49 = vector.load %arg12[%c42, %c0_76] : memref<98x1024xbf16, #tpu.memory_space<vmem>>, vector<7x256xbf16>
    tpu.vector_store %arg12[%c42, %c0_76], %48 {strides = array<i32>} : memref<98x1024xbf16, #tpu.memory_space<vmem>>, vector<7x256xbf16>,
    %c49_77 = arith.constant 49 : index
    %c0_78 = arith.constant 0 : index
    %50 = vector.load %arg0[%c49_77, %c0_78] : memref<128x256xbf16, #tpu.memory_space<vmem>>, vector<7x256xbf16>
    %c42_79 = arith.constant 42 : index
    %c256_80 = arith.constant 256 : index
    %51 = vector.load %arg12[%c42_79, %c256_80] : memref<98x1024xbf16, #tpu.memory_space<vmem>>, vector<7x256xbf16>
    tpu.vector_store %arg12[%c42_79, %c256_80], %50 {strides = array<i32>} : memref<98x1024xbf16, #tpu.memory_space<vmem>>, vector<7x256xbf16>,
    %c56 = arith.constant 56 : index
    %c0_81 = arith.constant 0 : index
    %52 = vector.load %arg0[%c56, %c0_81] : memref<128x256xbf16, #tpu.memory_space<vmem>>, vector<7x256xbf16>
    %c42_82 = arith.constant 42 : index
    %c512_83 = arith.constant 512 : index
    %53 = vector.load %arg12[%c42_82, %c512_83] : memref<98x1024xbf16, #tpu.memory_space<vmem>>, vector<7x256xbf16>
    tpu.vector_store %arg12[%c42_82, %c512_83], %52 {strides = array<i32>} : memref<98x1024xbf16, #tpu.memory_space<vmem>>, vector<7x256xbf16>,
    %c57 = arith.constant 57 : index
    %c0_84 = arith.constant 0 : index
    %54 = vector.load %arg0[%c57, %c0_84] : memref<128x256xbf16, #tpu.memory_space<vmem>>, vector<7x256xbf16>
    %c42_85 = arith.constant 42 : index
    %c768_86 = arith.constant 768 : index
    %55 = vector.load %arg12[%c42_85, %c768_86] : memref<98x1024xbf16, #tpu.memory_space<vmem>>, vector<7x256xbf16>
    tpu.vector_store %arg12[%c42_85, %c768_86], %54 {strides = array<i32>} : memref<98x1024xbf16, #tpu.memory_space<vmem>>, vector<7x256xbf16>,
    %c64 = arith.constant 64 : index
    %c0_87 = arith.constant 0 : index
    %56 = vector.load %arg0[%c64, %c0_87] : memref<128x256xbf16, #tpu.memory_space<vmem>>, vector<7x256xbf16>
    %c49_88 = arith.constant 49 : index
    %c0_89 = arith.constant 0 : index
    %57 = vector.load %arg12[%c49_88, %c0_89] : memref<98x1024xbf16, #tpu.memory_space<vmem>>, vector<7x256xbf16>
    tpu.vector_store %arg12[%c49_88, %c0_89], %56 {strides = array<i32>} : memref<98x1024xbf16, #tpu.memory_space<vmem>>, vector<7x256xbf16>,
    %c65 = arith.constant 65 : index
    %c0_90 = arith.constant 0 : index
    %58 = vector.load %arg0[%c65, %c0_90] : memref<128x256xbf16, #tpu.memory_space<vmem>>, vector<7x256xbf16>
    %c49_91 = arith.constant 49 : index
    %c256_92 = arith.constant 256 : index
    %59 = vector.load %arg12[%c49_91, %c256_92] : memref<98x1024xbf16, #tpu.memory_space<vmem>>, vector<7x256xbf16>
    tpu.vector_store %arg12[%c49_91, %c256_92], %58 {strides = array<i32>} : memref<98x1024xbf16, #tpu.memory_space<vmem>>, vector<7x256xbf16>,
    %c72 = arith.constant 72 : index
    %c0_93 = arith.constant 0 : index
    %60 = vector.load %arg0[%c72, %c0_93] : memref<128x256xbf16, #tpu.memory_space<vmem>>, vector<7x256xbf16>
    %c49_94 = arith.constant 49 : index
    %c512_95 = arith.constant 512 : index
    %61 = vector.load %arg12[%c49_94, %c512_95] : memref<98x1024xbf16, #tpu.memory_space<vmem>>, vector<7x256xbf16>
    tpu.vector_store %arg12[%c49_94, %c512_95], %60 {strides = array<i32>} : memref<98x1024xbf16, #tpu.memory_space<vmem>>, vector<7x256xbf16>,
    %c73 = arith.constant 73 : index
    %c0_96 = arith.constant 0 : index
    %62 = vector.load %arg0[%c73, %c0_96] : memref<128x256xbf16, #tpu.memory_space<vmem>>, vector<7x256xbf16>
    %c49_97 = arith.constant 49 : index
    %c768_98 = arith.constant 768 : index
    %63 = vector.load %arg12[%c49_97, %c768_98] : memref<98x1024xbf16, #tpu.memory_space<vmem>>, vector<7x256xbf16>
    tpu.vector_store %arg12[%c49_97, %c768_98], %62 {strides = array<i32>} : memref<98x1024xbf16, #tpu.memory_space<vmem>>, vector<7x256xbf16>,
    %c72_99 = arith.constant 72 : index
    %c0_100 = arith.constant 0 : index
    %64 = vector.load %arg0[%c72_99, %c0_100] : memref<128x256xbf16, #tpu.memory_space<vmem>>, vector<7x256xbf16>
    %c56_101 = arith.constant 56 : index
    %c0_102 = arith.constant 0 : index
    %65 = vector.load %arg12[%c56_101, %c0_102] : memref<98x1024xbf16, #tpu.memory_space<vmem>>, vector<7x256xbf16>
    tpu.vector_store %arg12[%c56_101, %c0_102], %64 {strides = array<i32>} : memref<98x1024xbf16, #tpu.memory_space<vmem>>, vector<7x256xbf16>,
    %c73_103 = arith.constant 73 : index
    %c0_104 = arith.constant 0 : index
    %66 = vector.load %arg0[%c73_103, %c0_104] : memref<128x256xbf16, #tpu.memory_space<vmem>>, vector<7x256xbf16>
    %c56_105 = arith.constant 56 : index
    %c256_106 = arith.constant 256 : index
    %67 = vector.load %arg12[%c56_105, %c256_106] : memref<98x1024xbf16, #tpu.memory_space<vmem>>, vector<7x256xbf16>
    tpu.vector_store %arg12[%c56_105, %c256_106], %66 {strides = array<i32>} : memref<98x1024xbf16, #tpu.memory_space<vmem>>, vector<7x256xbf16>,
    %c80 = arith.constant 80 : index
    %c0_107 = arith.constant 0 : index
    %68 = vector.load %arg0[%c80, %c0_107] : memref<128x256xbf16, #tpu.memory_space<vmem>>, vector<7x256xbf16>
    %c56_108 = arith.constant 56 : index
    %c512_109 = arith.constant 512 : index
    %69 = vector.load %arg12[%c56_108, %c512_109] : memref<98x1024xbf16, #tpu.memory_space<vmem>>, vector<7x256xbf16>
    tpu.vector_store %arg12[%c56_108, %c512_109], %68 {strides = array<i32>} : memref<98x1024xbf16, #tpu.memory_space<vmem>>, vector<7x256xbf16>,
    %c81 = arith.constant 81 : index
    %c0_110 = arith.constant 0 : index
    %70 = vector.load %arg0[%c81, %c0_110] : memref<128x256xbf16, #tpu.memory_space<vmem>>, vector<7x256xbf16>
    %c56_111 = arith.constant 56 : index
    %c768_112 = arith.constant 768 : index
    %71 = vector.load %arg12[%c56_111, %c768_112] : memref<98x1024xbf16, #tpu.memory_space<vmem>>, vector<7x256xbf16>
    tpu.vector_store %arg12[%c56_111, %c768_112], %70 {strides = array<i32>} : memref<98x1024xbf16, #tpu.memory_space<vmem>>, vector<7x256xbf16>,
    %c80_113 = arith.constant 80 : index
    %c0_114 = arith.constant 0 : index
    %72 = vector.load %arg0[%c80_113, %c0_114] : memref<128x256xbf16, #tpu.memory_space<vmem>>, vector<7x256xbf16>
    %c63 = arith.constant 63 : index
    %c0_115 = arith.constant 0 : index
    %73 = vector.load %arg12[%c63, %c0_115] : memref<98x1024xbf16, #tpu.memory_space<vmem>>, vector<7x256xbf16>
    tpu.vector_store %arg12[%c63, %c0_115], %72 {strides = array<i32>} : memref<98x1024xbf16, #tpu.memory_space<vmem>>, vector<7x256xbf16>,
    %c81_116 = arith.constant 81 : index
    %c0_117 = arith.constant 0 : index
    %74 = vector.load %arg0[%c81_116, %c0_117] : memref<128x256xbf16, #tpu.memory_space<vmem>>, vector<7x256xbf16>
    %c63_118 = arith.constant 63 : index
    %c256_119 = arith.constant 256 : index
    %75 = vector.load %arg12[%c63_118, %c256_119] : memref<98x1024xbf16, #tpu.memory_space<vmem>>, vector<7x256xbf16>
    tpu.vector_store %arg12[%c63_118, %c256_119], %74 {strides = array<i32>} : memref<98x1024xbf16, #tpu.memory_space<vmem>>, vector<7x256xbf16>,
    %c88 = arith.constant 88 : index
    %c0_120 = arith.constant 0 : index
    %76 = vector.load %arg0[%c88, %c0_120] : memref<128x256xbf16, #tpu.memory_space<vmem>>, vector<7x256xbf16>
    %c63_121 = arith.constant 63 : index
    %c512_122 = arith.constant 512 : index
    %77 = vector.load %arg12[%c63_121, %c512_122] : memref<98x1024xbf16, #tpu.memory_space<vmem>>, vector<7x256xbf16>
    tpu.vector_store %arg12[%c63_121, %c512_122], %76 {strides = array<i32>} : memref<98x1024xbf16, #tpu.memory_space<vmem>>, vector<7x256xbf16>,
    %c89 = arith.constant 89 : index
    %c0_123 = arith.constant 0 : index
    %78 = vector.load %arg0[%c89, %c0_123] : memref<128x256xbf16, #tpu.memory_space<vmem>>, vector<7x256xbf16>
    %c63_124 = arith.constant 63 : index
    %c768_125 = arith.constant 768 : index
    %79 = vector.load %arg12[%c63_124, %c768_125] : memref<98x1024xbf16, #tpu.memory_space<vmem>>, vector<7x256xbf16>
    tpu.vector_store %arg12[%c63_124, %c768_125], %78 {strides = array<i32>} : memref<98x1024xbf16, #tpu.memory_space<vmem>>, vector<7x256xbf16>,
    %c88_126 = arith.constant 88 : index
    %c0_127 = arith.constant 0 : index
    %80 = vector.load %arg0[%c88_126, %c0_127] : memref<128x256xbf16, #tpu.memory_space<vmem>>, vector<7x256xbf16>
    %c70 = arith.constant 70 : index
    %c0_128 = arith.constant 0 : index
    %81 = vector.load %arg12[%c70, %c0_128] : memref<98x1024xbf16, #tpu.memory_space<vmem>>, vector<7x256xbf16>
    tpu.vector_store %arg12[%c70, %c0_128], %80 {strides = array<i32>} : memref<98x1024xbf16, #tpu.memory_space<vmem>>, vector<7x256xbf16>,
    %c89_129 = arith.constant 89 : index
    %c0_130 = arith.constant 0 : index
    %82 = vector.load %arg0[%c89_129, %c0_130] : memref<128x256xbf16, #tpu.memory_space<vmem>>, vector<7x256xbf16>
    %c70_131 = arith.constant 70 : index
    %c256_132 = arith.constant 256 : index
    %83 = vector.load %arg12[%c70_131, %c256_132] : memref<98x1024xbf16, #tpu.memory_space<vmem>>, vector<7x256xbf16>
    tpu.vector_store %arg12[%c70_131, %c256_132], %82 {strides = array<i32>} : memref<98x1024xbf16, #tpu.memory_space<vmem>>, vector<7x256xbf16>,
    %c96 = arith.constant 96 : index
    %c0_133 = arith.constant 0 : index
    %84 = vector.load %arg0[%c96, %c0_133] : memref<128x256xbf16, #tpu.memory_space<vmem>>, vector<7x256xbf16>
    %c70_134 = arith.constant 70 : index
    %c512_135 = arith.constant 512 : index
    %85 = vector.load %arg12[%c70_134, %c512_135] : memref<98x1024xbf16, #tpu.memory_space<vmem>>, vector<7x256xbf16>
    tpu.vector_store %arg12[%c70_134, %c512_135], %84 {strides = array<i32>} : memref<98x1024xbf16, #tpu.memory_space<vmem>>, vector<7x256xbf16>,
    %c97 = arith.constant 97 : index
    %c0_136 = arith.constant 0 : index
    %86 = vector.load %arg0[%c97, %c0_136] : memref<128x256xbf16, #tpu.memory_space<vmem>>, vector<7x256xbf16>
    %c70_137 = arith.constant 70 : index
    %c768_138 = arith.constant 768 : index
    %87 = vector.load %arg12[%c70_137, %c768_138] : memref<98x1024xbf16, #tpu.memory_space<vmem>>, vector<7x256xbf16>
    tpu.vector_store %arg12[%c70_137, %c768_138], %86 {strides = array<i32>} : memref<98x1024xbf16, #tpu.memory_space<vmem>>, vector<7x256xbf16>,
    %c96_139 = arith.constant 96 : index
    %c0_140 = arith.constant 0 : index
    %88 = vector.load %arg0[%c96_139, %c0_140] : memref<128x256xbf16, #tpu.memory_space<vmem>>, vector<7x256xbf16>
    %c77 = arith.constant 77 : index
    %c0_141 = arith.constant 0 : index
    %89 = vector.load %arg12[%c77, %c0_141] : memref<98x1024xbf16, #tpu.memory_space<vmem>>, vector<7x256xbf16>
    tpu.vector_store %arg12[%c77, %c0_141], %88 {strides = array<i32>} : memref<98x1024xbf16, #tpu.memory_space<vmem>>, vector<7x256xbf16>,
    %c97_142 = arith.constant 97 : index
    %c0_143 = arith.constant 0 : index
    %90 = vector.load %arg0[%c97_142, %c0_143] : memref<128x256xbf16, #tpu.memory_space<vmem>>, vector<7x256xbf16>
    %c77_144 = arith.constant 77 : index
    %c256_145 = arith.constant 256 : index
    %91 = vector.load %arg12[%c77_144, %c256_145] : memref<98x1024xbf16, #tpu.memory_space<vmem>>, vector<7x256xbf16>
    tpu.vector_store %arg12[%c77_144, %c256_145], %90 {strides = array<i32>} : memref<98x1024xbf16, #tpu.memory_space<vmem>>, vector<7x256xbf16>,
    %c104 = arith.constant 104 : index
    %c0_146 = arith.constant 0 : index
    %92 = vector.load %arg0[%c104, %c0_146] : memref<128x256xbf16, #tpu.memory_space<vmem>>, vector<7x256xbf16>
    %c77_147 = arith.constant 77 : index
    %c512_148 = arith.constant 512 : index
    %93 = vector.load %arg12[%c77_147, %c512_148] : memref<98x1024xbf16, #tpu.memory_space<vmem>>, vector<7x256xbf16>
    tpu.vector_store %arg12[%c77_147, %c512_148], %92 {strides = array<i32>} : memref<98x1024xbf16, #tpu.memory_space<vmem>>, vector<7x256xbf16>,
    %c105 = arith.constant 105 : index
    %c0_149 = arith.constant 0 : index
    %94 = vector.load %arg0[%c105, %c0_149] : memref<128x256xbf16, #tpu.memory_space<vmem>>, vector<7x256xbf16>
    %c77_150 = arith.constant 77 : index
    %c768_151 = arith.constant 768 : index
    %95 = vector.load %arg12[%c77_150, %c768_151] : memref<98x1024xbf16, #tpu.memory_space<vmem>>, vector<7x256xbf16>
    tpu.vector_store %arg12[%c77_150, %c768_151], %94 {strides = array<i32>} : memref<98x1024xbf16, #tpu.memory_space<vmem>>, vector<7x256xbf16>,
    %c104_152 = arith.constant 104 : index
    %c0_153 = arith.constant 0 : index
    %96 = vector.load %arg0[%c104_152, %c0_153] : memref<128x256xbf16, #tpu.memory_space<vmem>>, vector<7x256xbf16>
    %c84 = arith.constant 84 : index
    %c0_154 = arith.constant 0 : index
    %97 = vector.load %arg12[%c84, %c0_154] : memref<98x1024xbf16, #tpu.memory_space<vmem>>, vector<7x256xbf16>
    tpu.vector_store %arg12[%c84, %c0_154], %96 {strides = array<i32>} : memref<98x1024xbf16, #tpu.memory_space<vmem>>, vector<7x256xbf16>,
    %c105_155 = arith.constant 105 : index
    %c0_156 = arith.constant 0 : index
    %98 = vector.load %arg0[%c105_155, %c0_156] : memref<128x256xbf16, #tpu.memory_space<vmem>>, vector<7x256xbf16>
    %c84_157 = arith.constant 84 : index
    %c256_158 = arith.constant 256 : index
    %99 = vector.load %arg12[%c84_157, %c256_158] : memref<98x1024xbf16, #tpu.memory_space<vmem>>, vector<7x256xbf16>
    tpu.vector_store %arg12[%c84_157, %c256_158], %98 {strides = array<i32>} : memref<98x1024xbf16, #tpu.memory_space<vmem>>, vector<7x256xbf16>,
    %c112 = arith.constant 112 : index
    %c0_159 = arith.constant 0 : index
    %100 = vector.load %arg0[%c112, %c0_159] : memref<128x256xbf16, #tpu.memory_space<vmem>>, vector<7x256xbf16>
    %c84_160 = arith.constant 84 : index
    %c512_161 = arith.constant 512 : index
    %101 = vector.load %arg12[%c84_160, %c512_161] : memref<98x1024xbf16, #tpu.memory_space<vmem>>, vector<7x256xbf16>
    tpu.vector_store %arg12[%c84_160, %c512_161], %100 {strides = array<i32>} : memref<98x1024xbf16, #tpu.memory_space<vmem>>, vector<7x256xbf16>,
    %c113 = arith.constant 113 : index
    %c0_162 = arith.constant 0 : index
    %102 = vector.load %arg0[%c113, %c0_162] : memref<128x256xbf16, #tpu.memory_space<vmem>>, vector<7x256xbf16>
    %c84_163 = arith.constant 84 : index
    %c768_164 = arith.constant 768 : index
    %103 = vector.load %arg12[%c84_163, %c768_164] : memref<98x1024xbf16, #tpu.memory_space<vmem>>, vector<7x256xbf16>
    tpu.vector_store %arg12[%c84_163, %c768_164], %102 {strides = array<i32>} : memref<98x1024xbf16, #tpu.memory_space<vmem>>, vector<7x256xbf16>,
    %c112_165 = arith.constant 112 : index
    %c0_166 = arith.constant 0 : index
    %104 = vector.load %arg0[%c112_165, %c0_166] : memref<128x256xbf16, #tpu.memory_space<vmem>>, vector<7x256xbf16>
    %c91 = arith.constant 91 : index
    %c0_167 = arith.constant 0 : index
    %105 = vector.load %arg12[%c91, %c0_167] : memref<98x1024xbf16, #tpu.memory_space<vmem>>, vector<7x256xbf16>
    tpu.vector_store %arg12[%c91, %c0_167], %104 {strides = array<i32>} : memref<98x1024xbf16, #tpu.memory_space<vmem>>, vector<7x256xbf16>,
    %c113_168 = arith.constant 113 : index
    %c0_169 = arith.constant 0 : index
    %106 = vector.load %arg0[%c113_168, %c0_169] : memref<128x256xbf16, #tpu.memory_space<vmem>>, vector<7x256xbf16>
    %c91_170 = arith.constant 91 : index
    %c256_171 = arith.constant 256 : index
    %107 = vector.load %arg12[%c91_170, %c256_171] : memref<98x1024xbf16, #tpu.memory_space<vmem>>, vector<7x256xbf16>
    tpu.vector_store %arg12[%c91_170, %c256_171], %106 {strides = array<i32>} : memref<98x1024xbf16, #tpu.memory_space<vmem>>, vector<7x256xbf16>,
    %c120 = arith.constant 120 : index
    %c0_172 = arith.constant 0 : index
    %108 = vector.load %arg0[%c120, %c0_172] : memref<128x256xbf16, #tpu.memory_space<vmem>>, vector<7x256xbf16>
    %c91_173 = arith.constant 91 : index
    %c512_174 = arith.constant 512 : index
    %109 = vector.load %arg12[%c91_173, %c512_174] : memref<98x1024xbf16, #tpu.memory_space<vmem>>, vector<7x256xbf16>
    tpu.vector_store %arg12[%c91_173, %c512_174], %108 {strides = array<i32>} : memref<98x1024xbf16, #tpu.memory_space<vmem>>, vector<7x256xbf16>,
    %c121 = arith.constant 121 : index
    %c0_175 = arith.constant 0 : index
    %110 = vector.load %arg0[%c121, %c0_175] : memref<128x256xbf16, #tpu.memory_space<vmem>>, vector<7x256xbf16>
    %c91_176 = arith.constant 91 : index
    %c768_177 = arith.constant 768 : index
    %111 = vector.load %arg12[%c91_176, %c768_177] : memref<98x1024xbf16, #tpu.memory_space<vmem>>, vector<7x256xbf16>
    tpu.vector_store %arg12[%c91_176, %c768_177], %110 {strides = array<i32>} : memref<98x1024xbf16, #tpu.memory_space<vmem>>, vector<7x256xbf16>,
    %c0_178 = arith.constant 0 : index
    %c0_179 = arith.constant 0 : index
    %112 = vector.load %arg12[%c0_178, %c0_179] : memref<98x1024xbf16, #tpu.memory_space<vmem>>, vector<98x1024xbf16>
    %c0_180 = arith.constant 0 : index
    %c0_181 = arith.constant 0 : index
    %113 = vector.load %arg1[%c0_180, %c0_181] : memref<1024x128xbf16, #tpu.memory_space<vmem>>, vector<1024x128xbf16>
    %cst = arith.constant dense<0.000000e+00> : vector<98x128xf32>
    %114 = tpu.matmul %112, %113, %cst {dimension_numbers = #tpu.dot_dimension_numbers<[1], [0], [0], [1], [0, 0, 1, 1], [], []>} : vector<98x1024xbf16>, vector<1024x128xbf16>, vector<98x128xf32> -> vector<98x128xf32>
    %c0_182 = arith.constant 0 : index
    %c0_183 = arith.constant 0 : index
    %115 = vector.load %arg2[%c0_182, %c0_183] : memref<1x128xf32, #tpu.memory_space<vmem>>, vector<1x128xf32>
    %116 = vector.broadcast %115 : vector<1x128xf32> to vector<98x128xf32>
    %117 = arith.addf %114, %116 : vector<98x128xf32>
    %cst_184 = arith.constant 0.000000e+00 : f32
    %118 = vector.broadcast %cst_184 : f32 to vector<98x128xf32>
    %119 = arith.maximumf %117, %118 : vector<98x128xf32>
    %120 = arith.truncf %119 : vector<98x128xf32> to vector<98x128xbf16>
    %c0_185 = arith.constant 0 : index
    %c0_186 = arith.constant 0 : index
    %121 = vector.load %arg13[%c0_185, %c0_186] : memref<98x128xbf16, #tpu.memory_space<vmem>>, vector<98x128xbf16>
    tpu.vector_store %arg13[%c0_185, %c0_186], %120 {strides = array<i32>} : memref<98x128xbf16, #tpu.memory_space<vmem>>, vector<98x128xbf16>,
    %c0_187 = arith.constant 0 : index
    %c0_188 = arith.constant 0 : index
    %122 = vector.load %arg13[%c0_187, %c0_188] : memref<98x128xbf16, #tpu.memory_space<vmem>>, vector<6x128xbf16>
    %c0_189 = arith.constant 0 : index
    %c0_190 = arith.constant 0 : index
    %123 = vector.load %arg14[%c0_189, %c0_190] : memref<72x512xbf16, #tpu.memory_space<vmem>>, vector<6x128xbf16>
    tpu.vector_store %arg14[%c0_189, %c0_190], %122 {strides = array<i32>} : memref<72x512xbf16, #tpu.memory_space<vmem>>, vector<6x128xbf16>,
    %c1_191 = arith.constant 1 : index
    %c0_192 = arith.constant 0 : index
    %124 = vector.load %arg13[%c1_191, %c0_192] : memref<98x128xbf16, #tpu.memory_space<vmem>>, vector<6x128xbf16>
    %c0_193 = arith.constant 0 : index
    %c128 = arith.constant 128 : index
    %125 = vector.load %arg14[%c0_193, %c128] : memref<72x512xbf16, #tpu.memory_space<vmem>>, vector<6x128xbf16>
    tpu.vector_store %arg14[%c0_193, %c128], %124 {strides = array<i32>} : memref<72x512xbf16, #tpu.memory_space<vmem>>, vector<6x128xbf16>,
    %c7_194 = arith.constant 7 : index
    %c0_195 = arith.constant 0 : index
    %126 = vector.load %arg13[%c7_194, %c0_195] : memref<98x128xbf16, #tpu.memory_space<vmem>>, vector<6x128xbf16>
    %c0_196 = arith.constant 0 : index
    %c256_197 = arith.constant 256 : index
    %127 = vector.load %arg14[%c0_196, %c256_197] : memref<72x512xbf16, #tpu.memory_space<vmem>>, vector<6x128xbf16>
    tpu.vector_store %arg14[%c0_196, %c256_197], %126 {strides = array<i32>} : memref<72x512xbf16, #tpu.memory_space<vmem>>, vector<6x128xbf16>,
    %c8_198 = arith.constant 8 : index
    %c0_199 = arith.constant 0 : index
    %128 = vector.load %arg13[%c8_198, %c0_199] : memref<98x128xbf16, #tpu.memory_space<vmem>>, vector<6x128xbf16>
    %c0_200 = arith.constant 0 : index
    %c384 = arith.constant 384 : index
    %129 = vector.load %arg14[%c0_200, %c384] : memref<72x512xbf16, #tpu.memory_space<vmem>>, vector<6x128xbf16>
    tpu.vector_store %arg14[%c0_200, %c384], %128 {strides = array<i32>} : memref<72x512xbf16, #tpu.memory_space<vmem>>, vector<6x128xbf16>,
    %c7_201 = arith.constant 7 : index
    %c0_202 = arith.constant 0 : index
    %130 = vector.load %arg13[%c7_201, %c0_202] : memref<98x128xbf16, #tpu.memory_space<vmem>>, vector<6x128xbf16>
    %c6 = arith.constant 6 : index
    %c0_203 = arith.constant 0 : index
    %131 = vector.load %arg14[%c6, %c0_203] : memref<72x512xbf16, #tpu.memory_space<vmem>>, vector<6x128xbf16>
    tpu.vector_store %arg14[%c6, %c0_203], %130 {strides = array<i32>} : memref<72x512xbf16, #tpu.memory_space<vmem>>, vector<6x128xbf16>,
    %c8_204 = arith.constant 8 : index
    %c0_205 = arith.constant 0 : index
    %132 = vector.load %arg13[%c8_204, %c0_205] : memref<98x128xbf16, #tpu.memory_space<vmem>>, vector<6x128xbf16>
    %c6_206 = arith.constant 6 : index
    %c128_207 = arith.constant 128 : index
    %133 = vector.load %arg14[%c6_206, %c128_207] : memref<72x512xbf16, #tpu.memory_space<vmem>>, vector<6x128xbf16>
    tpu.vector_store %arg14[%c6_206, %c128_207], %132 {strides = array<i32>} : memref<72x512xbf16, #tpu.memory_space<vmem>>, vector<6x128xbf16>,
    %c14_208 = arith.constant 14 : index
    %c0_209 = arith.constant 0 : index
    %134 = vector.load %arg13[%c14_208, %c0_209] : memref<98x128xbf16, #tpu.memory_space<vmem>>, vector<6x128xbf16>
    %c6_210 = arith.constant 6 : index
    %c256_211 = arith.constant 256 : index
    %135 = vector.load %arg14[%c6_210, %c256_211] : memref<72x512xbf16, #tpu.memory_space<vmem>>, vector<6x128xbf16>
    tpu.vector_store %arg14[%c6_210, %c256_211], %134 {strides = array<i32>} : memref<72x512xbf16, #tpu.memory_space<vmem>>, vector<6x128xbf16>,
    %c15 = arith.constant 15 : index
    %c0_212 = arith.constant 0 : index
    %136 = vector.load %arg13[%c15, %c0_212] : memref<98x128xbf16, #tpu.memory_space<vmem>>, vector<6x128xbf16>
    %c6_213 = arith.constant 6 : index
    %c384_214 = arith.constant 384 : index
    %137 = vector.load %arg14[%c6_213, %c384_214] : memref<72x512xbf16, #tpu.memory_space<vmem>>, vector<6x128xbf16>
    tpu.vector_store %arg14[%c6_213, %c384_214], %136 {strides = array<i32>} : memref<72x512xbf16, #tpu.memory_space<vmem>>, vector<6x128xbf16>,
    %c14_215 = arith.constant 14 : index
    %c0_216 = arith.constant 0 : index
    %138 = vector.load %arg13[%c14_215, %c0_216] : memref<98x128xbf16, #tpu.memory_space<vmem>>, vector<6x128xbf16>
    %c12 = arith.constant 12 : index
    %c0_217 = arith.constant 0 : index
    %139 = vector.load %arg14[%c12, %c0_217] : memref<72x512xbf16, #tpu.memory_space<vmem>>, vector<6x128xbf16>
    tpu.vector_store %arg14[%c12, %c0_217], %138 {strides = array<i32>} : memref<72x512xbf16, #tpu.memory_space<vmem>>, vector<6x128xbf16>,
    %c15_218 = arith.constant 15 : index
    %c0_219 = arith.constant 0 : index
    %140 = vector.load %arg13[%c15_218, %c0_219] : memref<98x128xbf16, #tpu.memory_space<vmem>>, vector<6x128xbf16>
    %c12_220 = arith.constant 12 : index
    %c128_221 = arith.constant 128 : index
    %141 = vector.load %arg14[%c12_220, %c128_221] : memref<72x512xbf16, #tpu.memory_space<vmem>>, vector<6x128xbf16>
    tpu.vector_store %arg14[%c12_220, %c128_221], %140 {strides = array<i32>} : memref<72x512xbf16, #tpu.memory_space<vmem>>, vector<6x128xbf16>,
    %c21_222 = arith.constant 21 : index
    %c0_223 = arith.constant 0 : index
    %142 = vector.load %arg13[%c21_222, %c0_223] : memref<98x128xbf16, #tpu.memory_space<vmem>>, vector<6x128xbf16>
    %c12_224 = arith.constant 12 : index
    %c256_225 = arith.constant 256 : index
    %143 = vector.load %arg14[%c12_224, %c256_225] : memref<72x512xbf16, #tpu.memory_space<vmem>>, vector<6x128xbf16>
    tpu.vector_store %arg14[%c12_224, %c256_225], %142 {strides = array<i32>} : memref<72x512xbf16, #tpu.memory_space<vmem>>, vector<6x128xbf16>,
    %c22 = arith.constant 22 : index
    %c0_226 = arith.constant 0 : index
    %144 = vector.load %arg13[%c22, %c0_226] : memref<98x128xbf16, #tpu.memory_space<vmem>>, vector<6x128xbf16>
    %c12_227 = arith.constant 12 : index
    %c384_228 = arith.constant 384 : index
    %145 = vector.load %arg14[%c12_227, %c384_228] : memref<72x512xbf16, #tpu.memory_space<vmem>>, vector<6x128xbf16>
    tpu.vector_store %arg14[%c12_227, %c384_228], %144 {strides = array<i32>} : memref<72x512xbf16, #tpu.memory_space<vmem>>, vector<6x128xbf16>,
    %c21_229 = arith.constant 21 : index
    %c0_230 = arith.constant 0 : index
    %146 = vector.load %arg13[%c21_229, %c0_230] : memref<98x128xbf16, #tpu.memory_space<vmem>>, vector<6x128xbf16>
    %c18 = arith.constant 18 : index
    %c0_231 = arith.constant 0 : index
    %147 = vector.load %arg14[%c18, %c0_231] : memref<72x512xbf16, #tpu.memory_space<vmem>>, vector<6x128xbf16>
    tpu.vector_store %arg14[%c18, %c0_231], %146 {strides = array<i32>} : memref<72x512xbf16, #tpu.memory_space<vmem>>, vector<6x128xbf16>,
    %c22_232 = arith.constant 22 : index
    %c0_233 = arith.constant 0 : index
    %148 = vector.load %arg13[%c22_232, %c0_233] : memref<98x128xbf16, #tpu.memory_space<vmem>>, vector<6x128xbf16>
    %c18_234 = arith.constant 18 : index
    %c128_235 = arith.constant 128 : index
    %149 = vector.load %arg14[%c18_234, %c128_235] : memref<72x512xbf16, #tpu.memory_space<vmem>>, vector<6x128xbf16>
    tpu.vector_store %arg14[%c18_234, %c128_235], %148 {strides = array<i32>} : memref<72x512xbf16, #tpu.memory_space<vmem>>, vector<6x128xbf16>,
    %c28_236 = arith.constant 28 : index
    %c0_237 = arith.constant 0 : index
    %150 = vector.load %arg13[%c28_236, %c0_237] : memref<98x128xbf16, #tpu.memory_space<vmem>>, vector<6x128xbf16>
    %c18_238 = arith.constant 18 : index
    %c256_239 = arith.constant 256 : index
    %151 = vector.load %arg14[%c18_238, %c256_239] : memref<72x512xbf16, #tpu.memory_space<vmem>>, vector<6x128xbf16>
    tpu.vector_store %arg14[%c18_238, %c256_239], %150 {strides = array<i32>} : memref<72x512xbf16, #tpu.memory_space<vmem>>, vector<6x128xbf16>,
    %c29 = arith.constant 29 : index
    %c0_240 = arith.constant 0 : index
    %152 = vector.load %arg13[%c29, %c0_240] : memref<98x128xbf16, #tpu.memory_space<vmem>>, vector<6x128xbf16>
    %c18_241 = arith.constant 18 : index
    %c384_242 = arith.constant 384 : index
    %153 = vector.load %arg14[%c18_241, %c384_242] : memref<72x512xbf16, #tpu.memory_space<vmem>>, vector<6x128xbf16>
    tpu.vector_store %arg14[%c18_241, %c384_242], %152 {strides = array<i32>} : memref<72x512xbf16, #tpu.memory_space<vmem>>, vector<6x128xbf16>,
    %c28_243 = arith.constant 28 : index
    %c0_244 = arith.constant 0 : index
    %154 = vector.load %arg13[%c28_243, %c0_244] : memref<98x128xbf16, #tpu.memory_space<vmem>>, vector<6x128xbf16>
    %c24_245 = arith.constant 24 : index
    %c0_246 = arith.constant 0 : index
    %155 = vector.load %arg14[%c24_245, %c0_246] : memref<72x512xbf16, #tpu.memory_space<vmem>>, vector<6x128xbf16>
    tpu.vector_store %arg14[%c24_245, %c0_246], %154 {strides = array<i32>} : memref<72x512xbf16, #tpu.memory_space<vmem>>, vector<6x128xbf16>,
    %c29_247 = arith.constant 29 : index
    %c0_248 = arith.constant 0 : index
    %156 = vector.load %arg13[%c29_247, %c0_248] : memref<98x128xbf16, #tpu.memory_space<vmem>>, vector<6x128xbf16>
    %c24_249 = arith.constant 24 : index
    %c128_250 = arith.constant 128 : index
    %157 = vector.load %arg14[%c24_249, %c128_250] : memref<72x512xbf16, #tpu.memory_space<vmem>>, vector<6x128xbf16>
    tpu.vector_store %arg14[%c24_249, %c128_250], %156 {strides = array<i32>} : memref<72x512xbf16, #tpu.memory_space<vmem>>, vector<6x128xbf16>,
    %c35_251 = arith.constant 35 : index
    %c0_252 = arith.constant 0 : index
    %158 = vector.load %arg13[%c35_251, %c0_252] : memref<98x128xbf16, #tpu.memory_space<vmem>>, vector<6x128xbf16>
    %c24_253 = arith.constant 24 : index
    %c256_254 = arith.constant 256 : index
    %159 = vector.load %arg14[%c24_253, %c256_254] : memref<72x512xbf16, #tpu.memory_space<vmem>>, vector<6x128xbf16>
    tpu.vector_store %arg14[%c24_253, %c256_254], %158 {strides = array<i32>} : memref<72x512xbf16, #tpu.memory_space<vmem>>, vector<6x128xbf16>,
    %c36 = arith.constant 36 : index
    %c0_255 = arith.constant 0 : index
    %160 = vector.load %arg13[%c36, %c0_255] : memref<98x128xbf16, #tpu.memory_space<vmem>>, vector<6x128xbf16>
    %c24_256 = arith.constant 24 : index
    %c384_257 = arith.constant 384 : index
    %161 = vector.load %arg14[%c24_256, %c384_257] : memref<72x512xbf16, #tpu.memory_space<vmem>>, vector<6x128xbf16>
    tpu.vector_store %arg14[%c24_256, %c384_257], %160 {strides = array<i32>} : memref<72x512xbf16, #tpu.memory_space<vmem>>, vector<6x128xbf16>,
    %c35_258 = arith.constant 35 : index
    %c0_259 = arith.constant 0 : index
    %162 = vector.load %arg13[%c35_258, %c0_259] : memref<98x128xbf16, #tpu.memory_space<vmem>>, vector<6x128xbf16>
    %c30 = arith.constant 30 : index
    %c0_260 = arith.constant 0 : index
    %163 = vector.load %arg14[%c30, %c0_260] : memref<72x512xbf16, #tpu.memory_space<vmem>>, vector<6x128xbf16>
    tpu.vector_store %arg14[%c30, %c0_260], %162 {strides = array<i32>} : memref<72x512xbf16, #tpu.memory_space<vmem>>, vector<6x128xbf16>,
    %c36_261 = arith.constant 36 : index
    %c0_262 = arith.constant 0 : index
    %164 = vector.load %arg13[%c36_261, %c0_262] : memref<98x128xbf16, #tpu.memory_space<vmem>>, vector<6x128xbf16>
    %c30_263 = arith.constant 30 : index
    %c128_264 = arith.constant 128 : index
    %165 = vector.load %arg14[%c30_263, %c128_264] : memref<72x512xbf16, #tpu.memory_space<vmem>>, vector<6x128xbf16>
    tpu.vector_store %arg14[%c30_263, %c128_264], %164 {strides = array<i32>} : memref<72x512xbf16, #tpu.memory_space<vmem>>, vector<6x128xbf16>,
    %c42_265 = arith.constant 42 : index
    %c0_266 = arith.constant 0 : index
    %166 = vector.load %arg13[%c42_265, %c0_266] : memref<98x128xbf16, #tpu.memory_space<vmem>>, vector<6x128xbf16>
    %c30_267 = arith.constant 30 : index
    %c256_268 = arith.constant 256 : index
    %167 = vector.load %arg14[%c30_267, %c256_268] : memref<72x512xbf16, #tpu.memory_space<vmem>>, vector<6x128xbf16>
    tpu.vector_store %arg14[%c30_267, %c256_268], %166 {strides = array<i32>} : memref<72x512xbf16, #tpu.memory_space<vmem>>, vector<6x128xbf16>,
    %c43 = arith.constant 43 : index
    %c0_269 = arith.constant 0 : index
    %168 = vector.load %arg13[%c43, %c0_269] : memref<98x128xbf16, #tpu.memory_space<vmem>>, vector<6x128xbf16>
    %c30_270 = arith.constant 30 : index
    %c384_271 = arith.constant 384 : index
    %169 = vector.load %arg14[%c30_270, %c384_271] : memref<72x512xbf16, #tpu.memory_space<vmem>>, vector<6x128xbf16>
    tpu.vector_store %arg14[%c30_270, %c384_271], %168 {strides = array<i32>} : memref<72x512xbf16, #tpu.memory_space<vmem>>, vector<6x128xbf16>,
    %c49_272 = arith.constant 49 : index
    %c0_273 = arith.constant 0 : index
    %170 = vector.load %arg13[%c49_272, %c0_273] : memref<98x128xbf16, #tpu.memory_space<vmem>>, vector<6x128xbf16>
    %c36_274 = arith.constant 36 : index
    %c0_275 = arith.constant 0 : index
    %171 = vector.load %arg14[%c36_274, %c0_275] : memref<72x512xbf16, #tpu.memory_space<vmem>>, vector<6x128xbf16>
    tpu.vector_store %arg14[%c36_274, %c0_275], %170 {strides = array<i32>} : memref<72x512xbf16, #tpu.memory_space<vmem>>, vector<6x128xbf16>,
    %c50 = arith.constant 50 : index
    %c0_276 = arith.constant 0 : index
    %172 = vector.load %arg13[%c50, %c0_276] : memref<98x128xbf16, #tpu.memory_space<vmem>>, vector<6x128xbf16>
    %c36_277 = arith.constant 36 : index
    %c128_278 = arith.constant 128 : index
    %173 = vector.load %arg14[%c36_277, %c128_278] : memref<72x512xbf16, #tpu.memory_space<vmem>>, vector<6x128xbf16>
    tpu.vector_store %arg14[%c36_277, %c128_278], %172 {strides = array<i32>} : memref<72x512xbf16, #tpu.memory_space<vmem>>, vector<6x128xbf16>,
    %c56_279 = arith.constant 56 : index
    %c0_280 = arith.constant 0 : index
    %174 = vector.load %arg13[%c56_279, %c0_280] : memref<98x128xbf16, #tpu.memory_space<vmem>>, vector<6x128xbf16>
    %c36_281 = arith.constant 36 : index
    %c256_282 = arith.constant 256 : index
    %175 = vector.load %arg14[%c36_281, %c256_282] : memref<72x512xbf16, #tpu.memory_space<vmem>>, vector<6x128xbf16>
    tpu.vector_store %arg14[%c36_281, %c256_282], %174 {strides = array<i32>} : memref<72x512xbf16, #tpu.memory_space<vmem>>, vector<6x128xbf16>,
    %c57_283 = arith.constant 57 : index
    %c0_284 = arith.constant 0 : index
    %176 = vector.load %arg13[%c57_283, %c0_284] : memref<98x128xbf16, #tpu.memory_space<vmem>>, vector<6x128xbf16>
    %c36_285 = arith.constant 36 : index
    %c384_286 = arith.constant 384 : index
    %177 = vector.load %arg14[%c36_285, %c384_286] : memref<72x512xbf16, #tpu.memory_space<vmem>>, vector<6x128xbf16>
    tpu.vector_store %arg14[%c36_285, %c384_286], %176 {strides = array<i32>} : memref<72x512xbf16, #tpu.memory_space<vmem>>, vector<6x128xbf16>,
    %c56_287 = arith.constant 56 : index
    %c0_288 = arith.constant 0 : index
    %178 = vector.load %arg13[%c56_287, %c0_288] : memref<98x128xbf16, #tpu.memory_space<vmem>>, vector<6x128xbf16>
    %c42_289 = arith.constant 42 : index
    %c0_290 = arith.constant 0 : index
    %179 = vector.load %arg14[%c42_289, %c0_290] : memref<72x512xbf16, #tpu.memory_space<vmem>>, vector<6x128xbf16>
    tpu.vector_store %arg14[%c42_289, %c0_290], %178 {strides = array<i32>} : memref<72x512xbf16, #tpu.memory_space<vmem>>, vector<6x128xbf16>,
    %c57_291 = arith.constant 57 : index
    %c0_292 = arith.constant 0 : index
    %180 = vector.load %arg13[%c57_291, %c0_292] : memref<98x128xbf16, #tpu.memory_space<vmem>>, vector<6x128xbf16>
    %c42_293 = arith.constant 42 : index
    %c128_294 = arith.constant 128 : index
    %181 = vector.load %arg14[%c42_293, %c128_294] : memref<72x512xbf16, #tpu.memory_space<vmem>>, vector<6x128xbf16>
    tpu.vector_store %arg14[%c42_293, %c128_294], %180 {strides = array<i32>} : memref<72x512xbf16, #tpu.memory_space<vmem>>, vector<6x128xbf16>,
    %c63_295 = arith.constant 63 : index
    %c0_296 = arith.constant 0 : index
    %182 = vector.load %arg13[%c63_295, %c0_296] : memref<98x128xbf16, #tpu.memory_space<vmem>>, vector<6x128xbf16>
    %c42_297 = arith.constant 42 : index
    %c256_298 = arith.constant 256 : index
    %183 = vector.load %arg14[%c42_297, %c256_298] : memref<72x512xbf16, #tpu.memory_space<vmem>>, vector<6x128xbf16>
    tpu.vector_store %arg14[%c42_297, %c256_298], %182 {strides = array<i32>} : memref<72x512xbf16, #tpu.memory_space<vmem>>, vector<6x128xbf16>,
    %c64_299 = arith.constant 64 : index
    %c0_300 = arith.constant 0 : index
    %184 = vector.load %arg13[%c64_299, %c0_300] : memref<98x128xbf16, #tpu.memory_space<vmem>>, vector<6x128xbf16>
    %c42_301 = arith.constant 42 : index
    %c384_302 = arith.constant 384 : index
    %185 = vector.load %arg14[%c42_301, %c384_302] : memref<72x512xbf16, #tpu.memory_space<vmem>>, vector<6x128xbf16>
    tpu.vector_store %arg14[%c42_301, %c384_302], %184 {strides = array<i32>} : memref<72x512xbf16, #tpu.memory_space<vmem>>, vector<6x128xbf16>,
    %c63_303 = arith.constant 63 : index
    %c0_304 = arith.constant 0 : index
    %186 = vector.load %arg13[%c63_303, %c0_304] : memref<98x128xbf16, #tpu.memory_space<vmem>>, vector<6x128xbf16>
    %c48_305 = arith.constant 48 : index
    %c0_306 = arith.constant 0 : index
    %187 = vector.load %arg14[%c48_305, %c0_306] : memref<72x512xbf16, #tpu.memory_space<vmem>>, vector<6x128xbf16>
    tpu.vector_store %arg14[%c48_305, %c0_306], %186 {strides = array<i32>} : memref<72x512xbf16, #tpu.memory_space<vmem>>, vector<6x128xbf16>,
    %c64_307 = arith.constant 64 : index
    %c0_308 = arith.constant 0 : index
    %188 = vector.load %arg13[%c64_307, %c0_308] : memref<98x128xbf16, #tpu.memory_space<vmem>>, vector<6x128xbf16>
    %c48_309 = arith.constant 48 : index
    %c128_310 = arith.constant 128 : index
    %189 = vector.load %arg14[%c48_309, %c128_310] : memref<72x512xbf16, #tpu.memory_space<vmem>>, vector<6x128xbf16>
    tpu.vector_store %arg14[%c48_309, %c128_310], %188 {strides = array<i32>} : memref<72x512xbf16, #tpu.memory_space<vmem>>, vector<6x128xbf16>,
    %c70_311 = arith.constant 70 : index
    %c0_312 = arith.constant 0 : index
    %190 = vector.load %arg13[%c70_311, %c0_312] : memref<98x128xbf16, #tpu.memory_space<vmem>>, vector<6x128xbf16>
    %c48_313 = arith.constant 48 : index
    %c256_314 = arith.constant 256 : index
    %191 = vector.load %arg14[%c48_313, %c256_314] : memref<72x512xbf16, #tpu.memory_space<vmem>>, vector<6x128xbf16>
    tpu.vector_store %arg14[%c48_313, %c256_314], %190 {strides = array<i32>} : memref<72x512xbf16, #tpu.memory_space<vmem>>, vector<6x128xbf16>,
    %c71 = arith.constant 71 : index
    %c0_315 = arith.constant 0 : index
    %192 = vector.load %arg13[%c71, %c0_315] : memref<98x128xbf16, #tpu.memory_space<vmem>>, vector<6x128xbf16>
    %c48_316 = arith.constant 48 : index
    %c384_317 = arith.constant 384 : index
    %193 = vector.load %arg14[%c48_316, %c384_317] : memref<72x512xbf16, #tpu.memory_space<vmem>>, vector<6x128xbf16>
    tpu.vector_store %arg14[%c48_316, %c384_317], %192 {strides = array<i32>} : memref<72x512xbf16, #tpu.memory_space<vmem>>, vector<6x128xbf16>,
    %c70_318 = arith.constant 70 : index
    %c0_319 = arith.constant 0 : index
    %194 = vector.load %arg13[%c70_318, %c0_319] : memref<98x128xbf16, #tpu.memory_space<vmem>>, vector<6x128xbf16>
    %c54 = arith.constant 54 : index
    %c0_320 = arith.constant 0 : index
    %195 = vector.load %arg14[%c54, %c0_320] : memref<72x512xbf16, #tpu.memory_space<vmem>>, vector<6x128xbf16>
    tpu.vector_store %arg14[%c54, %c0_320], %194 {strides = array<i32>} : memref<72x512xbf16, #tpu.memory_space<vmem>>, vector<6x128xbf16>,
    %c71_321 = arith.constant 71 : index
    %c0_322 = arith.constant 0 : index
    %196 = vector.load %arg13[%c71_321, %c0_322] : memref<98x128xbf16, #tpu.memory_space<vmem>>, vector<6x128xbf16>
    %c54_323 = arith.constant 54 : index
    %c128_324 = arith.constant 128 : index
    %197 = vector.load %arg14[%c54_323, %c128_324] : memref<72x512xbf16, #tpu.memory_space<vmem>>, vector<6x128xbf16>
    tpu.vector_store %arg14[%c54_323, %c128_324], %196 {strides = array<i32>} : memref<72x512xbf16, #tpu.memory_space<vmem>>, vector<6x128xbf16>,
    %c77_325 = arith.constant 77 : index
    %c0_326 = arith.constant 0 : index
    %198 = vector.load %arg13[%c77_325, %c0_326] : memref<98x128xbf16, #tpu.memory_space<vmem>>, vector<6x128xbf16>
    %c54_327 = arith.constant 54 : index
    %c256_328 = arith.constant 256 : index
    %199 = vector.load %arg14[%c54_327, %c256_328] : memref<72x512xbf16, #tpu.memory_space<vmem>>, vector<6x128xbf16>
    tpu.vector_store %arg14[%c54_327, %c256_328], %198 {strides = array<i32>} : memref<72x512xbf16, #tpu.memory_space<vmem>>, vector<6x128xbf16>,
    %c78 = arith.constant 78 : index
    %c0_329 = arith.constant 0 : index
    %200 = vector.load %arg13[%c78, %c0_329] : memref<98x128xbf16, #tpu.memory_space<vmem>>, vector<6x128xbf16>
    %c54_330 = arith.constant 54 : index
    %c384_331 = arith.constant 384 : index
    %201 = vector.load %arg14[%c54_330, %c384_331] : memref<72x512xbf16, #tpu.memory_space<vmem>>, vector<6x128xbf16>
    tpu.vector_store %arg14[%c54_330, %c384_331], %200 {strides = array<i32>} : memref<72x512xbf16, #tpu.memory_space<vmem>>, vector<6x128xbf16>,
    %c77_332 = arith.constant 77 : index
    %c0_333 = arith.constant 0 : index
    %202 = vector.load %arg13[%c77_332, %c0_333] : memref<98x128xbf16, #tpu.memory_space<vmem>>, vector<6x128xbf16>
    %c60 = arith.constant 60 : index
    %c0_334 = arith.constant 0 : index
    %203 = vector.load %arg14[%c60, %c0_334] : memref<72x512xbf16, #tpu.memory_space<vmem>>, vector<6x128xbf16>
    tpu.vector_store %arg14[%c60, %c0_334], %202 {strides = array<i32>} : memref<72x512xbf16, #tpu.memory_space<vmem>>, vector<6x128xbf16>,
    %c78_335 = arith.constant 78 : index
    %c0_336 = arith.constant 0 : index
    %204 = vector.load %arg13[%c78_335, %c0_336] : memref<98x128xbf16, #tpu.memory_space<vmem>>, vector<6x128xbf16>
    %c60_337 = arith.constant 60 : index
    %c128_338 = arith.constant 128 : index
    %205 = vector.load %arg14[%c60_337, %c128_338] : memref<72x512xbf16, #tpu.memory_space<vmem>>, vector<6x128xbf16>
    tpu.vector_store %arg14[%c60_337, %c128_338], %204 {strides = array<i32>} : memref<72x512xbf16, #tpu.memory_space<vmem>>, vector<6x128xbf16>,
    %c84_339 = arith.constant 84 : index
    %c0_340 = arith.constant 0 : index
    %206 = vector.load %arg13[%c84_339, %c0_340] : memref<98x128xbf16, #tpu.memory_space<vmem>>, vector<6x128xbf16>
    %c60_341 = arith.constant 60 : index
    %c256_342 = arith.constant 256 : index
    %207 = vector.load %arg14[%c60_341, %c256_342] : memref<72x512xbf16, #tpu.memory_space<vmem>>, vector<6x128xbf16>
    tpu.vector_store %arg14[%c60_341, %c256_342], %206 {strides = array<i32>} : memref<72x512xbf16, #tpu.memory_space<vmem>>, vector<6x128xbf16>,
    %c85 = arith.constant 85 : index
    %c0_343 = arith.constant 0 : index
    %208 = vector.load %arg13[%c85, %c0_343] : memref<98x128xbf16, #tpu.memory_space<vmem>>, vector<6x128xbf16>
    %c60_344 = arith.constant 60 : index
    %c384_345 = arith.constant 384 : index
    %209 = vector.load %arg14[%c60_344, %c384_345] : memref<72x512xbf16, #tpu.memory_space<vmem>>, vector<6x128xbf16>
    tpu.vector_store %arg14[%c60_344, %c384_345], %208 {strides = array<i32>} : memref<72x512xbf16, #tpu.memory_space<vmem>>, vector<6x128xbf16>,
    %c84_346 = arith.constant 84 : index
    %c0_347 = arith.constant 0 : index
    %210 = vector.load %arg13[%c84_346, %c0_347] : memref<98x128xbf16, #tpu.memory_space<vmem>>, vector<6x128xbf16>
    %c66 = arith.constant 66 : index
    %c0_348 = arith.constant 0 : index
    %211 = vector.load %arg14[%c66, %c0_348] : memref<72x512xbf16, #tpu.memory_space<vmem>>, vector<6x128xbf16>
    tpu.vector_store %arg14[%c66, %c0_348], %210 {strides = array<i32>} : memref<72x512xbf16, #tpu.memory_space<vmem>>, vector<6x128xbf16>,
    %c85_349 = arith.constant 85 : index
    %c0_350 = arith.constant 0 : index
    %212 = vector.load %arg13[%c85_349, %c0_350] : memref<98x128xbf16, #tpu.memory_space<vmem>>, vector<6x128xbf16>
    %c66_351 = arith.constant 66 : index
    %c128_352 = arith.constant 128 : index
    %213 = vector.load %arg14[%c66_351, %c128_352] : memref<72x512xbf16, #tpu.memory_space<vmem>>, vector<6x128xbf16>
    tpu.vector_store %arg14[%c66_351, %c128_352], %212 {strides = array<i32>} : memref<72x512xbf16, #tpu.memory_space<vmem>>, vector<6x128xbf16>,
    %c91_353 = arith.constant 91 : index
    %c0_354 = arith.constant 0 : index
    %214 = vector.load %arg13[%c91_353, %c0_354] : memref<98x128xbf16, #tpu.memory_space<vmem>>, vector<6x128xbf16>
    %c66_355 = arith.constant 66 : index
    %c256_356 = arith.constant 256 : index
    %215 = vector.load %arg14[%c66_355, %c256_356] : memref<72x512xbf16, #tpu.memory_space<vmem>>, vector<6x128xbf16>
    tpu.vector_store %arg14[%c66_355, %c256_356], %214 {strides = array<i32>} : memref<72x512xbf16, #tpu.memory_space<vmem>>, vector<6x128xbf16>,
    %c92 = arith.constant 92 : index
    %c0_357 = arith.constant 0 : index
    %216 = vector.load %arg13[%c92, %c0_357] : memref<98x128xbf16, #tpu.memory_space<vmem>>, vector<6x128xbf16>
    %c66_358 = arith.constant 66 : index
    %c384_359 = arith.constant 384 : index
    %217 = vector.load %arg14[%c66_358, %c384_359] : memref<72x512xbf16, #tpu.memory_space<vmem>>, vector<6x128xbf16>
    tpu.vector_store %arg14[%c66_358, %c384_359], %216 {strides = array<i32>} : memref<72x512xbf16, #tpu.memory_space<vmem>>, vector<6x128xbf16>,
    %c0_360 = arith.constant 0 : index
    %c0_361 = arith.constant 0 : index
    %218 = vector.load %arg14[%c0_360, %c0_361] : memref<72x512xbf16, #tpu.memory_space<vmem>>, vector<72x512xbf16>
    %c0_362 = arith.constant 0 : index
    %c0_363 = arith.constant 0 : index
    %219 = vector.load %arg3[%c0_362, %c0_363] : memref<512x64xbf16, #tpu.memory_space<vmem>>, vector<512x64xbf16>
    %cst_364 = arith.constant dense<0.000000e+00> : vector<72x64xf32>
    %220 = tpu.matmul %218, %219, %cst_364 {dimension_numbers = #tpu.dot_dimension_numbers<[1], [0], [0], [1], [0, 0, 1, 1], [], []>} : vector<72x512xbf16>, vector<512x64xbf16>, vector<72x64xf32> -> vector<72x64xf32>
    %c0_365 = arith.constant 0 : index
    %c0_366 = arith.constant 0 : index
    %221 = vector.load %arg4[%c0_365, %c0_366] : memref<1x64xf32, #tpu.memory_space<vmem>>, vector<1x64xf32>
    %222 = vector.broadcast %221 : vector<1x64xf32> to vector<72x64xf32>
    %223 = arith.addf %220, %222 : vector<72x64xf32>
    %cst_367 = arith.constant 0.000000e+00 : f32
    %224 = vector.broadcast %cst_367 : f32 to vector<72x64xf32>
    %225 = arith.maximumf %223, %224 : vector<72x64xf32>
    %226 = arith.truncf %225 : vector<72x64xf32> to vector<72x64xbf16>
    %c0_368 = arith.constant 0 : index
    %c0_369 = arith.constant 0 : index
    %227 = vector.load %arg15[%c0_368, %c0_369] : memref<72x64xbf16, #tpu.memory_space<vmem>>, vector<72x64xbf16>
    tpu.vector_store %arg15[%c0_368, %c0_369], %226 {strides = array<i32>} : memref<72x64xbf16, #tpu.memory_space<vmem>>, vector<72x64xbf16>,
    %c0_370 = arith.constant 0 : index
    %c0_371 = arith.constant 0 : index
    %228 = vector.load %arg15[%c0_370, %c0_371] : memref<72x64xbf16, #tpu.memory_space<vmem>>, vector<4x64xbf16>
    %c0_372 = arith.constant 0 : index
    %c0_373 = arith.constant 0 : index
    %229 = vector.load %arg16[%c0_372, %c0_373] : memref<32x576xbf16, #tpu.memory_space<vmem>>, vector<4x64xbf16>
    tpu.vector_store %arg16[%c0_372, %c0_373], %228 {strides = array<i32>} : memref<32x576xbf16, #tpu.memory_space<vmem>>, vector<4x64xbf16>,
    %c1_374 = arith.constant 1 : index
    %c0_375 = arith.constant 0 : index
    %230 = vector.load %arg15[%c1_374, %c0_375] : memref<72x64xbf16, #tpu.memory_space<vmem>>, vector<4x64xbf16>
    %c0_376 = arith.constant 0 : index
    %c64_377 = arith.constant 64 : index
    %231 = vector.load %arg16[%c0_376, %c64_377] : memref<32x576xbf16, #tpu.memory_space<vmem>>, vector<4x64xbf16>
    tpu.vector_store %arg16[%c0_376, %c64_377], %230 {strides = array<i32>} : memref<32x576xbf16, #tpu.memory_space<vmem>>, vector<4x64xbf16>,
    %c2 = arith.constant 2 : index
    %c0_378 = arith.constant 0 : index
    %232 = vector.load %arg15[%c2, %c0_378] : memref<72x64xbf16, #tpu.memory_space<vmem>>, vector<4x64xbf16>
    %c0_379 = arith.constant 0 : index
    %c128_380 = arith.constant 128 : index
    %233 = vector.load %arg16[%c0_379, %c128_380] : memref<32x576xbf16, #tpu.memory_space<vmem>>, vector<4x64xbf16>
    tpu.vector_store %arg16[%c0_379, %c128_380], %232 {strides = array<i32>} : memref<32x576xbf16, #tpu.memory_space<vmem>>, vector<4x64xbf16>,
    %c6_381 = arith.constant 6 : index
    %c0_382 = arith.constant 0 : index
    %234 = vector.load %arg15[%c6_381, %c0_382] : memref<72x64xbf16, #tpu.memory_space<vmem>>, vector<4x64xbf16>
    %c0_383 = arith.constant 0 : index
    %c192 = arith.constant 192 : index
    %235 = vector.load %arg16[%c0_383, %c192] : memref<32x576xbf16, #tpu.memory_space<vmem>>, vector<4x64xbf16>
    tpu.vector_store %arg16[%c0_383, %c192], %234 {strides = array<i32>} : memref<32x576xbf16, #tpu.memory_space<vmem>>, vector<4x64xbf16>,
    %c7_384 = arith.constant 7 : index
    %c0_385 = arith.constant 0 : index
    %236 = vector.load %arg15[%c7_384, %c0_385] : memref<72x64xbf16, #tpu.memory_space<vmem>>, vector<4x64xbf16>
    %c0_386 = arith.constant 0 : index
    %c256_387 = arith.constant 256 : index
    %237 = vector.load %arg16[%c0_386, %c256_387] : memref<32x576xbf16, #tpu.memory_space<vmem>>, vector<4x64xbf16>
    tpu.vector_store %arg16[%c0_386, %c256_387], %236 {strides = array<i32>} : memref<32x576xbf16, #tpu.memory_space<vmem>>, vector<4x64xbf16>,
    %c8_388 = arith.constant 8 : index
    %c0_389 = arith.constant 0 : index
    %238 = vector.load %arg15[%c8_388, %c0_389] : memref<72x64xbf16, #tpu.memory_space<vmem>>, vector<4x64xbf16>
    %c0_390 = arith.constant 0 : index
    %c320 = arith.constant 320 : index
    %239 = vector.load %arg16[%c0_390, %c320] : memref<32x576xbf16, #tpu.memory_space<vmem>>, vector<4x64xbf16>
    tpu.vector_store %arg16[%c0_390, %c320], %238 {strides = array<i32>} : memref<32x576xbf16, #tpu.memory_space<vmem>>, vector<4x64xbf16>,
    %c12_391 = arith.constant 12 : index
    %c0_392 = arith.constant 0 : index
    %240 = vector.load %arg15[%c12_391, %c0_392] : memref<72x64xbf16, #tpu.memory_space<vmem>>, vector<4x64xbf16>
    %c0_393 = arith.constant 0 : index
    %c384_394 = arith.constant 384 : index
    %241 = vector.load %arg16[%c0_393, %c384_394] : memref<32x576xbf16, #tpu.memory_space<vmem>>, vector<4x64xbf16>
    tpu.vector_store %arg16[%c0_393, %c384_394], %240 {strides = array<i32>} : memref<32x576xbf16, #tpu.memory_space<vmem>>, vector<4x64xbf16>,
    %c13 = arith.constant 13 : index
    %c0_395 = arith.constant 0 : index
    %242 = vector.load %arg15[%c13, %c0_395] : memref<72x64xbf16, #tpu.memory_space<vmem>>, vector<4x64xbf16>
    %c0_396 = arith.constant 0 : index
    %c448 = arith.constant 448 : index
    %243 = vector.load %arg16[%c0_396, %c448] : memref<32x576xbf16, #tpu.memory_space<vmem>>, vector<4x64xbf16>
    tpu.vector_store %arg16[%c0_396, %c448], %242 {strides = array<i32>} : memref<32x576xbf16, #tpu.memory_space<vmem>>, vector<4x64xbf16>,
    %c14_397 = arith.constant 14 : index
    %c0_398 = arith.constant 0 : index
    %244 = vector.load %arg15[%c14_397, %c0_398] : memref<72x64xbf16, #tpu.memory_space<vmem>>, vector<4x64xbf16>
    %c0_399 = arith.constant 0 : index
    %c512_400 = arith.constant 512 : index
    %245 = vector.load %arg16[%c0_399, %c512_400] : memref<32x576xbf16, #tpu.memory_space<vmem>>, vector<4x64xbf16>
    tpu.vector_store %arg16[%c0_399, %c512_400], %244 {strides = array<i32>} : memref<32x576xbf16, #tpu.memory_space<vmem>>, vector<4x64xbf16>,
    %c6_401 = arith.constant 6 : index
    %c0_402 = arith.constant 0 : index
    %246 = vector.load %arg15[%c6_401, %c0_402] : memref<72x64xbf16, #tpu.memory_space<vmem>>, vector<4x64xbf16>
    %c4 = arith.constant 4 : index
    %c0_403 = arith.constant 0 : index
    %247 = vector.load %arg16[%c4, %c0_403] : memref<32x576xbf16, #tpu.memory_space<vmem>>, vector<4x64xbf16>
    tpu.vector_store %arg16[%c4, %c0_403], %246 {strides = array<i32>} : memref<32x576xbf16, #tpu.memory_space<vmem>>, vector<4x64xbf16>,
    %c7_404 = arith.constant 7 : index
    %c0_405 = arith.constant 0 : index
    %248 = vector.load %arg15[%c7_404, %c0_405] : memref<72x64xbf16, #tpu.memory_space<vmem>>, vector<4x64xbf16>
    %c4_406 = arith.constant 4 : index
    %c64_407 = arith.constant 64 : index
    %249 = vector.load %arg16[%c4_406, %c64_407] : memref<32x576xbf16, #tpu.memory_space<vmem>>, vector<4x64xbf16>
    tpu.vector_store %arg16[%c4_406, %c64_407], %248 {strides = array<i32>} : memref<32x576xbf16, #tpu.memory_space<vmem>>, vector<4x64xbf16>,
    %c8_408 = arith.constant 8 : index
    %c0_409 = arith.constant 0 : index
    %250 = vector.load %arg15[%c8_408, %c0_409] : memref<72x64xbf16, #tpu.memory_space<vmem>>, vector<4x64xbf16>
    %c4_410 = arith.constant 4 : index
    %c128_411 = arith.constant 128 : index
    %251 = vector.load %arg16[%c4_410, %c128_411] : memref<32x576xbf16, #tpu.memory_space<vmem>>, vector<4x64xbf16>
    tpu.vector_store %arg16[%c4_410, %c128_411], %250 {strides = array<i32>} : memref<32x576xbf16, #tpu.memory_space<vmem>>, vector<4x64xbf16>,
    %c12_412 = arith.constant 12 : index
    %c0_413 = arith.constant 0 : index
    %252 = vector.load %arg15[%c12_412, %c0_413] : memref<72x64xbf16, #tpu.memory_space<vmem>>, vector<4x64xbf16>
    %c4_414 = arith.constant 4 : index
    %c192_415 = arith.constant 192 : index
    %253 = vector.load %arg16[%c4_414, %c192_415] : memref<32x576xbf16, #tpu.memory_space<vmem>>, vector<4x64xbf16>
    tpu.vector_store %arg16[%c4_414, %c192_415], %252 {strides = array<i32>} : memref<32x576xbf16, #tpu.memory_space<vmem>>, vector<4x64xbf16>,
    %c13_416 = arith.constant 13 : index
    %c0_417 = arith.constant 0 : index
    %254 = vector.load %arg15[%c13_416, %c0_417] : memref<72x64xbf16, #tpu.memory_space<vmem>>, vector<4x64xbf16>
    %c4_418 = arith.constant 4 : index
    %c256_419 = arith.constant 256 : index
    %255 = vector.load %arg16[%c4_418, %c256_419] : memref<32x576xbf16, #tpu.memory_space<vmem>>, vector<4x64xbf16>
    tpu.vector_store %arg16[%c4_418, %c256_419], %254 {strides = array<i32>} : memref<32x576xbf16, #tpu.memory_space<vmem>>, vector<4x64xbf16>,
    %c14_420 = arith.constant 14 : index
    %c0_421 = arith.constant 0 : index
    %256 = vector.load %arg15[%c14_420, %c0_421] : memref<72x64xbf16, #tpu.memory_space<vmem>>, vector<4x64xbf16>
    %c4_422 = arith.constant 4 : index
    %c320_423 = arith.constant 320 : index
    %257 = vector.load %arg16[%c4_422, %c320_423] : memref<32x576xbf16, #tpu.memory_space<vmem>>, vector<4x64xbf16>
    tpu.vector_store %arg16[%c4_422, %c320_423], %256 {strides = array<i32>} : memref<32x576xbf16, #tpu.memory_space<vmem>>, vector<4x64xbf16>,
    %c18_424 = arith.constant 18 : index
    %c0_425 = arith.constant 0 : index
    %258 = vector.load %arg15[%c18_424, %c0_425] : memref<72x64xbf16, #tpu.memory_space<vmem>>, vector<4x64xbf16>
    %c4_426 = arith.constant 4 : index
    %c384_427 = arith.constant 384 : index
    %259 = vector.load %arg16[%c4_426, %c384_427] : memref<32x576xbf16, #tpu.memory_space<vmem>>, vector<4x64xbf16>
    tpu.vector_store %arg16[%c4_426, %c384_427], %258 {strides = array<i32>} : memref<32x576xbf16, #tpu.memory_space<vmem>>, vector<4x64xbf16>,
    %c19 = arith.constant 19 : index
    %c0_428 = arith.constant 0 : index
    %260 = vector.load %arg15[%c19, %c0_428] : memref<72x64xbf16, #tpu.memory_space<vmem>>, vector<4x64xbf16>
    %c4_429 = arith.constant 4 : index
    %c448_430 = arith.constant 448 : index
    %261 = vector.load %arg16[%c4_429, %c448_430] : memref<32x576xbf16, #tpu.memory_space<vmem>>, vector<4x64xbf16>
    tpu.vector_store %arg16[%c4_429, %c448_430], %260 {strides = array<i32>} : memref<32x576xbf16, #tpu.memory_space<vmem>>, vector<4x64xbf16>,
    %c20 = arith.constant 20 : index
    %c0_431 = arith.constant 0 : index
    %262 = vector.load %arg15[%c20, %c0_431] : memref<72x64xbf16, #tpu.memory_space<vmem>>, vector<4x64xbf16>
    %c4_432 = arith.constant 4 : index
    %c512_433 = arith.constant 512 : index
    %263 = vector.load %arg16[%c4_432, %c512_433] : memref<32x576xbf16, #tpu.memory_space<vmem>>, vector<4x64xbf16>
    tpu.vector_store %arg16[%c4_432, %c512_433], %262 {strides = array<i32>} : memref<32x576xbf16, #tpu.memory_space<vmem>>, vector<4x64xbf16>,
    %c12_434 = arith.constant 12 : index
    %c0_435 = arith.constant 0 : index
    %264 = vector.load %arg15[%c12_434, %c0_435] : memref<72x64xbf16, #tpu.memory_space<vmem>>, vector<4x64xbf16>
    %c8_436 = arith.constant 8 : index
    %c0_437 = arith.constant 0 : index
    %265 = vector.load %arg16[%c8_436, %c0_437] : memref<32x576xbf16, #tpu.memory_space<vmem>>, vector<4x64xbf16>
    tpu.vector_store %arg16[%c8_436, %c0_437], %264 {strides = array<i32>} : memref<32x576xbf16, #tpu.memory_space<vmem>>, vector<4x64xbf16>,
    %c13_438 = arith.constant 13 : index
    %c0_439 = arith.constant 0 : index
    %266 = vector.load %arg15[%c13_438, %c0_439] : memref<72x64xbf16, #tpu.memory_space<vmem>>, vector<4x64xbf16>
    %c8_440 = arith.constant 8 : index
    %c64_441 = arith.constant 64 : index
    %267 = vector.load %arg16[%c8_440, %c64_441] : memref<32x576xbf16, #tpu.memory_space<vmem>>, vector<4x64xbf16>
    tpu.vector_store %arg16[%c8_440, %c64_441], %266 {strides = array<i32>} : memref<32x576xbf16, #tpu.memory_space<vmem>>, vector<4x64xbf16>,
    %c14_442 = arith.constant 14 : index
    %c0_443 = arith.constant 0 : index
    %268 = vector.load %arg15[%c14_442, %c0_443] : memref<72x64xbf16, #tpu.memory_space<vmem>>, vector<4x64xbf16>
    %c8_444 = arith.constant 8 : index
    %c128_445 = arith.constant 128 : index
    %269 = vector.load %arg16[%c8_444, %c128_445] : memref<32x576xbf16, #tpu.memory_space<vmem>>, vector<4x64xbf16>
    tpu.vector_store %arg16[%c8_444, %c128_445], %268 {strides = array<i32>} : memref<32x576xbf16, #tpu.memory_space<vmem>>, vector<4x64xbf16>,
    %c18_446 = arith.constant 18 : index
    %c0_447 = arith.constant 0 : index
    %270 = vector.load %arg15[%c18_446, %c0_447] : memref<72x64xbf16, #tpu.memory_space<vmem>>, vector<4x64xbf16>
    %c8_448 = arith.constant 8 : index
    %c192_449 = arith.constant 192 : index
    %271 = vector.load %arg16[%c8_448, %c192_449] : memref<32x576xbf16, #tpu.memory_space<vmem>>, vector<4x64xbf16>
    tpu.vector_store %arg16[%c8_448, %c192_449], %270 {strides = array<i32>} : memref<32x576xbf16, #tpu.memory_space<vmem>>, vector<4x64xbf16>,
    %c19_450 = arith.constant 19 : index
    %c0_451 = arith.constant 0 : index
    %272 = vector.load %arg15[%c19_450, %c0_451] : memref<72x64xbf16, #tpu.memory_space<vmem>>, vector<4x64xbf16>
    %c8_452 = arith.constant 8 : index
    %c256_453 = arith.constant 256 : index
    %273 = vector.load %arg16[%c8_452, %c256_453] : memref<32x576xbf16, #tpu.memory_space<vmem>>, vector<4x64xbf16>
    tpu.vector_store %arg16[%c8_452, %c256_453], %272 {strides = array<i32>} : memref<32x576xbf16, #tpu.memory_space<vmem>>, vector<4x64xbf16>,
    %c20_454 = arith.constant 20 : index
    %c0_455 = arith.constant 0 : index
    %274 = vector.load %arg15[%c20_454, %c0_455] : memref<72x64xbf16, #tpu.memory_space<vmem>>, vector<4x64xbf16>
    %c8_456 = arith.constant 8 : index
    %c320_457 = arith.constant 320 : index
    %275 = vector.load %arg16[%c8_456, %c320_457] : memref<32x576xbf16, #tpu.memory_space<vmem>>, vector<4x64xbf16>
    tpu.vector_store %arg16[%c8_456, %c320_457], %274 {strides = array<i32>} : memref<32x576xbf16, #tpu.memory_space<vmem>>, vector<4x64xbf16>,
    %c24_458 = arith.constant 24 : index
    %c0_459 = arith.constant 0 : index
    %276 = vector.load %arg15[%c24_458, %c0_459] : memref<72x64xbf16, #tpu.memory_space<vmem>>, vector<4x64xbf16>
    %c8_460 = arith.constant 8 : index
    %c384_461 = arith.constant 384 : index
    %277 = vector.load %arg16[%c8_460, %c384_461] : memref<32x576xbf16, #tpu.memory_space<vmem>>, vector<4x64xbf16>
    tpu.vector_store %arg16[%c8_460, %c384_461], %276 {strides = array<i32>} : memref<32x576xbf16, #tpu.memory_space<vmem>>, vector<4x64xbf16>,
    %c25_462 = arith.constant 25 : index
    %c0_463 = arith.constant 0 : index
    %278 = vector.load %arg15[%c25_462, %c0_463] : memref<72x64xbf16, #tpu.memory_space<vmem>>, vector<4x64xbf16>
    %c8_464 = arith.constant 8 : index
    %c448_465 = arith.constant 448 : index
    %279 = vector.load %arg16[%c8_464, %c448_465] : memref<32x576xbf16, #tpu.memory_space<vmem>>, vector<4x64xbf16>
    tpu.vector_store %arg16[%c8_464, %c448_465], %278 {strides = array<i32>} : memref<32x576xbf16, #tpu.memory_space<vmem>>, vector<4x64xbf16>,
    %c26 = arith.constant 26 : index
    %c0_466 = arith.constant 0 : index
    %280 = vector.load %arg15[%c26, %c0_466] : memref<72x64xbf16, #tpu.memory_space<vmem>>, vector<4x64xbf16>
    %c8_467 = arith.constant 8 : index
    %c512_468 = arith.constant 512 : index
    %281 = vector.load %arg16[%c8_467, %c512_468] : memref<32x576xbf16, #tpu.memory_space<vmem>>, vector<4x64xbf16>
    tpu.vector_store %arg16[%c8_467, %c512_468], %280 {strides = array<i32>} : memref<32x576xbf16, #tpu.memory_space<vmem>>, vector<4x64xbf16>,
    %c18_469 = arith.constant 18 : index
    %c0_470 = arith.constant 0 : index
    %282 = vector.load %arg15[%c18_469, %c0_470] : memref<72x64xbf16, #tpu.memory_space<vmem>>, vector<4x64xbf16>
    %c12_471 = arith.constant 12 : index
    %c0_472 = arith.constant 0 : index
    %283 = vector.load %arg16[%c12_471, %c0_472] : memref<32x576xbf16, #tpu.memory_space<vmem>>, vector<4x64xbf16>
    tpu.vector_store %arg16[%c12_471, %c0_472], %282 {strides = array<i32>} : memref<32x576xbf16, #tpu.memory_space<vmem>>, vector<4x64xbf16>,
    %c19_473 = arith.constant 19 : index
    %c0_474 = arith.constant 0 : index
    %284 = vector.load %arg15[%c19_473, %c0_474] : memref<72x64xbf16, #tpu.memory_space<vmem>>, vector<4x64xbf16>
    %c12_475 = arith.constant 12 : index
    %c64_476 = arith.constant 64 : index
    %285 = vector.load %arg16[%c12_475, %c64_476] : memref<32x576xbf16, #tpu.memory_space<vmem>>, vector<4x64xbf16>
    tpu.vector_store %arg16[%c12_475, %c64_476], %284 {strides = array<i32>} : memref<32x576xbf16, #tpu.memory_space<vmem>>, vector<4x64xbf16>,
    %c20_477 = arith.constant 20 : index
    %c0_478 = arith.constant 0 : index
    %286 = vector.load %arg15[%c20_477, %c0_478] : memref<72x64xbf16, #tpu.memory_space<vmem>>, vector<4x64xbf16>
    %c12_479 = arith.constant 12 : index
    %c128_480 = arith.constant 128 : index
    %287 = vector.load %arg16[%c12_479, %c128_480] : memref<32x576xbf16, #tpu.memory_space<vmem>>, vector<4x64xbf16>
    tpu.vector_store %arg16[%c12_479, %c128_480], %286 {strides = array<i32>} : memref<32x576xbf16, #tpu.memory_space<vmem>>, vector<4x64xbf16>,
    %c24_481 = arith.constant 24 : index
    %c0_482 = arith.constant 0 : index
    %288 = vector.load %arg15[%c24_481, %c0_482] : memref<72x64xbf16, #tpu.memory_space<vmem>>, vector<4x64xbf16>
    %c12_483 = arith.constant 12 : index
    %c192_484 = arith.constant 192 : index
    %289 = vector.load %arg16[%c12_483, %c192_484] : memref<32x576xbf16, #tpu.memory_space<vmem>>, vector<4x64xbf16>
    tpu.vector_store %arg16[%c12_483, %c192_484], %288 {strides = array<i32>} : memref<32x576xbf16, #tpu.memory_space<vmem>>, vector<4x64xbf16>,
    %c25_485 = arith.constant 25 : index
    %c0_486 = arith.constant 0 : index
    %290 = vector.load %arg15[%c25_485, %c0_486] : memref<72x64xbf16, #tpu.memory_space<vmem>>, vector<4x64xbf16>
    %c12_487 = arith.constant 12 : index
    %c256_488 = arith.constant 256 : index
    %291 = vector.load %arg16[%c12_487, %c256_488] : memref<32x576xbf16, #tpu.memory_space<vmem>>, vector<4x64xbf16>
    tpu.vector_store %arg16[%c12_487, %c256_488], %290 {strides = array<i32>} : memref<32x576xbf16, #tpu.memory_space<vmem>>, vector<4x64xbf16>,
    %c26_489 = arith.constant 26 : index
    %c0_490 = arith.constant 0 : index
    %292 = vector.load %arg15[%c26_489, %c0_490] : memref<72x64xbf16, #tpu.memory_space<vmem>>, vector<4x64xbf16>
    %c12_491 = arith.constant 12 : index
    %c320_492 = arith.constant 320 : index
    %293 = vector.load %arg16[%c12_491, %c320_492] : memref<32x576xbf16, #tpu.memory_space<vmem>>, vector<4x64xbf16>
    tpu.vector_store %arg16[%c12_491, %c320_492], %292 {strides = array<i32>} : memref<32x576xbf16, #tpu.memory_space<vmem>>, vector<4x64xbf16>,
    %c30_493 = arith.constant 30 : index
    %c0_494 = arith.constant 0 : index
    %294 = vector.load %arg15[%c30_493, %c0_494] : memref<72x64xbf16, #tpu.memory_space<vmem>>, vector<4x64xbf16>
    %c12_495 = arith.constant 12 : index
    %c384_496 = arith.constant 384 : index
    %295 = vector.load %arg16[%c12_495, %c384_496] : memref<32x576xbf16, #tpu.memory_space<vmem>>, vector<4x64xbf16>
    tpu.vector_store %arg16[%c12_495, %c384_496], %294 {strides = array<i32>} : memref<32x576xbf16, #tpu.memory_space<vmem>>, vector<4x64xbf16>,
    %c31 = arith.constant 31 : index
    %c0_497 = arith.constant 0 : index
    %296 = vector.load %arg15[%c31, %c0_497] : memref<72x64xbf16, #tpu.memory_space<vmem>>, vector<4x64xbf16>
    %c12_498 = arith.constant 12 : index
    %c448_499 = arith.constant 448 : index
    %297 = vector.load %arg16[%c12_498, %c448_499] : memref<32x576xbf16, #tpu.memory_space<vmem>>, vector<4x64xbf16>
    tpu.vector_store %arg16[%c12_498, %c448_499], %296 {strides = array<i32>} : memref<32x576xbf16, #tpu.memory_space<vmem>>, vector<4x64xbf16>,
    %c32_500 = arith.constant 32 : index
    %c0_501 = arith.constant 0 : index
    %298 = vector.load %arg15[%c32_500, %c0_501] : memref<72x64xbf16, #tpu.memory_space<vmem>>, vector<4x64xbf16>
    %c12_502 = arith.constant 12 : index
    %c512_503 = arith.constant 512 : index
    %299 = vector.load %arg16[%c12_502, %c512_503] : memref<32x576xbf16, #tpu.memory_space<vmem>>, vector<4x64xbf16>
    tpu.vector_store %arg16[%c12_502, %c512_503], %298 {strides = array<i32>} : memref<32x576xbf16, #tpu.memory_space<vmem>>, vector<4x64xbf16>,
    %c36_504 = arith.constant 36 : index
    %c0_505 = arith.constant 0 : index
    %300 = vector.load %arg15[%c36_504, %c0_505] : memref<72x64xbf16, #tpu.memory_space<vmem>>, vector<4x64xbf16>
    %c16_506 = arith.constant 16 : index
    %c0_507 = arith.constant 0 : index
    %301 = vector.load %arg16[%c16_506, %c0_507] : memref<32x576xbf16, #tpu.memory_space<vmem>>, vector<4x64xbf16>
    tpu.vector_store %arg16[%c16_506, %c0_507], %300 {strides = array<i32>} : memref<32x576xbf16, #tpu.memory_space<vmem>>, vector<4x64xbf16>,
    %c37 = arith.constant 37 : index
    %c0_508 = arith.constant 0 : index
    %302 = vector.load %arg15[%c37, %c0_508] : memref<72x64xbf16, #tpu.memory_space<vmem>>, vector<4x64xbf16>
    %c16_509 = arith.constant 16 : index
    %c64_510 = arith.constant 64 : index
    %303 = vector.load %arg16[%c16_509, %c64_510] : memref<32x576xbf16, #tpu.memory_space<vmem>>, vector<4x64xbf16>
    tpu.vector_store %arg16[%c16_509, %c64_510], %302 {strides = array<i32>} : memref<32x576xbf16, #tpu.memory_space<vmem>>, vector<4x64xbf16>,
    %c38 = arith.constant 38 : index
    %c0_511 = arith.constant 0 : index
    %304 = vector.load %arg15[%c38, %c0_511] : memref<72x64xbf16, #tpu.memory_space<vmem>>, vector<4x64xbf16>
    %c16_512 = arith.constant 16 : index
    %c128_513 = arith.constant 128 : index
    %305 = vector.load %arg16[%c16_512, %c128_513] : memref<32x576xbf16, #tpu.memory_space<vmem>>, vector<4x64xbf16>
    tpu.vector_store %arg16[%c16_512, %c128_513], %304 {strides = array<i32>} : memref<32x576xbf16, #tpu.memory_space<vmem>>, vector<4x64xbf16>,
    %c42_514 = arith.constant 42 : index
    %c0_515 = arith.constant 0 : index
    %306 = vector.load %arg15[%c42_514, %c0_515] : memref<72x64xbf16, #tpu.memory_space<vmem>>, vector<4x64xbf16>
    %c16_516 = arith.constant 16 : index
    %c192_517 = arith.constant 192 : index
    %307 = vector.load %arg16[%c16_516, %c192_517] : memref<32x576xbf16, #tpu.memory_space<vmem>>, vector<4x64xbf16>
    tpu.vector_store %arg16[%c16_516, %c192_517], %306 {strides = array<i32>} : memref<32x576xbf16, #tpu.memory_space<vmem>>, vector<4x64xbf16>,
    %c43_518 = arith.constant 43 : index
    %c0_519 = arith.constant 0 : index
    %308 = vector.load %arg15[%c43_518, %c0_519] : memref<72x64xbf16, #tpu.memory_space<vmem>>, vector<4x64xbf16>
    %c16_520 = arith.constant 16 : index
    %c256_521 = arith.constant 256 : index
    %309 = vector.load %arg16[%c16_520, %c256_521] : memref<32x576xbf16, #tpu.memory_space<vmem>>, vector<4x64xbf16>
    tpu.vector_store %arg16[%c16_520, %c256_521], %308 {strides = array<i32>} : memref<32x576xbf16, #tpu.memory_space<vmem>>, vector<4x64xbf16>,
    %c44 = arith.constant 44 : index
    %c0_522 = arith.constant 0 : index
    %310 = vector.load %arg15[%c44, %c0_522] : memref<72x64xbf16, #tpu.memory_space<vmem>>, vector<4x64xbf16>
    %c16_523 = arith.constant 16 : index
    %c320_524 = arith.constant 320 : index
    %311 = vector.load %arg16[%c16_523, %c320_524] : memref<32x576xbf16, #tpu.memory_space<vmem>>, vector<4x64xbf16>
    tpu.vector_store %arg16[%c16_523, %c320_524], %310 {strides = array<i32>} : memref<32x576xbf16, #tpu.memory_space<vmem>>, vector<4x64xbf16>,
    %c48_525 = arith.constant 48 : index
    %c0_526 = arith.constant 0 : index
    %312 = vector.load %arg15[%c48_525, %c0_526] : memref<72x64xbf16, #tpu.memory_space<vmem>>, vector<4x64xbf16>
    %c16_527 = arith.constant 16 : index
    %c384_528 = arith.constant 384 : index
    %313 = vector.load %arg16[%c16_527, %c384_528] : memref<32x576xbf16, #tpu.memory_space<vmem>>, vector<4x64xbf16>
    tpu.vector_store %arg16[%c16_527, %c384_528], %312 {strides = array<i32>} : memref<32x576xbf16, #tpu.memory_space<vmem>>, vector<4x64xbf16>,
    %c49_529 = arith.constant 49 : index
    %c0_530 = arith.constant 0 : index
    %314 = vector.load %arg15[%c49_529, %c0_530] : memref<72x64xbf16, #tpu.memory_space<vmem>>, vector<4x64xbf16>
    %c16_531 = arith.constant 16 : index
    %c448_532 = arith.constant 448 : index
    %315 = vector.load %arg16[%c16_531, %c448_532] : memref<32x576xbf16, #tpu.memory_space<vmem>>, vector<4x64xbf16>
    tpu.vector_store %arg16[%c16_531, %c448_532], %314 {strides = array<i32>} : memref<32x576xbf16, #tpu.memory_space<vmem>>, vector<4x64xbf16>,
    %c50_533 = arith.constant 50 : index
    %c0_534 = arith.constant 0 : index
    %316 = vector.load %arg15[%c50_533, %c0_534] : memref<72x64xbf16, #tpu.memory_space<vmem>>, vector<4x64xbf16>
    %c16_535 = arith.constant 16 : index
    %c512_536 = arith.constant 512 : index
    %317 = vector.load %arg16[%c16_535, %c512_536] : memref<32x576xbf16, #tpu.memory_space<vmem>>, vector<4x64xbf16>
    tpu.vector_store %arg16[%c16_535, %c512_536], %316 {strides = array<i32>} : memref<32x576xbf16, #tpu.memory_space<vmem>>, vector<4x64xbf16>,
    %c42_537 = arith.constant 42 : index
    %c0_538 = arith.constant 0 : index
    %318 = vector.load %arg15[%c42_537, %c0_538] : memref<72x64xbf16, #tpu.memory_space<vmem>>, vector<4x64xbf16>
    %c20_539 = arith.constant 20 : index
    %c0_540 = arith.constant 0 : index
    %319 = vector.load %arg16[%c20_539, %c0_540] : memref<32x576xbf16, #tpu.memory_space<vmem>>, vector<4x64xbf16>
    tpu.vector_store %arg16[%c20_539, %c0_540], %318 {strides = array<i32>} : memref<32x576xbf16, #tpu.memory_space<vmem>>, vector<4x64xbf16>,
    %c43_541 = arith.constant 43 : index
    %c0_542 = arith.constant 0 : index
    %320 = vector.load %arg15[%c43_541, %c0_542] : memref<72x64xbf16, #tpu.memory_space<vmem>>, vector<4x64xbf16>
    %c20_543 = arith.constant 20 : index
    %c64_544 = arith.constant 64 : index
    %321 = vector.load %arg16[%c20_543, %c64_544] : memref<32x576xbf16, #tpu.memory_space<vmem>>, vector<4x64xbf16>
    tpu.vector_store %arg16[%c20_543, %c64_544], %320 {strides = array<i32>} : memref<32x576xbf16, #tpu.memory_space<vmem>>, vector<4x64xbf16>,
    %c44_545 = arith.constant 44 : index
    %c0_546 = arith.constant 0 : index
    %322 = vector.load %arg15[%c44_545, %c0_546] : memref<72x64xbf16, #tpu.memory_space<vmem>>, vector<4x64xbf16>
    %c20_547 = arith.constant 20 : index
    %c128_548 = arith.constant 128 : index
    %323 = vector.load %arg16[%c20_547, %c128_548] : memref<32x576xbf16, #tpu.memory_space<vmem>>, vector<4x64xbf16>
    tpu.vector_store %arg16[%c20_547, %c128_548], %322 {strides = array<i32>} : memref<32x576xbf16, #tpu.memory_space<vmem>>, vector<4x64xbf16>,
    %c48_549 = arith.constant 48 : index
    %c0_550 = arith.constant 0 : index
    %324 = vector.load %arg15[%c48_549, %c0_550] : memref<72x64xbf16, #tpu.memory_space<vmem>>, vector<4x64xbf16>
    %c20_551 = arith.constant 20 : index
    %c192_552 = arith.constant 192 : index
    %325 = vector.load %arg16[%c20_551, %c192_552] : memref<32x576xbf16, #tpu.memory_space<vmem>>, vector<4x64xbf16>
    tpu.vector_store %arg16[%c20_551, %c192_552], %324 {strides = array<i32>} : memref<32x576xbf16, #tpu.memory_space<vmem>>, vector<4x64xbf16>,
    %c49_553 = arith.constant 49 : index
    %c0_554 = arith.constant 0 : index
    %326 = vector.load %arg15[%c49_553, %c0_554] : memref<72x64xbf16, #tpu.memory_space<vmem>>, vector<4x64xbf16>
    %c20_555 = arith.constant 20 : index
    %c256_556 = arith.constant 256 : index
    %327 = vector.load %arg16[%c20_555, %c256_556] : memref<32x576xbf16, #tpu.memory_space<vmem>>, vector<4x64xbf16>
    tpu.vector_store %arg16[%c20_555, %c256_556], %326 {strides = array<i32>} : memref<32x576xbf16, #tpu.memory_space<vmem>>, vector<4x64xbf16>,
    %c50_557 = arith.constant 50 : index
    %c0_558 = arith.constant 0 : index
    %328 = vector.load %arg15[%c50_557, %c0_558] : memref<72x64xbf16, #tpu.memory_space<vmem>>, vector<4x64xbf16>
    %c20_559 = arith.constant 20 : index
    %c320_560 = arith.constant 320 : index
    %329 = vector.load %arg16[%c20_559, %c320_560] : memref<32x576xbf16, #tpu.memory_space<vmem>>, vector<4x64xbf16>
    tpu.vector_store %arg16[%c20_559, %c320_560], %328 {strides = array<i32>} : memref<32x576xbf16, #tpu.memory_space<vmem>>, vector<4x64xbf16>,
    %c54_561 = arith.constant 54 : index
    %c0_562 = arith.constant 0 : index
    %330 = vector.load %arg15[%c54_561, %c0_562] : memref<72x64xbf16, #tpu.memory_space<vmem>>, vector<4x64xbf16>
    %c20_563 = arith.constant 20 : index
    %c384_564 = arith.constant 384 : index
    %331 = vector.load %arg16[%c20_563, %c384_564] : memref<32x576xbf16, #tpu.memory_space<vmem>>, vector<4x64xbf16>
    tpu.vector_store %arg16[%c20_563, %c384_564], %330 {strides = array<i32>} : memref<32x576xbf16, #tpu.memory_space<vmem>>, vector<4x64xbf16>,
    %c55 = arith.constant 55 : index
    %c0_565 = arith.constant 0 : index
    %332 = vector.load %arg15[%c55, %c0_565] : memref<72x64xbf16, #tpu.memory_space<vmem>>, vector<4x64xbf16>
    %c20_566 = arith.constant 20 : index
    %c448_567 = arith.constant 448 : index
    %333 = vector.load %arg16[%c20_566, %c448_567] : memref<32x576xbf16, #tpu.memory_space<vmem>>, vector<4x64xbf16>
    tpu.vector_store %arg16[%c20_566, %c448_567], %332 {strides = array<i32>} : memref<32x576xbf16, #tpu.memory_space<vmem>>, vector<4x64xbf16>,
    %c56_568 = arith.constant 56 : index
    %c0_569 = arith.constant 0 : index
    %334 = vector.load %arg15[%c56_568, %c0_569] : memref<72x64xbf16, #tpu.memory_space<vmem>>, vector<4x64xbf16>
    %c20_570 = arith.constant 20 : index
    %c512_571 = arith.constant 512 : index
    %335 = vector.load %arg16[%c20_570, %c512_571] : memref<32x576xbf16, #tpu.memory_space<vmem>>, vector<4x64xbf16>
    tpu.vector_store %arg16[%c20_570, %c512_571], %334 {strides = array<i32>} : memref<32x576xbf16, #tpu.memory_space<vmem>>, vector<4x64xbf16>,
    %c48_572 = arith.constant 48 : index
    %c0_573 = arith.constant 0 : index
    %336 = vector.load %arg15[%c48_572, %c0_573] : memref<72x64xbf16, #tpu.memory_space<vmem>>, vector<4x64xbf16>
    %c24_574 = arith.constant 24 : index
    %c0_575 = arith.constant 0 : index
    %337 = vector.load %arg16[%c24_574, %c0_575] : memref<32x576xbf16, #tpu.memory_space<vmem>>, vector<4x64xbf16>
    tpu.vector_store %arg16[%c24_574, %c0_575], %336 {strides = array<i32>} : memref<32x576xbf16, #tpu.memory_space<vmem>>, vector<4x64xbf16>,
    %c49_576 = arith.constant 49 : index
    %c0_577 = arith.constant 0 : index
    %338 = vector.load %arg15[%c49_576, %c0_577] : memref<72x64xbf16, #tpu.memory_space<vmem>>, vector<4x64xbf16>
    %c24_578 = arith.constant 24 : index
    %c64_579 = arith.constant 64 : index
    %339 = vector.load %arg16[%c24_578, %c64_579] : memref<32x576xbf16, #tpu.memory_space<vmem>>, vector<4x64xbf16>
    tpu.vector_store %arg16[%c24_578, %c64_579], %338 {strides = array<i32>} : memref<32x576xbf16, #tpu.memory_space<vmem>>, vector<4x64xbf16>,
    %c50_580 = arith.constant 50 : index
    %c0_581 = arith.constant 0 : index
    %340 = vector.load %arg15[%c50_580, %c0_581] : memref<72x64xbf16, #tpu.memory_space<vmem>>, vector<4x64xbf16>
    %c24_582 = arith.constant 24 : index
    %c128_583 = arith.constant 128 : index
    %341 = vector.load %arg16[%c24_582, %c128_583] : memref<32x576xbf16, #tpu.memory_space<vmem>>, vector<4x64xbf16>
    tpu.vector_store %arg16[%c24_582, %c128_583], %340 {strides = array<i32>} : memref<32x576xbf16, #tpu.memory_space<vmem>>, vector<4x64xbf16>,
    %c54_584 = arith.constant 54 : index
    %c0_585 = arith.constant 0 : index
    %342 = vector.load %arg15[%c54_584, %c0_585] : memref<72x64xbf16, #tpu.memory_space<vmem>>, vector<4x64xbf16>
    %c24_586 = arith.constant 24 : index
    %c192_587 = arith.constant 192 : index
    %343 = vector.load %arg16[%c24_586, %c192_587] : memref<32x576xbf16, #tpu.memory_space<vmem>>, vector<4x64xbf16>
    tpu.vector_store %arg16[%c24_586, %c192_587], %342 {strides = array<i32>} : memref<32x576xbf16, #tpu.memory_space<vmem>>, vector<4x64xbf16>,
    %c55_588 = arith.constant 55 : index
    %c0_589 = arith.constant 0 : index
    %344 = vector.load %arg15[%c55_588, %c0_589] : memref<72x64xbf16, #tpu.memory_space<vmem>>, vector<4x64xbf16>
    %c24_590 = arith.constant 24 : index
    %c256_591 = arith.constant 256 : index
    %345 = vector.load %arg16[%c24_590, %c256_591] : memref<32x576xbf16, #tpu.memory_space<vmem>>, vector<4x64xbf16>
    tpu.vector_store %arg16[%c24_590, %c256_591], %344 {strides = array<i32>} : memref<32x576xbf16, #tpu.memory_space<vmem>>, vector<4x64xbf16>,
    %c56_592 = arith.constant 56 : index
    %c0_593 = arith.constant 0 : index
    %346 = vector.load %arg15[%c56_592, %c0_593] : memref<72x64xbf16, #tpu.memory_space<vmem>>, vector<4x64xbf16>
    %c24_594 = arith.constant 24 : index
    %c320_595 = arith.constant 320 : index
    %347 = vector.load %arg16[%c24_594, %c320_595] : memref<32x576xbf16, #tpu.memory_space<vmem>>, vector<4x64xbf16>
    tpu.vector_store %arg16[%c24_594, %c320_595], %346 {strides = array<i32>} : memref<32x576xbf16, #tpu.memory_space<vmem>>, vector<4x64xbf16>,
    %c60_596 = arith.constant 60 : index
    %c0_597 = arith.constant 0 : index
    %348 = vector.load %arg15[%c60_596, %c0_597] : memref<72x64xbf16, #tpu.memory_space<vmem>>, vector<4x64xbf16>
    %c24_598 = arith.constant 24 : index
    %c384_599 = arith.constant 384 : index
    %349 = vector.load %arg16[%c24_598, %c384_599] : memref<32x576xbf16, #tpu.memory_space<vmem>>, vector<4x64xbf16>
    tpu.vector_store %arg16[%c24_598, %c384_599], %348 {strides = array<i32>} : memref<32x576xbf16, #tpu.memory_space<vmem>>, vector<4x64xbf16>,
    %c61 = arith.constant 61 : index
    %c0_600 = arith.constant 0 : index
    %350 = vector.load %arg15[%c61, %c0_600] : memref<72x64xbf16, #tpu.memory_space<vmem>>, vector<4x64xbf16>
    %c24_601 = arith.constant 24 : index
    %c448_602 = arith.constant 448 : index
    %351 = vector.load %arg16[%c24_601, %c448_602] : memref<32x576xbf16, #tpu.memory_space<vmem>>, vector<4x64xbf16>
    tpu.vector_store %arg16[%c24_601, %c448_602], %350 {strides = array<i32>} : memref<32x576xbf16, #tpu.memory_space<vmem>>, vector<4x64xbf16>,
    %c62 = arith.constant 62 : index
    %c0_603 = arith.constant 0 : index
    %352 = vector.load %arg15[%c62, %c0_603] : memref<72x64xbf16, #tpu.memory_space<vmem>>, vector<4x64xbf16>
    %c24_604 = arith.constant 24 : index
    %c512_605 = arith.constant 512 : index
    %353 = vector.load %arg16[%c24_604, %c512_605] : memref<32x576xbf16, #tpu.memory_space<vmem>>, vector<4x64xbf16>
    tpu.vector_store %arg16[%c24_604, %c512_605], %352 {strides = array<i32>} : memref<32x576xbf16, #tpu.memory_space<vmem>>, vector<4x64xbf16>,
    %c54_606 = arith.constant 54 : index
    %c0_607 = arith.constant 0 : index
    %354 = vector.load %arg15[%c54_606, %c0_607] : memref<72x64xbf16, #tpu.memory_space<vmem>>, vector<4x64xbf16>
    %c28_608 = arith.constant 28 : index
    %c0_609 = arith.constant 0 : index
    %355 = vector.load %arg16[%c28_608, %c0_609] : memref<32x576xbf16, #tpu.memory_space<vmem>>, vector<4x64xbf16>
    tpu.vector_store %arg16[%c28_608, %c0_609], %354 {strides = array<i32>} : memref<32x576xbf16, #tpu.memory_space<vmem>>, vector<4x64xbf16>,
    %c55_610 = arith.constant 55 : index
    %c0_611 = arith.constant 0 : index
    %356 = vector.load %arg15[%c55_610, %c0_611] : memref<72x64xbf16, #tpu.memory_space<vmem>>, vector<4x64xbf16>
    %c28_612 = arith.constant 28 : index
    %c64_613 = arith.constant 64 : index
    %357 = vector.load %arg16[%c28_612, %c64_613] : memref<32x576xbf16, #tpu.memory_space<vmem>>, vector<4x64xbf16>
    tpu.vector_store %arg16[%c28_612, %c64_613], %356 {strides = array<i32>} : memref<32x576xbf16, #tpu.memory_space<vmem>>, vector<4x64xbf16>,
    %c56_614 = arith.constant 56 : index
    %c0_615 = arith.constant 0 : index
    %358 = vector.load %arg15[%c56_614, %c0_615] : memref<72x64xbf16, #tpu.memory_space<vmem>>, vector<4x64xbf16>
    %c28_616 = arith.constant 28 : index
    %c128_617 = arith.constant 128 : index
    %359 = vector.load %arg16[%c28_616, %c128_617] : memref<32x576xbf16, #tpu.memory_space<vmem>>, vector<4x64xbf16>
    tpu.vector_store %arg16[%c28_616, %c128_617], %358 {strides = array<i32>} : memref<32x576xbf16, #tpu.memory_space<vmem>>, vector<4x64xbf16>,
    %c60_618 = arith.constant 60 : index
    %c0_619 = arith.constant 0 : index
    %360 = vector.load %arg15[%c60_618, %c0_619] : memref<72x64xbf16, #tpu.memory_space<vmem>>, vector<4x64xbf16>
    %c28_620 = arith.constant 28 : index
    %c192_621 = arith.constant 192 : index
    %361 = vector.load %arg16[%c28_620, %c192_621] : memref<32x576xbf16, #tpu.memory_space<vmem>>, vector<4x64xbf16>
    tpu.vector_store %arg16[%c28_620, %c192_621], %360 {strides = array<i32>} : memref<32x576xbf16, #tpu.memory_space<vmem>>, vector<4x64xbf16>,
    %c61_622 = arith.constant 61 : index
    %c0_623 = arith.constant 0 : index
    %362 = vector.load %arg15[%c61_622, %c0_623] : memref<72x64xbf16, #tpu.memory_space<vmem>>, vector<4x64xbf16>
    %c28_624 = arith.constant 28 : index
    %c256_625 = arith.constant 256 : index
    %363 = vector.load %arg16[%c28_624, %c256_625] : memref<32x576xbf16, #tpu.memory_space<vmem>>, vector<4x64xbf16>
    tpu.vector_store %arg16[%c28_624, %c256_625], %362 {strides = array<i32>} : memref<32x576xbf16, #tpu.memory_space<vmem>>, vector<4x64xbf16>,
    %c62_626 = arith.constant 62 : index
    %c0_627 = arith.constant 0 : index
    %364 = vector.load %arg15[%c62_626, %c0_627] : memref<72x64xbf16, #tpu.memory_space<vmem>>, vector<4x64xbf16>
    %c28_628 = arith.constant 28 : index
    %c320_629 = arith.constant 320 : index
    %365 = vector.load %arg16[%c28_628, %c320_629] : memref<32x576xbf16, #tpu.memory_space<vmem>>, vector<4x64xbf16>
    tpu.vector_store %arg16[%c28_628, %c320_629], %364 {strides = array<i32>} : memref<32x576xbf16, #tpu.memory_space<vmem>>, vector<4x64xbf16>,
    %c66_630 = arith.constant 66 : index
    %c0_631 = arith.constant 0 : index
    %366 = vector.load %arg15[%c66_630, %c0_631] : memref<72x64xbf16, #tpu.memory_space<vmem>>, vector<4x64xbf16>
    %c28_632 = arith.constant 28 : index
    %c384_633 = arith.constant 384 : index
    %367 = vector.load %arg16[%c28_632, %c384_633] : memref<32x576xbf16, #tpu.memory_space<vmem>>, vector<4x64xbf16>
    tpu.vector_store %arg16[%c28_632, %c384_633], %366 {strides = array<i32>} : memref<32x576xbf16, #tpu.memory_space<vmem>>, vector<4x64xbf16>,
    %c67 = arith.constant 67 : index
    %c0_634 = arith.constant 0 : index
    %368 = vector.load %arg15[%c67, %c0_634] : memref<72x64xbf16, #tpu.memory_space<vmem>>, vector<4x64xbf16>
    %c28_635 = arith.constant 28 : index
    %c448_636 = arith.constant 448 : index
    %369 = vector.load %arg16[%c28_635, %c448_636] : memref<32x576xbf16, #tpu.memory_space<vmem>>, vector<4x64xbf16>
    tpu.vector_store %arg16[%c28_635, %c448_636], %368 {strides = array<i32>} : memref<32x576xbf16, #tpu.memory_space<vmem>>, vector<4x64xbf16>,
    %c68 = arith.constant 68 : index
    %c0_637 = arith.constant 0 : index
    %370 = vector.load %arg15[%c68, %c0_637] : memref<72x64xbf16, #tpu.memory_space<vmem>>, vector<4x64xbf16>
    %c28_638 = arith.constant 28 : index
    %c512_639 = arith.constant 512 : index
    %371 = vector.load %arg16[%c28_638, %c512_639] : memref<32x576xbf16, #tpu.memory_space<vmem>>, vector<4x64xbf16>
    tpu.vector_store %arg16[%c28_638, %c512_639], %370 {strides = array<i32>} : memref<32x576xbf16, #tpu.memory_space<vmem>>, vector<4x64xbf16>,
    %c0_640 = arith.constant 0 : index
    %c0_641 = arith.constant 0 : index
    %372 = vector.load %arg16[%c0_640, %c0_641] : memref<32x576xbf16, #tpu.memory_space<vmem>>, vector<32x576xbf16>
    %c0_642 = arith.constant 0 : index
    %c0_643 = arith.constant 0 : index
    %373 = vector.load %arg5[%c0_642, %c0_643] : memref<576x64xbf16, #tpu.memory_space<vmem>>, vector<576x64xbf16>
    %cst_644 = arith.constant dense<0.000000e+00> : vector<32x64xf32>
    %374 = tpu.matmul %372, %373, %cst_644 {dimension_numbers = #tpu.dot_dimension_numbers<[1], [0], [0], [1], [0, 0, 1, 1], [], []>} : vector<32x576xbf16>, vector<576x64xbf16>, vector<32x64xf32> -> vector<32x64xf32>
    %c0_645 = arith.constant 0 : index
    %c0_646 = arith.constant 0 : index
    %375 = vector.load %arg6[%c0_645, %c0_646] : memref<1x64xf32, #tpu.memory_space<vmem>>, vector<1x64xf32>
    %376 = vector.broadcast %375 : vector<1x64xf32> to vector<32x64xf32>
    %377 = arith.addf %374, %376 : vector<32x64xf32>
    %cst_647 = arith.constant 0.000000e+00 : f32
    %378 = vector.broadcast %cst_647 : f32 to vector<32x64xf32>
    %379 = arith.maximumf %377, %378 : vector<32x64xf32>
    %380 = arith.truncf %379 : vector<32x64xf32> to vector<32x64xbf16>
    %c0_648 = arith.constant 0 : index
    %c0_649 = arith.constant 0 : index
    %381 = vector.load %arg17[%c0_648, %c0_649] : memref<32x64xbf16, #tpu.memory_space<vmem>>, vector<32x64xbf16>
    tpu.vector_store %arg17[%c0_648, %c0_649], %380 {strides = array<i32>} : memref<32x64xbf16, #tpu.memory_space<vmem>>, vector<32x64xbf16>,
    %c0_650 = arith.constant 0 : index
    %c0_651 = arith.constant 0 : index
    %382 = vector.load %arg17[%c0_650, %c0_651] : memref<32x64xbf16, #tpu.memory_space<vmem>>, vector<1x64xbf16>
    %c0_652 = arith.constant 0 : index
    %c0_653 = arith.constant 0 : index
    %383 = vector.load %arg18[%c0_652, %c0_653] : memref<2x1024xbf16, #tpu.memory_space<vmem>>, vector<1x64xbf16>
    tpu.vector_store %arg18[%c0_652, %c0_653], %382 {strides = array<i32>} : memref<2x1024xbf16, #tpu.memory_space<vmem>>, vector<1x64xbf16>,
    %c1_654 = arith.constant 1 : index
    %c0_655 = arith.constant 0 : index
    %384 = vector.load %arg17[%c1_654, %c0_655] : memref<32x64xbf16, #tpu.memory_space<vmem>>, vector<1x64xbf16>
    %c0_656 = arith.constant 0 : index
    %c64_657 = arith.constant 64 : index
    %385 = vector.load %arg18[%c0_656, %c64_657] : memref<2x1024xbf16, #tpu.memory_space<vmem>>, vector<1x64xbf16>
    tpu.vector_store %arg18[%c0_656, %c64_657], %384 {strides = array<i32>} : memref<2x1024xbf16, #tpu.memory_space<vmem>>, vector<1x64xbf16>,
    %c2_658 = arith.constant 2 : index
    %c0_659 = arith.constant 0 : index
    %386 = vector.load %arg17[%c2_658, %c0_659] : memref<32x64xbf16, #tpu.memory_space<vmem>>, vector<1x64xbf16>
    %c0_660 = arith.constant 0 : index
    %c128_661 = arith.constant 128 : index
    %387 = vector.load %arg18[%c0_660, %c128_661] : memref<2x1024xbf16, #tpu.memory_space<vmem>>, vector<1x64xbf16>
    tpu.vector_store %arg18[%c0_660, %c128_661], %386 {strides = array<i32>} : memref<2x1024xbf16, #tpu.memory_space<vmem>>, vector<1x64xbf16>,
    %c3 = arith.constant 3 : index
    %c0_662 = arith.constant 0 : index
    %388 = vector.load %arg17[%c3, %c0_662] : memref<32x64xbf16, #tpu.memory_space<vmem>>, vector<1x64xbf16>
    %c0_663 = arith.constant 0 : index
    %c192_664 = arith.constant 192 : index
    %389 = vector.load %arg18[%c0_663, %c192_664] : memref<2x1024xbf16, #tpu.memory_space<vmem>>, vector<1x64xbf16>
    tpu.vector_store %arg18[%c0_663, %c192_664], %388 {strides = array<i32>} : memref<2x1024xbf16, #tpu.memory_space<vmem>>, vector<1x64xbf16>,
    %c4_665 = arith.constant 4 : index
    %c0_666 = arith.constant 0 : index
    %390 = vector.load %arg17[%c4_665, %c0_666] : memref<32x64xbf16, #tpu.memory_space<vmem>>, vector<1x64xbf16>
    %c0_667 = arith.constant 0 : index
    %c256_668 = arith.constant 256 : index
    %391 = vector.load %arg18[%c0_667, %c256_668] : memref<2x1024xbf16, #tpu.memory_space<vmem>>, vector<1x64xbf16>
    tpu.vector_store %arg18[%c0_667, %c256_668], %390 {strides = array<i32>} : memref<2x1024xbf16, #tpu.memory_space<vmem>>, vector<1x64xbf16>,
    %c5 = arith.constant 5 : index
    %c0_669 = arith.constant 0 : index
    %392 = vector.load %arg17[%c5, %c0_669] : memref<32x64xbf16, #tpu.memory_space<vmem>>, vector<1x64xbf16>
    %c0_670 = arith.constant 0 : index
    %c320_671 = arith.constant 320 : index
    %393 = vector.load %arg18[%c0_670, %c320_671] : memref<2x1024xbf16, #tpu.memory_space<vmem>>, vector<1x64xbf16>
    tpu.vector_store %arg18[%c0_670, %c320_671], %392 {strides = array<i32>} : memref<2x1024xbf16, #tpu.memory_space<vmem>>, vector<1x64xbf16>,
    %c6_672 = arith.constant 6 : index
    %c0_673 = arith.constant 0 : index
    %394 = vector.load %arg17[%c6_672, %c0_673] : memref<32x64xbf16, #tpu.memory_space<vmem>>, vector<1x64xbf16>
    %c0_674 = arith.constant 0 : index
    %c384_675 = arith.constant 384 : index
    %395 = vector.load %arg18[%c0_674, %c384_675] : memref<2x1024xbf16, #tpu.memory_space<vmem>>, vector<1x64xbf16>
    tpu.vector_store %arg18[%c0_674, %c384_675], %394 {strides = array<i32>} : memref<2x1024xbf16, #tpu.memory_space<vmem>>, vector<1x64xbf16>,
    %c7_676 = arith.constant 7 : index
    %c0_677 = arith.constant 0 : index
    %396 = vector.load %arg17[%c7_676, %c0_677] : memref<32x64xbf16, #tpu.memory_space<vmem>>, vector<1x64xbf16>
    %c0_678 = arith.constant 0 : index
    %c448_679 = arith.constant 448 : index
    %397 = vector.load %arg18[%c0_678, %c448_679] : memref<2x1024xbf16, #tpu.memory_space<vmem>>, vector<1x64xbf16>
    tpu.vector_store %arg18[%c0_678, %c448_679], %396 {strides = array<i32>} : memref<2x1024xbf16, #tpu.memory_space<vmem>>, vector<1x64xbf16>,
    %c8_680 = arith.constant 8 : index
    %c0_681 = arith.constant 0 : index
    %398 = vector.load %arg17[%c8_680, %c0_681] : memref<32x64xbf16, #tpu.memory_space<vmem>>, vector<1x64xbf16>
    %c0_682 = arith.constant 0 : index
    %c512_683 = arith.constant 512 : index
    %399 = vector.load %arg18[%c0_682, %c512_683] : memref<2x1024xbf16, #tpu.memory_space<vmem>>, vector<1x64xbf16>
    tpu.vector_store %arg18[%c0_682, %c512_683], %398 {strides = array<i32>} : memref<2x1024xbf16, #tpu.memory_space<vmem>>, vector<1x64xbf16>,
    %c9_684 = arith.constant 9 : index
    %c0_685 = arith.constant 0 : index
    %400 = vector.load %arg17[%c9_684, %c0_685] : memref<32x64xbf16, #tpu.memory_space<vmem>>, vector<1x64xbf16>
    %c0_686 = arith.constant 0 : index
    %c576 = arith.constant 576 : index
    %401 = vector.load %arg18[%c0_686, %c576] : memref<2x1024xbf16, #tpu.memory_space<vmem>>, vector<1x64xbf16>
    tpu.vector_store %arg18[%c0_686, %c576], %400 {strides = array<i32>} : memref<2x1024xbf16, #tpu.memory_space<vmem>>, vector<1x64xbf16>,
    %c10 = arith.constant 10 : index
    %c0_687 = arith.constant 0 : index
    %402 = vector.load %arg17[%c10, %c0_687] : memref<32x64xbf16, #tpu.memory_space<vmem>>, vector<1x64xbf16>
    %c0_688 = arith.constant 0 : index
    %c640 = arith.constant 640 : index
    %403 = vector.load %arg18[%c0_688, %c640] : memref<2x1024xbf16, #tpu.memory_space<vmem>>, vector<1x64xbf16>
    tpu.vector_store %arg18[%c0_688, %c640], %402 {strides = array<i32>} : memref<2x1024xbf16, #tpu.memory_space<vmem>>, vector<1x64xbf16>,
    %c11 = arith.constant 11 : index
    %c0_689 = arith.constant 0 : index
    %404 = vector.load %arg17[%c11, %c0_689] : memref<32x64xbf16, #tpu.memory_space<vmem>>, vector<1x64xbf16>
    %c0_690 = arith.constant 0 : index
    %c704 = arith.constant 704 : index
    %405 = vector.load %arg18[%c0_690, %c704] : memref<2x1024xbf16, #tpu.memory_space<vmem>>, vector<1x64xbf16>
    tpu.vector_store %arg18[%c0_690, %c704], %404 {strides = array<i32>} : memref<2x1024xbf16, #tpu.memory_space<vmem>>, vector<1x64xbf16>,
    %c12_691 = arith.constant 12 : index
    %c0_692 = arith.constant 0 : index
    %406 = vector.load %arg17[%c12_691, %c0_692] : memref<32x64xbf16, #tpu.memory_space<vmem>>, vector<1x64xbf16>
    %c0_693 = arith.constant 0 : index
    %c768_694 = arith.constant 768 : index
    %407 = vector.load %arg18[%c0_693, %c768_694] : memref<2x1024xbf16, #tpu.memory_space<vmem>>, vector<1x64xbf16>
    tpu.vector_store %arg18[%c0_693, %c768_694], %406 {strides = array<i32>} : memref<2x1024xbf16, #tpu.memory_space<vmem>>, vector<1x64xbf16>,
    %c13_695 = arith.constant 13 : index
    %c0_696 = arith.constant 0 : index
    %408 = vector.load %arg17[%c13_695, %c0_696] : memref<32x64xbf16, #tpu.memory_space<vmem>>, vector<1x64xbf16>
    %c0_697 = arith.constant 0 : index
    %c832 = arith.constant 832 : index
    %409 = vector.load %arg18[%c0_697, %c832] : memref<2x1024xbf16, #tpu.memory_space<vmem>>, vector<1x64xbf16>
    tpu.vector_store %arg18[%c0_697, %c832], %408 {strides = array<i32>} : memref<2x1024xbf16, #tpu.memory_space<vmem>>, vector<1x64xbf16>,
    %c14_698 = arith.constant 14 : index
    %c0_699 = arith.constant 0 : index
    %410 = vector.load %arg17[%c14_698, %c0_699] : memref<32x64xbf16, #tpu.memory_space<vmem>>, vector<1x64xbf16>
    %c0_700 = arith.constant 0 : index
    %c896 = arith.constant 896 : index
    %411 = vector.load %arg18[%c0_700, %c896] : memref<2x1024xbf16, #tpu.memory_space<vmem>>, vector<1x64xbf16>
    tpu.vector_store %arg18[%c0_700, %c896], %410 {strides = array<i32>} : memref<2x1024xbf16, #tpu.memory_space<vmem>>, vector<1x64xbf16>,
    %c15_701 = arith.constant 15 : index
    %c0_702 = arith.constant 0 : index
    %412 = vector.load %arg17[%c15_701, %c0_702] : memref<32x64xbf16, #tpu.memory_space<vmem>>, vector<1x64xbf16>
    %c0_703 = arith.constant 0 : index
    %c960 = arith.constant 960 : index
    %413 = vector.load %arg18[%c0_703, %c960] : memref<2x1024xbf16, #tpu.memory_space<vmem>>, vector<1x64xbf16>
    tpu.vector_store %arg18[%c0_703, %c960], %412 {strides = array<i32>} : memref<2x1024xbf16, #tpu.memory_space<vmem>>, vector<1x64xbf16>,
    %c16_704 = arith.constant 16 : index
    %c0_705 = arith.constant 0 : index
    %414 = vector.load %arg17[%c16_704, %c0_705] : memref<32x64xbf16, #tpu.memory_space<vmem>>, vector<1x64xbf16>
    %c1_706 = arith.constant 1 : index
    %c0_707 = arith.constant 0 : index
    %415 = vector.load %arg18[%c1_706, %c0_707] : memref<2x1024xbf16, #tpu.memory_space<vmem>>, vector<1x64xbf16>
    tpu.vector_store %arg18[%c1_706, %c0_707], %414 {strides = array<i32>} : memref<2x1024xbf16, #tpu.memory_space<vmem>>, vector<1x64xbf16>,
    %c17_708 = arith.constant 17 : index
    %c0_709 = arith.constant 0 : index
    %416 = vector.load %arg17[%c17_708, %c0_709] : memref<32x64xbf16, #tpu.memory_space<vmem>>, vector<1x64xbf16>
    %c1_710 = arith.constant 1 : index
    %c64_711 = arith.constant 64 : index
    %417 = vector.load %arg18[%c1_710, %c64_711] : memref<2x1024xbf16, #tpu.memory_space<vmem>>, vector<1x64xbf16>
    tpu.vector_store %arg18[%c1_710, %c64_711], %416 {strides = array<i32>} : memref<2x1024xbf16, #tpu.memory_space<vmem>>, vector<1x64xbf16>,
    %c18_712 = arith.constant 18 : index
    %c0_713 = arith.constant 0 : index
    %418 = vector.load %arg17[%c18_712, %c0_713] : memref<32x64xbf16, #tpu.memory_space<vmem>>, vector<1x64xbf16>
    %c1_714 = arith.constant 1 : index
    %c128_715 = arith.constant 128 : index
    %419 = vector.load %arg18[%c1_714, %c128_715] : memref<2x1024xbf16, #tpu.memory_space<vmem>>, vector<1x64xbf16>
    tpu.vector_store %arg18[%c1_714, %c128_715], %418 {strides = array<i32>} : memref<2x1024xbf16, #tpu.memory_space<vmem>>, vector<1x64xbf16>,
    %c19_716 = arith.constant 19 : index
    %c0_717 = arith.constant 0 : index
    %420 = vector.load %arg17[%c19_716, %c0_717] : memref<32x64xbf16, #tpu.memory_space<vmem>>, vector<1x64xbf16>
    %c1_718 = arith.constant 1 : index
    %c192_719 = arith.constant 192 : index
    %421 = vector.load %arg18[%c1_718, %c192_719] : memref<2x1024xbf16, #tpu.memory_space<vmem>>, vector<1x64xbf16>
    tpu.vector_store %arg18[%c1_718, %c192_719], %420 {strides = array<i32>} : memref<2x1024xbf16, #tpu.memory_space<vmem>>, vector<1x64xbf16>,
    %c20_720 = arith.constant 20 : index
    %c0_721 = arith.constant 0 : index
    %422 = vector.load %arg17[%c20_720, %c0_721] : memref<32x64xbf16, #tpu.memory_space<vmem>>, vector<1x64xbf16>
    %c1_722 = arith.constant 1 : index
    %c256_723 = arith.constant 256 : index
    %423 = vector.load %arg18[%c1_722, %c256_723] : memref<2x1024xbf16, #tpu.memory_space<vmem>>, vector<1x64xbf16>
    tpu.vector_store %arg18[%c1_722, %c256_723], %422 {strides = array<i32>} : memref<2x1024xbf16, #tpu.memory_space<vmem>>, vector<1x64xbf16>,
    %c21_724 = arith.constant 21 : index
    %c0_725 = arith.constant 0 : index
    %424 = vector.load %arg17[%c21_724, %c0_725] : memref<32x64xbf16, #tpu.memory_space<vmem>>, vector<1x64xbf16>
    %c1_726 = arith.constant 1 : index
    %c320_727 = arith.constant 320 : index
    %425 = vector.load %arg18[%c1_726, %c320_727] : memref<2x1024xbf16, #tpu.memory_space<vmem>>, vector<1x64xbf16>
    tpu.vector_store %arg18[%c1_726, %c320_727], %424 {strides = array<i32>} : memref<2x1024xbf16, #tpu.memory_space<vmem>>, vector<1x64xbf16>,
    %c22_728 = arith.constant 22 : index
    %c0_729 = arith.constant 0 : index
    %426 = vector.load %arg17[%c22_728, %c0_729] : memref<32x64xbf16, #tpu.memory_space<vmem>>, vector<1x64xbf16>
    %c1_730 = arith.constant 1 : index
    %c384_731 = arith.constant 384 : index
    %427 = vector.load %arg18[%c1_730, %c384_731] : memref<2x1024xbf16, #tpu.memory_space<vmem>>, vector<1x64xbf16>
    tpu.vector_store %arg18[%c1_730, %c384_731], %426 {strides = array<i32>} : memref<2x1024xbf16, #tpu.memory_space<vmem>>, vector<1x64xbf16>,
    %c23 = arith.constant 23 : index
    %c0_732 = arith.constant 0 : index
    %428 = vector.load %arg17[%c23, %c0_732] : memref<32x64xbf16, #tpu.memory_space<vmem>>, vector<1x64xbf16>
    %c1_733 = arith.constant 1 : index
    %c448_734 = arith.constant 448 : index
    %429 = vector.load %arg18[%c1_733, %c448_734] : memref<2x1024xbf16, #tpu.memory_space<vmem>>, vector<1x64xbf16>
    tpu.vector_store %arg18[%c1_733, %c448_734], %428 {strides = array<i32>} : memref<2x1024xbf16, #tpu.memory_space<vmem>>, vector<1x64xbf16>,
    %c24_735 = arith.constant 24 : index
    %c0_736 = arith.constant 0 : index
    %430 = vector.load %arg17[%c24_735, %c0_736] : memref<32x64xbf16, #tpu.memory_space<vmem>>, vector<1x64xbf16>
    %c1_737 = arith.constant 1 : index
    %c512_738 = arith.constant 512 : index
    %431 = vector.load %arg18[%c1_737, %c512_738] : memref<2x1024xbf16, #tpu.memory_space<vmem>>, vector<1x64xbf16>
    tpu.vector_store %arg18[%c1_737, %c512_738], %430 {strides = array<i32>} : memref<2x1024xbf16, #tpu.memory_space<vmem>>, vector<1x64xbf16>,
    %c25_739 = arith.constant 25 : index
    %c0_740 = arith.constant 0 : index
    %432 = vector.load %arg17[%c25_739, %c0_740] : memref<32x64xbf16, #tpu.memory_space<vmem>>, vector<1x64xbf16>
    %c1_741 = arith.constant 1 : index
    %c576_742 = arith.constant 576 : index
    %433 = vector.load %arg18[%c1_741, %c576_742] : memref<2x1024xbf16, #tpu.memory_space<vmem>>, vector<1x64xbf16>
    tpu.vector_store %arg18[%c1_741, %c576_742], %432 {strides = array<i32>} : memref<2x1024xbf16, #tpu.memory_space<vmem>>, vector<1x64xbf16>,
    %c26_743 = arith.constant 26 : index
    %c0_744 = arith.constant 0 : index
    %434 = vector.load %arg17[%c26_743, %c0_744] : memref<32x64xbf16, #tpu.memory_space<vmem>>, vector<1x64xbf16>
    %c1_745 = arith.constant 1 : index
    %c640_746 = arith.constant 640 : index
    %435 = vector.load %arg18[%c1_745, %c640_746] : memref<2x1024xbf16, #tpu.memory_space<vmem>>, vector<1x64xbf16>
    tpu.vector_store %arg18[%c1_745, %c640_746], %434 {strides = array<i32>} : memref<2x1024xbf16, #tpu.memory_space<vmem>>, vector<1x64xbf16>,
    %c27 = arith.constant 27 : index
    %c0_747 = arith.constant 0 : index
    %436 = vector.load %arg17[%c27, %c0_747] : memref<32x64xbf16, #tpu.memory_space<vmem>>, vector<1x64xbf16>
    %c1_748 = arith.constant 1 : index
    %c704_749 = arith.constant 704 : index
    %437 = vector.load %arg18[%c1_748, %c704_749] : memref<2x1024xbf16, #tpu.memory_space<vmem>>, vector<1x64xbf16>
    tpu.vector_store %arg18[%c1_748, %c704_749], %436 {strides = array<i32>} : memref<2x1024xbf16, #tpu.memory_space<vmem>>, vector<1x64xbf16>,
    %c28_750 = arith.constant 28 : index
    %c0_751 = arith.constant 0 : index
    %438 = vector.load %arg17[%c28_750, %c0_751] : memref<32x64xbf16, #tpu.memory_space<vmem>>, vector<1x64xbf16>
    %c1_752 = arith.constant 1 : index
    %c768_753 = arith.constant 768 : index
    %439 = vector.load %arg18[%c1_752, %c768_753] : memref<2x1024xbf16, #tpu.memory_space<vmem>>, vector<1x64xbf16>
    tpu.vector_store %arg18[%c1_752, %c768_753], %438 {strides = array<i32>} : memref<2x1024xbf16, #tpu.memory_space<vmem>>, vector<1x64xbf16>,
    %c29_754 = arith.constant 29 : index
    %c0_755 = arith.constant 0 : index
    %440 = vector.load %arg17[%c29_754, %c0_755] : memref<32x64xbf16, #tpu.memory_space<vmem>>, vector<1x64xbf16>
    %c1_756 = arith.constant 1 : index
    %c832_757 = arith.constant 832 : index
    %441 = vector.load %arg18[%c1_756, %c832_757] : memref<2x1024xbf16, #tpu.memory_space<vmem>>, vector<1x64xbf16>
    tpu.vector_store %arg18[%c1_756, %c832_757], %440 {strides = array<i32>} : memref<2x1024xbf16, #tpu.memory_space<vmem>>, vector<1x64xbf16>,
    %c30_758 = arith.constant 30 : index
    %c0_759 = arith.constant 0 : index
    %442 = vector.load %arg17[%c30_758, %c0_759] : memref<32x64xbf16, #tpu.memory_space<vmem>>, vector<1x64xbf16>
    %c1_760 = arith.constant 1 : index
    %c896_761 = arith.constant 896 : index
    %443 = vector.load %arg18[%c1_760, %c896_761] : memref<2x1024xbf16, #tpu.memory_space<vmem>>, vector<1x64xbf16>
    tpu.vector_store %arg18[%c1_760, %c896_761], %442 {strides = array<i32>} : memref<2x1024xbf16, #tpu.memory_space<vmem>>, vector<1x64xbf16>,
    %c31_762 = arith.constant 31 : index
    %c0_763 = arith.constant 0 : index
    %444 = vector.load %arg17[%c31_762, %c0_763] : memref<32x64xbf16, #tpu.memory_space<vmem>>, vector<1x64xbf16>
    %c1_764 = arith.constant 1 : index
    %c960_765 = arith.constant 960 : index
    %445 = vector.load %arg18[%c1_764, %c960_765] : memref<2x1024xbf16, #tpu.memory_space<vmem>>, vector<1x64xbf16>
    tpu.vector_store %arg18[%c1_764, %c960_765], %444 {strides = array<i32>} : memref<2x1024xbf16, #tpu.memory_space<vmem>>, vector<1x64xbf16>,
    %c0_766 = arith.constant 0 : index
    %c0_767 = arith.constant 0 : index
    %446 = vector.load %arg18[%c0_766, %c0_767] : memref<2x1024xbf16, #tpu.memory_space<vmem>>, vector<2x1024xbf16>
    %c0_768 = arith.constant 0 : index
    %c0_769 = arith.constant 0 : index
    %447 = vector.load %arg7[%c0_768, %c0_769] : memref<1024x128xbf16, #tpu.memory_space<vmem>>, vector<1024x128xbf16>
    %cst_770 = arith.constant dense<0.000000e+00> : vector<2x128xf32>
    %448 = tpu.matmul %446, %447, %cst_770 {dimension_numbers = #tpu.dot_dimension_numbers<[1], [0], [0], [1], [0, 0, 1, 1], [], []>} : vector<2x1024xbf16>, vector<1024x128xbf16>, vector<2x128xf32> -> vector<2x128xf32>
    %c0_771 = arith.constant 0 : index
    %c0_772 = arith.constant 0 : index
    %449 = vector.load %arg8[%c0_771, %c0_772] : memref<1x128xf32, #tpu.memory_space<vmem>>, vector<1x128xf32>
    %450 = vector.broadcast %449 : vector<1x128xf32> to vector<2x128xf32>
    %451 = arith.addf %448, %450 : vector<2x128xf32>
    %cst_773 = arith.constant 0.000000e+00 : f32
    %452 = vector.broadcast %cst_773 : f32 to vector<2x128xf32>
    %453 = arith.maximumf %451, %452 : vector<2x128xf32>
    %454 = arith.truncf %453 : vector<2x128xf32> to vector<2x128xbf16>
    %c0_774 = arith.constant 0 : index
    %c0_775 = arith.constant 0 : index
    %455 = vector.load %arg9[%c0_774, %c0_775] : memref<128x128xbf16, #tpu.memory_space<vmem>>, vector<128x128xbf16>
    %cst_776 = arith.constant dense<0.000000e+00> : vector<2x128xf32>
    %456 = tpu.matmul %454, %455, %cst_776 {dimension_numbers = #tpu.dot_dimension_numbers<[1], [0], [0], [1], [0, 0, 1, 1], [], []>} : vector<2x128xbf16>, vector<128x128xbf16>, vector<2x128xf32> -> vector<2x128xf32>
    %c0_777 = arith.constant 0 : index
    %c0_778 = arith.constant 0 : index
    %457 = vector.load %arg10[%c0_777, %c0_778] : memref<1x128xf32, #tpu.memory_space<vmem>>, vector<1x128xf32>
    %458 = vector.broadcast %457 : vector<1x128xf32> to vector<2x128xf32>
    %459 = arith.addf %456, %458 : vector<2x128xf32>
    %c0_779 = arith.constant 0 : index
    %c0_780 = arith.constant 0 : index
    %460 = vector.load %arg11[%c0_779, %c0_780] : memref<2x128xf32, #tpu.memory_space<vmem>>, vector<2x128xf32>
    tpu.vector_store %arg11[%c0_779, %c0_780], %459 {strides = array<i32>} : memref<2x128xf32, #tpu.memory_space<vmem>>, vector<2x128xf32>,
    return
  }
}

</mosaic_0001>

<llo_original>
// kernel: action_network_forward.1
$region0: #{action_network_forward.1}
  #allocation0 [shape = 'u32[]', space=smem, size = 0x4, offset = 0x4, fixed_abs, tag = 'smem constant byte address 0x4 - core index']
  #allocation1 [shape = 'u32[144,128]{1,0:T(1,128)}', space=vmem, size = 0x12000, scoped, tag = 'internal scratch']
  #allocation2 [shape = 'bf16[98,1024]{1,0:T(8,128)(2,1)}', space=vmem, size = 0x34000, scoped, tag = 'scratch operand']
  #allocation3 [shape = 'bf16[98,128]{1,0:T(8,128)(2,1)}', space=vmem, size = 0x6800, scoped, tag = 'scratch operand']
  #allocation4 [shape = 'bf16[72,512]{1,0:T(8,128)(2,1)}', space=vmem, size = 0x12000, scoped, tag = 'scratch operand']
  #allocation5 [shape = 'bf16[72,64]{1,0:T(8,128)(2,1)}', space=vmem, size = 0x4800, scoped, tag = 'scratch operand']
  #allocation6 [shape = 'bf16[32,576]{1,0:T(16,128)(2,1)}', space=vmem, size = 0xa000, scoped, tag = 'scratch operand']
  #allocation7 [shape = 'bf16[32,64]{1,0:T(16,128)(2,1)}', space=vmem, size = 0x2000, scoped, tag = 'scratch operand']
  #allocation8 [shape = 'bf16[2,1024]{1,0:T(2,128)(2,1)}', space=vmem, size = 0x1000, scoped, tag = 'scratch operand']
  %s0 = inlined_call_operand.vmem [shape: bf16[128,256], index: 0, kind: input, shape index: {}]
  %s1 = inlined_call_operand.vmem [shape: bf16[1024,128], index: 1, kind: input, shape index: {}]
  %s2 = inlined_call_operand.vmem [shape: f32[1,128], index: 2, kind: input, shape index: {}]
  %s3 = inlined_call_operand.vmem [shape: bf16[512,64], index: 3, kind: input, shape index: {}]
  %s4 = inlined_call_operand.vmem [shape: f32[1,64], index: 4, kind: input, shape index: {}]
  %s5 = inlined_call_operand.vmem [shape: bf16[576,64], index: 5, kind: input, shape index: {}]
  %s6 = inlined_call_operand.vmem [shape: f32[1,64], index: 6, kind: input, shape index: {}]
  %s7 = inlined_call_operand.vmem [shape: bf16[1024,128], index: 7, kind: input, shape index: {}]
  %s8 = inlined_call_operand.vmem [shape: f32[1,128], index: 8, kind: input, shape index: {}]
  %s9 = inlined_call_operand.vmem [shape: bf16[128,128], index: 9, kind: input, shape index: {}]
  %s10 = inlined_call_operand.vmem [shape: f32[1,128], index: 10, kind: input, shape index: {}]
  %s11 = inlined_call_operand.hbm [shape: f32[2,128], index: 11, kind: output, shape index: {}]
  %s12 = sld [smem:[#allocation0]]
  $region54: #{action_network_forward.1} parent=0
    _
  %s14 = ssub.s32 1, %s12
  %s15 = scalar_select 0, %s14, %s12
  $region1: #{action_network_forward.1} parent=0
    #allocation9 [shape = 'u8[1024]{0}', space=vmem, size = 0x400, scoped, tag = 'output window, operand 0, single buffered']
    #allocation10 [shape = 's32[1]{0}', space=sflag, size = 0x4, scoped, tag = 'scoped memory for action_network_forward.1']
    %16 = vsyncpa [#allocation10], 0
    // Predicated region
    $region2: #{action_network_forward.1} parent=1 // pred_check
      _
    $region3: #{action_network_forward.1} parent=1 // pred_check_branch
      %18 = sbr.rel (0) target = $region5
    $region4: #{action_network_forward.1} parent=1 // pred_region
      _
    $region5: #{action_network_forward.1} parent=1 // pred_fallthru
      _
    // Predicated region
    $region6: #{action_network_forward.1} parent=1 // pred_check
      _
    $region7: #{action_network_forward.1} parent=1 // pred_check_branch
      %20 = sbr.rel (0) target = $region9
    $region8: #{action_network_forward.1} parent=1 // pred_region
      _
    $region9: #{action_network_forward.1} parent=1 // pred_fallthru
      _
    // Predicated region
    $region10: #{action_network_forward.1} parent=1 // pred_check
      _
    $region11: #{action_network_forward.1} parent=1 // pred_check_branch
      %22 = sbr.rel (0) target = $region13
    $region12: #{action_network_forward.1} parent=1 // pred_region
      _
    $region13: #{action_network_forward.1} parent=1 // pred_fallthru
      _
    // Predicated region
    $region14: #{action_network_forward.1} parent=1 // pred_check
      _
    $region15: #{action_network_forward.1} parent=1 // pred_check_branch
      %24 = sbr.rel (0) target = $region17
    $region16: #{action_network_forward.1} parent=1 // pred_region
      _
    $region17: #{action_network_forward.1} parent=1 // pred_fallthru
      _
    // Predicated region
    $region18: #{action_network_forward.1} parent=1 // pred_check
      _
    $region19: #{action_network_forward.1} parent=1 // pred_check_branch
      %26 = sbr.rel (0) target = $region21
    $region20: #{action_network_forward.1} parent=1 // pred_region
      _
    $region21: #{action_network_forward.1} parent=1 // pred_fallthru
      _
    // Predicated region
    $region22: #{action_network_forward.1} parent=1 // pred_check
      _
    $region23: #{action_network_forward.1} parent=1 // pred_check_branch
      %28 = sbr.rel (0) target = $region25
    $region24: #{action_network_forward.1} parent=1 // pred_region
      _
    $region25: #{action_network_forward.1} parent=1 // pred_fallthru
      _
    // Predicated region
    $region26: #{action_network_forward.1} parent=1 // pred_check
      _
    $region27: #{action_network_forward.1} parent=1 // pred_check_branch
      %30 = sbr.rel (0) target = $region29
    $region28: #{action_network_forward.1} parent=1 // pred_region
      _
    $region29: #{action_network_forward.1} parent=1 // pred_fallthru
      _
    // Predicated region
    $region30: #{action_network_forward.1} parent=1 // pred_check
      _
    $region31: #{action_network_forward.1} parent=1 // pred_check_branch
      %32 = sbr.rel (0) target = $region33
    $region32: #{action_network_forward.1} parent=1 // pred_region
      _
    $region33: #{action_network_forward.1} parent=1 // pred_fallthru
      _
    // Predicated region
    $region34: #{action_network_forward.1} parent=1 // pred_check
      _
    $region35: #{action_network_forward.1} parent=1 // pred_check_branch
      %34 = sbr.rel (0) target = $region37
    $region36: #{action_network_forward.1} parent=1 // pred_region
      _
    $region37: #{action_network_forward.1} parent=1 // pred_fallthru
      _
    // Predicated region
    $region38: #{action_network_forward.1} parent=1 // pred_check
      _
    $region39: #{action_network_forward.1} parent=1 // pred_check_branch
      %36 = sbr.rel (0) target = $region41
    $region40: #{action_network_forward.1} parent=1 // pred_region
      _
    $region41: #{action_network_forward.1} parent=1 // pred_fallthru
      _
    // Predicated region
    $region42: #{action_network_forward.1} parent=1 // pred_check
      _
    $region43: #{action_network_forward.1} parent=1 // pred_check_branch
      %38 = sbr.rel (0) target = $region45
    $region44: #{action_network_forward.1} parent=1 // pred_region
      _
    $region45: #{action_network_forward.1} parent=1 // pred_fallthru
      _
    %v40 = vld [vmem:[%s0] sm:$0xff]
    %vm41 = vcmask 1043456
    %vm42 = vsmask.f32 3328
    %vm43 = vmand %vm41, %vm42
    %vm44 = vcmask 1047556
    %vm45 = vsmask.f32 7424
    %vm46 = vmand %vm44, %vm45
    %vm47 = vmor %vm46, %vm43
    %v48 = vld [vmem:[#allocation2] sm:$0xff]
    %v49 = vsel %vm47, %v40, %v48
    %50 = vst [vmem:[#allocation2] sm:$0xff] %v49
    %v51 = vld [vmem:[%s0] sm:$0xff]
    %v53 = vshrl.u32 %v51, 16
    %v55 = vrot.slane %v53, 4
    %v56 = vshll.u32 %v51, 16
    %v58 = vrot.slane %v56, 5
    %v59 = vor.u32 %v55, %v58
    %v60 = vrot.slane %v59, 4
    %v62 = vld [vmem:[#allocation2 + $0x8] sm:$0xff]
    %v63 = vsel %vm47, %v60, %v62
    %64 = vst [vmem:[#allocation2 + $0x8] sm:$0xff] %v63
    %v65 = vld [vmem:[%s0 + $0x8] sm:$0xff]
    %v66 = vld [vmem:[#allocation2 + $0x10] sm:$0xff]
    %v67 = vsel %vm47, %v65, %v66
    %68 = vst [vmem:[#allocation2 + $0x10] sm:$0xff] %v67
    %v69 = vld [vmem:[%s0 + $0x8] sm:$0xff]
    %v71 = vshrl.u32 %v69, 16
    %v73 = vrot.slane %v71, 4
    %v74 = vshll.u32 %v69, 16
    %v76 = vrot.slane %v74, 5
    %v77 = vor.u32 %v73, %v76
    %v78 = vrot.slane %v77, 4
    %v80 = vld [vmem:[#allocation2 + $0x18] sm:$0xff]
    %v81 = vsel %vm47, %v78, %v80
    %82 = vst [vmem:[#allocation2 + $0x18] sm:$0xff] %v81
    %v83 = vld [vmem:[%s0 + $0x8] sm:$0xff]
    %v85 = vshll.u32 %v83, 16
    %v87 = vrot.slane %v85, 5
    %v88 = vshrl.u32 %v83, 16
    %v90 = vrot.slane %v88, 4
    %v91 = vor.u32 %v90, %v87
    %v92 = vrot.slane %v91, 4
    %vm95 = vcmask 1043459
    %vm96 = vsmask.f32 7950
    %vm97 = vmand %vm95, %vm96
    %vm98 = vcmask 1047559
    %vm99 = vsmask.f32 7966
    %vm100 = vmand %vm98, %vm99
    %vm101 = vmor %vm100, %vm97
    %v102 = vld [vmem:[#allocation2] sm:$0x88]
    %v103 = vsel %vm101, %v87, %v102
    %104 = vst [vmem:[#allocation2] sm:$0x88] %v103
    %105 = vst [vmem:[#allocation2 + $0x20] sm:$0x77] %v92
    %v106 = vld [vmem:[%s0 + $0x8] sm:$0xff]
    %v108 = vrot.slane %v106, 5
    %v109 = vrot.slane %v108, 4
    %v112 = vld [vmem:[#allocation2 + $0x8] sm:$0x88]
    %v113 = vsel %vm101, %v108, %v112
    %114 = vst [vmem:[#allocation2 + $0x8] sm:$0x88] %v113
    %115 = vst [vmem:[#allocation2 + $0x28] sm:$0x77] %v109
    %v116 = vld [vmem:[%s0 + $0x10] sm:$0xff]
    %v118 = vshll.u32 %v116, 16
    %v120 = vrot.slane %v118, 5
    %v121 = vshrl.u32 %v116, 16
    %v123 = vrot.slane %v121, 4
    %v124 = vor.u32 %v123, %v120
    %v125 = vrot.slane %v124, 4
    %v128 = vld [vmem:[#allocation2 + $0x10] sm:$0x88]
    %v129 = vsel %vm101, %v120, %v128
    %130 = vst [vmem:[#allocation2 + $0x10] sm:$0x88] %v129
    %131 = vst [vmem:[#allocation2 + $0x30] sm:$0x77] %v125
    %v132 = vld [vmem:[%s0 + $0x10] sm:$0xff]
    %v134 = vrot.slane %v132, 5
    %v135 = vrot.slane %v134, 4
    %v138 = vld [vmem:[#allocation2 + $0x18] sm:$0x88]
    %v139 = vsel %vm101, %v134, %v138
    %140 = vst [vmem:[#allocation2 + $0x18] sm:$0x88] %v139
    %141 = vst [vmem:[#allocation2 + $0x38] sm:$0x77] %v135
    %v142 = vld [vmem:[%s0 + $0x10] sm:$0xff]
    %v144 = vrot.slane %v142, 5
    %v145 = vrot.slane %v144, 4
    %148 = vst [vmem:[#allocation2 + $0x20] sm:$0x88] %v144
    %vm149 = vcmask 1042432
    %vm150 = vsmask.f32 2304
    %vm151 = vmand %vm149, %vm150
    %vm152 = vcmask 1046532
    %vm153 = vsmask.f32 6400
    %vm154 = vmand %vm152, %vm153
    %vm155 = vmor %vm154, %vm151
    %v156 = vld [vmem:[#allocation2 + $0x40] sm:$0x77]
    %v157 = vsel %vm155, %v145, %v156
    %158 = vst [vmem:[#allocation2 + $0x40] sm:$0x77] %v157
    %v159 = vld [vmem:[%s0 + $0x10] sm:$0xff]
    %v161 = vshrl.u32 %v159, 16
    %v163 = vrot.slane %v161, 5
    %v164 = vshll.u32 %v159, 16
    %v166 = vrot.slane %v164, 6
    %v167 = vor.u32 %v163, %v166
    %v168 = vrot.slane %v167, 4
    %171 = vst [vmem:[#allocation2 + $0x28] sm:$0x88] %v167
    %v172 = vld [vmem:[#allocation2 + $0x48] sm:$0x77]
    %v173 = vsel %vm155, %v168, %v172
    %174 = vst [vmem:[#allocation2 + $0x48] sm:$0x77] %v173
    %v175 = vld [vmem:[%s0 + $0x18] sm:$0xff]
    %v177 = vrot.slane %v175, 5
    %v178 = vrot.slane %v177, 4
    %181 = vst [vmem:[#allocation2 + $0x30] sm:$0x88] %v177
    %v182 = vld [vmem:[#allocation2 + $0x50] sm:$0x77]
    %v183 = vsel %vm155, %v178, %v182
    %184 = vst [vmem:[#allocation2 + $0x50] sm:$0x77] %v183
    %v185 = vld [vmem:[%s0 + $0x18] sm:$0xff]
    %v187 = vshrl.u32 %v185, 16
    %v189 = vrot.slane %v187, 5
    %v190 = vshll.u32 %v185, 16
    %v192 = vrot.slane %v190, 6
    %v193 = vor.u32 %v189, %v192
    %v194 = vrot.slane %v193, 4
    %197 = vst [vmem:[#allocation2 + $0x38] sm:$0x88] %v193
    %v198 = vld [vmem:[#allocation2 + $0x58] sm:$0x77]
    %v199 = vsel %vm155, %v194, %v198
    %200 = vst [vmem:[#allocation2 + $0x58] sm:$0x77] %v199
    %v201 = vld [vmem:[%s0 + $0x18] sm:$0xff]
    %v203 = vshrl.u32 %v201, 16
    %v205 = vrot.slane %v203, 5
    %v206 = vshll.u32 %v201, 16
    %v208 = vrot.slane %v206, 6
    %v209 = vor.u32 %v205, %v208
    %v210 = vrot.slane %v209, 4
    %vm213 = vcmask 1043458
    %vm214 = vsmask.f32 7946
    %vm215 = vmand %vm213, %vm214
    %vm216 = vcmask 1047558
    %vm217 = vsmask.f32 7962
    %vm218 = vmand %vm216, %vm217
    %vm219 = vmor %vm218, %vm215
    %v220 = vld [vmem:[#allocation2 + $0x40] sm:$0xcc]
    %v221 = vsel %vm219, %v209, %v220
    %222 = vst [vmem:[#allocation2 + $0x40] sm:$0xcc] %v221
    %223 = vst [vmem:[#allocation2 + $0x60] sm:$0x33] %v210
    %v224 = vld [vmem:[%s0 + $0x18] sm:$0xff]
    %v226 = vrot.slane %v224, 6
    %v227 = vrot.slane %v226, 4
    %v230 = vld [vmem:[#allocation2 + $0x48] sm:$0xcc]
    %v231 = vsel %vm219, %v226, %v230
    %232 = vst [vmem:[#allocation2 + $0x48] sm:$0xcc] %v231
    %233 = vst [vmem:[#allocation2 + $0x68] sm:$0x33] %v227
    %v234 = vld [vmem:[%s0 + $0x20] sm:$0xff]
    %v236 = vshrl.u32 %v234, 16
    %v238 = vrot.slane %v236, 5
    %v239 = vshll.u32 %v234, 16
    %v241 = vrot.slane %v239, 6
    %v242 = vor.u32 %v238, %v241
    %v243 = vrot.slane %v242, 4
    %v246 = vld [vmem:[#allocation2 + $0x50] sm:$0xcc]
    %v247 = vsel %vm219, %v242, %v246
    %248 = vst [vmem:[#allocation2 + $0x50] sm:$0xcc] %v247
    %249 = vst [vmem:[#allocation2 + $0x70] sm:$0x33] %v243
    %v250 = vld [vmem:[%s0 + $0x20] sm:$0xff]
    %v252 = vrot.slane %v250, 6
    %v253 = vrot.slane %v252, 4
    %v256 = vld [vmem:[#allocation2 + $0x58] sm:$0xcc]
    %v257 = vsel %vm219, %v252, %v256
    %258 = vst [vmem:[#allocation2 + $0x58] sm:$0xcc] %v257
    %259 = vst [vmem:[#allocation2 + $0x78] sm:$0x33] %v253
    %v260 = vld [vmem:[%s0 + $0x20] sm:$0xff]
    %v262 = vrot.slane %v260, 6
    %v263 = vrot.slane %v262, 4
    %266 = vst [vmem:[#allocation2 + $0x60] sm:$0xcc] %v262
    %vm267 = vcmask 1041408
    %vm268 = vsmask.f32 1280
    %vm269 = vmand %vm267, %vm268
    %vm270 = vcmask 1045508
    %vm271 = vsmask.f32 5376
    %vm272 = vmand %vm270, %vm271
    %vm273 = vmor %vm272, %vm269
    %v274 = vld [vmem:[#allocation2 + $0x80] sm:$0x33]
    %v275 = vsel %vm273, %v263, %v274
    %276 = vst [vmem:[#allocation2 + $0x80] sm:$0x33] %v275
    %v277 = vld [vmem:[%s0 + $0x20] sm:$0xff]
    %v279 = vshrl.u32 %v277, 16
    %v281 = vrot.slane %v279, 6
    %v282 = vshll.u32 %v277, 16
    %v284 = vrot.slane %v282, 7
    %v285 = vor.u32 %v281, %v284
    %v286 = vrot.slane %v285, 4
    %289 = vst [vmem:[#allocation2 + $0x68] sm:$0xcc] %v285
    %v290 = vld [vmem:[#allocation2 + $0x88] sm:$0x33]
    %v291 = vsel %vm273, %v286, %v290
    %292 = vst [vmem:[#allocation2 + $0x88] sm:$0x33] %v291
    %v293 = vld [vmem:[%s0 + $0x28] sm:$0xff]
    %v295 = vrot.slane %v293, 6
    %v296 = vrot.slane %v295, 4
    %299 = vst [vmem:[#allocation2 + $0x70] sm:$0xcc] %v295
    %v300 = vld [vmem:[#allocation2 + $0x90] sm:$0x33]
    %v301 = vsel %vm273, %v296, %v300
    %302 = vst [vmem:[#allocation2 + $0x90] sm:$0x33] %v301
    %v303 = vld [vmem:[%s0 + $0x28] sm:$0xff]
    %v305 = vshrl.u32 %v303, 16
    %v307 = vrot.slane %v305, 6
    %v308 = vshll.u32 %v303, 16
    %v310 = vrot.slane %v308, 7
    %v311 = vor.u32 %v307, %v310
    %v312 = vrot.slane %v311, 4
    %315 = vst [vmem:[#allocation2 + $0x78] sm:$0xcc] %v311
    %v316 = vld [vmem:[#allocation2 + $0x98] sm:$0x33]
    %v317 = vsel %vm273, %v312, %v316
    %318 = vst [vmem:[#allocation2 + $0x98] sm:$0x33] %v317
    %v319 = vld [vmem:[%s0 + $0x28] sm:$0xff]
    %v321 = vshrl.u32 %v319, 16
    %v323 = vrot.slane %v321, 6
    %v324 = vshll.u32 %v319, 16
    %v326 = vrot.slane %v324, 7
    %v327 = vor.u32 %v323, %v326
    %v328 = vrot.slane %v327, 4
    %vm331 = vcmask 1043457
    %vm332 = vsmask.f32 7942
    %vm333 = vmand %vm331, %vm332
    %vm334 = vcmask 1047557
    %vm335 = vsmask.f32 7958
    %vm336 = vmand %vm334, %vm335
    %vm337 = vmor %vm336, %vm333
    %v338 = vld [vmem:[#allocation2 + $0x80] sm:$0xee]
    %v339 = vsel %vm337, %v327, %v338
    %340 = vst [vmem:[#allocation2 + $0x80] sm:$0xee] %v339
    %341 = vst [vmem:[#allocation2 + $0xa0] sm:$0x11] %v328
    %v342 = vld [vmem:[%s0 + $0x28] sm:$0xff]
    %v344 = vrot.slane %v342, 7
    %v345 = vrot.slane %v344, 4
    %v348 = vld [vmem:[#allocation2 + $0x88] sm:$0xee]
    %v349 = vsel %vm337, %v344, %v348
    %350 = vst [vmem:[#allocation2 + $0x88] sm:$0xee] %v349
    %351 = vst [vmem:[#allocation2 + $0xa8] sm:$0x11] %v345
    %v352 = vld [vmem:[%s0 + $0x30] sm:$0xff]
    %v354 = vshrl.u32 %v352, 16
    %v356 = vrot.slane %v354, 6
    %v357 = vshll.u32 %v352, 16
    %v359 = vrot.slane %v357, 7
    %v360 = vor.u32 %v356, %v359
    %v361 = vrot.slane %v360, 4
    %v364 = vld [vmem:[#allocation2 + $0x90] sm:$0xee]
    %v365 = vsel %vm337, %v360, %v364
    %366 = vst [vmem:[#allocation2 + $0x90] sm:$0xee] %v365
    %367 = vst [vmem:[#allocation2 + $0xb0] sm:$0x11] %v361
    %v368 = vld [vmem:[%s0 + $0x30] sm:$0xff]
    %v370 = vrot.slane %v368, 7
    %v371 = vrot.slane %v370, 4
    %v374 = vld [vmem:[#allocation2 + $0x98] sm:$0xee]
    %v375 = vsel %vm337, %v370, %v374
    %376 = vst [vmem:[#allocation2 + $0x98] sm:$0xee] %v375
    %377 = vst [vmem:[#allocation2 + $0xb8] sm:$0x11] %v371
    %v378 = vld [vmem:[%s0 + $0x30] sm:$0xff]
    %v380 = vrot.slane %v378, 7
    %v381 = vrot.slane %v380, 4
    %384 = vst [vmem:[#allocation2 + $0xa0] sm:$0xee] %v380
    %vm385 = vcmask 1040384
    %vm386 = vsmask.f32 256
    %vm387 = vmand %vm385, %vm386
    %vm388 = vcmask 1044484
    %vm389 = vsmask.f32 4352
    %vm390 = vmand %vm388, %vm389
    %vm391 = vmor %vm390, %vm387
    %v392 = vld [vmem:[#allocation2 + $0xc0] sm:$0x11]
    %v393 = vsel %vm391, %v381, %v392
    %394 = vst [vmem:[#allocation2 + $0xc0] sm:$0x11] %v393
    %v395 = vld [vmem:[%s0 + $0x30] sm:$0xff]
    %v397 = vshrl.u32 %v395, 16
    %v399 = vrot.slane %v397, 7
    %v400 = vshll.u32 %v395, 16
    %v402 = vor.u32 %v399, %v400
    %v403 = vrot.slane %v399, 4
    %406 = vst [vmem:[#allocation2 + $0xa8] sm:$0xee] %v402
    %v407 = vld [vmem:[#allocation2 + $0xc8] sm:$0x11]
    %v408 = vsel %vm391, %v403, %v407
    %409 = vst [vmem:[#allocation2 + $0xc8] sm:$0x11] %v408
    %v410 = vld [vmem:[%s0 + $0x38] sm:$0xff]
    %v412 = vrot.slane %v410, 7
    %v413 = vrot.slane %v412, 4
    %416 = vst [vmem:[#allocation2 + $0xb0] sm:$0xee] %v412
    %v417 = vld [vmem:[#allocation2 + $0xd0] sm:$0x11]
    %v418 = vsel %vm391, %v413, %v417
    %419 = vst [vmem:[#allocation2 + $0xd0] sm:$0x11] %v418
    %v420 = vld [vmem:[%s0 + $0x38] sm:$0xff]
    %v422 = vshrl.u32 %v420, 16
    %v424 = vrot.slane %v422, 7
    %v425 = vshll.u32 %v420, 16
    %v427 = vor.u32 %v424, %v425
    %v428 = vrot.slane %v424, 4
    %431 = vst [vmem:[#allocation2 + $0xb8] sm:$0xee] %v427
    %v432 = vld [vmem:[#allocation2 + $0xd8] sm:$0x11]
    %v433 = vsel %vm391, %v428, %v432
    %434 = vst [vmem:[#allocation2 + $0xd8] sm:$0x11] %v433
    %v435 = vld [vmem:[%s0 + $0x40] sm:$0xff]
    %v437 = vshrl.u32 %v435, 16
    %v439 = vrot.slane %v437, 7
    %v440 = vshll.u32 %v435, 16
    %v442 = vor.u32 %v439, %v440
    %vm444 = vsmask.f32 7938
    %vm445 = vmand %vm41, %vm444
    %vm446 = vsmask.f32 7954
    %vm447 = vmand %vm44, %vm446
    %vm448 = vmor %vm447, %vm445
    %v449 = vld [vmem:[#allocation2 + $0xc0] sm:$0xff]
    %v450 = vsel %vm448, %v442, %v449
    %451 = vst [vmem:[#allocation2 + $0xc0] sm:$0xff] %v450
    %v452 = vld [vmem:[%s0 + $0x40] sm:$0xff]
    %v453 = vld [vmem:[#allocation2 + $0xc8] sm:$0xff]
    %v454 = vsel %vm448, %v452, %v453
    %455 = vst [vmem:[#allocation2 + $0xc8] sm:$0xff] %v454
    %v456 = vld [vmem:[%s0 + $0x48] sm:$0xff]
    %v458 = vshrl.u32 %v456, 16
    %v460 = vrot.slane %v458, 7
    %v461 = vshll.u32 %v456, 16
    %v463 = vor.u32 %v460, %v461
    %v465 = vld [vmem:[#allocation2 + $0xd0] sm:$0xff]
    %v466 = vsel %vm448, %v463, %v465
    %467 = vst [vmem:[#allocation2 + $0xd0] sm:$0xff] %v466
    %v468 = vld [vmem:[%s0 + $0x48] sm:$0xff]
    %v469 = vld [vmem:[#allocation2 + $0xd8] sm:$0xff]
    %v470 = vsel %vm448, %v468, %v469
    %471 = vst [vmem:[#allocation2 + $0xd8] sm:$0xff] %v470
    %v472 = vld [vmem:[%s0 + $0x48] sm:$0xff]
    %v473 = vld [vmem:[#allocation2 + $0xe0] sm:$0xff]
    %v474 = vsel %vm47, %v472, %v473
    %475 = vst [vmem:[#allocation2 + $0xe0] sm:$0xff] %v474
    %v476 = vld [vmem:[%s0 + $0x48] sm:$0xff]
    %v478 = vshrl.u32 %v476, 16
    %v480 = vrot.slane %v478, 4
    %v481 = vshll.u32 %v476, 16
    %v483 = vrot.slane %v481, 5
    %v484 = vor.u32 %v480, %v483
    %v485 = vrot.slane %v484, 4
    %v487 = vld [vmem:[#allocation2 + $0xe8] sm:$0xff]
    %v488 = vsel %vm47, %v485, %v487
    %489 = vst [vmem:[#allocation2 + $0xe8] sm:$0xff] %v488
    %v490 = vld [vmem:[%s0 + $0x50] sm:$0xff]
    %v491 = vld [vmem:[#allocation2 + $0xf0] sm:$0xff]
    %v492 = vsel %vm47, %v490, %v491
    %493 = vst [vmem:[#allocation2 + $0xf0] sm:$0xff] %v492
    %v494 = vld [vmem:[%s0 + $0x50] sm:$0xff]
    %v496 = vshrl.u32 %v494, 16
    %v498 = vrot.slane %v496, 4
    %v499 = vshll.u32 %v494, 16
    %v501 = vrot.slane %v499, 5
    %v502 = vor.u32 %v498, %v501
    %v503 = vrot.slane %v502, 4
    %v505 = vld [vmem:[#allocation2 + $0xf8] sm:$0xff]
    %v506 = vsel %vm47, %v503, %v505
    %507 = vst [vmem:[#allocation2 + $0xf8] sm:$0xff] %v506
    %v508 = vld [vmem:[%s0 + $0x50] sm:$0xff]
    %v510 = vshll.u32 %v508, 16
    %v512 = vrot.slane %v510, 5
    %v513 = vshrl.u32 %v508, 16
    %v515 = vrot.slane %v513, 4
    %v516 = vor.u32 %v515, %v512
    %v517 = vrot.slane %v516, 4
    %v520 = vld [vmem:[#allocation2 + $0xe0] sm:$0x88]
    %v521 = vsel %vm101, %v512, %v520
    %522 = vst [vmem:[#allocation2 + $0xe0] sm:$0x88] %v521
    %523 = vst [vmem:[#allocation2 + $0x100] sm:$0x77] %v517
    %v524 = vld [vmem:[%s0 + $0x50] sm:$0xff]
    %v526 = vrot.slane %v524, 5
    %v527 = vrot.slane %v526, 4
    %v530 = vld [vmem:[#allocation2 + $0xe8] sm:$0x88]
    %v531 = vsel %vm101, %v526, %v530
    %532 = vst [vmem:[#allocation2 + $0xe8] sm:$0x88] %v531
    %533 = vst [vmem:[#allocation2 + $0x108] sm:$0x77] %v527
    %v534 = vld [vmem:[%s0 + $0x58] sm:$0xff]
    %v536 = vshll.u32 %v534, 16
    %v538 = vrot.slane %v536, 5
    %v539 = vshrl.u32 %v534, 16
    %v541 = vrot.slane %v539, 4
    %v542 = vor.u32 %v541, %v538
    %v543 = vrot.slane %v542, 4
    %v546 = vld [vmem:[#allocation2 + $0xf0] sm:$0x88]
    %v547 = vsel %vm101, %v538, %v546
    %548 = vst [vmem:[#allocation2 + $0xf0] sm:$0x88] %v547
    %549 = vst [vmem:[#allocation2 + $0x110] sm:$0x77] %v543
    %v550 = vld [vmem:[%s0 + $0x58] sm:$0xff]
    %v552 = vrot.slane %v550, 5
    %v553 = vrot.slane %v552, 4
    %v556 = vld [vmem:[#allocation2 + $0xf8] sm:$0x88]
    %v557 = vsel %vm101, %v552, %v556
    %558 = vst [vmem:[#allocation2 + $0xf8] sm:$0x88] %v557
    %559 = vst [vmem:[#allocation2 + $0x118] sm:$0x77] %v553
    %v560 = vld [vmem:[%s0 + $0x58] sm:$0xff]
    %v562 = vrot.slane %v560, 5
    %v563 = vrot.slane %v562, 4
    %566 = vst [vmem:[#allocation2 + $0x100] sm:$0x88] %v562
    %v567 = vld [vmem:[#allocation2 + $0x120] sm:$0x77]
    %v568 = vsel %vm155, %v563, %v567
    %569 = vst [vmem:[#allocation2 + $0x120] sm:$0x77] %v568
    %v570 = vld [vmem:[%s0 + $0x58] sm:$0xff]
    %v572 = vshrl.u32 %v570, 16
    %v574 = vrot.slane %v572, 5
    %v575 = vshll.u32 %v570, 16
    %v577 = vrot.slane %v575, 6
    %v578 = vor.u32 %v574, %v577
    %v579 = vrot.slane %v578, 4
    %582 = vst [vmem:[#allocation2 + $0x108] sm:$0x88] %v578
    %v583 = vld [vmem:[#allocation2 + $0x128] sm:$0x77]
    %v584 = vsel %vm155, %v579, %v583
    %585 = vst [vmem:[#allocation2 + $0x128] sm:$0x77] %v584
    %v586 = vld [vmem:[%s0 + $0x60] sm:$0xff]
    %v588 = vrot.slane %v586, 5
    %v589 = vrot.slane %v588, 4
    %592 = vst [vmem:[#allocation2 + $0x110] sm:$0x88] %v588
    %v593 = vld [vmem:[#allocation2 + $0x130] sm:$0x77]
    %v594 = vsel %vm155, %v589, %v593
    %595 = vst [vmem:[#allocation2 + $0x130] sm:$0x77] %v594
    %v596 = vld [vmem:[%s0 + $0x60] sm:$0xff]
    %v598 = vshrl.u32 %v596, 16
    %v600 = vrot.slane %v598, 5
    %v601 = vshll.u32 %v596, 16
    %v603 = vrot.slane %v601, 6
    %v604 = vor.u32 %v600, %v603
    %v605 = vrot.slane %v604, 4
    %608 = vst [vmem:[#allocation2 + $0x118] sm:$0x88] %v604
    %v609 = vld [vmem:[#allocation2 + $0x138] sm:$0x77]
    %v610 = vsel %vm155, %v605, %v609
    %611 = vst [vmem:[#allocation2 + $0x138] sm:$0x77] %v610
    %v612 = vld [vmem:[%s0 + $0x60] sm:$0xff]
    %v614 = vshrl.u32 %v612, 16
    %v616 = vrot.slane %v614, 5
    %v617 = vshll.u32 %v612, 16
    %v619 = vrot.slane %v617, 6
    %v620 = vor.u32 %v616, %v619
    %v621 = vrot.slane %v620, 4
    %v624 = vld [vmem:[#allocation2 + $0x120] sm:$0xcc]
    %v625 = vsel %vm219, %v620, %v624
    %626 = vst [vmem:[#allocation2 + $0x120] sm:$0xcc] %v625
    %627 = vst [vmem:[#allocation2 + $0x140] sm:$0x33] %v621
    %v628 = vld [vmem:[%s0 + $0x60] sm:$0xff]
    %v630 = vrot.slane %v628, 6
    %v631 = vrot.slane %v630, 4
    %v634 = vld [vmem:[#allocation2 + $0x128] sm:$0xcc]
    %v635 = vsel %vm219, %v630, %v634
    %636 = vst [vmem:[#allocation2 + $0x128] sm:$0xcc] %v635
    %637 = vst [vmem:[#allocation2 + $0x148] sm:$0x33] %v631
    %v638 = vld [vmem:[%s0 + $0x68] sm:$0xff]
    %v640 = vshrl.u32 %v638, 16
    %v642 = vrot.slane %v640, 5
    %v643 = vshll.u32 %v638, 16
    %v645 = vrot.slane %v643, 6
    %v646 = vor.u32 %v642, %v645
    %v647 = vrot.slane %v646, 4
    %v650 = vld [vmem:[#allocation2 + $0x130] sm:$0xcc]
    %v651 = vsel %vm219, %v646, %v650
    %652 = vst [vmem:[#allocation2 + $0x130] sm:$0xcc] %v651
    %653 = vst [vmem:[#allocation2 + $0x150] sm:$0x33] %v647
    %v654 = vld [vmem:[%s0 + $0x68] sm:$0xff]
    %v656 = vrot.slane %v654, 6
    %v657 = vrot.slane %v656, 4
    %v660 = vld [vmem:[#allocation2 + $0x138] sm:$0xcc]
    %v661 = vsel %vm219, %v656, %v660
    %662 = vst [vmem:[#allocation2 + $0x138] sm:$0xcc] %v661
    %663 = vst [vmem:[#allocation2 + $0x158] sm:$0x33] %v657
    %v664 = vld [vmem:[%s0 + $0x68] sm:$0xff]
    %v666 = vrot.slane %v664, 6
    %v667 = vrot.slane %v666, 4
    %670 = vst [vmem:[#allocation2 + $0x140] sm:$0xcc] %v666
    %v671 = vld [vmem:[#allocation2 + $0x160] sm:$0x33]
    %v672 = vsel %vm273, %v667, %v671
    %673 = vst [vmem:[#allocation2 + $0x160] sm:$0x33] %v672
    %v674 = vld [vmem:[%s0 + $0x68] sm:$0xff]
    %v676 = vshrl.u32 %v674, 16
    %v678 = vrot.slane %v676, 6
    %v679 = vshll.u32 %v674, 16
    %v681 = vrot.slane %v679, 7
    %v682 = vor.u32 %v678, %v681
    %v683 = vrot.slane %v682, 4
    %686 = vst [vmem:[#allocation2 + $0x148] sm:$0xcc] %v682
    %v687 = vld [vmem:[#allocation2 + $0x168] sm:$0x33]
    %v688 = vsel %vm273, %v683, %v687
    %689 = vst [vmem:[#allocation2 + $0x168] sm:$0x33] %v688
    %v690 = vld [vmem:[%s0 + $0x70] sm:$0xff]
    %v692 = vrot.slane %v690, 6
    %v693 = vrot.slane %v692, 4
    %696 = vst [vmem:[#allocation2 + $0x150] sm:$0xcc] %v692
    %v697 = vld [vmem:[#allocation2 + $0x170] sm:$0x33]
    %v698 = vsel %vm273, %v693, %v697
    %699 = vst [vmem:[#allocation2 + $0x170] sm:$0x33] %v698
    %v700 = vld [vmem:[%s0 + $0x70] sm:$0xff]
    %v702 = vshrl.u32 %v700, 16
    %v704 = vrot.slane %v702, 6
    %v705 = vshll.u32 %v700, 16
    %v707 = vrot.slane %v705, 7
    %v708 = vor.u32 %v704, %v707
    %v709 = vrot.slane %v708, 4
    %712 = vst [vmem:[#allocation2 + $0x158] sm:$0xcc] %v708
    %v713 = vld [vmem:[#allocation2 + $0x178] sm:$0x33]
    %v714 = vsel %vm273, %v709, %v713
    %715 = vst [vmem:[#allocation2 + $0x178] sm:$0x33] %v714
    %v716 = vld [vmem:[%s0 + $0x70] sm:$0xff]
    %v718 = vshrl.u32 %v716, 16
    %v720 = vrot.slane %v718, 6
    %v721 = vshll.u32 %v716, 16
    %v723 = vrot.slane %v721, 7
    %v724 = vor.u32 %v720, %v723
    %v725 = vrot.slane %v724, 4
    %v728 = vld [vmem:[#allocation2 + $0x160] sm:$0xee]
    %v729 = vsel %vm337, %v724, %v728
    %730 = vst [vmem:[#allocation2 + $0x160] sm:$0xee] %v729
    %731 = vst [vmem:[#allocation2 + $0x180] sm:$0x11] %v725
    %v732 = vld [vmem:[%s0 + $0x70] sm:$0xff]
    %v734 = vrot.slane %v732, 7
    %v735 = vrot.slane %v734, 4
    %v738 = vld [vmem:[#allocation2 + $0x168] sm:$0xee]
    %v739 = vsel %vm337, %v734, %v738
    %740 = vst [vmem:[#allocation2 + $0x168] sm:$0xee] %v739
    %741 = vst [vmem:[#allocation2 + $0x188] sm:$0x11] %v735
    %v742 = vld [vmem:[%s0 + $0x78] sm:$0xff]
    %v744 = vshrl.u32 %v742, 16
    %v746 = vrot.slane %v744, 6
    %v747 = vshll.u32 %v742, 16
    %v749 = vrot.slane %v747, 7
    %v750 = vor.u32 %v746, %v749
    %v751 = vrot.slane %v750, 4
    %v754 = vld [vmem:[#allocation2 + $0x170] sm:$0xee]
    %v755 = vsel %vm337, %v750, %v754
    %756 = vst [vmem:[#allocation2 + $0x170] sm:$0xee] %v755
    %757 = vst [vmem:[#allocation2 + $0x190] sm:$0x11] %v751
    %v758 = vld [vmem:[%s0 + $0x78] sm:$0xff]
    %v760 = vrot.slane %v758, 7
    %v761 = vrot.slane %v760, 4
    %v764 = vld [vmem:[#allocation2 + $0x178] sm:$0xee]
    %v765 = vsel %vm337, %v760, %v764
    %766 = vst [vmem:[#allocation2 + $0x178] sm:$0xee] %v765
    %767 = vst [vmem:[#allocation2 + $0x198] sm:$0x11] %v761
    %v768 = vld [vmem:[#allocation2] sm:$0xff]
    %v769 = vld [vmem:[#allocation2 + $0x8] sm:$0xff]
    %v770 = vld [vmem:[#allocation2 + $0x10] sm:$0xff]
    %v771 = vld [vmem:[#allocation2 + $0x18] sm:$0xff]
    %v772 = vld [vmem:[#allocation2 + $0x20] sm:$0xff]
    %v773 = vld [vmem:[#allocation2 + $0x28] sm:$0xff]
    %v774 = vld [vmem:[#allocation2 + $0x30] sm:$0xff]
    %v775 = vld [vmem:[#allocation2 + $0x38] sm:$0xff]
    %v776 = vld [vmem:[#allocation2 + $0x40] sm:$0xff]
    %v777 = vld [vmem:[#allocation2 + $0x48] sm:$0xff]
    %v778 = vld [vmem:[#allocation2 + $0x50] sm:$0xff]
    %v779 = vld [vmem:[#allocation2 + $0x58] sm:$0xff]
    %v780 = vld [vmem:[#allocation2 + $0x60] sm:$0xff]
    %v781 = vld [vmem:[#allocation2 + $0x68] sm:$0xff]
    %v782 = vld [vmem:[#allocation2 + $0x70] sm:$0xff]
    %v783 = vld [vmem:[#allocation2 + $0x78] sm:$0xff]
    %v784 = vld [vmem:[#allocation2 + $0x80] sm:$0xff]
    %v785 = vld [vmem:[#allocation2 + $0x88] sm:$0xff]
    %v786 = vld [vmem:[#allocation2 + $0x90] sm:$0xff]
    %v787 = vld [vmem:[#allocation2 + $0x98] sm:$0xff]
    %v788 = vld [vmem:[#allocation2 + $0xa0] sm:$0xff]
    %v789 = vld [vmem:[#allocation2 + $0xa8] sm:$0xff]
    %v790 = vld [vmem:[#allocation2 + $0xb0] sm:$0xff]
    %v791 = vld [vmem:[#allocation2 + $0xb8] sm:$0xff]
    %v792 = vld [vmem:[#allocation2 + $0xc0] sm:$0xff]
    %v793 = vld [vmem:[#allocation2 + $0xc8] sm:$0xff]
    %v794 = vld [vmem:[#allocation2 + $0xd0] sm:$0xff]
    %v795 = vld [vmem:[#allocation2 + $0xd8] sm:$0xff]
    %v796 = vld [vmem:[#allocation2 + $0xe0] sm:$0xff]
    %v797 = vld [vmem:[#allocation2 + $0xe8] sm:$0xff]
    %v798 = vld [vmem:[#allocation2 + $0xf0] sm:$0xff]
    %v799 = vld [vmem:[#allocation2 + $0xf8] sm:$0xff]
    %v800 = vld [vmem:[#allocation2 + $0x100] sm:$0xff]
    %v801 = vld [vmem:[#allocation2 + $0x108] sm:$0xff]
    %v802 = vld [vmem:[#allocation2 + $0x110] sm:$0xff]
    %v803 = vld [vmem:[#allocation2 + $0x118] sm:$0xff]
    %v804 = vld [vmem:[#allocation2 + $0x120] sm:$0xff]
    %v805 = vld [vmem:[#allocation2 + $0x128] sm:$0xff]
    %v806 = vld [vmem:[#allocation2 + $0x130] sm:$0xff]
    %v807 = vld [vmem:[#allocation2 + $0x138] sm:$0xff]
    %v808 = vld [vmem:[#allocation2 + $0x140] sm:$0xff]
    %v809 = vld [vmem:[#allocation2 + $0x148] sm:$0xff]
    %v810 = vld [vmem:[#allocation2 + $0x150] sm:$0xff]
    %v811 = vld [vmem:[#allocation2 + $0x158] sm:$0xff]
    %v812 = vld [vmem:[#allocation2 + $0x160] sm:$0xff]
    %v813 = vld [vmem:[#allocation2 + $0x168] sm:$0xff]
    %v814 = vld [vmem:[#allocation2 + $0x170] sm:$0xff]
    %v815 = vld [vmem:[#allocation2 + $0x178] sm:$0xff]
    %v816 = vld [vmem:[#allocation2 + $0x180] sm:$0x11]
    %v817 = vld [vmem:[#allocation2 + $0x188] sm:$0x11]
    %v818 = vld [vmem:[#allocation2 + $0x190] sm:$0x11]
    %v819 = vld [vmem:[#allocation2 + $0x198] sm:$0x11]
    %v820 = vld [vmem:[%s1] sm:$0xf]
    %v821 = vld [vmem:[%s1 + $0x4] sm:$0xf]
    %v822 = vld [vmem:[%s1 + $0x8] sm:$0xf]
    %v823 = vld [vmem:[%s1 + $0xc] sm:$0xf]
    %v824 = vld [vmem:[%s1 + $0x10] sm:$0xf]
    %v825 = vld [vmem:[%s1 + $0x14] sm:$0xf]
    %v826 = vld [vmem:[%s1 + $0x18] sm:$0xf]
    %v827 = vld [vmem:[%s1 + $0x1c] sm:$0xf]
    %v828 = vld [vmem:[%s1 + $0x20] sm:$0xf]
    %v829 = vld [vmem:[%s1 + $0x24] sm:$0xf]
    %v830 = vld [vmem:[%s1 + $0x28] sm:$0xf]
    %v831 = vld [vmem:[%s1 + $0x2c] sm:$0xf]
    %v832 = vld [vmem:[%s1 + $0x30] sm:$0xf]
    %v833 = vld [vmem:[%s1 + $0x34] sm:$0xf]
    %v834 = vld [vmem:[%s1 + $0x38] sm:$0xf]
    %v835 = vld [vmem:[%s1 + $0x3c] sm:$0xf]
    %v836 = vld [vmem:[%s1 + $0x40] sm:$0xf]
    %v837 = vld [vmem:[%s1 + $0x44] sm:$0xf]
    %v838 = vld [vmem:[%s1 + $0x48] sm:$0xf]
    %v839 = vld [vmem:[%s1 + $0x4c] sm:$0xf]
    %v840 = vld [vmem:[%s1 + $0x50] sm:$0xf]
    %v841 = vld [vmem:[%s1 + $0x54] sm:$0xf]
    %v842 = vld [vmem:[%s1 + $0x58] sm:$0xf]
    %v843 = vld [vmem:[%s1 + $0x5c] sm:$0xf]
    %v844 = vld [vmem:[%s1 + $0x60] sm:$0xf]
    %v845 = vld [vmem:[%s1 + $0x64] sm:$0xf]
    %v846 = vld [vmem:[%s1 + $0x68] sm:$0xf]
    %v847 = vld [vmem:[%s1 + $0x6c] sm:$0xf]
    %v848 = vld [vmem:[%s1 + $0x70] sm:$0xf]
    %v849 = vld [vmem:[%s1 + $0x74] sm:$0xf]
    %v850 = vld [vmem:[%s1 + $0x78] sm:$0xf]
    %v851 = vld [vmem:[%s1 + $0x7c] sm:$0xf]
    %v852 = vld [vmem:[%s1 + $0x80] sm:$0xf]
    %v853 = vld [vmem:[%s1 + $0x84] sm:$0xf]
    %v854 = vld [vmem:[%s1 + $0x88] sm:$0xf]
    %v855 = vld [vmem:[%s1 + $0x8c] sm:$0xf]
    %v856 = vld [vmem:[%s1 + $0x90] sm:$0xf]
    %v857 = vld [vmem:[%s1 + $0x94] sm:$0xf]
    %v858 = vld [vmem:[%s1 + $0x98] sm:$0xf]
    %v859 = vld [vmem:[%s1 + $0x9c] sm:$0xf]
    %v860 = vld [vmem:[%s1 + $0xa0] sm:$0xf]
    %v861 = vld [vmem:[%s1 + $0xa4] sm:$0xf]
    %v862 = vld [vmem:[%s1 + $0xa8] sm:$0xf]
    %v863 = vld [vmem:[%s1 + $0xac] sm:$0xf]
    %v864 = vld [vmem:[%s1 + $0xb0] sm:$0xf]
    %v865 = vld [vmem:[%s1 + $0xb4] sm:$0xf]
    %v866 = vld [vmem:[%s1 + $0xb8] sm:$0xf]
    %v867 = vld [vmem:[%s1 + $0xbc] sm:$0xf]
    %v868 = vld [vmem:[%s1 + $0xc0] sm:$0xf]
    %v869 = vld [vmem:[%s1 + $0xc4] sm:$0xf]
    %v870 = vld [vmem:[%s1 + $0xc8] sm:$0xf]
    %v871 = vld [vmem:[%s1 + $0xcc] sm:$0xf]
    %v872 = vld [vmem:[%s1 + $0xd0] sm:$0xf]
    %v873 = vld [vmem:[%s1 + $0xd4] sm:$0xf]
    %v874 = vld [vmem:[%s1 + $0xd8] sm:$0xf]
    %v875 = vld [vmem:[%s1 + $0xdc] sm:$0xf]
    %v876 = vld [vmem:[%s1 + $0xe0] sm:$0xf]
    %v877 = vld [vmem:[%s1 + $0xe4] sm:$0xf]
    %v878 = vld [vmem:[%s1 + $0xe8] sm:$0xf]
    %v879 = vld [vmem:[%s1 + $0xec] sm:$0xf]
    %v880 = vld [vmem:[%s1 + $0xf0] sm:$0xf]
    %v881 = vld [vmem:[%s1 + $0xf4] sm:$0xf]
    %v882 = vld [vmem:[%s1 + $0xf8] sm:$0xf]
    %v883 = vld [vmem:[%s1 + $0xfc] sm:$0xf]
    %v884 = vld [vmem:[%s1 + $0x100] sm:$0xf]
    %v885 = vld [vmem:[%s1 + $0x104] sm:$0xf]
    %v886 = vld [vmem:[%s1 + $0x108] sm:$0xf]
    %v887 = vld [vmem:[%s1 + $0x10c] sm:$0xf]
    %v888 = vld [vmem:[%s1 + $0x110] sm:$0xf]
    %v889 = vld [vmem:[%s1 + $0x114] sm:$0xf]
    %v890 = vld [vmem:[%s1 + $0x118] sm:$0xf]
    %v891 = vld [vmem:[%s1 + $0x11c] sm:$0xf]
    %v892 = vld [vmem:[%s1 + $0x120] sm:$0xf]
    %v893 = vld [vmem:[%s1 + $0x124] sm:$0xf]
    %v894 = vld [vmem:[%s1 + $0x128] sm:$0xf]
    %v895 = vld [vmem:[%s1 + $0x12c] sm:$0xf]
    %v896 = vld [vmem:[%s1 + $0x130] sm:$0xf]
    %v897 = vld [vmem:[%s1 + $0x134] sm:$0xf]
    %v898 = vld [vmem:[%s1 + $0x138] sm:$0xf]
    %v899 = vld [vmem:[%s1 + $0x13c] sm:$0xf]
    %v900 = vld [vmem:[%s1 + $0x140] sm:$0xf]
    %v901 = vld [vmem:[%s1 + $0x144] sm:$0xf]
    %v902 = vld [vmem:[%s1 + $0x148] sm:$0xf]
    %v903 = vld [vmem:[%s1 + $0x14c] sm:$0xf]
    %v904 = vld [vmem:[%s1 + $0x150] sm:$0xf]
    %v905 = vld [vmem:[%s1 + $0x154] sm:$0xf]
    %v906 = vld [vmem:[%s1 + $0x158] sm:$0xf]
    %v907 = vld [vmem:[%s1 + $0x15c] sm:$0xf]
    %v908 = vld [vmem:[%s1 + $0x160] sm:$0xf]
    %v909 = vld [vmem:[%s1 + $0x164] sm:$0xf]
    %v910 = vld [vmem:[%s1 + $0x168] sm:$0xf]
    %v911 = vld [vmem:[%s1 + $0x16c] sm:$0xf]
    %v912 = vld [vmem:[%s1 + $0x170] sm:$0xf]
    %v913 = vld [vmem:[%s1 + $0x174] sm:$0xf]
    %v914 = vld [vmem:[%s1 + $0x178] sm:$0xf]
    %v915 = vld [vmem:[%s1 + $0x17c] sm:$0xf]
    %v916 = vld [vmem:[%s1 + $0x180] sm:$0xf]
    %v917 = vld [vmem:[%s1 + $0x184] sm:$0xf]
    %v918 = vld [vmem:[%s1 + $0x188] sm:$0xf]
    %v919 = vld [vmem:[%s1 + $0x18c] sm:$0xf]
    %v920 = vld [vmem:[%s1 + $0x190] sm:$0xf]
    %v921 = vld [vmem:[%s1 + $0x194] sm:$0xf]
    %v922 = vld [vmem:[%s1 + $0x198] sm:$0xf]
    %v923 = vld [vmem:[%s1 + $0x19c] sm:$0xf]
    %v924 = vld [vmem:[%s1 + $0x1a0] sm:$0xf]
    %v925 = vld [vmem:[%s1 + $0x1a4] sm:$0xf]
    %v926 = vld [vmem:[%s1 + $0x1a8] sm:$0xf]
    %v927 = vld [vmem:[%s1 + $0x1ac] sm:$0xf]
    %v928 = vld [vmem:[%s1 + $0x1b0] sm:$0xf]
    %v929 = vld [vmem:[%s1 + $0x1b4] sm:$0xf]
    %v930 = vld [vmem:[%s1 + $0x1b8] sm:$0xf]
    %v931 = vld [vmem:[%s1 + $0x1bc] sm:$0xf]
    %v932 = vld [vmem:[%s1 + $0x1c0] sm:$0xf]
    %v933 = vld [vmem:[%s1 + $0x1c4] sm:$0xf]
    %v934 = vld [vmem:[%s1 + $0x1c8] sm:$0xf]
    %v935 = vld [vmem:[%s1 + $0x1cc] sm:$0xf]
    %v936 = vld [vmem:[%s1 + $0x1d0] sm:$0xf]
    %v937 = vld [vmem:[%s1 + $0x1d4] sm:$0xf]
    %v938 = vld [vmem:[%s1 + $0x1d8] sm:$0xf]
    %v939 = vld [vmem:[%s1 + $0x1dc] sm:$0xf]
    %v940 = vld [vmem:[%s1 + $0x1e0] sm:$0xf]
    %v941 = vld [vmem:[%s1 + $0x1e4] sm:$0xf]
    %v942 = vld [vmem:[%s1 + $0x1e8] sm:$0xf]
    %v943 = vld [vmem:[%s1 + $0x1ec] sm:$0xf]
    %v944 = vld [vmem:[%s1 + $0x1f0] sm:$0xf]
    %v945 = vld [vmem:[%s1 + $0x1f4] sm:$0xf]
    %v946 = vld [vmem:[%s1 + $0x1f8] sm:$0xf]
    %v947 = vld [vmem:[%s1 + $0x1fc] sm:$0xf]
    %v948 = vld [vmem:[%s2] sm:$0x1]
    %v950 = vlaneseq
    %v951 = vshrl.u32 %v950, 7
    %v952 = vsub.s32 0, %v951
    %v953 = vrot.slane %v948, %v952
    %v1007 = vunpack.c.l.b16 %v768
    %v1008 = vunpack.c.h.b16 %v768
    %v1009 = vunpack.c.l.b16 %v769
    %v1010 = vunpack.c.h.b16 %v769
    %v1011 = vunpack.c.l.b16 %v770
    %v1012 = vunpack.c.h.b16 %v770
    %v1013 = vunpack.c.l.b16 %v771
    %v1014 = vunpack.c.h.b16 %v771
    %v1015 = vunpack.c.l.b16 %v772
    %v1016 = vunpack.c.h.b16 %v772
    %v1017 = vunpack.c.l.b16 %v773
    %v1018 = vunpack.c.h.b16 %v773
    %v1019 = vunpack.c.l.b16 %v774
    %v1020 = vunpack.c.h.b16 %v774
    %v1021 = vunpack.c.l.b16 %v775
    %v1022 = vunpack.c.h.b16 %v775
    %v1023 = vunpack.c.l.b16 %v776
    %v1024 = vunpack.c.h.b16 %v776
    %v1025 = vunpack.c.l.b16 %v777
    %v1026 = vunpack.c.h.b16 %v777
    %v1027 = vunpack.c.l.b16 %v778
    %v1028 = vunpack.c.h.b16 %v778
    %v1029 = vunpack.c.l.b16 %v779
    %v1030 = vunpack.c.h.b16 %v779
    %v1031 = vunpack.c.l.b16 %v780
    %v1032 = vunpack.c.h.b16 %v780
    %v1033 = vunpack.c.l.b16 %v781
    %v1034 = vunpack.c.h.b16 %v781
    %v1035 = vunpack.c.l.b16 %v782
    %v1036 = vunpack.c.h.b16 %v782
    %v1037 = vunpack.c.l.b16 %v783
    %v1038 = vunpack.c.h.b16 %v783
    %v1039 = vunpack.c.l.b16 %v784
    %v1040 = vunpack.c.h.b16 %v784
    %v1041 = vunpack.c.l.b16 %v785
    %v1042 = vunpack.c.h.b16 %v785
    %v1043 = vunpack.c.l.b16 %v786
    %v1044 = vunpack.c.h.b16 %v786
    %v1045 = vunpack.c.l.b16 %v787
    %v1046 = vunpack.c.h.b16 %v787
    %v1047 = vunpack.c.l.b16 %v788
    %v1048 = vunpack.c.h.b16 %v788
    %v1049 = vunpack.c.l.b16 %v789
    %v1050 = vunpack.c.h.b16 %v789
    %v1051 = vunpack.c.l.b16 %v790
    %v1052 = vunpack.c.h.b16 %v790
    %v1053 = vunpack.c.l.b16 %v791
    %v1054 = vunpack.c.h.b16 %v791
    %v1055 = vunpack.c.l.b16 %v792
    %v1056 = vunpack.c.h.b16 %v792
    %v1057 = vunpack.c.l.b16 %v793
    %v1058 = vunpack.c.h.b16 %v793
    %v1059 = vunpack.c.l.b16 %v794
    %v1060 = vunpack.c.h.b16 %v794
    %v1061 = vunpack.c.l.b16 %v795
    %v1062 = vunpack.c.h.b16 %v795
    %v1063 = vunpack.c.l.b16 %v796
    %v1064 = vunpack.c.h.b16 %v796
    %v1065 = vunpack.c.l.b16 %v797
    %v1066 = vunpack.c.h.b16 %v797
    %v1067 = vunpack.c.l.b16 %v798
    %v1068 = vunpack.c.h.b16 %v798
    %v1069 = vunpack.c.l.b16 %v799
    %v1070 = vunpack.c.h.b16 %v799
    %v1071 = vunpack.c.l.b16 %v800
    %v1072 = vunpack.c.h.b16 %v800
    %v1073 = vunpack.c.l.b16 %v801
    %v1074 = vunpack.c.h.b16 %v801
    %v1075 = vunpack.c.l.b16 %v802
    %v1076 = vunpack.c.h.b16 %v802
    %v1077 = vunpack.c.l.b16 %v803
    %v1078 = vunpack.c.h.b16 %v803
    %v1079 = vunpack.c.l.b16 %v804
    %v1080 = vunpack.c.h.b16 %v804
    %v1081 = vunpack.c.l.b16 %v805
    %v1082 = vunpack.c.h.b16 %v805
    %v1083 = vunpack.c.l.b16 %v806
    %v1084 = vunpack.c.h.b16 %v806
    %v1085 = vunpack.c.l.b16 %v807
    %v1086 = vunpack.c.h.b16 %v807
    %v1087 = vunpack.c.l.b16 %v808
    %v1088 = vunpack.c.h.b16 %v808
    %v1089 = vunpack.c.l.b16 %v809
    %v1090 = vunpack.c.h.b16 %v809
    %v1091 = vunpack.c.l.b16 %v810
    %v1092 = vunpack.c.h.b16 %v810
    %v1093 = vunpack.c.l.b16 %v811
    %v1094 = vunpack.c.h.b16 %v811
    %v1095 = vunpack.c.l.b16 %v812
    %v1096 = vunpack.c.h.b16 %v812
    %v1097 = vunpack.c.l.b16 %v813
    %v1098 = vunpack.c.h.b16 %v813
    %v1099 = vunpack.c.l.b16 %v814
    %v1100 = vunpack.c.h.b16 %v814
    %v1101 = vunpack.c.l.b16 %v815
    %v1102 = vunpack.c.h.b16 %v815
    %v1103 = vunpack.c.l.b16 %v816
    %v1104 = vunpack.c.h.b16 %v816
    %v1105 = vunpack.c.l.b16 %v817
    %v1106 = vunpack.c.h.b16 %v817
    %v1107 = vunpack.c.l.b16 %v818
    %v1108 = vunpack.c.h.b16 %v818
    %v1109 = vunpack.c.l.b16 %v819
    %v1110 = vunpack.c.h.b16 %v819
    %v1111 = vpack.c.b16 %v1015, %v1007
    %v1112 = vpack.c.b16 %v1016, %v1008
    %v1113 = vpack.c.b16 %v1017, %v1009
    %v1114 = vpack.c.b16 %v1018, %v1010
    %v1115 = vpack.c.b16 %v1019, %v1011
    %v1116 = vpack.c.b16 %v1020, %v1012
    %v1117 = vpack.c.b16 %v1021, %v1013
    %v1118 = vpack.c.b16 %v1022, %v1014
    %v1119 = vpack.c.b16 %v1031, %v1023
    %v1120 = vpack.c.b16 %v1032, %v1024
    %v1121 = vpack.c.b16 %v1033, %v1025
    %v1122 = vpack.c.b16 %v1034, %v1026
    %v1123 = vpack.c.b16 %v1035, %v1027
    %v1124 = vpack.c.b16 %v1036, %v1028
    %v1125 = vpack.c.b16 %v1037, %v1029
    %v1126 = vpack.c.b16 %v1038, %v1030
    %v1127 = vpack.c.b16 %v1047, %v1039
    %v1128 = vpack.c.b16 %v1048, %v1040
    %v1129 = vpack.c.b16 %v1049, %v1041
    %v1130 = vpack.c.b16 %v1050, %v1042
    %v1131 = vpack.c.b16 %v1051, %v1043
    %v1132 = vpack.c.b16 %v1052, %v1044
    %v1133 = vpack.c.b16 %v1053, %v1045
    %v1134 = vpack.c.b16 %v1054, %v1046
    %v1135 = vpack.c.b16 %v1063, %v1055
    %v1136 = vpack.c.b16 %v1064, %v1056
    %v1137 = vpack.c.b16 %v1065, %v1057
    %v1138 = vpack.c.b16 %v1066, %v1058
    %v1139 = vpack.c.b16 %v1067, %v1059
    %v1140 = vpack.c.b16 %v1068, %v1060
    %v1141 = vpack.c.b16 %v1069, %v1061
    %v1142 = vpack.c.b16 %v1070, %v1062
    %v1143 = vpack.c.b16 %v1079, %v1071
    %v1144 = vpack.c.b16 %v1080, %v1072
    %v1145 = vpack.c.b16 %v1081, %v1073
    %v1146 = vpack.c.b16 %v1082, %v1074
    %v1147 = vpack.c.b16 %v1083, %v1075
    %v1148 = vpack.c.b16 %v1084, %v1076
    %v1149 = vpack.c.b16 %v1085, %v1077
    %v1150 = vpack.c.b16 %v1086, %v1078
    %v1151 = vpack.c.b16 %v1095, %v1087
    %v1152 = vpack.c.b16 %v1096, %v1088
    %v1153 = vpack.c.b16 %v1097, %v1089
    %v1154 = vpack.c.b16 %v1098, %v1090
    %v1155 = vpack.c.b16 %v1099, %v1091
    %v1156 = vpack.c.b16 %v1100, %v1092
    %v1157 = vpack.c.b16 %v1101, %v1093
    %v1158 = vpack.c.b16 %v1102, %v1094
    %v1159 = vpack.c.b16 %v1103, %v1103
    %v1160 = vpack.c.b16 %v1104, %v1104
    %v1161 = vpack.c.b16 %v1105, %v1105
    %v1162 = vpack.c.b16 %v1106, %v1106
    %v1163 = vpack.c.b16 %v1107, %v1107
    %v1164 = vpack.c.b16 %v1108, %v1108
    %v1165 = vpack.c.b16 %v1109, %v1109
    %v1166 = vpack.c.b16 %v1110, %v1110
    %v1351 = vunpack.c.l.b16 %v820
    %v1352 = vunpack.c.l.b16 %v821
    %v1353 = vunpack.c.l.b16 %v822
    %v1354 = vunpack.c.l.b16 %v823
    %v1355 = vunpack.c.l.b16 %v824
    %v1356 = vunpack.c.l.b16 %v825
    %v1357 = vunpack.c.l.b16 %v826
    %v1358 = vunpack.c.l.b16 %v827
    %v1359 = vunpack.c.l.b16 %v828
    %v1360 = vunpack.c.l.b16 %v829
    %v1361 = vunpack.c.l.b16 %v830
    %v1362 = vunpack.c.l.b16 %v831
    %v1363 = vunpack.c.l.b16 %v832
    %v1364 = vunpack.c.l.b16 %v833
    %v1365 = vunpack.c.l.b16 %v834
    %v1366 = vunpack.c.l.b16 %v835
    %v1367 = vunpack.c.l.b16 %v836
    %v1368 = vunpack.c.l.b16 %v837
    %v1369 = vunpack.c.l.b16 %v838
    %v1370 = vunpack.c.l.b16 %v839
    %v1371 = vunpack.c.l.b16 %v840
    %v1372 = vunpack.c.l.b16 %v841
    %v1373 = vunpack.c.l.b16 %v842
    %v1374 = vunpack.c.l.b16 %v843
    %v1375 = vunpack.c.l.b16 %v844
    %v1376 = vunpack.c.l.b16 %v845
    %v1377 = vunpack.c.l.b16 %v846
    %v1378 = vunpack.c.l.b16 %v847
    %v1379 = vunpack.c.l.b16 %v848
    %v1380 = vunpack.c.l.b16 %v849
    %v1381 = vunpack.c.l.b16 %v850
    %v1382 = vunpack.c.l.b16 %v851
    %v1383 = vunpack.c.l.b16 %v852
    %v1384 = vunpack.c.l.b16 %v853
    %v1385 = vunpack.c.l.b16 %v854
    %v1386 = vunpack.c.l.b16 %v855
    %v1387 = vunpack.c.l.b16 %v856
    %v1388 = vunpack.c.l.b16 %v857
    %v1389 = vunpack.c.l.b16 %v858
    %v1390 = vunpack.c.l.b16 %v859
    %v1391 = vunpack.c.l.b16 %v860
    %v1392 = vunpack.c.l.b16 %v861
    %v1393 = vunpack.c.l.b16 %v862
    %v1394 = vunpack.c.l.b16 %v863
    %v1395 = vunpack.c.l.b16 %v864
    %v1396 = vunpack.c.l.b16 %v865
    %v1397 = vunpack.c.l.b16 %v866
    %v1398 = vunpack.c.l.b16 %v867
    %v1399 = vunpack.c.l.b16 %v868
    %v1400 = vunpack.c.l.b16 %v869
    %v1401 = vunpack.c.l.b16 %v870
    %v1402 = vunpack.c.l.b16 %v871
    %v1403 = vunpack.c.l.b16 %v872
    %v1404 = vunpack.c.l.b16 %v873
    %v1405 = vunpack.c.l.b16 %v874
    %v1406 = vunpack.c.l.b16 %v875
    %v1407 = vunpack.c.l.b16 %v876
    %v1408 = vunpack.c.l.b16 %v877
    %v1409 = vunpack.c.l.b16 %v878
    %v1410 = vunpack.c.l.b16 %v879
    %v1411 = vunpack.c.l.b16 %v880
    %v1412 = vunpack.c.l.b16 %v881
    %v1413 = vunpack.c.l.b16 %v882
    %v1414 = vunpack.c.l.b16 %v883
    %v1415 = vunpack.c.l.b16 %v884
    %v1416 = vunpack.c.l.b16 %v885
    %v1417 = vunpack.c.l.b16 %v886
    %v1418 = vunpack.c.l.b16 %v887
    %v1419 = vunpack.c.l.b16 %v888
    %v1420 = vunpack.c.l.b16 %v889
    %v1421 = vunpack.c.l.b16 %v890
    %v1422 = vunpack.c.l.b16 %v891
    %v1423 = vunpack.c.l.b16 %v892
    %v1424 = vunpack.c.l.b16 %v893
    %v1425 = vunpack.c.l.b16 %v894
    %v1426 = vunpack.c.l.b16 %v895
    %v1427 = vunpack.c.l.b16 %v896
    %v1428 = vunpack.c.l.b16 %v897
    %v1429 = vunpack.c.l.b16 %v898
    %v1430 = vunpack.c.l.b16 %v899
    %v1431 = vunpack.c.l.b16 %v900
    %v1432 = vunpack.c.l.b16 %v901
    %v1433 = vunpack.c.l.b16 %v902
    %v1434 = vunpack.c.l.b16 %v903
    %v1435 = vunpack.c.l.b16 %v904
    %v1436 = vunpack.c.l.b16 %v905
    %v1437 = vunpack.c.l.b16 %v906
    %v1438 = vunpack.c.l.b16 %v907
    %v1439 = vunpack.c.l.b16 %v908
    %v1440 = vunpack.c.l.b16 %v909
    %v1441 = vunpack.c.l.b16 %v910
    %v1442 = vunpack.c.l.b16 %v911
    %v1443 = vunpack.c.l.b16 %v912
    %v1444 = vunpack.c.l.b16 %v913
    %v1445 = vunpack.c.l.b16 %v914
    %v1446 = vunpack.c.l.b16 %v915
    %v1447 = vunpack.c.l.b16 %v916
    %v1448 = vunpack.c.l.b16 %v917
    %v1449 = vunpack.c.l.b16 %v918
    %v1450 = vunpack.c.l.b16 %v919
    %v1451 = vunpack.c.l.b16 %v920
    %v1452 = vunpack.c.l.b16 %v921
    %v1453 = vunpack.c.l.b16 %v922
    %v1454 = vunpack.c.l.b16 %v923
    %v1455 = vunpack.c.l.b16 %v924
    %v1456 = vunpack.c.l.b16 %v925
    %v1457 = vunpack.c.l.b16 %v926
    %v1458 = vunpack.c.l.b16 %v927
    %v1459 = vunpack.c.l.b16 %v928
    %v1460 = vunpack.c.l.b16 %v929
    %v1461 = vunpack.c.l.b16 %v930
    %v1462 = vunpack.c.l.b16 %v931
    %v1463 = vunpack.c.l.b16 %v932
    %v1464 = vunpack.c.l.b16 %v933
    %v1465 = vunpack.c.l.b16 %v934
    %v1466 = vunpack.c.l.b16 %v935
    %v1467 = vunpack.c.l.b16 %v936
    %v1468 = vunpack.c.l.b16 %v937
    %v1469 = vunpack.c.l.b16 %v938
    %v1470 = vunpack.c.l.b16 %v939
    %v1471 = vunpack.c.l.b16 %v940
    %v1472 = vunpack.c.l.b16 %v941
    %v1473 = vunpack.c.l.b16 %v942
    %v1474 = vunpack.c.l.b16 %v943
    %v1475 = vunpack.c.l.b16 %v944
    %v1476 = vunpack.c.l.b16 %v945
    %v1477 = vunpack.c.l.b16 %v946
    %v1478 = vunpack.c.l.b16 %v947
    %v1479 = vpack.c.b16 %v1352, %v1351
    %v1480 = vpack.c.b16 %v1354, %v1353
    %v1481 = vpack.c.b16 %v1356, %v1355
    %v1482 = vpack.c.b16 %v1358, %v1357
    %v1483 = vpack.c.b16 %v1360, %v1359
    %v1484 = vpack.c.b16 %v1362, %v1361
    %v1485 = vpack.c.b16 %v1364, %v1363
    %v1486 = vpack.c.b16 %v1366, %v1365
    %v1487 = vpack.c.b16 %v1368, %v1367
    %v1488 = vpack.c.b16 %v1370, %v1369
    %v1489 = vpack.c.b16 %v1372, %v1371
    %v1490 = vpack.c.b16 %v1374, %v1373
    %v1491 = vpack.c.b16 %v1376, %v1375
    %v1492 = vpack.c.b16 %v1378, %v1377
    %v1493 = vpack.c.b16 %v1380, %v1379
    %v1494 = vpack.c.b16 %v1382, %v1381
    %v1495 = vpack.c.b16 %v1384, %v1383
    %v1496 = vpack.c.b16 %v1386, %v1385
    %v1497 = vpack.c.b16 %v1388, %v1387
    %v1498 = vpack.c.b16 %v1390, %v1389
    %v1499 = vpack.c.b16 %v1392, %v1391
    %v1500 = vpack.c.b16 %v1394, %v1393
    %v1501 = vpack.c.b16 %v1396, %v1395
    %v1502 = vpack.c.b16 %v1398, %v1397
    %v1503 = vpack.c.b16 %v1400, %v1399
    %v1504 = vpack.c.b16 %v1402, %v1401
    %v1505 = vpack.c.b16 %v1404, %v1403
    %v1506 = vpack.c.b16 %v1406, %v1405
    %v1507 = vpack.c.b16 %v1408, %v1407
    %v1508 = vpack.c.b16 %v1410, %v1409
    %v1509 = vpack.c.b16 %v1412, %v1411
    %v1510 = vpack.c.b16 %v1414, %v1413
    %v1511 = vpack.c.b16 %v1416, %v1415
    %v1512 = vpack.c.b16 %v1418, %v1417
    %v1513 = vpack.c.b16 %v1420, %v1419
    %v1514 = vpack.c.b16 %v1422, %v1421
    %v1515 = vpack.c.b16 %v1424, %v1423
    %v1516 = vpack.c.b16 %v1426, %v1425
    %v1517 = vpack.c.b16 %v1428, %v1427
    %v1518 = vpack.c.b16 %v1430, %v1429
    %v1519 = vpack.c.b16 %v1432, %v1431
    %v1520 = vpack.c.b16 %v1434, %v1433
    %v1521 = vpack.c.b16 %v1436, %v1435
    %v1522 = vpack.c.b16 %v1438, %v1437
    %v1523 = vpack.c.b16 %v1440, %v1439
    %v1524 = vpack.c.b16 %v1442, %v1441
    %v1525 = vpack.c.b16 %v1444, %v1443
    %v1526 = vpack.c.b16 %v1446, %v1445
    %v1527 = vpack.c.b16 %v1448, %v1447
    %v1528 = vpack.c.b16 %v1450, %v1449
    %v1529 = vpack.c.b16 %v1452, %v1451
    %v1530 = vpack.c.b16 %v1454, %v1453
    %v1531 = vpack.c.b16 %v1456, %v1455
    %v1532 = vpack.c.b16 %v1458, %v1457
    %v1533 = vpack.c.b16 %v1460, %v1459
    %v1534 = vpack.c.b16 %v1462, %v1461
    %v1535 = vpack.c.b16 %v1464, %v1463
    %v1536 = vpack.c.b16 %v1466, %v1465
    %v1537 = vpack.c.b16 %v1468, %v1467
    %v1538 = vpack.c.b16 %v1470, %v1469
    %v1539 = vpack.c.b16 %v1472, %v1471
    %v1540 = vpack.c.b16 %v1474, %v1473
    %v1541 = vpack.c.b16 %v1476, %v1475
    %v1542 = vpack.c.b16 %v1478, %v1477
    %1607 = vmatprep.subr.bf16.mxu0 0
    %1608 = vmatpush1.bf16.msra.mxu0 %v1479
    %1609 = vmatprep.subr.bf16.mxu0 0
    %1610 = vmatpush1.bf16.msra.mxu0 %v1480
    %1611 = vmatprep.subr.bf16.mxu0 0
    %1612 = vmatpush1.bf16.msra.mxu0 %v1481
    %1613 = vmatprep.subr.bf16.mxu0 0
    %1614 = vmatpush1.bf16.msra.mxu0 %v1482
    %1615 = vmatprep.subr.bf16.mxu0 0
    %1616 = vmatpush1.bf16.msra.mxu0 %v1483
    %1617 = vmatprep.subr.bf16.mxu0 0
    %1618 = vmatpush1.bf16.msra.mxu0 %v1484
    %1619 = vmatprep.subr.bf16.mxu0 0
    %1620 = vmatpush1.bf16.msra.mxu0 %v1485
    %1621 = vmatprep.subr.bf16.mxu0 0
    %1622 = vmatpush1.bf16.msra.mxu0 %v1486
    %1623 = vmatprep.subr.bf16.mxu0 0
    %1624 = vmatpush1.bf16.msra.mxu0 %v1487
    %1625 = vmatprep.subr.bf16.mxu0 0
    %1626 = vmatpush1.bf16.msra.mxu0 %v1488
    %1627 = vmatprep.subr.bf16.mxu0 0
    %1628 = vmatpush1.bf16.msra.mxu0 %v1489
    %1629 = vmatprep.subr.bf16.mxu0 0
    %1630 = vmatpush1.bf16.msra.mxu0 %v1490
    %1631 = vmatprep.subr.bf16.mxu0 0
    %1632 = vmatpush1.bf16.msra.mxu0 %v1491
    %1633 = vmatprep.subr.bf16.mxu0 0
    %1634 = vmatpush1.bf16.msra.mxu0 %v1492
    %1635 = vmatprep.subr.bf16.mxu0 0
    %1636 = vmatpush1.bf16.msra.mxu0 %v1493
    %1637 = vmatprep.subr.bf16.mxu0 0
    %1638 = vmatpush1.bf16.msra.mxu0 %v1494
    %1639 = vmatprep.mubr.bf16.mxu0 %v1112
    %1640 = vmatmul.mubr.bf16.gmra.mrb[0].mxu0 %v1111
    %v1641 = vpop.f32.mrb[0].mxu0
    %v1642 = vadd.f32 %v953, %v1641
    %v1643 = vpop.f32.mrb[0].mxu0
    %v1644 = vpop.f32.mrb[0].mxu0
    %v1645 = vadd.f32 %v953, %v1644
    %v1646 = vpop.f32.mrb[0].mxu0
    %1647 = vmatprep.mubr.bf16.mxu0 %v1120
    %1648 = vmatmul.mubr.bf16.gmra.mrb[0].mxu0 %v1119
    %v1649 = vpop.f32.mrb[0].mxu0
    %v1650 = vadd.f32 %v953, %v1649
    %v1651 = vpop.f32.mrb[0].mxu0
    %v1652 = vpop.f32.mrb[0].mxu0
    %v1653 = vadd.f32 %v953, %v1652
    %v1654 = vpop.f32.mrb[0].mxu0
    %1655 = vmatprep.mubr.bf16.mxu0 %v1128
    %1656 = vmatmul.mubr.bf16.gmra.mrb[0].mxu0 %v1127
    %v1657 = vpop.f32.mrb[0].mxu0
    %v1658 = vadd.f32 %v953, %v1657
    %v1659 = vpop.f32.mrb[0].mxu0
    %v1660 = vpop.f32.mrb[0].mxu0
    %v1661 = vadd.f32 %v953, %v1660
    %v1662 = vpop.f32.mrb[0].mxu0
    %1663 = vmatprep.mubr.bf16.mxu0 %v1136
    %1664 = vmatmul.mubr.bf16.gmra.mrb[0].mxu0 %v1135
    %v1665 = vpop.f32.mrb[0].mxu0
    %v1666 = vadd.f32 %v953, %v1665
    %v1667 = vpop.f32.mrb[0].mxu0
    %v1668 = vpop.f32.mrb[0].mxu0
    %v1669 = vadd.f32 %v953, %v1668
    %v1670 = vpop.f32.mrb[0].mxu0
    %1671 = vmatprep.mubr.bf16.mxu0 %v1144
    %1672 = vmatmul.mubr.bf16.gmra.mrb[0].mxu0 %v1143
    %v1673 = vpop.f32.mrb[0].mxu0
    %v1674 = vadd.f32 %v953, %v1673
    %v1675 = vpop.f32.mrb[0].mxu0
    %v1676 = vpop.f32.mrb[0].mxu0
    %v1677 = vadd.f32 %v953, %v1676
    %v1678 = vpop.f32.mrb[0].mxu0
    %1679 = vmatprep.mubr.bf16.mxu0 %v1152
    %1680 = vmatmul.mubr.bf16.gmra.mrb[0].mxu0 %v1151
    %v1681 = vpop.f32.mrb[0].mxu0
    %v1682 = vadd.f32 %v953, %v1681
    %v1683 = vpop.f32.mrb[0].mxu0
    %v1684 = vpop.f32.mrb[0].mxu0
    %v1685 = vadd.f32 %v953, %v1684
    %v1686 = vpop.f32.mrb[0].mxu0
    %1687 = vmatprep.mubr.bf16.mxu0 %v1160
    %1688 = vmatmul.mubr.bf16.gmra.mrb[0].mxu0 %v1159
    %v1689 = vpop.f32.mrb[0].mxu0
    %v1690 = vadd.f32 %v953, %v1689
    %v1691 = vpop.f32.mrb[0].mxu0
    %v1692 = vpop.f32.mrb[0].mxu0
    %v1693 = vpop.f32.mrb[0].mxu0
    %1694 = vdwg.mxu0
    %1695 = vmatprep.subr.bf16.mxu0 0
    %1696 = vmatpush1.bf16.msra.mxu0 %v1495
    %1697 = vmatprep.subr.bf16.mxu0 0
    %1698 = vmatpush1.bf16.msra.mxu0 %v1496
    %1699 = vmatprep.subr.bf16.mxu0 0
    %1700 = vmatpush1.bf16.msra.mxu0 %v1497
    %1701 = vmatprep.subr.bf16.mxu0 0
    %1702 = vmatpush1.bf16.msra.mxu0 %v1498
    %1703 = vmatprep.subr.bf16.mxu0 0
    %1704 = vmatpush1.bf16.msra.mxu0 %v1499
    %1705 = vmatprep.subr.bf16.mxu0 0
    %1706 = vmatpush1.bf16.msra.mxu0 %v1500
    %1707 = vmatprep.subr.bf16.mxu0 0
    %1708 = vmatpush1.bf16.msra.mxu0 %v1501
    %1709 = vmatprep.subr.bf16.mxu0 0
    %1710 = vmatpush1.bf16.msra.mxu0 %v1502
    %1711 = vmatprep.subr.bf16.mxu0 0
    %1712 = vmatpush1.bf16.msra.mxu0 %v1503
    %1713 = vmatprep.subr.bf16.mxu0 0
    %1714 = vmatpush1.bf16.msra.mxu0 %v1504
    %1715 = vmatprep.subr.bf16.mxu0 0
    %1716 = vmatpush1.bf16.msra.mxu0 %v1505
    %1717 = vmatprep.subr.bf16.mxu0 0
    %1718 = vmatpush1.bf16.msra.mxu0 %v1506
    %1719 = vmatprep.subr.bf16.mxu0 0
    %1720 = vmatpush1.bf16.msra.mxu0 %v1507
    %1721 = vmatprep.subr.bf16.mxu0 0
    %1722 = vmatpush1.bf16.msra.mxu0 %v1508
    %1723 = vmatprep.subr.bf16.mxu0 0
    %1724 = vmatpush1.bf16.msra.mxu0 %v1509
    %1725 = vmatprep.subr.bf16.mxu0 0
    %1726 = vmatpush1.bf16.msra.mxu0 %v1510
    %1727 = vmatprep.mubr.bf16.mxu0 %v1114
    %1728 = vmatmul.mubr.bf16.gmra.mrb[0].mxu0 %v1113
    %v1729 = vpop.f32.mrb[0].mxu0
    %v1730 = vadd.f32 %v1642, %v1729
    %v1731 = vpop.f32.mrb[0].mxu0
    %v1732 = vpop.f32.mrb[0].mxu0
    %v1733 = vadd.f32 %v1645, %v1732
    %v1734 = vpop.f32.mrb[0].mxu0
    %1735 = vmatprep.mubr.bf16.mxu0 %v1122
    %1736 = vmatmul.mubr.bf16.gmra.mrb[0].mxu0 %v1121
    %v1737 = vpop.f32.mrb[0].mxu0
    %v1738 = vadd.f32 %v1650, %v1737
    %v1739 = vpop.f32.mrb[0].mxu0
    %v1740 = vpop.f32.mrb[0].mxu0
    %v1741 = vadd.f32 %v1653, %v1740
    %v1742 = vpop.f32.mrb[0].mxu0
    %1743 = vmatprep.mubr.bf16.mxu0 %v1130
    %1744 = vmatmul.mubr.bf16.gmra.mrb[0].mxu0 %v1129
    %v1745 = vpop.f32.mrb[0].mxu0
    %v1746 = vadd.f32 %v1658, %v1745
    %v1747 = vpop.f32.mrb[0].mxu0
    %v1748 = vpop.f32.mrb[0].mxu0
    %v1749 = vadd.f32 %v1661, %v1748
    %v1750 = vpop.f32.mrb[0].mxu0
    %1751 = vmatprep.mubr.bf16.mxu0 %v1138
    %1752 = vmatmul.mubr.bf16.gmra.mrb[0].mxu0 %v1137
    %v1753 = vpop.f32.mrb[0].mxu0
    %v1754 = vadd.f32 %v1666, %v1753
    %v1755 = vpop.f32.mrb[0].mxu0
    %v1756 = vpop.f32.mrb[0].mxu0
    %v1757 = vadd.f32 %v1669, %v1756
    %v1758 = vpop.f32.mrb[0].mxu0
    %1759 = vmatprep.mubr.bf16.mxu0 %v1146
    %1760 = vmatmul.mubr.bf16.gmra.mrb[0].mxu0 %v1145
    %v1761 = vpop.f32.mrb[0].mxu0
    %v1762 = vadd.f32 %v1674, %v1761
    %v1763 = vpop.f32.mrb[0].mxu0
    %v1764 = vpop.f32.mrb[0].mxu0
    %v1765 = vadd.f32 %v1677, %v1764
    %v1766 = vpop.f32.mrb[0].mxu0
    %1767 = vmatprep.mubr.bf16.mxu0 %v1154
    %1768 = vmatmul.mubr.bf16.gmra.mrb[0].mxu0 %v1153
    %v1769 = vpop.f32.mrb[0].mxu0
    %v1770 = vadd.f32 %v1682, %v1769
    %v1771 = vpop.f32.mrb[0].mxu0
    %v1772 = vpop.f32.mrb[0].mxu0
    %v1773 = vadd.f32 %v1685, %v1772
    %v1774 = vpop.f32.mrb[0].mxu0
    %1775 = vmatprep.mubr.bf16.mxu0 %v1162
    %1776 = vmatmul.mubr.bf16.gmra.mrb[0].mxu0 %v1161
    %v1777 = vpop.f32.mrb[0].mxu0
    %v1778 = vadd.f32 %v1690, %v1777
    %v1779 = vpop.f32.mrb[0].mxu0
    %v1780 = vpop.f32.mrb[0].mxu0
    %v1781 = vpop.f32.mrb[0].mxu0
    %1782 = vdwg.mxu0
    %1783 = vmatprep.subr.bf16.mxu0 0
    %1784 = vmatpush1.bf16.msra.mxu0 %v1511
    %1785 = vmatprep.subr.bf16.mxu0 0
    %1786 = vmatpush1.bf16.msra.mxu0 %v1512
    %1787 = vmatprep.subr.bf16.mxu0 0
    %1788 = vmatpush1.bf16.msra.mxu0 %v1513
    %1789 = vmatprep.subr.bf16.mxu0 0
    %1790 = vmatpush1.bf16.msra.mxu0 %v1514
    %1791 = vmatprep.subr.bf16.mxu0 0
    %1792 = vmatpush1.bf16.msra.mxu0 %v1515
    %1793 = vmatprep.subr.bf16.mxu0 0
    %1794 = vmatpush1.bf16.msra.mxu0 %v1516
    %1795 = vmatprep.subr.bf16.mxu0 0
    %1796 = vmatpush1.bf16.msra.mxu0 %v1517
    %1797 = vmatprep.subr.bf16.mxu0 0
    %1798 = vmatpush1.bf16.msra.mxu0 %v1518
    %1799 = vmatprep.subr.bf16.mxu0 0
    %1800 = vmatpush1.bf16.msra.mxu0 %v1519
    %1801 = vmatprep.subr.bf16.mxu0 0
    %1802 = vmatpush1.bf16.msra.mxu0 %v1520
    %1803 = vmatprep.subr.bf16.mxu0 0
    %1804 = vmatpush1.bf16.msra.mxu0 %v1521
    %1805 = vmatprep.subr.bf16.mxu0 0
    %1806 = vmatpush1.bf16.msra.mxu0 %v1522
    %1807 = vmatprep.subr.bf16.mxu0 0
    %1808 = vmatpush1.bf16.msra.mxu0 %v1523
    %1809 = vmatprep.subr.bf16.mxu0 0
    %1810 = vmatpush1.bf16.msra.mxu0 %v1524
    %1811 = vmatprep.subr.bf16.mxu0 0
    %1812 = vmatpush1.bf16.msra.mxu0 %v1525
    %1813 = vmatprep.subr.bf16.mxu0 0
    %1814 = vmatpush1.bf16.msra.mxu0 %v1526
    %1815 = vmatprep.mubr.bf16.mxu0 %v1116
    %1816 = vmatmul.mubr.bf16.gmra.mrb[0].mxu0 %v1115
    %v1817 = vpop.f32.mrb[0].mxu0
    %v1818 = vadd.f32 %v1730, %v1817
    %v1819 = vpop.f32.mrb[0].mxu0
    %v1820 = vpop.f32.mrb[0].mxu0
    %v1821 = vadd.f32 %v1733, %v1820
    %v1822 = vpop.f32.mrb[0].mxu0
    %1823 = vmatprep.mubr.bf16.mxu0 %v1124
    %1824 = vmatmul.mubr.bf16.gmra.mrb[0].mxu0 %v1123
    %v1825 = vpop.f32.mrb[0].mxu0
    %v1826 = vadd.f32 %v1738, %v1825
    %v1827 = vpop.f32.mrb[0].mxu0
    %v1828 = vpop.f32.mrb[0].mxu0
    %v1829 = vadd.f32 %v1741, %v1828
    %v1830 = vpop.f32.mrb[0].mxu0
    %1831 = vmatprep.mubr.bf16.mxu0 %v1132
    %1832 = vmatmul.mubr.bf16.gmra.mrb[0].mxu0 %v1131
    %v1833 = vpop.f32.mrb[0].mxu0
    %v1834 = vadd.f32 %v1746, %v1833
    %v1835 = vpop.f32.mrb[0].mxu0
    %v1836 = vpop.f32.mrb[0].mxu0
    %v1837 = vadd.f32 %v1749, %v1836
    %v1838 = vpop.f32.mrb[0].mxu0
    %1839 = vmatprep.mubr.bf16.mxu0 %v1140
    %1840 = vmatmul.mubr.bf16.gmra.mrb[0].mxu0 %v1139
    %v1841 = vpop.f32.mrb[0].mxu0
    %v1842 = vadd.f32 %v1754, %v1841
    %v1843 = vpop.f32.mrb[0].mxu0
    %v1844 = vpop.f32.mrb[0].mxu0
    %v1845 = vadd.f32 %v1757, %v1844
    %v1846 = vpop.f32.mrb[0].mxu0
    %1847 = vmatprep.mubr.bf16.mxu0 %v1148
    %1848 = vmatmul.mubr.bf16.gmra.mrb[0].mxu0 %v1147
    %v1849 = vpop.f32.mrb[0].mxu0
    %v1850 = vadd.f32 %v1762, %v1849
    %v1851 = vpop.f32.mrb[0].mxu0
    %v1852 = vpop.f32.mrb[0].mxu0
    %v1853 = vadd.f32 %v1765, %v1852
    %v1854 = vpop.f32.mrb[0].mxu0
    %1855 = vmatprep.mubr.bf16.mxu0 %v1156
    %1856 = vmatmul.mubr.bf16.gmra.mrb[0].mxu0 %v1155
    %v1857 = vpop.f32.mrb[0].mxu0
    %v1858 = vadd.f32 %v1770, %v1857
    %v1859 = vpop.f32.mrb[0].mxu0
    %v1860 = vpop.f32.mrb[0].mxu0
    %v1861 = vadd.f32 %v1773, %v1860
    %v1862 = vpop.f32.mrb[0].mxu0
    %1863 = vmatprep.mubr.bf16.mxu0 %v1164
    %1864 = vmatmul.mubr.bf16.gmra.mrb[0].mxu0 %v1163
    %v1865 = vpop.f32.mrb[0].mxu0
    %v1866 = vadd.f32 %v1778, %v1865
    %v1867 = vpop.f32.mrb[0].mxu0
    %v1868 = vpop.f32.mrb[0].mxu0
    %v1869 = vpop.f32.mrb[0].mxu0
    %1870 = vdwg.mxu0
    %1871 = vmatprep.subr.bf16.mxu0 0
    %1872 = vmatpush1.bf16.msra.mxu0 %v1527
    %1873 = vmatprep.subr.bf16.mxu0 0
    %1874 = vmatpush1.bf16.msra.mxu0 %v1528
    %1875 = vmatprep.subr.bf16.mxu0 0
    %1876 = vmatpush1.bf16.msra.mxu0 %v1529
    %1877 = vmatprep.subr.bf16.mxu0 0
    %1878 = vmatpush1.bf16.msra.mxu0 %v1530
    %1879 = vmatprep.subr.bf16.mxu0 0
    %1880 = vmatpush1.bf16.msra.mxu0 %v1531
    %1881 = vmatprep.subr.bf16.mxu0 0
    %1882 = vmatpush1.bf16.msra.mxu0 %v1532
    %1883 = vmatprep.subr.bf16.mxu0 0
    %1884 = vmatpush1.bf16.msra.mxu0 %v1533
    %1885 = vmatprep.subr.bf16.mxu0 0
    %1886 = vmatpush1.bf16.msra.mxu0 %v1534
    %1887 = vmatprep.subr.bf16.mxu0 0
    %1888 = vmatpush1.bf16.msra.mxu0 %v1535
    %1889 = vmatprep.subr.bf16.mxu0 0
    %1890 = vmatpush1.bf16.msra.mxu0 %v1536
    %1891 = vmatprep.subr.bf16.mxu0 0
    %1892 = vmatpush1.bf16.msra.mxu0 %v1537
    %1893 = vmatprep.subr.bf16.mxu0 0
    %1894 = vmatpush1.bf16.msra.mxu0 %v1538
    %1895 = vmatprep.subr.bf16.mxu0 0
    %1896 = vmatpush1.bf16.msra.mxu0 %v1539
    %1897 = vmatprep.subr.bf16.mxu0 0
    %1898 = vmatpush1.bf16.msra.mxu0 %v1540
    %1899 = vmatprep.subr.bf16.mxu0 0
    %1900 = vmatpush1.bf16.msra.mxu0 %v1541
    %1901 = vmatprep.subr.bf16.mxu0 0
    %1902 = vmatpush1.bf16.msra.mxu0 %v1542
    %1903 = vmatprep.mubr.bf16.mxu0 %v1118
    %1904 = vmatmul.mubr.bf16.gmra.mrb[0].mxu0 %v1117
    %v1905 = vpop.f32.mrb[0].mxu0
    %v1906 = vadd.f32 %v1818, %v1905
    %v1907 = vpop.f32.mrb[0].mxu0
    %v1908 = vpop.f32.mrb[0].mxu0
    %v1909 = vadd.f32 %v1821, %v1908
    %v1910 = vpop.f32.mrb[0].mxu0
    %1911 = vmatprep.mubr.bf16.mxu0 %v1126
    %1912 = vmatmul.mubr.bf16.gmra.mrb[0].mxu0 %v1125
    %v1913 = vpop.f32.mrb[0].mxu0
    %v1914 = vadd.f32 %v1826, %v1913
    %v1915 = vpop.f32.mrb[0].mxu0
    %v1916 = vpop.f32.mrb[0].mxu0
    %v1917 = vadd.f32 %v1829, %v1916
    %v1918 = vpop.f32.mrb[0].mxu0
    %1919 = vmatprep.mubr.bf16.mxu0 %v1134
    %1920 = vmatmul.mubr.bf16.gmra.mrb[0].mxu0 %v1133
    %v1921 = vpop.f32.mrb[0].mxu0
    %v1922 = vadd.f32 %v1834, %v1921
    %v1923 = vpop.f32.mrb[0].mxu0
    %v1924 = vpop.f32.mrb[0].mxu0
    %v1925 = vadd.f32 %v1837, %v1924
    %v1926 = vpop.f32.mrb[0].mxu0
    %1927 = vmatprep.mubr.bf16.mxu0 %v1142
    %1928 = vmatmul.mubr.bf16.gmra.mrb[0].mxu0 %v1141
    %v1929 = vpop.f32.mrb[0].mxu0
    %v1930 = vadd.f32 %v1842, %v1929
    %v1931 = vpop.f32.mrb[0].mxu0
    %v1932 = vpop.f32.mrb[0].mxu0
    %v1933 = vadd.f32 %v1845, %v1932
    %v1934 = vpop.f32.mrb[0].mxu0
    %1935 = vmatprep.mubr.bf16.mxu0 %v1150
    %1936 = vmatmul.mubr.bf16.gmra.mrb[0].mxu0 %v1149
    %v1937 = vpop.f32.mrb[0].mxu0
    %v1938 = vadd.f32 %v1850, %v1937
    %v1939 = vpop.f32.mrb[0].mxu0
    %v1940 = vpop.f32.mrb[0].mxu0
    %v1941 = vadd.f32 %v1853, %v1940
    %v1942 = vpop.f32.mrb[0].mxu0
    %1943 = vmatprep.mubr.bf16.mxu0 %v1158
    %1944 = vmatmul.mubr.bf16.gmra.mrb[0].mxu0 %v1157
    %v1945 = vpop.f32.mrb[0].mxu0
    %v1946 = vadd.f32 %v1858, %v1945
    %v1947 = vpop.f32.mrb[0].mxu0
    %v1948 = vpop.f32.mrb[0].mxu0
    %v1949 = vadd.f32 %v1861, %v1948
    %v1950 = vpop.f32.mrb[0].mxu0
    %1951 = vmatprep.mubr.bf16.mxu0 %v1166
    %1952 = vmatmul.mubr.bf16.gmra.mrb[0].mxu0 %v1165
    %v1953 = vpop.f32.mrb[0].mxu0
    %v1954 = vadd.f32 %v1866, %v1953
    %v1955 = vpop.f32.mrb[0].mxu0
    %v1956 = vpop.f32.mrb[0].mxu0
    %v1957 = vpop.f32.mrb[0].mxu0
    %1958 = vdwg.mxu0
    %v1959 = vmax.f32 %v1906, 0.0
    %v1960 = vmax.f32 %v1909, 0.0
    %v1961 = vmax.f32 %v1914, 0.0
    %v1962 = vmax.f32 %v1917, 0.0
    %v1963 = vmax.f32 %v1922, 0.0
    %v1964 = vmax.f32 %v1925, 0.0
    %v1965 = vmax.f32 %v1930, 0.0
    %v1966 = vmax.f32 %v1933, 0.0
    %v1967 = vmax.f32 %v1938, 0.0
    %v1968 = vmax.f32 %v1941, 0.0
    %v1969 = vmax.f32 %v1946, 0.0
    %v1970 = vmax.f32 %v1949, 0.0
    %v1971 = vmax.f32 %v1954, 0.0
    %v1972 = vpack.c.bf16 %v1960, %v1959
    %v1973 = vpack.c.bf16 %v1962, %v1961
    %v1974 = vpack.c.bf16 %v1964, %v1963
    %v1975 = vpack.c.bf16 %v1966, %v1965
    %v1976 = vpack.c.bf16 %v1968, %v1967
    %v1977 = vpack.c.bf16 %v1970, %v1969
    %v1978 = vpack.c.bf16 %v1971, %v1971
    %v1986 = vunpack.c.l.b16 %v1972
    %v1987 = vunpack.c.h.b16 %v1972
    %v1988 = vunpack.c.l.b16 %v1973
    %v1989 = vunpack.c.h.b16 %v1973
    %v1990 = vunpack.c.l.b16 %v1974
    %v1991 = vunpack.c.h.b16 %v1974
    %v1992 = vunpack.c.l.b16 %v1975
    %v1993 = vunpack.c.h.b16 %v1975
    %v1994 = vunpack.c.l.b16 %v1976
    %v1995 = vunpack.c.h.b16 %v1976
    %v1996 = vunpack.c.l.b16 %v1977
    %v1997 = vunpack.c.h.b16 %v1977
    %v1998 = vunpack.c.l.b16 %v1978
    %v1999 = vpack.c.b16 %v1986, %v1986
    %v2000 = vpack.c.b16 %v1987, %v1987
    %v2001 = vpack.c.b16 %v1988, %v1988
    %v2002 = vpack.c.b16 %v1989, %v1989
    %v2003 = vpack.c.b16 %v1990, %v1990
    %v2004 = vpack.c.b16 %v1991, %v1991
    %v2005 = vpack.c.b16 %v1992, %v1992
    %v2006 = vpack.c.b16 %v1993, %v1993
    %v2007 = vpack.c.b16 %v1994, %v1994
    %v2008 = vpack.c.b16 %v1995, %v1995
    %v2009 = vpack.c.b16 %v1996, %v1996
    %v2010 = vpack.c.b16 %v1997, %v1997
    %v2011 = vpack.c.b16 %v1998, %v1998
    %2025 = vst [vmem:[#allocation3] sm:$0xf] %v1999
    %2026 = vst [vmem:[#allocation3 + $0x4] sm:$0xf] %v2000
    %2027 = vst [vmem:[#allocation3 + $0x8] sm:$0xf] %v2001
    %2028 = vst [vmem:[#allocation3 + $0xc] sm:$0xf] %v2002
    %2029 = vst [vmem:[#allocation3 + $0x10] sm:$0xf] %v2003
    %2030 = vst [vmem:[#allocation3 + $0x14] sm:$0xf] %v2004
    %2031 = vst [vmem:[#allocation3 + $0x18] sm:$0xf] %v2005
    %2032 = vst [vmem:[#allocation3 + $0x1c] sm:$0xf] %v2006
    %2033 = vst [vmem:[#allocation3 + $0x20] sm:$0xf] %v2007
    %2034 = vst [vmem:[#allocation3 + $0x24] sm:$0xf] %v2008
    %2035 = vst [vmem:[#allocation3 + $0x28] sm:$0xf] %v2009
    %2036 = vst [vmem:[#allocation3 + $0x2c] sm:$0xf] %v2010
    %2037 = vst [vmem:[#allocation3 + $0x30] sm:$0x1] %v2011
    %v2038 = vld [vmem:[#allocation3] sm:$0x7]
    %2039 = vst [vmem:[#allocation4] sm:$0x7] %v2038
    %v2040 = vld [vmem:[#allocation3] sm:$0xf]
    %v2042 = vshrl.u32 %v2040, 16
    %v2044 = vrot.slane %v2042, 4
    %v2045 = vshll.u32 %v2040, 16
    %v2047 = vrot.slane %v2045, 5
    %v2048 = vor.u32 %v2044, %v2047
    %v2049 = vrot.slane %v2048, 4
    %2051 = vst [vmem:[#allocation4 + $0x4] sm:$0x7] %v2049
    %v2052 = vld [vmem:[#allocation3] sm:$0x8]
    %v2053 = vld [vmem:[#allocation3 + $0x4] sm:$0x7]
    %vm2054 = vsmask.f32 4368
    %vm2055 = vmor %vm386, %vm2054
    %v2057 = vshrl.u32 %v2052, 16
    %v2059 = vrot.slane %v2057, 7
    %v2060 = vrot.slane %v2059, 4
    %v2062 = vshrl.u32 %v2053, 16
    %v2064 = vrot.slane %v2062, 7
    %v2065 = vshll.u32 %v2053, 16
    %v2067 = vor.u32 %v2064, %v2065
    %v2068 = vsel %vm2055, %v2060, %v2067
    %2070 = vst [vmem:[#allocation4 + $0x8] sm:$0x7] %v2068
    %v2071 = vld [vmem:[#allocation3 + $0x4] sm:$0x7]
    %2072 = vst [vmem:[#allocation4 + $0xc] sm:$0x7] %v2071
    %v2073 = vld [vmem:[#allocation3] sm:$0x8]
    %v2074 = vld [vmem:[#allocation3 + $0x4] sm:$0x7]
    %vm2075 = vsmask.f32 7440
    %vm2076 = vmor %vm42, %vm2075
    %v2078 = vshrl.u32 %v2073, 16
    %v2080 = vrot.slane %v2078, 4
    %v2081 = vrot.slane %v2080, 4
    %v2083 = vshll.u32 %v2074, 16
    %v2085 = vrot.slane %v2083, 5
    %v2086 = vsel %vm2076, %v2081, %v2085
    %v2087 = vshrl.u32 %v2074, 16
    %v2089 = vrot.slane %v2087, 4
    %v2090 = vor.u32 %v2089, %v2085
    %v2091 = vrot.slane %v2090, 4
    %2094 = vst [vmem:[#allocation4] sm:$0x8] %v2086
    %2095 = vst [vmem:[#allocation4 + $0x10] sm:$0x3] %v2091
    %v2096 = vld [vmem:[#allocation3 + $0x4] sm:$0x7]
    %v2098 = vrot.slane %v2096, 5
    %v2099 = vrot.slane %v2098, 4
    %2102 = vst [vmem:[#allocation4 + $0x4] sm:$0x8] %v2098
    %2103 = vst [vmem:[#allocation4 + $0x14] sm:$0x3] %v2099
    %v2104 = vld [vmem:[#allocation3 + $0x4] sm:$0x8]
    %v2105 = vld [vmem:[#allocation3 + $0x8] sm:$0x3]
    %2106 = vst [vmem:[#allocation4 + $0x8] sm:$0x8] %v2104
    %2107 = vst [vmem:[#allocation4 + $0x18] sm:$0x3] %v2105
    %v2108 = vld [vmem:[#allocation3 + $0x4] sm:$0x8]
    %v2109 = vld [vmem:[#allocation3 + $0x8] sm:$0x7]
    %v2111 = vshrl.u32 %v2108, 16
    %v2113 = vrot.slane %v2111, 4
    %v2114 = vrot.slane %v2113, 4
    %v2116 = vshll.u32 %v2109, 16
    %v2118 = vrot.slane %v2116, 5
    %v2119 = vsel %vm2076, %v2114, %v2118
    %v2120 = vshrl.u32 %v2109, 16
    %v2122 = vrot.slane %v2120, 4
    %v2123 = vor.u32 %v2122, %v2118
    %v2124 = vrot.slane %v2123, 4
    %2127 = vst [vmem:[#allocation4 + $0xc] sm:$0x8] %v2119
    %2128 = vst [vmem:[#allocation4 + $0x1c] sm:$0x3] %v2124
    %v2129 = vld [vmem:[#allocation3 + $0x4] sm:$0x8]
    %v2130 = vld [vmem:[#allocation3 + $0x8] sm:$0x3]
    %vm2133 = vmor %vm149, %vm152
    %v2134 = vrot.slane %v2129, 5
    %v2135 = vrot.slane %v2134, 4
    %v2136 = vrot.slane %v2130, 5
    %v2137 = vsel %vm2133, %v2135, %v2136
    %v2138 = vrot.slane %v2136, 4
    %2141 = vst [vmem:[#allocation4 + $0x10] sm:$0xc] %v2137
    %2142 = vst [vmem:[#allocation4 + $0x20] sm:$0x1] %v2138
    %v2143 = vld [vmem:[#allocation3 + $0x4] sm:$0x8]
    %v2144 = vld [vmem:[#allocation3 + $0x8] sm:$0x7]
    %vm2145 = vsmask.f32 6416
    %vm2146 = vmor %vm150, %vm2145
    %v2148 = vshrl.u32 %v2143, 16
    %v2150 = vrot.slane %v2148, 5
    %v2151 = vrot.slane %v2150, 4
    %v2153 = vshrl.u32 %v2144, 16
    %v2155 = vrot.slane %v2153, 5
    %v2156 = vshll.u32 %v2144, 16
    %v2158 = vrot.slane %v2156, 6
    %v2159 = vor.u32 %v2155, %v2158
    %v2160 = vsel %vm2146, %v2151, %v2159
    %v2161 = vrot.slane %v2159, 4
    %2164 = vst [vmem:[#allocation4 + $0x14] sm:$0xc] %v2160
    %2165 = vst [vmem:[#allocation4 + $0x24] sm:$0x1] %v2161
    %v2166 = vld [vmem:[#allocation3 + $0x8] sm:$0xc]
    %v2167 = vld [vmem:[#allocation3 + $0xc] sm:$0x3]
    %v2169 = vshrl.u32 %v2166, 16
    %v2171 = vrot.slane %v2169, 4
    %v2172 = vshll.u32 %v2166, 16
    %v2174 = vrot.slane %v2172, 5
    %v2175 = vor.u32 %v2171, %v2174
    %v2176 = vrot.slane %v2175, 4
    %v2178 = vshll.u32 %v2167, 16
    %v2180 = vrot.slane %v2178, 5
    %v2181 = vsel %vm2076, %v2176, %v2180
    %v2182 = vshrl.u32 %v2167, 16
    %v2184 = vrot.slane %v2182, 4
    %v2185 = vor.u32 %v2184, %v2180
    %v2186 = vrot.slane %v2185, 4
    %2189 = vst [vmem:[#allocation4 + $0x18] sm:$0xc] %v2181
    %2190 = vst [vmem:[#allocation4 + $0x28] sm:$0x1] %v2186
    %v2191 = vld [vmem:[#allocation3 + $0x8] sm:$0x8]
    %v2192 = vld [vmem:[#allocation3 + $0xc] sm:$0x3]
    %v2195 = vrot.slane %v2191, 5
    %v2196 = vrot.slane %v2195, 4
    %v2197 = vrot.slane %v2192, 5
    %v2198 = vsel %vm2133, %v2196, %v2197
    %v2199 = vrot.slane %v2197, 4
    %2202 = vst [vmem:[#allocation4 + $0x1c] sm:$0xc] %v2198
    %2203 = vst [vmem:[#allocation4 + $0x2c] sm:$0x1] %v2199
    %v2204 = vld [vmem:[#allocation3 + $0x8] sm:$0xc]
    %v2205 = vld [vmem:[#allocation3 + $0xc] sm:$0x3]
    %v2207 = vshrl.u32 %v2204, 16
    %v2209 = vrot.slane %v2207, 5
    %v2210 = vshll.u32 %v2204, 16
    %v2212 = vrot.slane %v2210, 6
    %v2213 = vor.u32 %v2209, %v2212
    %v2214 = vrot.slane %v2213, 4
    %v2216 = vshrl.u32 %v2205, 16
    %v2218 = vrot.slane %v2216, 5
    %v2219 = vshll.u32 %v2205, 16
    %v2221 = vrot.slane %v2219, 6
    %v2222 = vor.u32 %v2218, %v2221
    %v2223 = vsel %vm2146, %v2214, %v2222
    %2225 = vst [vmem:[#allocation4 + $0x20] sm:$0xe] %v2223
    %v2226 = vld [vmem:[#allocation3 + $0x8] sm:$0x8]
    %v2227 = vld [vmem:[#allocation3 + $0xc] sm:$0x3]
    %vm2230 = vmor %vm267, %vm270
    %v2231 = vrot.slane %v2226, 6
    %v2232 = vrot.slane %v2231, 4
    %v2233 = vrot.slane %v2227, 6
    %v2234 = vsel %vm2230, %v2232, %v2233
    %2236 = vst [vmem:[#allocation4 + $0x24] sm:$0xe] %v2234
    %v2237 = vld [vmem:[#allocation3 + $0xc] sm:$0xc]
    %v2238 = vld [vmem:[#allocation3 + $0x10] sm:$0x1]
    %v2241 = vrot.slane %v2237, 5
    %v2242 = vrot.slane %v2241, 4
    %v2243 = vrot.slane %v2238, 5
    %v2244 = vsel %vm2133, %v2242, %v2243
    %2246 = vst [vmem:[#allocation4 + $0x28] sm:$0xe] %v2244
    %v2247 = vld [vmem:[#allocation3 + $0xc] sm:$0xc]
    %v2248 = vld [vmem:[#allocation3 + $0x10] sm:$0x3]
    %v2250 = vshrl.u32 %v2247, 16
    %v2252 = vrot.slane %v2250, 5
    %v2253 = vshll.u32 %v2247, 16
    %v2255 = vrot.slane %v2253, 6
    %v2256 = vor.u32 %v2252, %v2255
    %v2257 = vrot.slane %v2256, 4
    %v2259 = vshrl.u32 %v2248, 16
    %v2261 = vrot.slane %v2259, 5
    %v2262 = vshll.u32 %v2248, 16
    %v2264 = vrot.slane %v2262, 6
    %v2265 = vor.u32 %v2261, %v2264
    %v2266 = vsel %vm2146, %v2257, %v2265
    %2268 = vst [vmem:[#allocation4 + $0x2c] sm:$0xe] %v2266
    %v2269 = vld [vmem:[#allocation3 + $0xc] sm:$0xc]
    %v2270 = vld [vmem:[#allocation3 + $0x10] sm:$0x1]
    %v2273 = vrot.slane %v2269, 6
    %v2274 = vrot.slane %v2273, 4
    %v2275 = vrot.slane %v2270, 6
    %v2276 = vsel %vm2230, %v2274, %v2275
    %2278 = vst [vmem:[#allocation4 + $0x30] sm:$0x7] %v2276
    %v2279 = vld [vmem:[#allocation3 + $0xc] sm:$0xc]
    %v2280 = vld [vmem:[#allocation3 + $0x10] sm:$0x3]
    %vm2281 = vsmask.f32 5392
    %vm2282 = vmor %vm268, %vm2281
    %v2284 = vshrl.u32 %v2279, 16
    %v2286 = vrot.slane %v2284, 6
    %v2287 = vshll.u32 %v2279, 16
    %v2289 = vrot.slane %v2287, 7
    %v2290 = vor.u32 %v2286, %v2289
    %v2291 = vrot.slane %v2290, 4
    %v2293 = vshrl.u32 %v2280, 16
    %v2295 = vrot.slane %v2293, 6
    %v2296 = vshll.u32 %v2280, 16
    %v2298 = vrot.slane %v2296, 7
    %v2299 = vor.u32 %v2295, %v2298
    %v2300 = vsel %vm2282, %v2291, %v2299
    %2302 = vst [vmem:[#allocation4 + $0x34] sm:$0x7] %v2300
    %v2303 = vld [vmem:[#allocation3 + $0x10] sm:$0xe]
    %v2304 = vld [vmem:[#allocation3 + $0x14] sm:$0x1]
    %v2306 = vshrl.u32 %v2303, 16
    %v2308 = vrot.slane %v2306, 5
    %v2309 = vshll.u32 %v2303, 16
    %v2311 = vrot.slane %v2309, 6
    %v2312 = vor.u32 %v2308, %v2311
    %v2313 = vrot.slane %v2312, 4
    %v2315 = vshll.u32 %v2304, 16
    %v2317 = vrot.slane %v2315, 6
    %v2318 = vsel %vm2146, %v2313, %v2317
    %2320 = vst [vmem:[#allocation4 + $0x38] sm:$0x7] %v2318
    %v2321 = vld [vmem:[#allocation3 + $0x10] sm:$0xc]
    %v2322 = vld [vmem:[#allocation3 + $0x14] sm:$0x1]
    %v2325 = vrot.slane %v2321, 6
    %v2326 = vrot.slane %v2325, 4
    %v2327 = vrot.slane %v2322, 6
    %v2328 = vsel %vm2230, %v2326, %v2327
    %2330 = vst [vmem:[#allocation4 + $0x3c] sm:$0x7] %v2328
    %v2331 = vld [vmem:[#allocation3 + $0x10] sm:$0xe]
    %v2332 = vld [vmem:[#allocation3 + $0x14] sm:$0x1]
    %v2334 = vshrl.u32 %v2331, 16
    %v2336 = vrot.slane %v2334, 6
    %v2337 = vshll.u32 %v2331, 16
    %v2339 = vrot.slane %v2337, 7
    %v2340 = vor.u32 %v2336, %v2339
    %v2341 = vrot.slane %v2340, 4
    %v2343 = vshll.u32 %v2332, 16
    %v2345 = vrot.slane %v2343, 7
    %v2346 = vsel %vm2282, %v2341, %v2345
    %2349 = vst [vmem:[#allocation4 + $0x30] sm:$0x8] %v2340
    %2350 = vst [vmem:[#allocation4 + $0x40] sm:$0x3] %v2346
    %v2351 = vld [vmem:[#allocation3 + $0x10] sm:$0xc]
    %v2352 = vld [vmem:[#allocation3 + $0x14] sm:$0x1]
    %vm2355 = vmor %vm385, %vm388
    %v2356 = vrot.slane %v2351, 7
    %v2357 = vrot.slane %v2356, 4
    %v2358 = vrot.slane %v2352, 7
    %v2359 = vsel %vm2355, %v2357, %v2358
    %2362 = vst [vmem:[#allocation4 + $0x34] sm:$0x8] %v2356
    %2363 = vst [vmem:[#allocation4 + $0x44] sm:$0x3] %v2359
    %v2364 = vld [vmem:[#allocation3 + $0x14] sm:$0xe]
    %v2366 = vrot.slane %v2364, 6
    %v2367 = vrot.slane %v2366, 4
    %2370 = vst [vmem:[#allocation4 + $0x38] sm:$0x8] %v2366
    %2371 = vst [vmem:[#allocation4 + $0x48] sm:$0x3] %v2367
    %v2372 = vld [vmem:[#allocation3 + $0x14] sm:$0xe]
    %v2373 = vld [vmem:[#allocation3 + $0x18] sm:$0x1]
    %v2375 = vshrl.u32 %v2372, 16
    %v2377 = vrot.slane %v2375, 6
    %v2378 = vshll.u32 %v2372, 16
    %v2380 = vrot.slane %v2378, 7
    %v2381 = vor.u32 %v2377, %v2380
    %v2382 = vrot.slane %v2381, 4
    %v2384 = vshll.u32 %v2373, 16
    %v2386 = vrot.slane %v2384, 7
    %v2387 = vsel %vm2282, %v2382, %v2386
    %2390 = vst [vmem:[#allocation4 + $0x3c] sm:$0x8] %v2381
    %2391 = vst [vmem:[#allocation4 + $0x4c] sm:$0x3] %v2387
    %v2392 = vld [vmem:[#allocation3 + $0x18] sm:$0xf]
    %v2394 = vshrl.u32 %v2392, 16
    %v2396 = vrot.slane %v2394, 6
    %v2397 = vshll.u32 %v2392, 16
    %v2399 = vrot.slane %v2397, 7
    %v2400 = vor.u32 %v2396, %v2399
    %v2401 = vrot.slane %v2400, 4
    %2404 = vst [vmem:[#allocation4 + $0x40] sm:$0xc] %v2400
    %2405 = vst [vmem:[#allocation4 + $0x50] sm:$0x1] %v2401
    %v2406 = vld [vmem:[#allocation3 + $0x18] sm:$0xe]
    %v2408 = vrot.slane %v2406, 7
    %v2409 = vrot.slane %v2408, 4
    %2412 = vst [vmem:[#allocation4 + $0x44] sm:$0xc] %v2408
    %2413 = vst [vmem:[#allocation4 + $0x54] sm:$0x1] %v2409
    %v2414 = vld [vmem:[#allocation3 + $0x1c] sm:$0x7]
    %v2416 = vrot.slane %v2414, 6
    %v2417 = vrot.slane %v2416, 4
    %2420 = vst [vmem:[#allocation4 + $0x48] sm:$0xc] %v2416
    %2421 = vst [vmem:[#allocation4 + $0x58] sm:$0x1] %v2417
    %v2422 = vld [vmem:[#allocation3 + $0x1c] sm:$0xf]
    %v2424 = vshrl.u32 %v2422, 16
    %v2426 = vrot.slane %v2424, 6
    %v2427 = vshll.u32 %v2422, 16
    %v2429 = vrot.slane %v2427, 7
    %v2430 = vor.u32 %v2426, %v2429
    %v2431 = vrot.slane %v2430, 4
    %2434 = vst [vmem:[#allocation4 + $0x4c] sm:$0xc] %v2430
    %2435 = vst [vmem:[#allocation4 + $0x5c] sm:$0x1] %v2431
    %v2436 = vld [vmem:[#allocation3 + $0x1c] sm:$0x7]
    %v2438 = vrot.slane %v2436, 7
    %2440 = vst [vmem:[#allocation4 + $0x50] sm:$0xe] %v2438
    %v2441 = vld [vmem:[#allocation3 + $0x1c] sm:$0xf]
    %v2443 = vshrl.u32 %v2441, 16
    %v2445 = vrot.slane %v2443, 7
    %v2446 = vshll.u32 %v2441, 16
    %v2448 = vor.u32 %v2445, %v2446
    %2450 = vst [vmem:[#allocation4 + $0x54] sm:$0xe] %v2448
    %v2451 = vld [vmem:[#allocation3 + $0x1c] sm:$0x8]
    %v2452 = vld [vmem:[#allocation3 + $0x20] sm:$0x7]
    %v2454 = vshrl.u32 %v2451, 16
    %v2456 = vrot.slane %v2454, 6
    %v2457 = vrot.slane %v2456, 4
    %v2459 = vshrl.u32 %v2452, 16
    %v2461 = vrot.slane %v2459, 6
    %v2462 = vshll.u32 %v2452, 16
    %v2464 = vrot.slane %v2462, 7
    %v2465 = vor.u32 %v2461, %v2464
    %v2466 = vsel %vm2282, %v2457, %v2465
    %2468 = vst [vmem:[#allocation4 + $0x58] sm:$0xe] %v2466
    %v2469 = vld [vmem:[#allocation3 + $0x20] sm:$0x7]
    %v2471 = vrot.slane %v2469, 7
    %2473 = vst [vmem:[#allocation4 + $0x5c] sm:$0xe] %v2471
    %v2474 = vld [vmem:[#allocation3 + $0x1c] sm:$0x8]
    %v2475 = vld [vmem:[#allocation3 + $0x20] sm:$0x7]
    %v2477 = vshrl.u32 %v2474, 16
    %v2479 = vrot.slane %v2477, 7
    %v2480 = vrot.slane %v2479, 4
    %v2482 = vshrl.u32 %v2475, 16
    %v2484 = vrot.slane %v2482, 7
    %v2485 = vshll.u32 %v2475, 16
    %v2487 = vor.u32 %v2484, %v2485
    %v2488 = vsel %vm2055, %v2480, %v2487
    %2490 = vst [vmem:[#allocation4 + $0x60] sm:$0x7] %v2488
    %v2491 = vld [vmem:[#allocation3 + $0x20] sm:$0x7]
    %2492 = vst [vmem:[#allocation4 + $0x64] sm:$0x7] %v2491
    %v2493 = vld [vmem:[#allocation3 + $0x20] sm:$0x8]
    %v2494 = vld [vmem:[#allocation3 + $0x24] sm:$0x3]
    %v2497 = vrot.slane %v2493, 7
    %v2498 = vrot.slane %v2497, 4
    %v2499 = vrot.slane %v2494, 7
    %v2500 = vsel %vm2355, %v2498, %v2499
    %2502 = vst [vmem:[#allocation4 + $0x68] sm:$0x7] %v2500
    %v2503 = vld [vmem:[#allocation3 + $0x20] sm:$0x8]
    %v2504 = vld [vmem:[#allocation3 + $0x24] sm:$0x7]
    %v2506 = vshrl.u32 %v2503, 16
    %v2508 = vrot.slane %v2506, 7
    %v2509 = vrot.slane %v2508, 4
    %v2511 = vshrl.u32 %v2504, 16
    %v2513 = vrot.slane %v2511, 7
    %v2514 = vshll.u32 %v2504, 16
    %v2516 = vor.u32 %v2513, %v2514
    %v2517 = vsel %vm2055, %v2509, %v2516
    %2519 = vst [vmem:[#allocation4 + $0x6c] sm:$0x7] %v2517
    %v2520 = vld [vmem:[#allocation3 + $0x20] sm:$0x8]
    %v2521 = vld [vmem:[#allocation3 + $0x24] sm:$0x3]
    %2522 = vst [vmem:[#allocation4 + $0x60] sm:$0x8] %v2520
    %2523 = vst [vmem:[#allocation4 + $0x70] sm:$0x3] %v2521
    %v2524 = vld [vmem:[#allocation3 + $0x20] sm:$0x8]
    %v2525 = vld [vmem:[#allocation3 + $0x24] sm:$0x7]
    %v2527 = vshrl.u32 %v2524, 16
    %v2529 = vrot.slane %v2527, 4
    %v2530 = vrot.slane %v2529, 4
    %v2532 = vshll.u32 %v2525, 16
    %v2534 = vrot.slane %v2532, 5
    %v2535 = vsel %vm2076, %v2530, %v2534
    %v2536 = vshrl.u32 %v2525, 16
    %v2538 = vrot.slane %v2536, 4
    %v2539 = vor.u32 %v2538, %v2534
    %v2540 = vrot.slane %v2539, 4
    %2543 = vst [vmem:[#allocation4 + $0x64] sm:$0x8] %v2535
    %2544 = vst [vmem:[#allocation4 + $0x74] sm:$0x3] %v2540
    %v2545 = vld [vmem:[#allocation3 + $0x24] sm:$0xc]
    %v2546 = vld [vmem:[#allocation3 + $0x28] sm:$0x3]
    %v2548 = vshrl.u32 %v2545, 16
    %v2550 = vrot.slane %v2548, 7
    %v2551 = vshll.u32 %v2545, 16
    %v2553 = vor.u32 %v2550, %v2551
    %v2554 = vrot.slane %v2550, 4
    %v2556 = vshrl.u32 %v2546, 16
    %v2558 = vrot.slane %v2556, 7
    %v2559 = vshll.u32 %v2546, 16
    %v2561 = vor.u32 %v2558, %v2559
    %v2562 = vsel %vm2055, %v2554, %v2561
    %2565 = vst [vmem:[#allocation4 + $0x68] sm:$0x8] %v2553
    %2566 = vst [vmem:[#allocation4 + $0x78] sm:$0x3] %v2562
    %v2567 = vld [vmem:[#allocation3 + $0x24] sm:$0x8]
    %v2568 = vld [vmem:[#allocation3 + $0x28] sm:$0x3]
    %2569 = vst [vmem:[#allocation4 + $0x6c] sm:$0x8] %v2567
    %2570 = vst [vmem:[#allocation4 + $0x7c] sm:$0x3] %v2568
    %v2571 = vld [vmem:[#allocation3 + $0x24] sm:$0xc]
    %v2572 = vld [vmem:[#allocation3 + $0x28] sm:$0x3]
    %v2574 = vshrl.u32 %v2571, 16
    %v2576 = vrot.slane %v2574, 4
    %v2577 = vshll.u32 %v2571, 16
    %v2579 = vrot.slane %v2577, 5
    %v2580 = vor.u32 %v2576, %v2579
    %v2581 = vrot.slane %v2580, 4
    %v2583 = vshll.u32 %v2572, 16
    %v2585 = vrot.slane %v2583, 5
    %v2586 = vsel %vm2076, %v2581, %v2585
    %v2587 = vshrl.u32 %v2572, 16
    %v2589 = vrot.slane %v2587, 4
    %v2590 = vor.u32 %v2589, %v2585
    %v2591 = vrot.slane %v2590, 4
    %2594 = vst [vmem:[#allocation4 + $0x70] sm:$0xc] %v2586
    %2595 = vst [vmem:[#allocation4 + $0x80] sm:$0x1] %v2591
    %v2596 = vld [vmem:[#allocation3 + $0x24] sm:$0x8]
    %v2597 = vld [vmem:[#allocation3 + $0x28] sm:$0x3]
    %v2600 = vrot.slane %v2596, 5
    %v2601 = vrot.slane %v2600, 4
    %v2602 = vrot.slane %v2597, 5
    %v2603 = vsel %vm2133, %v2601, %v2602
    %v2604 = vrot.slane %v2602, 4
    %2607 = vst [vmem:[#allocation4 + $0x74] sm:$0xc] %v2603
    %2608 = vst [vmem:[#allocation4 + $0x84] sm:$0x1] %v2604
    %v2609 = vld [vmem:[#allocation3 + $0x28] sm:$0xc]
    %v2610 = vld [vmem:[#allocation3 + $0x2c] sm:$0x1]
    %2611 = vst [vmem:[#allocation4 + $0x78] sm:$0xc] %v2609
    %2612 = vst [vmem:[#allocation4 + $0x88] sm:$0x1] %v2610
    %v2613 = vld [vmem:[#allocation3 + $0x28] sm:$0xc]
    %v2614 = vld [vmem:[#allocation3 + $0x2c] sm:$0x3]
    %v2616 = vshrl.u32 %v2613, 16
    %v2618 = vrot.slane %v2616, 4
    %v2619 = vshll.u32 %v2613, 16
    %v2621 = vrot.slane %v2619, 5
    %v2622 = vor.u32 %v2618, %v2621
    %v2623 = vrot.slane %v2622, 4
    %v2625 = vshll.u32 %v2614, 16
    %v2627 = vrot.slane %v2625, 5
    %v2628 = vsel %vm2076, %v2623, %v2627
    %v2629 = vshrl.u32 %v2614, 16
    %v2631 = vrot.slane %v2629, 4
    %v2632 = vor.u32 %v2631, %v2627
    %v2633 = vrot.slane %v2632, 4
    %2636 = vst [vmem:[#allocation4 + $0x7c] sm:$0xc] %v2628
    %2637 = vst [vmem:[#allocation4 + $0x8c] sm:$0x1] %v2633
    %v2638 = vld [vmem:[#allocation3 + $0x28] sm:$0xc]
    %v2639 = vld [vmem:[#allocation3 + $0x2c] sm:$0x1]
    %v2642 = vrot.slane %v2638, 5
    %v2643 = vrot.slane %v2642, 4
    %v2644 = vrot.slane %v2639, 5
    %v2645 = vsel %vm2133, %v2643, %v2644
    %2647 = vst [vmem:[#allocation4 + $0x80] sm:$0xe] %v2645
    %v2648 = vld [vmem:[#allocation3 + $0x28] sm:$0xc]
    %v2649 = vld [vmem:[#allocation3 + $0x2c] sm:$0x3]
    %v2651 = vshrl.u32 %v2648, 16
    %v2653 = vrot.slane %v2651, 5
    %v2654 = vshll.u32 %v2648, 16
    %v2656 = vrot.slane %v2654, 6
    %v2657 = vor.u32 %v2653, %v2656
    %v2658 = vrot.slane %v2657, 4
    %v2660 = vshrl.u32 %v2649, 16
    %v2662 = vrot.slane %v2660, 5
    %v2663 = vshll.u32 %v2649, 16
    %v2665 = vrot.slane %v2663, 6
    %v2666 = vor.u32 %v2662, %v2665
    %v2667 = vsel %vm2146, %v2658, %v2666
    %2669 = vst [vmem:[#allocation4 + $0x84] sm:$0xe] %v2667
    %v2670 = vld [vmem:[#allocation3 + $0x2c] sm:$0xe]
    %v2671 = vld [vmem:[#allocation3 + $0x30] sm:$0x1]
    %v2673 = vshrl.u32 %v2670, 16
    %v2675 = vrot.slane %v2673, 4
    %v2676 = vshll.u32 %v2670, 16
    %v2678 = vrot.slane %v2676, 5
    %v2679 = vor.u32 %v2675, %v2678
    %v2680 = vrot.slane %v2679, 4
    %v2682 = vshll.u32 %v2671, 16
    %v2684 = vrot.slane %v2682, 5
    %v2685 = vsel %vm2076, %v2680, %v2684
    %2687 = vst [vmem:[#allocation4 + $0x88] sm:$0xe] %v2685
    %v2688 = vld [vmem:[#allocation3 + $0x2c] sm:$0xc]
    %v2689 = vld [vmem:[#allocation3 + $0x30] sm:$0x1]
    %v2692 = vrot.slane %v2688, 5
    %v2693 = vrot.slane %v2692, 4
    %v2694 = vrot.slane %v2689, 5
    %v2695 = vsel %vm2133, %v2693, %v2694
    %2697 = vst [vmem:[#allocation4 + $0x8c] sm:$0xe] %v2695
    %v2698 = vld [vmem:[#allocation4] sm:$0xff]
    %v2699 = vld [vmem:[#allocation4 + $0x8] sm:$0xff]
    %v2700 = vld [vmem:[#allocation4 + $0x10] sm:$0xff]
    %v2701 = vld [vmem:[#allocation4 + $0x18] sm:$0xff]
    %v2702 = vld [vmem:[#allocation4 + $0x20] sm:$0xff]
    %v2703 = vld [vmem:[#allocation4 + $0x28] sm:$0xff]
    %v2704 = vld [vmem:[#allocation4 + $0x30] sm:$0xff]
    %v2705 = vld [vmem:[#allocation4 + $0x38] sm:$0xff]
    %v2706 = vld [vmem:[#allocation4 + $0x40] sm:$0xff]
    %v2707 = vld [vmem:[#allocation4 + $0x48] sm:$0xff]
    %v2708 = vld [vmem:[#allocation4 + $0x50] sm:$0xff]
    %v2709 = vld [vmem:[#allocation4 + $0x58] sm:$0xff]
    %v2710 = vld [vmem:[#allocation4 + $0x60] sm:$0xff]
    %v2711 = vld [vmem:[#allocation4 + $0x68] sm:$0xff]
    %v2712 = vld [vmem:[#allocation4 + $0x70] sm:$0xff]
    %v2713 = vld [vmem:[#allocation4 + $0x78] sm:$0xff]
    %v2714 = vld [vmem:[#allocation4 + $0x80] sm:$0xff]
    %v2715 = vld [vmem:[#allocation4 + $0x88] sm:$0xff]
    %v2716 = vld [vmem:[%s3] sm:$0xf]
    %v2717 = vld [vmem:[%s3 + $0x4] sm:$0xf]
    %v2718 = vld [vmem:[%s3 + $0x8] sm:$0xf]
    %v2719 = vld [vmem:[%s3 + $0xc] sm:$0xf]
    %v2720 = vld [vmem:[%s3 + $0x10] sm:$0xf]
    %v2721 = vld [vmem:[%s3 + $0x14] sm:$0xf]
    %v2722 = vld [vmem:[%s3 + $0x18] sm:$0xf]
    %v2723 = vld [vmem:[%s3 + $0x1c] sm:$0xf]
    %v2724 = vld [vmem:[%s3 + $0x20] sm:$0xf]
    %v2725 = vld [vmem:[%s3 + $0x24] sm:$0xf]
    %v2726 = vld [vmem:[%s3 + $0x28] sm:$0xf]
    %v2727 = vld [vmem:[%s3 + $0x2c] sm:$0xf]
    %v2728 = vld [vmem:[%s3 + $0x30] sm:$0xf]
    %v2729 = vld [vmem:[%s3 + $0x34] sm:$0xf]
    %v2730 = vld [vmem:[%s3 + $0x38] sm:$0xf]
    %v2731 = vld [vmem:[%s3 + $0x3c] sm:$0xf]
    %v2732 = vld [vmem:[%s3 + $0x40] sm:$0xf]
    %v2733 = vld [vmem:[%s3 + $0x44] sm:$0xf]
    %v2734 = vld [vmem:[%s3 + $0x48] sm:$0xf]
    %v2735 = vld [vmem:[%s3 + $0x4c] sm:$0xf]
    %v2736 = vld [vmem:[%s3 + $0x50] sm:$0xf]
    %v2737 = vld [vmem:[%s3 + $0x54] sm:$0xf]
    %v2738 = vld [vmem:[%s3 + $0x58] sm:$0xf]
    %v2739 = vld [vmem:[%s3 + $0x5c] sm:$0xf]
    %v2740 = vld [vmem:[%s3 + $0x60] sm:$0xf]
    %v2741 = vld [vmem:[%s3 + $0x64] sm:$0xf]
    %v2742 = vld [vmem:[%s3 + $0x68] sm:$0xf]
    %v2743 = vld [vmem:[%s3 + $0x6c] sm:$0xf]
    %v2744 = vld [vmem:[%s3 + $0x70] sm:$0xf]
    %v2745 = vld [vmem:[%s3 + $0x74] sm:$0xf]
    %v2746 = vld [vmem:[%s3 + $0x78] sm:$0xf]
    %v2747 = vld [vmem:[%s3 + $0x7c] sm:$0xf]
    %v2748 = vld [vmem:[%s3 + $0x80] sm:$0xf]
    %v2749 = vld [vmem:[%s3 + $0x84] sm:$0xf]
    %v2750 = vld [vmem:[%s3 + $0x88] sm:$0xf]
    %v2751 = vld [vmem:[%s3 + $0x8c] sm:$0xf]
    %v2752 = vld [vmem:[%s3 + $0x90] sm:$0xf]
    %v2753 = vld [vmem:[%s3 + $0x94] sm:$0xf]
    %v2754 = vld [vmem:[%s3 + $0x98] sm:$0xf]
    %v2755 = vld [vmem:[%s3 + $0x9c] sm:$0xf]
    %v2756 = vld [vmem:[%s3 + $0xa0] sm:$0xf]
    %v2757 = vld [vmem:[%s3 + $0xa4] sm:$0xf]
    %v2758 = vld [vmem:[%s3 + $0xa8] sm:$0xf]
    %v2759 = vld [vmem:[%s3 + $0xac] sm:$0xf]
    %v2760 = vld [vmem:[%s3 + $0xb0] sm:$0xf]
    %v2761 = vld [vmem:[%s3 + $0xb4] sm:$0xf]
    %v2762 = vld [vmem:[%s3 + $0xb8] sm:$0xf]
    %v2763 = vld [vmem:[%s3 + $0xbc] sm:$0xf]
    %v2764 = vld [vmem:[%s3 + $0xc0] sm:$0xf]
    %v2765 = vld [vmem:[%s3 + $0xc4] sm:$0xf]
    %v2766 = vld [vmem:[%s3 + $0xc8] sm:$0xf]
    %v2767 = vld [vmem:[%s3 + $0xcc] sm:$0xf]
    %v2768 = vld [vmem:[%s3 + $0xd0] sm:$0xf]
    %v2769 = vld [vmem:[%s3 + $0xd4] sm:$0xf]
    %v2770 = vld [vmem:[%s3 + $0xd8] sm:$0xf]
    %v2771 = vld [vmem:[%s3 + $0xdc] sm:$0xf]
    %v2772 = vld [vmem:[%s3 + $0xe0] sm:$0xf]
    %v2773 = vld [vmem:[%s3 + $0xe4] sm:$0xf]
    %v2774 = vld [vmem:[%s3 + $0xe8] sm:$0xf]
    %v2775 = vld [vmem:[%s3 + $0xec] sm:$0xf]
    %v2776 = vld [vmem:[%s3 + $0xf0] sm:$0xf]
    %v2777 = vld [vmem:[%s3 + $0xf4] sm:$0xf]
    %v2778 = vld [vmem:[%s3 + $0xf8] sm:$0xf]
    %v2779 = vld [vmem:[%s3 + $0xfc] sm:$0xf]
    %v2780 = vld [vmem:[%s4] sm:$0x1]
    %v2782 = vlaneseq
    %v2783 = vshrl.u32 %v2782, 7
    %v2784 = vsub.s32 0, %v2783
    %v2785 = vrot.slane %v2780, %v2784
    %v2805 = vunpack.c.l.b16 %v2698
    %v2806 = vunpack.c.h.b16 %v2698
    %v2807 = vunpack.c.l.b16 %v2699
    %v2808 = vunpack.c.h.b16 %v2699
    %v2809 = vunpack.c.l.b16 %v2700
    %v2810 = vunpack.c.h.b16 %v2700
    %v2811 = vunpack.c.l.b16 %v2701
    %v2812 = vunpack.c.h.b16 %v2701
    %v2813 = vunpack.c.l.b16 %v2702
    %v2814 = vunpack.c.h.b16 %v2702
    %v2815 = vunpack.c.l.b16 %v2703
    %v2816 = vunpack.c.h.b16 %v2703
    %v2817 = vunpack.c.l.b16 %v2704
    %v2818 = vunpack.c.h.b16 %v2704
    %v2819 = vunpack.c.l.b16 %v2705
    %v2820 = vunpack.c.h.b16 %v2705
    %v2821 = vunpack.c.l.b16 %v2706
    %v2822 = vunpack.c.h.b16 %v2706
    %v2823 = vunpack.c.l.b16 %v2707
    %v2824 = vunpack.c.h.b16 %v2707
    %v2825 = vunpack.c.l.b16 %v2708
    %v2826 = vunpack.c.h.b16 %v2708
    %v2827 = vunpack.c.l.b16 %v2709
    %v2828 = vunpack.c.h.b16 %v2709
    %v2829 = vunpack.c.l.b16 %v2710
    %v2830 = vunpack.c.h.b16 %v2710
    %v2831 = vunpack.c.l.b16 %v2711
    %v2832 = vunpack.c.h.b16 %v2711
    %v2833 = vunpack.c.l.b16 %v2712
    %v2834 = vunpack.c.h.b16 %v2712
    %v2835 = vunpack.c.l.b16 %v2713
    %v2836 = vunpack.c.h.b16 %v2713
    %v2837 = vunpack.c.l.b16 %v2714
    %v2838 = vunpack.c.h.b16 %v2714
    %v2839 = vunpack.c.l.b16 %v2715
    %v2840 = vunpack.c.h.b16 %v2715
    %v2841 = vpack.c.b16 %v2809, %v2805
    %v2842 = vpack.c.b16 %v2810, %v2806
    %v2843 = vpack.c.b16 %v2811, %v2807
    %v2844 = vpack.c.b16 %v2812, %v2808
    %v2845 = vpack.c.b16 %v2817, %v2813
    %v2846 = vpack.c.b16 %v2818, %v2814
    %v2847 = vpack.c.b16 %v2819, %v2815
    %v2848 = vpack.c.b16 %v2820, %v2816
    %v2849 = vpack.c.b16 %v2825, %v2821
    %v2850 = vpack.c.b16 %v2826, %v2822
    %v2851 = vpack.c.b16 %v2827, %v2823
    %v2852 = vpack.c.b16 %v2828, %v2824
    %v2853 = vpack.c.b16 %v2833, %v2829
    %v2854 = vpack.c.b16 %v2834, %v2830
    %v2855 = vpack.c.b16 %v2835, %v2831
    %v2856 = vpack.c.b16 %v2836, %v2832
    %v2857 = vpack.c.b16 %v2837, %v2837
    %v2858 = vpack.c.b16 %v2838, %v2838
    %v2859 = vpack.c.b16 %v2839, %v2839
    %v2860 = vpack.c.b16 %v2840, %v2840
    %v2945 = vunpack.c.l.b16 %v2716
    %v2946 = vunpack.c.l.b16 %v2717
    %v2947 = vunpack.c.l.b16 %v2718
    %v2948 = vunpack.c.l.b16 %v2719
    %v2949 = vunpack.c.l.b16 %v2720
    %v2950 = vunpack.c.l.b16 %v2721
    %v2951 = vunpack.c.l.b16 %v2722
    %v2952 = vunpack.c.l.b16 %v2723
    %v2953 = vunpack.c.l.b16 %v2724
    %v2954 = vunpack.c.l.b16 %v2725
    %v2955 = vunpack.c.l.b16 %v2726
    %v2956 = vunpack.c.l.b16 %v2727
    %v2957 = vunpack.c.l.b16 %v2728
    %v2958 = vunpack.c.l.b16 %v2729
    %v2959 = vunpack.c.l.b16 %v2730
    %v2960 = vunpack.c.l.b16 %v2731
    %v2961 = vunpack.c.l.b16 %v2732
    %v2962 = vunpack.c.l.b16 %v2733
    %v2963 = vunpack.c.l.b16 %v2734
    %v2964 = vunpack.c.l.b16 %v2735
    %v2965 = vunpack.c.l.b16 %v2736
    %v2966 = vunpack.c.l.b16 %v2737
    %v2967 = vunpack.c.l.b16 %v2738
    %v2968 = vunpack.c.l.b16 %v2739
    %v2969 = vunpack.c.l.b16 %v2740
    %v2970 = vunpack.c.l.b16 %v2741
    %v2971 = vunpack.c.l.b16 %v2742
    %v2972 = vunpack.c.l.b16 %v2743
    %v2973 = vunpack.c.l.b16 %v2744
    %v2974 = vunpack.c.l.b16 %v2745
    %v2975 = vunpack.c.l.b16 %v2746
    %v2976 = vunpack.c.l.b16 %v2747
    %v2977 = vunpack.c.l.b16 %v2748
    %v2978 = vunpack.c.l.b16 %v2749
    %v2979 = vunpack.c.l.b16 %v2750
    %v2980 = vunpack.c.l.b16 %v2751
    %v2981 = vunpack.c.l.b16 %v2752
    %v2982 = vunpack.c.l.b16 %v2753
    %v2983 = vunpack.c.l.b16 %v2754
    %v2984 = vunpack.c.l.b16 %v2755
    %v2985 = vunpack.c.l.b16 %v2756
    %v2986 = vunpack.c.l.b16 %v2757
    %v2987 = vunpack.c.l.b16 %v2758
    %v2988 = vunpack.c.l.b16 %v2759
    %v2989 = vunpack.c.l.b16 %v2760
    %v2990 = vunpack.c.l.b16 %v2761
    %v2991 = vunpack.c.l.b16 %v2762
    %v2992 = vunpack.c.l.b16 %v2763
    %v2993 = vunpack.c.l.b16 %v2764
    %v2994 = vunpack.c.l.b16 %v2765
    %v2995 = vunpack.c.l.b16 %v2766
    %v2996 = vunpack.c.l.b16 %v2767
    %v2997 = vunpack.c.l.b16 %v2768
    %v2998 = vunpack.c.l.b16 %v2769
    %v2999 = vunpack.c.l.b16 %v2770
    %v3000 = vunpack.c.l.b16 %v2771
    %v3001 = vunpack.c.l.b16 %v2772
    %v3002 = vunpack.c.l.b16 %v2773
    %v3003 = vunpack.c.l.b16 %v2774
    %v3004 = vunpack.c.l.b16 %v2775
    %v3005 = vunpack.c.l.b16 %v2776
    %v3006 = vunpack.c.l.b16 %v2777
    %v3007 = vunpack.c.l.b16 %v2778
    %v3008 = vunpack.c.l.b16 %v2779
    %v3009 = vpack.c.b16 %v2946, %v2945
    %v3010 = vpack.c.b16 %v2948, %v2947
    %v3011 = vpack.c.b16 %v2950, %v2949
    %v3012 = vpack.c.b16 %v2952, %v2951
    %v3013 = vpack.c.b16 %v2954, %v2953
    %v3014 = vpack.c.b16 %v2956, %v2955
    %v3015 = vpack.c.b16 %v2958, %v2957
    %v3016 = vpack.c.b16 %v2960, %v2959
    %v3017 = vpack.c.b16 %v2962, %v2961
    %v3018 = vpack.c.b16 %v2964, %v2963
    %v3019 = vpack.c.b16 %v2966, %v2965
    %v3020 = vpack.c.b16 %v2968, %v2967
    %v3021 = vpack.c.b16 %v2970, %v2969
    %v3022 = vpack.c.b16 %v2972, %v2971
    %v3023 = vpack.c.b16 %v2974, %v2973
    %v3024 = vpack.c.b16 %v2976, %v2975
    %v3025 = vpack.c.b16 %v2978, %v2977
    %v3026 = vpack.c.b16 %v2980, %v2979
    %v3027 = vpack.c.b16 %v2982, %v2981
    %v3028 = vpack.c.b16 %v2984, %v2983
    %v3029 = vpack.c.b16 %v2986, %v2985
    %v3030 = vpack.c.b16 %v2988, %v2987
    %v3031 = vpack.c.b16 %v2990, %v2989
    %v3032 = vpack.c.b16 %v2992, %v2991
    %v3033 = vpack.c.b16 %v2994, %v2993
    %v3034 = vpack.c.b16 %v2996, %v2995
    %v3035 = vpack.c.b16 %v2998, %v2997
    %v3036 = vpack.c.b16 %v3000, %v2999
    %v3037 = vpack.c.b16 %v3002, %v3001
    %v3038 = vpack.c.b16 %v3004, %v3003
    %v3039 = vpack.c.b16 %v3006, %v3005
    %v3040 = vpack.c.b16 %v3008, %v3007
    %3073 = vmatprep.subr.bf16.mxu0 0
    %3074 = vmatpush1.bf16.msra.mxu0 %v3009
    %3075 = vmatprep.subr.bf16.mxu0 0
    %3076 = vmatpush1.bf16.msra.mxu0 %v3010
    %3077 = vmatprep.subr.bf16.mxu0 0
    %3078 = vmatpush1.bf16.msra.mxu0 %v3011
    %3079 = vmatprep.subr.bf16.mxu0 0
    %3080 = vmatpush1.bf16.msra.mxu0 %v3012
    %3081 = vmatprep.subr.bf16.mxu0 0
    %3082 = vmatpush1.bf16.msra.mxu0 %v3013
    %3083 = vmatprep.subr.bf16.mxu0 0
    %3084 = vmatpush1.bf16.msra.mxu0 %v3014
    %3085 = vmatprep.subr.bf16.mxu0 0
    %3086 = vmatpush1.bf16.msra.mxu0 %v3015
    %3087 = vmatprep.subr.bf16.mxu0 0
    %3088 = vmatpush1.bf16.msra.mxu0 %v3016
    %3089 = vmatprep.subr.bf16.mxu0 0
    %3090 = vmatpush1.bf16.msra.mxu0 %v3017
    %3091 = vmatprep.subr.bf16.mxu0 0
    %3092 = vmatpush1.bf16.msra.mxu0 %v3018
    %3093 = vmatprep.subr.bf16.mxu0 0
    %3094 = vmatpush1.bf16.msra.mxu0 %v3019
    %3095 = vmatprep.subr.bf16.mxu0 0
    %3096 = vmatpush1.bf16.msra.mxu0 %v3020
    %3097 = vmatprep.subr.bf16.mxu0 0
    %3098 = vmatpush1.bf16.msra.mxu0 %v3021
    %3099 = vmatprep.subr.bf16.mxu0 0
    %3100 = vmatpush1.bf16.msra.mxu0 %v3022
    %3101 = vmatprep.subr.bf16.mxu0 0
    %3102 = vmatpush1.bf16.msra.mxu0 %v3023
    %3103 = vmatprep.subr.bf16.mxu0 0
    %3104 = vmatpush1.bf16.msra.mxu0 %v3024
    %3105 = vmatprep.mubr.bf16.mxu0 %v2842
    %3106 = vmatmul.mubr.bf16.gmra.mrb[0].mxu0 %v2841
    %v3107 = vpop.f32.mrb[0].mxu0
    %v3108 = vadd.f32 %v2785, %v3107
    %v3109 = vpop.f32.mrb[0].mxu0
    %v3110 = vpop.f32.mrb[0].mxu0
    %v3111 = vadd.f32 %v2785, %v3110
    %v3112 = vpop.f32.mrb[0].mxu0
    %3113 = vmatprep.mubr.bf16.mxu0 %v2846
    %3114 = vmatmul.mubr.bf16.gmra.mrb[0].mxu0 %v2845
    %v3115 = vpop.f32.mrb[0].mxu0
    %v3116 = vadd.f32 %v2785, %v3115
    %v3117 = vpop.f32.mrb[0].mxu0
    %v3118 = vpop.f32.mrb[0].mxu0
    %v3119 = vadd.f32 %v2785, %v3118
    %v3120 = vpop.f32.mrb[0].mxu0
    %3121 = vmatprep.mubr.bf16.mxu0 %v2850
    %3122 = vmatmul.mubr.bf16.gmra.mrb[0].mxu0 %v2849
    %v3123 = vpop.f32.mrb[0].mxu0
    %v3124 = vadd.f32 %v2785, %v3123
    %v3125 = vpop.f32.mrb[0].mxu0
    %v3126 = vpop.f32.mrb[0].mxu0
    %v3127 = vadd.f32 %v2785, %v3126
    %v3128 = vpop.f32.mrb[0].mxu0
    %3129 = vmatprep.mubr.bf16.mxu0 %v2854
    %3130 = vmatmul.mubr.bf16.gmra.mrb[0].mxu0 %v2853
    %v3131 = vpop.f32.mrb[0].mxu0
    %v3132 = vadd.f32 %v2785, %v3131
    %v3133 = vpop.f32.mrb[0].mxu0
    %v3134 = vpop.f32.mrb[0].mxu0
    %v3135 = vadd.f32 %v2785, %v3134
    %v3136 = vpop.f32.mrb[0].mxu0
    %3137 = vmatprep.mubr.bf16.mxu0 %v2858
    %3138 = vmatmul.mubr.bf16.gmra.mrb[0].mxu0 %v2857
    %v3139 = vpop.f32.mrb[0].mxu0
    %v3140 = vadd.f32 %v2785, %v3139
    %v3141 = vpop.f32.mrb[0].mxu0
    %v3142 = vpop.f32.mrb[0].mxu0
    %v3143 = vpop.f32.mrb[0].mxu0
    %3144 = vdwg.mxu0
    %3145 = vmatprep.subr.bf16.mxu0 0
    %3146 = vmatpush1.bf16.msra.mxu0 %v3025
    %3147 = vmatprep.subr.bf16.mxu0 0
    %3148 = vmatpush1.bf16.msra.mxu0 %v3026
    %3149 = vmatprep.subr.bf16.mxu0 0
    %3150 = vmatpush1.bf16.msra.mxu0 %v3027
    %3151 = vmatprep.subr.bf16.mxu0 0
    %3152 = vmatpush1.bf16.msra.mxu0 %v3028
    %3153 = vmatprep.subr.bf16.mxu0 0
    %3154 = vmatpush1.bf16.msra.mxu0 %v3029
    %3155 = vmatprep.subr.bf16.mxu0 0
    %3156 = vmatpush1.bf16.msra.mxu0 %v3030
    %3157 = vmatprep.subr.bf16.mxu0 0
    %3158 = vmatpush1.bf16.msra.mxu0 %v3031
    %3159 = vmatprep.subr.bf16.mxu0 0
    %3160 = vmatpush1.bf16.msra.mxu0 %v3032
    %3161 = vmatprep.subr.bf16.mxu0 0
    %3162 = vmatpush1.bf16.msra.mxu0 %v3033
    %3163 = vmatprep.subr.bf16.mxu0 0
    %3164 = vmatpush1.bf16.msra.mxu0 %v3034
    %3165 = vmatprep.subr.bf16.mxu0 0
    %3166 = vmatpush1.bf16.msra.mxu0 %v3035
    %3167 = vmatprep.subr.bf16.mxu0 0
    %3168 = vmatpush1.bf16.msra.mxu0 %v3036
    %3169 = vmatprep.subr.bf16.mxu0 0
    %3170 = vmatpush1.bf16.msra.mxu0 %v3037
    %3171 = vmatprep.subr.bf16.mxu0 0
    %3172 = vmatpush1.bf16.msra.mxu0 %v3038
    %3173 = vmatprep.subr.bf16.mxu0 0
    %3174 = vmatpush1.bf16.msra.mxu0 %v3039
    %3175 = vmatprep.subr.bf16.mxu0 0
    %3176 = vmatpush1.bf16.msra.mxu0 %v3040
    %3177 = vmatprep.mubr.bf16.mxu0 %v2844
    %3178 = vmatmul.mubr.bf16.gmra.mrb[0].mxu0 %v2843
    %v3179 = vpop.f32.mrb[0].mxu0
    %v3180 = vadd.f32 %v3108, %v3179
    %v3181 = vpop.f32.mrb[0].mxu0
    %v3182 = vpop.f32.mrb[0].mxu0
    %v3183 = vadd.f32 %v3111, %v3182
    %v3184 = vpop.f32.mrb[0].mxu0
    %3185 = vmatprep.mubr.bf16.mxu0 %v2848
    %3186 = vmatmul.mubr.bf16.gmra.mrb[0].mxu0 %v2847
    %v3187 = vpop.f32.mrb[0].mxu0
    %v3188 = vadd.f32 %v3116, %v3187
    %v3189 = vpop.f32.mrb[0].mxu0
    %v3190 = vpop.f32.mrb[0].mxu0
    %v3191 = vadd.f32 %v3119, %v3190
    %v3192 = vpop.f32.mrb[0].mxu0
    %3193 = vmatprep.mubr.bf16.mxu0 %v2852
    %3194 = vmatmul.mubr.bf16.gmra.mrb[0].mxu0 %v2851
    %v3195 = vpop.f32.mrb[0].mxu0
    %v3196 = vadd.f32 %v3124, %v3195
    %v3197 = vpop.f32.mrb[0].mxu0
    %v3198 = vpop.f32.mrb[0].mxu0
    %v3199 = vadd.f32 %v3127, %v3198
    %v3200 = vpop.f32.mrb[0].mxu0
    %3201 = vmatprep.mubr.bf16.mxu0 %v2856
    %3202 = vmatmul.mubr.bf16.gmra.mrb[0].mxu0 %v2855
    %v3203 = vpop.f32.mrb[0].mxu0
    %v3204 = vadd.f32 %v3132, %v3203
    %v3205 = vpop.f32.mrb[0].mxu0
    %v3206 = vpop.f32.mrb[0].mxu0
    %v3207 = vadd.f32 %v3135, %v3206
    %v3208 = vpop.f32.mrb[0].mxu0
    %3209 = vmatprep.mubr.bf16.mxu0 %v2860
    %3210 = vmatmul.mubr.bf16.gmra.mrb[0].mxu0 %v2859
    %v3211 = vpop.f32.mrb[0].mxu0
    %v3212 = vadd.f32 %v3140, %v3211
    %v3213 = vpop.f32.mrb[0].mxu0
    %v3214 = vpop.f32.mrb[0].mxu0
    %v3215 = vpop.f32.mrb[0].mxu0
    %3216 = vdwg.mxu0
    %v3217 = vmax.f32 %v3180, 0.0
    %v3218 = vmax.f32 %v3183, 0.0
    %v3219 = vmax.f32 %v3188, 0.0
    %v3220 = vmax.f32 %v3191, 0.0
    %v3221 = vmax.f32 %v3196, 0.0
    %v3222 = vmax.f32 %v3199, 0.0
    %v3223 = vmax.f32 %v3204, 0.0
    %v3224 = vmax.f32 %v3207, 0.0
    %v3225 = vmax.f32 %v3212, 0.0
    %v3226 = vpack.c.bf16 %v3218, %v3217
    %v3227 = vpack.c.bf16 %v3220, %v3219
    %v3228 = vpack.c.bf16 %v3222, %v3221
    %v3229 = vpack.c.bf16 %v3224, %v3223
    %v3230 = vpack.c.bf16 %v3225, %v3225
    %v3236 = vunpack.c.l.b16 %v3226
    %v3237 = vunpack.c.h.b16 %v3226
    %v3238 = vunpack.c.l.b16 %v3227
    %v3239 = vunpack.c.h.b16 %v3227
    %v3240 = vunpack.c.l.b16 %v3228
    %v3241 = vunpack.c.h.b16 %v3228
    %v3242 = vunpack.c.l.b16 %v3229
    %v3243 = vunpack.c.h.b16 %v3229
    %v3244 = vunpack.c.l.b16 %v3230
    %v3245 = vpack.c.b16 %v3236, %v3236
    %v3246 = vpack.c.b16 %v3237, %v3237
    %v3247 = vpack.c.b16 %v3238, %v3238
    %v3248 = vpack.c.b16 %v3239, %v3239
    %v3249 = vpack.c.b16 %v3240, %v3240
    %v3250 = vpack.c.b16 %v3241, %v3241
    %v3251 = vpack.c.b16 %v3242, %v3242
    %v3252 = vpack.c.b16 %v3243, %v3243
    %v3253 = vpack.c.b16 %v3244, %v3244
    %vm3263 = vcmask 519168
    %3264 = vst.msk [vmem:[#allocation5] sm:$0xf] %vm3263, %v3245
    %3265 = vst.msk [vmem:[#allocation5 + $0x4] sm:$0xf] %vm3263, %v3246
    %3266 = vst.msk [vmem:[#allocation5 + $0x8] sm:$0xf] %vm3263, %v3247
    %3267 = vst.msk [vmem:[#allocation5 + $0xc] sm:$0xf] %vm3263, %v3248
    %3268 = vst.msk [vmem:[#allocation5 + $0x10] sm:$0xf] %vm3263, %v3249
    %3269 = vst.msk [vmem:[#allocation5 + $0x14] sm:$0xf] %vm3263, %v3250
    %3270 = vst.msk [vmem:[#allocation5 + $0x18] sm:$0xf] %vm3263, %v3251
    %3271 = vst.msk [vmem:[#allocation5 + $0x1c] sm:$0xf] %vm3263, %v3252
    %3272 = vst.msk [vmem:[#allocation5 + $0x20] sm:$0xf] %vm3263, %v3253
    %v3273 = vld [vmem:[#allocation5] sm:$0x3]
    %vm3274 = vcmask 517120
    %3275 = vst.msk [vmem:[#allocation6] sm:$0x3] %vm3274, %v3273
    %v3276 = vld [vmem:[#allocation5] sm:$0x7]
    %v3278 = vunpack.c.l.b16 %v3276
    %v3279 = vpack.c.b16 %v3278, %v3278
    %v3281 = vshrl.u32 %v3279, 16
    %v3283 = vshll.u32 %v3279, 16
    %v3285 = vrot.slane %v3283, 1
    %v3286 = vor.u32 %v3281, %v3285
    %3287 = vrot.lane.b32.xlu0 %v3286, 64
    %v3288 = vpop.permute.xlu0 %3287
    %vm3290 = vcmask 1041920
    %3291 = vst.msk [vmem:[#allocation6] sm:$0x3] %vm3290, %v3288
    %v3292 = vld [vmem:[#allocation5] sm:$0x6]
    %v3294 = vunpack.c.l.b16 %v3292
    %v3295 = vpack.c.b16 %v3294, %v3294
    %v3296 = vrot.slane %v3295, 1
    %3298 = vst.msk [vmem:[#allocation6 + $0x8] sm:$0x3] %vm3274, %v3296
    %v3299 = vld [vmem:[#allocation5] sm:$0x8]
    %v3300 = vld [vmem:[#allocation5 + $0x4] sm:$0x1]
    %v3303 = vunpack.c.l.b16 %v3299
    %v3304 = vunpack.c.l.b16 %v3300
    %v3305 = vpack.c.b16 %v3304, %v3303
    %v3306 = vrot.slane %v3305, 3
    %3307 = vrot.lane.b32.xlu0 %v3306, 64
    %v3308 = vpop.permute.xlu0 %3307
    %3310 = vst.msk [vmem:[#allocation6 + $0x8] sm:$0x3] %vm3290, %v3308
    %v3311 = vld [vmem:[#allocation5] sm:$0x8]
    %v3312 = vld [vmem:[#allocation5 + $0x4] sm:$0x3]
    %v3315 = vunpack.c.l.b16 %v3311
    %v3316 = vunpack.c.l.b16 %v3312
    %v3317 = vpack.c.b16 %v3316, %v3315
    %v3319 = vshrl.u32 %v3317, 16
    %v3321 = vrot.slane %v3319, 3
    %v3322 = vshll.u32 %v3317, 16
    %v3324 = vrot.slane %v3322, 4
    %v3325 = vor.u32 %v3321, %v3324
    %3327 = vst.msk [vmem:[#allocation6 + $0x10] sm:$0x3] %vm3274, %v3325
    %v3328 = vld [vmem:[#allocation5 + $0x4] sm:$0x3]
    %v3330 = vunpack.c.l.b16 %v3328
    %v3331 = vpack.c.b16 %v3330, %v3330
    %3332 = vrot.lane.b32.xlu0 %v3331, 64
    %v3333 = vpop.permute.xlu0 %3332
    %3335 = vst.msk [vmem:[#allocation6 + $0x10] sm:$0x3] %vm3290, %v3333
    %v3336 = vld [vmem:[#allocation5 + $0x4] sm:$0xc]
    %v3338 = vunpack.c.l.b16 %v3336
    %v3339 = vpack.c.b16 %v3338, %v3338
    %v3340 = vrot.slane %v3339, 2
    %3342 = vst.msk [vmem:[#allocation6 + $0x18] sm:$0x3] %vm3274, %v3340
    %v3343 = vld [vmem:[#allocation5 + $0x4] sm:$0xc]
    %v3344 = vld [vmem:[#allocation5 + $0x8] sm:$0x1]
    %v3347 = vunpack.c.l.b16 %v3343
    %v3348 = vunpack.c.l.b16 %v3344
    %v3349 = vpack.c.b16 %v3348, %v3347
    %v3351 = vshrl.u32 %v3349, 16
    %v3353 = vrot.slane %v3351, 2
    %v3354 = vshll.u32 %v3349, 16
    %v3356 = vrot.slane %v3354, 3
    %v3357 = vor.u32 %v3353, %v3356
    %3358 = vrot.lane.b32.xlu0 %v3357, 64
    %v3359 = vpop.permute.xlu0 %3358
    %3361 = vst.msk [vmem:[#allocation6 + $0x18] sm:$0x3] %vm3290, %v3359
    %v3362 = vld [vmem:[#allocation5 + $0x4] sm:$0x8]
    %v3363 = vld [vmem:[#allocation5 + $0x8] sm:$0x1]
    %v3366 = vunpack.c.l.b16 %v3362
    %v3367 = vunpack.c.l.b16 %v3363
    %v3368 = vpack.c.b16 %v3367, %v3366
    %v3369 = vrot.slane %v3368, 3
    %3371 = vst.msk [vmem:[#allocation6 + $0x20] sm:$0x3] %vm3274, %v3369
    %v3372 = vld [vmem:[#allocation5] sm:$0x8]
    %v3373 = vld [vmem:[#allocation5 + $0x4] sm:$0x1]
    %v3376 = vunpack.c.l.b16 %v3372
    %v3377 = vunpack.c.l.b16 %v3373
    %v3378 = vpack.c.b16 %v3377, %v3376
    %v3379 = vrot.slane %v3378, 1
    %vm3381 = vcmask 519170
    %3382 = vst.msk [vmem:[#allocation6] sm:$0xc] %vm3381, %v3379
    %v3383 = vld [vmem:[#allocation5] sm:$0x8]
    %v3384 = vld [vmem:[#allocation5 + $0x4] sm:$0x3]
    %v3387 = vunpack.c.l.b16 %v3383
    %v3388 = vunpack.c.l.b16 %v3384
    %v3389 = vpack.c.b16 %v3388, %v3387
    %v3391 = vshrl.u32 %v3389, 16
    %v3393 = vrot.slane %v3391, 1
    %v3394 = vshll.u32 %v3389, 16
    %v3396 = vrot.slane %v3394, 2
    %v3397 = vor.u32 %v3393, %v3396
    %3398 = vrot.lane.b32.xlu0 %v3397, 64
    %v3399 = vpop.permute.xlu0 %3398
    %vm3401 = vcmask 1043970
    %3402 = vst.msk [vmem:[#allocation6] sm:$0xc] %vm3401, %v3399
    %v3403 = vld [vmem:[#allocation5 + $0x4] sm:$0x3]
    %v3405 = vunpack.c.l.b16 %v3403
    %v3406 = vpack.c.b16 %v3405, %v3405
    %v3407 = vrot.slane %v3406, 6
    %3409 = vst.msk [vmem:[#allocation6 + $0x8] sm:$0xc] %vm3381, %v3407
    %v3410 = vld [vmem:[#allocation5 + $0x4] sm:$0xc]
    %v3412 = vunpack.c.l.b16 %v3410
    %v3413 = vpack.c.b16 %v3412, %v3412
    %3414 = vrot.lane.b32.xlu0 %v3413, 64
    %v3415 = vpop.permute.xlu0 %3414
    %3417 = vst.msk [vmem:[#allocation6 + $0x8] sm:$0xc] %vm3401, %v3415
    %v3418 = vld [vmem:[#allocation5 + $0x4] sm:$0xc]
    %v3419 = vld [vmem:[#allocation5 + $0x8] sm:$0x1]
    %v3422 = vunpack.c.l.b16 %v3418
    %v3423 = vunpack.c.l.b16 %v3419
    %v3424 = vpack.c.b16 %v3423, %v3422
    %v3426 = vshrl.u32 %v3424, 16
    %v3428 = vshll.u32 %v3424, 16
    %v3430 = vrot.slane %v3428, 1
    %v3431 = vor.u32 %v3426, %v3430
    %3433 = vst.msk [vmem:[#allocation6 + $0x10] sm:$0xc] %vm3381, %v3431
    %v3434 = vld [vmem:[#allocation5 + $0x4] sm:$0x8]
    %v3435 = vld [vmem:[#allocation5 + $0x8] sm:$0x1]
    %v3438 = vunpack.c.l.b16 %v3434
    %v3439 = vunpack.c.l.b16 %v3435
    %v3440 = vpack.c.b16 %v3439, %v3438
    %v3441 = vrot.slane %v3440, 1
    %3442 = vrot.lane.b32.xlu0 %v3441, 64
    %v3443 = vpop.permute.xlu0 %3442
    %3445 = vst.msk [vmem:[#allocation6 + $0x10] sm:$0xc] %vm3401, %v3443
    %v3446 = vld [vmem:[#allocation5 + $0x8] sm:$0x6]
    %v3448 = vunpack.c.l.b16 %v3446
    %v3449 = vpack.c.b16 %v3448, %v3448
    %v3450 = vrot.slane %v3449, 7
    %3452 = vst.msk [vmem:[#allocation6 + $0x18] sm:$0xc] %vm3381, %v3450
    %v3453 = vld [vmem:[#allocation5 + $0x8] sm:$0xe]
    %v3455 = vunpack.c.l.b16 %v3453
    %v3456 = vpack.c.b16 %v3455, %v3455
    %v3458 = vshrl.u32 %v3456, 16
    %v3460 = vrot.slane %v3458, 7
    %v3461 = vshll.u32 %v3456, 16
    %v3463 = vor.u32 %v3460, %v3461
    %3464 = vrot.lane.b32.xlu0 %v3463, 64
    %v3465 = vpop.permute.xlu0 %3464
    %3467 = vst.msk [vmem:[#allocation6 + $0x18] sm:$0xc] %vm3401, %v3465
    %v3468 = vld [vmem:[#allocation5 + $0x8] sm:$0xc]
    %3469 = vst.msk [vmem:[#allocation6 + $0x20] sm:$0xc] %vm3381, %v3468
    %v3470 = vld [vmem:[#allocation5 + $0x4] sm:$0xc]
    %v3472 = vunpack.c.l.b16 %v3470
    %v3473 = vpack.c.b16 %v3472, %v3472
    %v3474 = vrot.slane %v3473, 6
    %vm3476 = vcmask 521220
    %3477 = vst.msk [vmem:[#allocation6] sm:$0x30] %vm3476, %v3474
    %v3478 = vld [vmem:[#allocation5 + $0x4] sm:$0xc]
    %v3479 = vld [vmem:[#allocation5 + $0x8] sm:$0x1]
    %v3482 = vunpack.c.l.b16 %v3478
    %v3483 = vunpack.c.l.b16 %v3479
    %v3484 = vpack.c.b16 %v3483, %v3482
    %v3486 = vshrl.u32 %v3484, 16
    %v3488 = vrot.slane %v3486, 6
    %v3489 = vshll.u32 %v3484, 16
    %v3491 = vrot.slane %v3489, 7
    %v3492 = vor.u32 %v3488, %v3491
    %3493 = vrot.lane.b32.xlu0 %v3492, 64
    %v3494 = vpop.permute.xlu0 %3493
    %vm3496 = vcmask 1046020
    %3497 = vst.msk [vmem:[#allocation6] sm:$0x30] %vm3496, %v3494
    %v3498 = vld [vmem:[#allocation5 + $0x4] sm:$0x8]
    %v3499 = vld [vmem:[#allocation5 + $0x8] sm:$0x1]
    %v3502 = vunpack.c.l.b16 %v3498
    %v3503 = vunpack.c.l.b16 %v3499
    %v3504 = vpack.c.b16 %v3503, %v3502
    %v3505 = vrot.slane %v3504, 7
    %3507 = vst.msk [vmem:[#allocation6 + $0x8] sm:$0x30] %vm3476, %v3505
    %v3508 = vld [vmem:[#allocation5 + $0x8] sm:$0x6]
    %v3510 = vunpack.c.l.b16 %v3508
    %v3511 = vpack.c.b16 %v3510, %v3510
    %v3512 = vrot.slane %v3511, 5
    %3513 = vrot.lane.b32.xlu0 %v3512, 64
    %v3514 = vpop.permute.xlu0 %3513
    %3516 = vst.msk [vmem:[#allocation6 + $0x8] sm:$0x30] %vm3496, %v3514
    %v3517 = vld [vmem:[#allocation5 + $0x8] sm:$0xe]
    %v3519 = vunpack.c.l.b16 %v3517
    %v3520 = vpack.c.b16 %v3519, %v3519
    %v3522 = vshrl.u32 %v3520, 16
    %v3524 = vrot.slane %v3522, 5
    %v3525 = vshll.u32 %v3520, 16
    %v3527 = vrot.slane %v3525, 6
    %v3528 = vor.u32 %v3524, %v3527
    %3530 = vst.msk [vmem:[#allocation6 + $0x10] sm:$0x30] %vm3476, %v3528
    %v3531 = vld [vmem:[#allocation5 + $0x8] sm:$0xc]
    %v3533 = vunpack.c.l.b16 %v3531
    %v3534 = vpack.c.b16 %v3533, %v3533
    %v3535 = vrot.slane %v3534, 6
    %3536 = vrot.lane.b32.xlu0 %v3535, 64
    %v3537 = vpop.permute.xlu0 %3536
    %3539 = vst.msk [vmem:[#allocation6 + $0x10] sm:$0x30] %vm3496, %v3537
    %v3540 = vld [vmem:[#allocation5 + $0xc] sm:$0x3]
    %v3542 = vunpack.c.l.b16 %v3540
    %v3543 = vpack.c.b16 %v3542, %v3542
    %3545 = vst.msk [vmem:[#allocation6 + $0x18] sm:$0x30] %vm3476, %v3543
    %v3546 = vld [vmem:[#allocation5 + $0xc] sm:$0x7]
    %v3548 = vunpack.c.l.b16 %v3546
    %v3549 = vpack.c.b16 %v3548, %v3548
    %v3551 = vshrl.u32 %v3549, 16
    %v3553 = vrot.slane %v3551, 4
    %v3554 = vshll.u32 %v3549, 16
    %v3556 = vrot.slane %v3554, 5
    %v3557 = vor.u32 %v3553, %v3556
    %3558 = vrot.lane.b32.xlu0 %v3557, 64
    %v3559 = vpop.permute.xlu0 %3558
    %3561 = vst.msk [vmem:[#allocation6 + $0x18] sm:$0x30] %vm3496, %v3559
    %v3562 = vld [vmem:[#allocation5 + $0xc] sm:$0x6]
    %v3564 = vunpack.c.l.b16 %v3562
    %v3565 = vpack.c.b16 %v3564, %v3564
    %v3566 = vrot.slane %v3565, 5
    %3568 = vst.msk [vmem:[#allocation6 + $0x20] sm:$0x30] %vm3476, %v3566
    %v3569 = vld [vmem:[#allocation5 + $0x8] sm:$0x6]
    %v3571 = vunpack.c.l.b16 %v3569
    %v3572 = vpack.c.b16 %v3571, %v3571
    %v3573 = vrot.slane %v3572, 3
    %vm3575 = vcmask 523270
    %3576 = vst.msk [vmem:[#allocation6] sm:$0xc0] %vm3575, %v3573
    %v3577 = vld [vmem:[#allocation5 + $0x8] sm:$0xe]
    %v3579 = vunpack.c.l.b16 %v3577
    %v3580 = vpack.c.b16 %v3579, %v3579
    %v3582 = vshrl.u32 %v3580, 16
    %v3584 = vrot.slane %v3582, 3
    %v3585 = vshll.u32 %v3580, 16
    %v3587 = vrot.slane %v3585, 4
    %v3588 = vor.u32 %v3584, %v3587
    %3589 = vrot.lane.b32.xlu0 %v3588, 64
    %v3590 = vpop.permute.xlu0 %3589
    %vm3592 = vcmask 1048070
    %3593 = vst.msk [vmem:[#allocation6] sm:$0xc0] %vm3592, %v3590
    %v3594 = vld [vmem:[#allocation5 + $0x8] sm:$0xc]
    %v3596 = vunpack.c.l.b16 %v3594
    %v3597 = vpack.c.b16 %v3596, %v3596
    %3599 = vst.msk [vmem:[#allocation6 + $0x8] sm:$0xc0] %vm3575, %v3597
    %v3600 = vld [vmem:[#allocation5 + $0xc] sm:$0x3]
    %v3602 = vunpack.c.l.b16 %v3600
    %v3603 = vpack.c.b16 %v3602, %v3602
    %v3604 = vrot.slane %v3603, 2
    %3605 = vrot.lane.b32.xlu0 %v3604, 64
    %v3606 = vpop.permute.xlu0 %3605
    %3608 = vst.msk [vmem:[#allocation6 + $0x8] sm:$0xc0] %vm3592, %v3606
    %v3609 = vld [vmem:[#allocation5 + $0xc] sm:$0x7]
    %v3611 = vunpack.c.l.b16 %v3609
    %v3612 = vpack.c.b16 %v3611, %v3611
    %v3614 = vshrl.u32 %v3612, 16
    %v3616 = vrot.slane %v3614, 2
    %v3617 = vshll.u32 %v3612, 16
    %v3619 = vrot.slane %v3617, 3
    %v3620 = vor.u32 %v3616, %v3619
    %3622 = vst.msk [vmem:[#allocation6 + $0x10] sm:$0xc0] %vm3575, %v3620
    %v3623 = vld [vmem:[#allocation5 + $0xc] sm:$0x6]
    %v3625 = vunpack.c.l.b16 %v3623
    %v3626 = vpack.c.b16 %v3625, %v3625
    %v3627 = vrot.slane %v3626, 3
    %3628 = vrot.lane.b32.xlu0 %v3627, 64
    %v3629 = vpop.permute.xlu0 %3628
    %3631 = vst.msk [vmem:[#allocation6 + $0x10] sm:$0xc0] %vm3592, %v3629
    %v3632 = vld [vmem:[#allocation5 + $0xc] sm:$0x8]
    %v3633 = vld [vmem:[#allocation5 + $0x10] sm:$0x1]
    %v3636 = vunpack.c.l.b16 %v3632
    %v3637 = vunpack.c.l.b16 %v3633
    %v3638 = vpack.c.b16 %v3637, %v3636
    %v3639 = vrot.slane %v3638, 5
    %3641 = vst.msk [vmem:[#allocation6 + $0x18] sm:$0xc0] %vm3575, %v3639
    %v3642 = vld [vmem:[#allocation5 + $0xc] sm:$0x8]
    %v3643 = vld [vmem:[#allocation5 + $0x10] sm:$0x3]
    %v3646 = vunpack.c.l.b16 %v3642
    %v3647 = vunpack.c.l.b16 %v3643
    %v3648 = vpack.c.b16 %v3647, %v3646
    %v3650 = vshrl.u32 %v3648, 16
    %v3652 = vrot.slane %v3650, 5
    %v3653 = vshll.u32 %v3648, 16
    %v3655 = vrot.slane %v3653, 6
    %v3656 = vor.u32 %v3652, %v3655
    %3657 = vrot.lane.b32.xlu0 %v3656, 64
    %v3658 = vpop.permute.xlu0 %3657
    %3660 = vst.msk [vmem:[#allocation6 + $0x18] sm:$0xc0] %vm3592, %v3658
    %v3661 = vld [vmem:[#allocation5 + $0x10] sm:$0x3]
    %v3663 = vunpack.c.l.b16 %v3661
    %v3664 = vpack.c.b16 %v3663, %v3663
    %v3665 = vrot.slane %v3664, 2
    %3667 = vst.msk [vmem:[#allocation6 + $0x20] sm:$0xc0] %vm3575, %v3665
    %v3668 = vld [vmem:[#allocation5 + $0x10] sm:$0xc]
    %v3670 = vunpack.c.l.b16 %v3668
    %v3671 = vpack.c.b16 %v3670, %v3670
    %v3672 = vrot.slane %v3671, 2
    %3674 = vst.msk [vmem:[#allocation6 + $0x28] sm:$0x3] %vm3274, %v3672
    %v3675 = vld [vmem:[#allocation5 + $0x10] sm:$0xc]
    %v3676 = vld [vmem:[#allocation5 + $0x14] sm:$0x1]
    %v3679 = vunpack.c.l.b16 %v3675
    %v3680 = vunpack.c.l.b16 %v3676
    %v3681 = vpack.c.b16 %v3680, %v3679
    %v3683 = vshrl.u32 %v3681, 16
    %v3685 = vrot.slane %v3683, 2
    %v3686 = vshll.u32 %v3681, 16
    %v3688 = vrot.slane %v3686, 3
    %v3689 = vor.u32 %v3685, %v3688
    %3690 = vrot.lane.b32.xlu0 %v3689, 64
    %v3691 = vpop.permute.xlu0 %3690
    %3693 = vst.msk [vmem:[#allocation6 + $0x28] sm:$0x3] %vm3290, %v3691
    %v3694 = vld [vmem:[#allocation5 + $0x10] sm:$0x8]
    %v3695 = vld [vmem:[#allocation5 + $0x14] sm:$0x1]
    %v3698 = vunpack.c.l.b16 %v3694
    %v3699 = vunpack.c.l.b16 %v3695
    %v3700 = vpack.c.b16 %v3699, %v3698
    %v3701 = vrot.slane %v3700, 3
    %3703 = vst.msk [vmem:[#allocation6 + $0x30] sm:$0x3] %vm3274, %v3701
    %v3704 = vld [vmem:[#allocation5 + $0x14] sm:$0x6]
    %v3706 = vunpack.c.l.b16 %v3704
    %v3707 = vpack.c.b16 %v3706, %v3706
    %v3708 = vrot.slane %v3707, 1
    %3709 = vrot.lane.b32.xlu0 %v3708, 64
    %v3710 = vpop.permute.xlu0 %3709
    %3712 = vst.msk [vmem:[#allocation6 + $0x30] sm:$0x3] %vm3290, %v3710
    %v3713 = vld [vmem:[#allocation5 + $0x14] sm:$0xe]
    %v3715 = vunpack.c.l.b16 %v3713
    %v3716 = vpack.c.b16 %v3715, %v3715
    %v3718 = vshrl.u32 %v3716, 16
    %v3720 = vrot.slane %v3718, 1
    %v3721 = vshll.u32 %v3716, 16
    %v3723 = vrot.slane %v3721, 2
    %v3724 = vor.u32 %v3720, %v3723
    %3726 = vst.msk [vmem:[#allocation6 + $0x38] sm:$0x3] %vm3274, %v3724
    %v3727 = vld [vmem:[#allocation5 + $0x14] sm:$0xc]
    %v3729 = vunpack.c.l.b16 %v3727
    %v3730 = vpack.c.b16 %v3729, %v3729
    %v3731 = vrot.slane %v3730, 2
    %3732 = vrot.lane.b32.xlu0 %v3731, 64
    %v3733 = vpop.permute.xlu0 %3732
    %3735 = vst.msk [vmem:[#allocation6 + $0x38] sm:$0x3] %vm3290, %v3733
    %v3736 = vld [vmem:[#allocation5 + $0x18] sm:$0x3]
    %3737 = vst.msk [vmem:[#allocation6 + $0x40] sm:$0x3] %vm3274, %v3736
    %v3738 = vld [vmem:[#allocation5 + $0x18] sm:$0x7]
    %v3740 = vunpack.c.l.b16 %v3738
    %v3741 = vpack.c.b16 %v3740, %v3740
    %v3743 = vshrl.u32 %v3741, 16
    %v3745 = vshll.u32 %v3741, 16
    %v3747 = vrot.slane %v3745, 1
    %v3748 = vor.u32 %v3743, %v3747
    %3749 = vrot.lane.b32.xlu0 %v3748, 64
    %v3750 = vpop.permute.xlu0 %3749
    %3752 = vst.msk [vmem:[#allocation6 + $0x40] sm:$0x3] %vm3290, %v3750
    %v3753 = vld [vmem:[#allocation5 + $0x18] sm:$0x6]
    %v3755 = vunpack.c.l.b16 %v3753
    %v3756 = vpack.c.b16 %v3755, %v3755
    %v3757 = vrot.slane %v3756, 1
    %3759 = vst.msk [vmem:[#allocation6 + $0x48] sm:$0x3] %vm3274, %v3757
    %v3760 = vld [vmem:[#allocation5 + $0x14] sm:$0x6]
    %v3762 = vunpack.c.l.b16 %v3760
    %v3763 = vpack.c.b16 %v3762, %v3762
    %v3764 = vrot.slane %v3763, 7
    %3766 = vst.msk [vmem:[#allocation6 + $0x28] sm:$0xc] %vm3381, %v3764
    %v3767 = vld [vmem:[#allocation5 + $0x14] sm:$0xe]
    %v3769 = vunpack.c.l.b16 %v3767
    %v3770 = vpack.c.b16 %v3769, %v3769
    %v3772 = vshrl.u32 %v3770, 16
    %v3774 = vrot.slane %v3772, 7
    %v3775 = vshll.u32 %v3770, 16
    %v3777 = vor.u32 %v3774, %v3775
    %3778 = vrot.lane.b32.xlu0 %v3777, 64
    %v3779 = vpop.permute.xlu0 %3778
    %3781 = vst.msk [vmem:[#allocation6 + $0x28] sm:$0xc] %vm3401, %v3779
    %v3782 = vld [vmem:[#allocation5 + $0x14] sm:$0xc]
    %3783 = vst.msk [vmem:[#allocation6 + $0x30] sm:$0xc] %vm3381, %v3782
    %v3784 = vld [vmem:[#allocation5 + $0x18] sm:$0x3]
    %v3786 = vunpack.c.l.b16 %v3784
    %v3787 = vpack.c.b16 %v3786, %v3786
    %v3788 = vrot.slane %v3787, 6
    %3789 = vrot.lane.b32.xlu0 %v3788, 64
    %v3790 = vpop.permute.xlu0 %3789
    %3792 = vst.msk [vmem:[#allocation6 + $0x30] sm:$0xc] %vm3401, %v3790
    %v3793 = vld [vmem:[#allocation5 + $0x18] sm:$0x7]
    %v3795 = vunpack.c.l.b16 %v3793
    %v3796 = vpack.c.b16 %v3795, %v3795
    %v3798 = vshrl.u32 %v3796, 16
    %v3800 = vrot.slane %v3798, 6
    %v3801 = vshll.u32 %v3796, 16
    %v3803 = vrot.slane %v3801, 7
    %v3804 = vor.u32 %v3800, %v3803
    %3806 = vst.msk [vmem:[#allocation6 + $0x38] sm:$0xc] %vm3381, %v3804
    %v3807 = vld [vmem:[#allocation5 + $0x18] sm:$0x6]
    %v3809 = vunpack.c.l.b16 %v3807
    %v3810 = vpack.c.b16 %v3809, %v3809
    %v3811 = vrot.slane %v3810, 7
    %3812 = vrot.lane.b32.xlu0 %v3811, 64
    %v3813 = vpop.permute.xlu0 %3812
    %3815 = vst.msk [vmem:[#allocation6 + $0x38] sm:$0xc] %vm3401, %v3813
    %v3816 = vld [vmem:[#allocation5 + $0x18] sm:$0x8]
    %v3817 = vld [vmem:[#allocation5 + $0x1c] sm:$0x1]
    %v3820 = vunpack.c.l.b16 %v3816
    %v3821 = vunpack.c.l.b16 %v3817
    %v3822 = vpack.c.b16 %v3821, %v3820
    %v3823 = vrot.slane %v3822, 1
    %3825 = vst.msk [vmem:[#allocation6 + $0x40] sm:$0xc] %vm3381, %v3823
    %v3826 = vld [vmem:[#allocation5 + $0x18] sm:$0x8]
    %v3827 = vld [vmem:[#allocation5 + $0x1c] sm:$0x3]
    %v3830 = vunpack.c.l.b16 %v3826
    %v3831 = vunpack.c.l.b16 %v3827
    %v3832 = vpack.c.b16 %v3831, %v3830
    %v3834 = vshrl.u32 %v3832, 16
    %v3836 = vrot.slane %v3834, 1
    %v3837 = vshll.u32 %v3832, 16
    %v3839 = vrot.slane %v3837, 2
    %v3840 = vor.u32 %v3836, %v3839
    %3841 = vrot.lane.b32.xlu0 %v3840, 64
    %v3842 = vpop.permute.xlu0 %3841
    %3844 = vst.msk [vmem:[#allocation6 + $0x40] sm:$0xc] %vm3401, %v3842
    %v3845 = vld [vmem:[#allocation5 + $0x1c] sm:$0x3]
    %v3847 = vunpack.c.l.b16 %v3845
    %v3848 = vpack.c.b16 %v3847, %v3847
    %v3849 = vrot.slane %v3848, 6
    %3851 = vst.msk [vmem:[#allocation6 + $0x48] sm:$0xc] %vm3381, %v3849
    %v3852 = vld [vmem:[#allocation5 + $0x18] sm:$0x3]
    %v3854 = vunpack.c.l.b16 %v3852
    %v3855 = vpack.c.b16 %v3854, %v3854
    %3857 = vst.msk [vmem:[#allocation6 + $0x28] sm:$0x30] %vm3476, %v3855
    %v3858 = vld [vmem:[#allocation5 + $0x18] sm:$0x7]
    %v3860 = vunpack.c.l.b16 %v3858
    %v3861 = vpack.c.b16 %v3860, %v3860
    %v3863 = vshrl.u32 %v3861, 16
    %v3865 = vrot.slane %v3863, 4
    %v3866 = vshll.u32 %v3861, 16
    %v3868 = vrot.slane %v3866, 5
    %v3869 = vor.u32 %v3865, %v3868
    %3870 = vrot.lane.b32.xlu0 %v3869, 64
    %v3871 = vpop.permute.xlu0 %3870
    %3873 = vst.msk [vmem:[#allocation6 + $0x28] sm:$0x30] %vm3496, %v3871
    %v3874 = vld [vmem:[#allocation5 + $0x18] sm:$0x6]
    %v3876 = vunpack.c.l.b16 %v3874
    %v3877 = vpack.c.b16 %v3876, %v3876
    %v3878 = vrot.slane %v3877, 5
    %3880 = vst.msk [vmem:[#allocation6 + $0x30] sm:$0x30] %vm3476, %v3878
    %v3881 = vld [vmem:[#allocation5 + $0x18] sm:$0x8]
    %v3882 = vld [vmem:[#allocation5 + $0x1c] sm:$0x1]
    %v3885 = vunpack.c.l.b16 %v3881
    %v3886 = vunpack.c.l.b16 %v3882
    %v3887 = vpack.c.b16 %v3886, %v3885
    %v3888 = vrot.slane %v3887, 7
    %3889 = vrot.lane.b32.xlu0 %v3888, 64
    %v3890 = vpop.permute.xlu0 %3889
    %3892 = vst.msk [vmem:[#allocation6 + $0x30] sm:$0x30] %vm3496, %v3890
    %v3893 = vld [vmem:[#allocation5 + $0x18] sm:$0x8]
    %v3894 = vld [vmem:[#allocation5 + $0x1c] sm:$0x3]
    %v3897 = vunpack.c.l.b16 %v3893
    %v3898 = vunpack.c.l.b16 %v3894
    %v3899 = vpack.c.b16 %v3898, %v3897
    %v3901 = vshrl.u32 %v3899, 16
    %v3903 = vrot.slane %v3901, 7
    %v3904 = vshll.u32 %v3899, 16
    %v3906 = vor.u32 %v3903, %v3904
    %3908 = vst.msk [vmem:[#allocation6 + $0x38] sm:$0x30] %vm3476, %v3906
    %v3909 = vld [vmem:[#allocation5 + $0x1c] sm:$0x3]
    %v3911 = vunpack.c.l.b16 %v3909
    %v3912 = vpack.c.b16 %v3911, %v3911
    %3913 = vrot.lane.b32.xlu0 %v3912, 64
    %v3914 = vpop.permute.xlu0 %3913
    %3916 = vst.msk [vmem:[#allocation6 + $0x38] sm:$0x30] %vm3496, %v3914
    %v3917 = vld [vmem:[#allocation5 + $0x1c] sm:$0xc]
    %v3919 = vunpack.c.l.b16 %v3917
    %v3920 = vpack.c.b16 %v3919, %v3919
    %v3921 = vrot.slane %v3920, 6
    %3923 = vst.msk [vmem:[#allocation6 + $0x40] sm:$0x30] %vm3476, %v3921
    %v3924 = vld [vmem:[#allocation5 + $0x1c] sm:$0xc]
    %v3925 = vld [vmem:[#allocation5 + $0x20] sm:$0x1]
    %v3928 = vunpack.c.l.b16 %v3924
    %v3929 = vunpack.c.l.b16 %v3925
    %v3930 = vpack.c.b16 %v3929, %v3928
    %v3932 = vshrl.u32 %v3930, 16
    %v3934 = vrot.slane %v3932, 6
    %v3935 = vshll.u32 %v3930, 16
    %v3937 = vrot.slane %v3935, 7
    %v3938 = vor.u32 %v3934, %v3937
    %3939 = vrot.lane.b32.xlu0 %v3938, 64
    %v3940 = vpop.permute.xlu0 %3939
    %3942 = vst.msk [vmem:[#allocation6 + $0x40] sm:$0x30] %vm3496, %v3940
    %v3943 = vld [vmem:[#allocation5 + $0x1c] sm:$0x8]
    %v3944 = vld [vmem:[#allocation5 + $0x20] sm:$0x1]
    %v3947 = vunpack.c.l.b16 %v3943
    %v3948 = vunpack.c.l.b16 %v3944
    %v3949 = vpack.c.b16 %v3948, %v3947
    %v3950 = vrot.slane %v3949, 7
    %3952 = vst.msk [vmem:[#allocation6 + $0x48] sm:$0x30] %vm3476, %v3950
    %v3953 = vld [vmem:[#allocation5 + $0x18] sm:$0x8]
    %v3954 = vld [vmem:[#allocation5 + $0x1c] sm:$0x1]
    %v3957 = vunpack.c.l.b16 %v3953
    %v3958 = vunpack.c.l.b16 %v3954
    %v3959 = vpack.c.b16 %v3958, %v3957
    %v3960 = vrot.slane %v3959, 5
    %3962 = vst.msk [vmem:[#allocation6 + $0x28] sm:$0xc0] %vm3575, %v3960
    %v3963 = vld [vmem:[#allocation5 + $0x18] sm:$0x8]
    %v3964 = vld [vmem:[#allocation5 + $0x1c] sm:$0x3]
    %v3967 = vunpack.c.l.b16 %v3963
    %v3968 = vunpack.c.l.b16 %v3964
    %v3969 = vpack.c.b16 %v3968, %v3967
    %v3971 = vshrl.u32 %v3969, 16
    %v3973 = vrot.slane %v3971, 5
    %v3974 = vshll.u32 %v3969, 16
    %v3976 = vrot.slane %v3974, 6
    %v3977 = vor.u32 %v3973, %v3976
    %3978 = vrot.lane.b32.xlu0 %v3977, 64
    %v3979 = vpop.permute.xlu0 %3978
    %3981 = vst.msk [vmem:[#allocation6 + $0x28] sm:$0xc0] %vm3592, %v3979
    %v3982 = vld [vmem:[#allocation5 + $0x1c] sm:$0x3]
    %v3984 = vunpack.c.l.b16 %v3982
    %v3985 = vpack.c.b16 %v3984, %v3984
    %v3986 = vrot.slane %v3985, 2
    %3988 = vst.msk [vmem:[#allocation6 + $0x30] sm:$0xc0] %vm3575, %v3986
    %v3989 = vld [vmem:[#allocation5 + $0x1c] sm:$0xc]
    %v3991 = vunpack.c.l.b16 %v3989
    %v3992 = vpack.c.b16 %v3991, %v3991
    %3993 = vrot.lane.b32.xlu0 %v3992, 64
    %v3994 = vpop.permute.xlu0 %3993
    %3996 = vst.msk [vmem:[#allocation6 + $0x30] sm:$0xc0] %vm3592, %v3994
    %v3997 = vld [vmem:[#allocation5 + $0x1c] sm:$0xc]
    %v3998 = vld [vmem:[#allocation5 + $0x20] sm:$0x1]
    %v4001 = vunpack.c.l.b16 %v3997
    %v4002 = vunpack.c.l.b16 %v3998
    %v4003 = vpack.c.b16 %v4002, %v4001
    %v4005 = vshrl.u32 %v4003, 16
    %v4007 = vrot.slane %v4005, 4
    %v4008 = vshll.u32 %v4003, 16
    %v4010 = vrot.slane %v4008, 5
    %v4011 = vor.u32 %v4007, %v4010
    %4013 = vst.msk [vmem:[#allocation6 + $0x38] sm:$0xc0] %vm3575, %v4011
    %v4014 = vld [vmem:[#allocation5 + $0x1c] sm:$0x8]
    %v4015 = vld [vmem:[#allocation5 + $0x20] sm:$0x1]
    %v4018 = vunpack.c.l.b16 %v4014
    %v4019 = vunpack.c.l.b16 %v4015
    %v4020 = vpack.c.b16 %v4019, %v4018
    %v4021 = vrot.slane %v4020, 5
    %4022 = vrot.lane.b32.xlu0 %v4021, 64
    %v4023 = vpop.permute.xlu0 %4022
    %4025 = vst.msk [vmem:[#allocation6 + $0x38] sm:$0xc0] %vm3592, %v4023
    %v4026 = vld [vmem:[#allocation5 + $0x20] sm:$0x6]
    %v4028 = vunpack.c.l.b16 %v4026
    %v4029 = vpack.c.b16 %v4028, %v4028
    %v4030 = vrot.slane %v4029, 3
    %4032 = vst.msk [vmem:[#allocation6 + $0x40] sm:$0xc0] %vm3575, %v4030
    %v4033 = vld [vmem:[#allocation5 + $0x20] sm:$0xe]
    %v4035 = vunpack.c.l.b16 %v4033
    %v4036 = vpack.c.b16 %v4035, %v4035
    %v4038 = vshrl.u32 %v4036, 16
    %v4040 = vrot.slane %v4038, 3
    %v4041 = vshll.u32 %v4036, 16
    %v4043 = vrot.slane %v4041, 4
    %v4044 = vor.u32 %v4040, %v4043
    %4045 = vrot.lane.b32.xlu0 %v4044, 64
    %v4046 = vpop.permute.xlu0 %4045
    %4048 = vst.msk [vmem:[#allocation6 + $0x40] sm:$0xc0] %vm3592, %v4046
    %v4049 = vld [vmem:[#allocation5 + $0x20] sm:$0xc]
    %v4051 = vunpack.c.l.b16 %v4049
    %v4052 = vpack.c.b16 %v4051, %v4051
    %4054 = vst.msk [vmem:[#allocation6 + $0x48] sm:$0xc0] %vm3575, %v4052
    %v4055 = vld [vmem:[#allocation6] sm:$0xff]
    %v4056 = vld [vmem:[#allocation6 + $0x8] sm:$0xff]
    %v4057 = vld [vmem:[#allocation6 + $0x10] sm:$0xff]
    %v4058 = vld [vmem:[#allocation6 + $0x18] sm:$0xff]
    %v4059 = vld [vmem:[#allocation6 + $0x20] sm:$0xff]
    %v4060 = vld [vmem:[#allocation6 + $0x28] sm:$0xff]
    %v4061 = vld [vmem:[#allocation6 + $0x30] sm:$0xff]
    %v4062 = vld [vmem:[#allocation6 + $0x38] sm:$0xff]
    %v4063 = vld [vmem:[#allocation6 + $0x40] sm:$0xff]
    %v4064 = vld [vmem:[#allocation6 + $0x48] sm:$0xff]
    %v4065 = vld [vmem:[%s5] sm:$0xf]
    %v4066 = vld [vmem:[%s5 + $0x4] sm:$0xf]
    %v4067 = vld [vmem:[%s5 + $0x8] sm:$0xf]
    %v4068 = vld [vmem:[%s5 + $0xc] sm:$0xf]
    %v4069 = vld [vmem:[%s5 + $0x10] sm:$0xf]
    %v4070 = vld [vmem:[%s5 + $0x14] sm:$0xf]
    %v4071 = vld [vmem:[%s5 + $0x18] sm:$0xf]
    %v4072 = vld [vmem:[%s5 + $0x1c] sm:$0xf]
    %v4073 = vld [vmem:[%s5 + $0x20] sm:$0xf]
    %v4074 = vld [vmem:[%s5 + $0x24] sm:$0xf]
    %v4075 = vld [vmem:[%s5 + $0x28] sm:$0xf]
    %v4076 = vld [vmem:[%s5 + $0x2c] sm:$0xf]
    %v4077 = vld [vmem:[%s5 + $0x30] sm:$0xf]
    %v4078 = vld [vmem:[%s5 + $0x34] sm:$0xf]
    %v4079 = vld [vmem:[%s5 + $0x38] sm:$0xf]
    %v4080 = vld [vmem:[%s5 + $0x3c] sm:$0xf]
    %v4081 = vld [vmem:[%s5 + $0x40] sm:$0xf]
    %v4082 = vld [vmem:[%s5 + $0x44] sm:$0xf]
    %v4083 = vld [vmem:[%s5 + $0x48] sm:$0xf]
    %v4084 = vld [vmem:[%s5 + $0x4c] sm:$0xf]
    %v4085 = vld [vmem:[%s5 + $0x50] sm:$0xf]
    %v4086 = vld [vmem:[%s5 + $0x54] sm:$0xf]
    %v4087 = vld [vmem:[%s5 + $0x58] sm:$0xf]
    %v4088 = vld [vmem:[%s5 + $0x5c] sm:$0xf]
    %v4089 = vld [vmem:[%s5 + $0x60] sm:$0xf]
    %v4090 = vld [vmem:[%s5 + $0x64] sm:$0xf]
    %v4091 = vld [vmem:[%s5 + $0x68] sm:$0xf]
    %v4092 = vld [vmem:[%s5 + $0x6c] sm:$0xf]
    %v4093 = vld [vmem:[%s5 + $0x70] sm:$0xf]
    %v4094 = vld [vmem:[%s5 + $0x74] sm:$0xf]
    %v4095 = vld [vmem:[%s5 + $0x78] sm:$0xf]
    %v4096 = vld [vmem:[%s5 + $0x7c] sm:$0xf]
    %v4097 = vld [vmem:[%s5 + $0x80] sm:$0xf]
    %v4098 = vld [vmem:[%s5 + $0x84] sm:$0xf]
    %v4099 = vld [vmem:[%s5 + $0x88] sm:$0xf]
    %v4100 = vld [vmem:[%s5 + $0x8c] sm:$0xf]
    %v4101 = vld [vmem:[%s5 + $0x90] sm:$0xf]
    %v4102 = vld [vmem:[%s5 + $0x94] sm:$0xf]
    %v4103 = vld [vmem:[%s5 + $0x98] sm:$0xf]
    %v4104 = vld [vmem:[%s5 + $0x9c] sm:$0xf]
    %v4105 = vld [vmem:[%s5 + $0xa0] sm:$0xf]
    %v4106 = vld [vmem:[%s5 + $0xa4] sm:$0xf]
    %v4107 = vld [vmem:[%s5 + $0xa8] sm:$0xf]
    %v4108 = vld [vmem:[%s5 + $0xac] sm:$0xf]
    %v4109 = vld [vmem:[%s5 + $0xb0] sm:$0xf]
    %v4110 = vld [vmem:[%s5 + $0xb4] sm:$0xf]
    %v4111 = vld [vmem:[%s5 + $0xb8] sm:$0xf]
    %v4112 = vld [vmem:[%s5 + $0xbc] sm:$0xf]
    %v4113 = vld [vmem:[%s5 + $0xc0] sm:$0xf]
    %v4114 = vld [vmem:[%s5 + $0xc4] sm:$0xf]
    %v4115 = vld [vmem:[%s5 + $0xc8] sm:$0xf]
    %v4116 = vld [vmem:[%s5 + $0xcc] sm:$0xf]
    %v4117 = vld [vmem:[%s5 + $0xd0] sm:$0xf]
    %v4118 = vld [vmem:[%s5 + $0xd4] sm:$0xf]
    %v4119 = vld [vmem:[%s5 + $0xd8] sm:$0xf]
    %v4120 = vld [vmem:[%s5 + $0xdc] sm:$0xf]
    %v4121 = vld [vmem:[%s5 + $0xe0] sm:$0xf]
    %v4122 = vld [vmem:[%s5 + $0xe4] sm:$0xf]
    %v4123 = vld [vmem:[%s5 + $0xe8] sm:$0xf]
    %v4124 = vld [vmem:[%s5 + $0xec] sm:$0xf]
    %v4125 = vld [vmem:[%s5 + $0xf0] sm:$0xf]
    %v4126 = vld [vmem:[%s5 + $0xf4] sm:$0xf]
    %v4127 = vld [vmem:[%s5 + $0xf8] sm:$0xf]
    %v4128 = vld [vmem:[%s5 + $0xfc] sm:$0xf]
    %v4129 = vld [vmem:[%s5 + $0x100] sm:$0xf]
    %v4130 = vld [vmem:[%s5 + $0x104] sm:$0xf]
    %v4131 = vld [vmem:[%s5 + $0x108] sm:$0xf]
    %v4132 = vld [vmem:[%s5 + $0x10c] sm:$0xf]
    %v4133 = vld [vmem:[%s5 + $0x110] sm:$0xf]
    %v4134 = vld [vmem:[%s5 + $0x114] sm:$0xf]
    %v4135 = vld [vmem:[%s5 + $0x118] sm:$0xf]
    %v4136 = vld [vmem:[%s5 + $0x11c] sm:$0xf]
    %v4137 = vld [vmem:[%s6] sm:$0x1]
    %v4139 = vlaneseq
    %v4140 = vshrl.u32 %v4139, 7
    %v4141 = vsub.s32 0, %v4140
    %v4142 = vrot.slane %v4137, %v4141
    %v4216 = vunpack.c.l.b16 %v4065
    %v4217 = vunpack.c.l.b16 %v4066
    %v4218 = vunpack.c.l.b16 %v4067
    %v4219 = vunpack.c.l.b16 %v4068
    %v4220 = vunpack.c.l.b16 %v4069
    %v4221 = vunpack.c.l.b16 %v4070
    %v4222 = vunpack.c.l.b16 %v4071
    %v4223 = vunpack.c.l.b16 %v4072
    %v4224 = vunpack.c.l.b16 %v4073
    %v4225 = vunpack.c.l.b16 %v4074
    %v4226 = vunpack.c.l.b16 %v4075
    %v4227 = vunpack.c.l.b16 %v4076
    %v4228 = vunpack.c.l.b16 %v4077
    %v4229 = vunpack.c.l.b16 %v4078
    %v4230 = vunpack.c.l.b16 %v4079
    %v4231 = vunpack.c.l.b16 %v4080
    %v4232 = vunpack.c.l.b16 %v4081
    %v4233 = vunpack.c.l.b16 %v4082
    %v4234 = vunpack.c.l.b16 %v4083
    %v4235 = vunpack.c.l.b16 %v4084
    %v4236 = vunpack.c.l.b16 %v4085
    %v4237 = vunpack.c.l.b16 %v4086
    %v4238 = vunpack.c.l.b16 %v4087
    %v4239 = vunpack.c.l.b16 %v4088
    %v4240 = vunpack.c.l.b16 %v4089
    %v4241 = vunpack.c.l.b16 %v4090
    %v4242 = vunpack.c.l.b16 %v4091
    %v4243 = vunpack.c.l.b16 %v4092
    %v4244 = vunpack.c.l.b16 %v4093
    %v4245 = vunpack.c.l.b16 %v4094
    %v4246 = vunpack.c.l.b16 %v4095
    %v4247 = vunpack.c.l.b16 %v4096
    %v4248 = vunpack.c.l.b16 %v4097
    %v4249 = vunpack.c.l.b16 %v4098
    %v4250 = vunpack.c.l.b16 %v4099
    %v4251 = vunpack.c.l.b16 %v4100
    %v4252 = vunpack.c.l.b16 %v4101
    %v4253 = vunpack.c.l.b16 %v4102
    %v4254 = vunpack.c.l.b16 %v4103
    %v4255 = vunpack.c.l.b16 %v4104
    %v4256 = vunpack.c.l.b16 %v4105
    %v4257 = vunpack.c.l.b16 %v4106
    %v4258 = vunpack.c.l.b16 %v4107
    %v4259 = vunpack.c.l.b16 %v4108
    %v4260 = vunpack.c.l.b16 %v4109
    %v4261 = vunpack.c.l.b16 %v4110
    %v4262 = vunpack.c.l.b16 %v4111
    %v4263 = vunpack.c.l.b16 %v4112
    %v4264 = vunpack.c.l.b16 %v4113
    %v4265 = vunpack.c.l.b16 %v4114
    %v4266 = vunpack.c.l.b16 %v4115
    %v4267 = vunpack.c.l.b16 %v4116
    %v4268 = vunpack.c.l.b16 %v4117
    %v4269 = vunpack.c.l.b16 %v4118
    %v4270 = vunpack.c.l.b16 %v4119
    %v4271 = vunpack.c.l.b16 %v4120
    %v4272 = vunpack.c.l.b16 %v4121
    %v4273 = vunpack.c.l.b16 %v4122
    %v4274 = vunpack.c.l.b16 %v4123
    %v4275 = vunpack.c.l.b16 %v4124
    %v4276 = vunpack.c.l.b16 %v4125
    %v4277 = vunpack.c.l.b16 %v4126
    %v4278 = vunpack.c.l.b16 %v4127
    %v4279 = vunpack.c.l.b16 %v4128
    %v4280 = vunpack.c.l.b16 %v4129
    %v4281 = vunpack.c.l.b16 %v4130
    %v4282 = vunpack.c.l.b16 %v4131
    %v4283 = vunpack.c.l.b16 %v4132
    %v4284 = vunpack.c.l.b16 %v4133
    %v4285 = vunpack.c.l.b16 %v4134
    %v4286 = vunpack.c.l.b16 %v4135
    %v4287 = vunpack.c.l.b16 %v4136
    %v4288 = vpack.c.b16 %v4217, %v4216
    %v4289 = vpack.c.b16 %v4219, %v4218
    %v4290 = vpack.c.b16 %v4221, %v4220
    %v4291 = vpack.c.b16 %v4223, %v4222
    %v4292 = vpack.c.b16 %v4225, %v4224
    %v4293 = vpack.c.b16 %v4227, %v4226
    %v4294 = vpack.c.b16 %v4229, %v4228
    %v4295 = vpack.c.b16 %v4231, %v4230
    %v4296 = vpack.c.b16 %v4233, %v4232
    %v4297 = vpack.c.b16 %v4235, %v4234
    %v4298 = vpack.c.b16 %v4237, %v4236
    %v4299 = vpack.c.b16 %v4239, %v4238
    %v4300 = vpack.c.b16 %v4241, %v4240
    %v4301 = vpack.c.b16 %v4243, %v4242
    %v4302 = vpack.c.b16 %v4245, %v4244
    %v4303 = vpack.c.b16 %v4247, %v4246
    %v4304 = vpack.c.b16 %v4249, %v4248
    %v4305 = vpack.c.b16 %v4251, %v4250
    %v4306 = vpack.c.b16 %v4253, %v4252
    %v4307 = vpack.c.b16 %v4255, %v4254
    %v4308 = vpack.c.b16 %v4257, %v4256
    %v4309 = vpack.c.b16 %v4259, %v4258
    %v4310 = vpack.c.b16 %v4261, %v4260
    %v4311 = vpack.c.b16 %v4263, %v4262
    %v4312 = vpack.c.b16 %v4265, %v4264
    %v4313 = vpack.c.b16 %v4267, %v4266
    %v4314 = vpack.c.b16 %v4269, %v4268
    %v4315 = vpack.c.b16 %v4271, %v4270
    %v4316 = vpack.c.b16 %v4273, %v4272
    %v4317 = vpack.c.b16 %v4275, %v4274
    %v4318 = vpack.c.b16 %v4277, %v4276
    %v4319 = vpack.c.b16 %v4279, %v4278
    %v4320 = vpack.c.b16 %v4281, %v4280
    %v4321 = vpack.c.b16 %v4283, %v4282
    %v4322 = vpack.c.b16 %v4285, %v4284
    %v4323 = vpack.c.b16 %v4287, %v4286
    %vm4360 = vcmask 523264
    %v4362 = vsel %vm4360, %v4059, 0
    %v4365 = vsel %vm4360, %v4064, 0
    %4367 = vmatprep.subr.bf16.mxu0 0
    %4368 = vmatpush1.bf16.msra.mxu0 %v4288
    %4369 = vmatprep.subr.bf16.mxu0 0
    %4370 = vmatpush1.bf16.msra.mxu0 %v4289
    %4371 = vmatprep.subr.bf16.mxu0 0
    %4372 = vmatpush1.bf16.msra.mxu0 %v4290
    %4373 = vmatprep.subr.bf16.mxu0 0
    %4374 = vmatpush1.bf16.msra.mxu0 %v4291
    %4375 = vmatprep.subr.bf16.mxu0 0
    %4376 = vmatpush1.bf16.msra.mxu0 %v4292
    %4377 = vmatprep.subr.bf16.mxu0 0
    %4378 = vmatpush1.bf16.msra.mxu0 %v4293
    %4379 = vmatprep.subr.bf16.mxu0 0
    %4380 = vmatpush1.bf16.msra.mxu0 %v4294
    %4381 = vmatprep.subr.bf16.mxu0 0
    %4382 = vmatpush1.bf16.msra.mxu0 %v4295
    %4383 = vmatprep.subr.bf16.mxu0 0
    %4384 = vmatpush1.bf16.msra.mxu0 %v4296
    %4385 = vmatprep.subr.bf16.mxu0 0
    %4386 = vmatpush1.bf16.msra.mxu0 %v4297
    %4387 = vmatprep.subr.bf16.mxu0 0
    %4388 = vmatpush1.bf16.msra.mxu0 %v4298
    %4389 = vmatprep.subr.bf16.mxu0 0
    %4390 = vmatpush1.bf16.msra.mxu0 %v4299
    %4391 = vmatprep.subr.bf16.mxu0 0
    %4392 = vmatpush1.bf16.msra.mxu0 %v4300
    %4393 = vmatprep.subr.bf16.mxu0 0
    %4394 = vmatpush1.bf16.msra.mxu0 %v4301
    %4395 = vmatprep.subr.bf16.mxu0 0
    %4396 = vmatpush1.bf16.msra.mxu0 %v4302
    %4397 = vmatprep.subr.bf16.mxu0 0
    %4398 = vmatpush1.bf16.msra.mxu0 %v4303
    %4399 = vmatprep.mubr.bf16.mxu0 %v4056
    %4400 = vmatmul.mubr.bf16.gmra.mrb[0].mxu0 %v4055
    %v4401 = vpop.f32.mrb[0].mxu0
    %v4402 = vadd.f32 %v4142, %v4401
    %v4403 = vpop.f32.mrb[0].mxu0
    %v4404 = vpop.f32.mrb[0].mxu0
    %v4405 = vadd.f32 %v4142, %v4404
    %v4406 = vpop.f32.mrb[0].mxu0
    %4407 = vmatprep.mubr.bf16.mxu0 %v4061
    %4408 = vmatmul.mubr.bf16.gmra.mrb[0].mxu0 %v4060
    %v4409 = vpop.f32.mrb[0].mxu0
    %v4410 = vadd.f32 %v4142, %v4409
    %v4411 = vpop.f32.mrb[0].mxu0
    %v4412 = vpop.f32.mrb[0].mxu0
    %v4413 = vadd.f32 %v4142, %v4412
    %v4414 = vpop.f32.mrb[0].mxu0
    %4415 = vdwg.mxu0
    %4416 = vmatprep.subr.bf16.mxu0 0
    %4417 = vmatpush1.bf16.msra.mxu0 %v4304
    %4418 = vmatprep.subr.bf16.mxu0 0
    %4419 = vmatpush1.bf16.msra.mxu0 %v4305
    %4420 = vmatprep.subr.bf16.mxu0 0
    %4421 = vmatpush1.bf16.msra.mxu0 %v4306
    %4422 = vmatprep.subr.bf16.mxu0 0
    %4423 = vmatpush1.bf16.msra.mxu0 %v4307
    %4424 = vmatprep.subr.bf16.mxu0 0
    %4425 = vmatpush1.bf16.msra.mxu0 %v4308
    %4426 = vmatprep.subr.bf16.mxu0 0
    %4427 = vmatpush1.bf16.msra.mxu0 %v4309
    %4428 = vmatprep.subr.bf16.mxu0 0
    %4429 = vmatpush1.bf16.msra.mxu0 %v4310
    %4430 = vmatprep.subr.bf16.mxu0 0
    %4431 = vmatpush1.bf16.msra.mxu0 %v4311
    %4432 = vmatprep.subr.bf16.mxu0 0
    %4433 = vmatpush1.bf16.msra.mxu0 %v4312
    %4434 = vmatprep.subr.bf16.mxu0 0
    %4435 = vmatpush1.bf16.msra.mxu0 %v4313
    %4436 = vmatprep.subr.bf16.mxu0 0
    %4437 = vmatpush1.bf16.msra.mxu0 %v4314
    %4438 = vmatprep.subr.bf16.mxu0 0
    %4439 = vmatpush1.bf16.msra.mxu0 %v4315
    %4440 = vmatprep.subr.bf16.mxu0 0
    %4441 = vmatpush1.bf16.msra.mxu0 %v4316
    %4442 = vmatprep.subr.bf16.mxu0 0
    %4443 = vmatpush1.bf16.msra.mxu0 %v4317
    %4444 = vmatprep.subr.bf16.mxu0 0
    %4445 = vmatpush1.bf16.msra.mxu0 %v4318
    %4446 = vmatprep.subr.bf16.mxu0 0
    %4447 = vmatpush1.bf16.msra.mxu0 %v4319
    %4448 = vmatprep.mubr.bf16.mxu0 %v4058
    %4449 = vmatmul.mubr.bf16.gmra.mrb[0].mxu0 %v4057
    %v4450 = vpop.f32.mrb[0].mxu0
    %v4451 = vadd.f32 %v4402, %v4450
    %v4452 = vpop.f32.mrb[0].mxu0
    %v4453 = vpop.f32.mrb[0].mxu0
    %v4454 = vadd.f32 %v4405, %v4453
    %v4455 = vpop.f32.mrb[0].mxu0
    %4456 = vmatprep.mubr.bf16.mxu0 %v4063
    %4457 = vmatmul.mubr.bf16.gmra.mrb[0].mxu0 %v4062
    %v4458 = vpop.f32.mrb[0].mxu0
    %v4459 = vadd.f32 %v4410, %v4458
    %v4460 = vpop.f32.mrb[0].mxu0
    %v4461 = vpop.f32.mrb[0].mxu0
    %v4462 = vadd.f32 %v4413, %v4461
    %v4463 = vpop.f32.mrb[0].mxu0
    %4464 = vdwg.mxu0
    %4465 = vmatprep.subr.bf16.mxu0 0
    %4466 = vmatpush1.bf16.msra.mxu0 %v4320
    %4467 = vmatprep.subr.bf16.mxu0 0
    %4468 = vmatpush1.bf16.msra.mxu0 %v4321
    %4469 = vmatprep.subr.bf16.mxu0 0
    %4470 = vmatpush1.bf16.msra.mxu0 %v4322
    %4471 = vmatprep.subr.bf16.mxu0 0
    %4472 = vmatpush1.bf16.msra.mxu0 %v4323
    %4473 = vmatprep.subr.bf16.mxu0 0
    %4474 = vmatpush1.bf16.msra.mxu0 0
    %4475 = vmatprep.subr.bf16.mxu0 0
    %4476 = vmatpush1.bf16.msra.mxu0 0
    %4477 = vmatprep.subr.bf16.mxu0 0
    %4478 = vmatpush1.bf16.msra.mxu0 0
    %4479 = vmatprep.subr.bf16.mxu0 0
    %4480 = vmatpush1.bf16.msra.mxu0 0
    %4481 = vmatprep.subr.bf16.mxu0 0
    %4482 = vmatpush1.bf16.msra.mxu0 0
    %4483 = vmatprep.subr.bf16.mxu0 0
    %4484 = vmatpush1.bf16.msra.mxu0 0
    %4485 = vmatprep.subr.bf16.mxu0 0
    %4486 = vmatpush1.bf16.msra.mxu0 0
    %4487 = vmatprep.subr.bf16.mxu0 0
    %4488 = vmatpush1.bf16.msra.mxu0 0
    %4489 = vmatprep.subr.bf16.mxu0 0
    %4490 = vmatpush1.bf16.msra.mxu0 0
    %4491 = vmatprep.subr.bf16.mxu0 0
    %4492 = vmatpush1.bf16.msra.mxu0 0
    %4493 = vmatprep.subr.bf16.mxu0 0
    %4494 = vmatpush1.bf16.msra.mxu0 0
    %4495 = vmatprep.subr.bf16.mxu0 0
    %4496 = vmatpush1.bf16.msra.mxu0 0
    %4497 = vmatprep.mubr.bf16.mxu0 0
    %4498 = vmatmul.mubr.bf16.gmra.mrb[0].mxu0 %v4362
    %v4499 = vpop.f32.mrb[0].mxu0
    %v4500 = vadd.f32 %v4451, %v4499
    %v4501 = vpop.f32.mrb[0].mxu0
    %v4502 = vpop.f32.mrb[0].mxu0
    %v4503 = vadd.f32 %v4454, %v4502
    %v4504 = vpop.f32.mrb[0].mxu0
    %4505 = vmatprep.mubr.bf16.mxu0 0
    %4506 = vmatmul.mubr.bf16.gmra.mrb[0].mxu0 %v4365
    %v4507 = vpop.f32.mrb[0].mxu0
    %v4508 = vadd.f32 %v4459, %v4507
    %v4509 = vpop.f32.mrb[0].mxu0
    %v4510 = vpop.f32.mrb[0].mxu0
    %v4511 = vadd.f32 %v4462, %v4510
    %v4512 = vpop.f32.mrb[0].mxu0
    %4513 = vdwg.mxu0
    %v4514 = vmax.f32 %v4500, 0.0
    %v4515 = vmax.f32 %v4503, 0.0
    %v4516 = vmax.f32 %v4508, 0.0
    %v4517 = vmax.f32 %v4511, 0.0
    %v4518 = vpack.c.bf16 %v4515, %v4514
    %v4519 = vpack.c.bf16 %v4517, %v4516
    %4520 = vst.msk [vmem:[#allocation7] sm:$0xff] %vm4360, %v4518
    %4521 = vst.msk [vmem:[#allocation7 + $0x8] sm:$0xff] %vm4360, %v4519
    %v4522 = vld [vmem:[#allocation7] sm:$0x1]
    %vm4523 = vcmask 516096
    %vm4524 = vmand %vm4523, %vm386
    %v4525 = vld [vmem:[#allocation8] sm:$0x1]
    %v4526 = vsel %vm4524, %v4522, %v4525
    %4527 = vst [vmem:[#allocation8] sm:$0x1] %v4526
    %v4528 = vld [vmem:[#allocation7] sm:$0x1]
    %v4531 = vunpack.c.l.s4 1966171168
    %v4532 = vunpack.c.0.s8 %v4531
    %v4533 = vlaneseq
    %v4534 = vshrl.u32 %v4533, 7
    %v4535 = vsub.s32 %v4532, %v4534
    %v4536 = vrot.slane %v4528, %v4535
    %v4538 = vunpack.c.l.s4 1966171168
    %v4539 = vunpack.c.0.s8 %v4538
    %v4540 = vlaneseq
    %v4541 = vshrl.u32 %v4540, 7
    %v4542 = vsub.s32 %v4539, %v4541
    %v4543 = vrot.slane %v4536, %v4542
    %v4545 = vshrl.u32 %v4543, 16
    %v4547 = vrot.slane %v4545, 7
    %v4548 = vrot.slane %v4547, 1
    %4549 = vrot.lane.b32.xlu0 %v4548, 64
    %v4550 = vpop.permute.xlu0 %4549
    %vm4552 = vcmask 1040896
    %vm4553 = vmand %vm4552, %vm386
    %v4554 = vld [vmem:[#allocation8] sm:$0x1]
    %v4555 = vsel %vm4553, %v4550, %v4554
    %4556 = vst [vmem:[#allocation8] sm:$0x1] %v4555
    %v4557 = vld [vmem:[#allocation7] sm:$0x2]
    %v4560 = vunpack.c.l.s4 1966171168
    %v4561 = vunpack.c.0.s8 %v4560
    %v4562 = vlaneseq
    %v4563 = vshrl.u32 %v4562, 7
    %v4564 = vsub.s32 %v4561, %v4563
    %v4565 = vrot.slane %v4557, %v4564
    %v4566 = vcombine.high %v4565, %v4565
    %v4568 = vunpack.c.l.s4 1966171168
    %v4569 = vunpack.c.0.s8 %v4568
    %v4570 = vlaneseq
    %v4571 = vshrl.u32 %v4570, 7
    %v4572 = vsub.s32 %v4569, %v4571
    %v4573 = vrot.slane %v4566, %v4572
    %v4575 = vld [vmem:[#allocation8 + $0x1] sm:$0x1]
    %v4576 = vsel %vm4524, %v4573, %v4575
    %4577 = vst [vmem:[#allocation8 + $0x1] sm:$0x1] %v4576
    %v4578 = vld [vmem:[#allocation7] sm:$0x2]
    %v4581 = vunpack.c.l.s4 1966171168
    %v4582 = vunpack.c.0.s8 %v4581
    %v4583 = vlaneseq
    %v4584 = vshrl.u32 %v4583, 7
    %v4585 = vsub.s32 %v4582, %v4584
    %v4586 = vrot.slane %v4578, %v4585
    %v4587 = vcombine.high %v4586, %v4586
    %v4589 = vunpack.c.l.s4 1966171168
    %v4590 = vunpack.c.0.s8 %v4589
    %v4591 = vlaneseq
    %v4592 = vshrl.u32 %v4591, 7
    %v4593 = vsub.s32 %v4590, %v4592
    %v4594 = vrot.slane %v4587, %v4593
    %v4596 = vshrl.u32 %v4594, 16
    %v4598 = vrot.slane %v4596, 7
    %v4599 = vrot.slane %v4598, 1
    %4600 = vrot.lane.b32.xlu0 %v4599, 64
    %v4601 = vpop.permute.xlu0 %4600
    %v4603 = vld [vmem:[#allocation8 + $0x1] sm:$0x1]
    %v4604 = vsel %vm4553, %v4601, %v4603
    %4605 = vst [vmem:[#allocation8 + $0x1] sm:$0x1] %v4604
    %v4606 = vld [vmem:[#allocation7] sm:$0x4]
    %v4609 = vunpack.c.l.s4 1966171168
    %v4610 = vunpack.c.0.s8 %v4609
    %v4611 = vlaneseq
    %v4612 = vshrl.u32 %v4611, 7
    %v4613 = vsub.s32 %v4610, %v4612
    %v4614 = vrot.slane %v4606, %v4613
    %v4616 = vunpack.c.l.s4 1966171168
    %v4617 = vunpack.c.0.s8 %v4616
    %v4618 = vlaneseq
    %v4619 = vshrl.u32 %v4618, 7
    %v4620 = vsub.s32 %v4617, %v4619
    %v4621 = vrot.slane %v4614, %v4620
    %v4622 = vcombine.high %v4621, %v4621
    %v4624 = vld [vmem:[#allocation8 + $0x2] sm:$0x1]
    %v4625 = vsel %vm4524, %v4622, %v4624
    %4626 = vst [vmem:[#allocation8 + $0x2] sm:$0x1] %v4625
    %v4627 = vld [vmem:[#allocation7] sm:$0x4]
    %v4630 = vunpack.c.l.s4 1966171168
    %v4631 = vunpack.c.0.s8 %v4630
    %v4632 = vlaneseq
    %v4633 = vshrl.u32 %v4632, 7
    %v4634 = vsub.s32 %v4631, %v4633
    %v4635 = vrot.slane %v4627, %v4634
    %v4637 = vunpack.c.l.s4 1966171168
    %v4638 = vunpack.c.0.s8 %v4637
    %v4639 = vlaneseq
    %v4640 = vshrl.u32 %v4639, 7
    %v4641 = vsub.s32 %v4638, %v4640
    %v4642 = vrot.slane %v4635, %v4641
    %v4643 = vcombine.high %v4642, %v4642
    %v4645 = vshrl.u32 %v4643, 16
    %v4647 = vrot.slane %v4645, 7
    %v4648 = vrot.slane %v4647, 1
    %4649 = vrot.lane.b32.xlu0 %v4648, 64
    %v4650 = vpop.permute.xlu0 %4649
    %v4652 = vld [vmem:[#allocation8 + $0x2] sm:$0x1]
    %v4653 = vsel %vm4553, %v4650, %v4652
    %4654 = vst [vmem:[#allocation8 + $0x2] sm:$0x1] %v4653
    %v4655 = vld [vmem:[#allocation7] sm:$0x8]
    %v4658 = vunpack.c.l.s4 1966171168
    %v4659 = vunpack.c.0.s8 %v4658
    %v4660 = vlaneseq
    %v4661 = vshrl.u32 %v4660, 7
    %v4662 = vsub.s32 %v4659, %v4661
    %v4663 = vrot.slane %v4655, %v4662
    %v4664 = vcombine.high %v4663, %v4663
    %v4666 = vunpack.c.l.s4 1966171168
    %v4667 = vunpack.c.0.s8 %v4666
    %v4668 = vlaneseq
    %v4669 = vshrl.u32 %v4668, 7
    %v4670 = vsub.s32 %v4667, %v4669
    %v4671 = vrot.slane %v4664, %v4670
    %v4672 = vcombine.high %v4671, %v4671
    %v4674 = vld [vmem:[#allocation8 + $0x3] sm:$0x1]
    %v4675 = vsel %vm4524, %v4672, %v4674
    %4676 = vst [vmem:[#allocation8 + $0x3] sm:$0x1] %v4675
    %v4677 = vld [vmem:[#allocation7] sm:$0x8]
    %v4680 = vunpack.c.l.s4 1966171168
    %v4681 = vunpack.c.0.s8 %v4680
    %v4682 = vlaneseq
    %v4683 = vshrl.u32 %v4682, 7
    %v4684 = vsub.s32 %v4681, %v4683
    %v4685 = vrot.slane %v4677, %v4684
    %v4686 = vcombine.high %v4685, %v4685
    %v4688 = vunpack.c.l.s4 1966171168
    %v4689 = vunpack.c.0.s8 %v4688
    %v4690 = vlaneseq
    %v4691 = vshrl.u32 %v4690, 7
    %v4692 = vsub.s32 %v4689, %v4691
    %v4693 = vrot.slane %v4686, %v4692
    %v4694 = vcombine.high %v4693, %v4693
    %v4696 = vshrl.u32 %v4694, 16
    %v4698 = vrot.slane %v4696, 7
    %v4699 = vrot.slane %v4698, 1
    %4700 = vrot.lane.b32.xlu0 %v4699, 64
    %v4701 = vpop.permute.xlu0 %4700
    %v4703 = vld [vmem:[#allocation8 + $0x3] sm:$0x1]
    %v4704 = vsel %vm4553, %v4701, %v4703
    %4705 = vst [vmem:[#allocation8 + $0x3] sm:$0x1] %v4704
    %v4706 = vld [vmem:[#allocation7] sm:$0x10]
    %v4708 = vcombine.high %v4706, %v4706
    %v4710 = vunpack.c.l.s4 1966171168
    %v4711 = vunpack.c.0.s8 %v4710
    %v4712 = vlaneseq
    %v4713 = vshrl.u32 %v4712, 7
    %v4714 = vsub.s32 %v4711, %v4713
    %v4715 = vrot.slane %v4708, %v4714
    %v4717 = vunpack.c.l.s4 1966171168
    %v4718 = vunpack.c.0.s8 %v4717
    %v4719 = vlaneseq
    %v4720 = vshrl.u32 %v4719, 7
    %v4721 = vsub.s32 %v4718, %v4720
    %v4722 = vrot.slane %v4715, %v4721
    %v4724 = vld [vmem:[#allocation8 + $0x4] sm:$0x1]
    %v4725 = vsel %vm4524, %v4722, %v4724
    %4726 = vst [vmem:[#allocation8 + $0x4] sm:$0x1] %v4725
    %v4727 = vld [vmem:[#allocation7] sm:$0x10]
    %v4729 = vcombine.high %v4727, %v4727
    %v4731 = vunpack.c.l.s4 1966171168
    %v4732 = vunpack.c.0.s8 %v4731
    %v4733 = vlaneseq
    %v4734 = vshrl.u32 %v4733, 7
    %v4735 = vsub.s32 %v4732, %v4734
    %v4736 = vrot.slane %v4729, %v4735
    %v4738 = vunpack.c.l.s4 1966171168
    %v4739 = vunpack.c.0.s8 %v4738
    %v4740 = vlaneseq
    %v4741 = vshrl.u32 %v4740, 7
    %v4742 = vsub.s32 %v4739, %v4741
    %v4743 = vrot.slane %v4736, %v4742
    %v4745 = vshrl.u32 %v4743, 16
    %v4747 = vrot.slane %v4745, 7
    %v4748 = vrot.slane %v4747, 1
    %4749 = vrot.lane.b32.xlu0 %v4748, 64
    %v4750 = vpop.permute.xlu0 %4749
    %v4752 = vld [vmem:[#allocation8 + $0x4] sm:$0x1]
    %v4753 = vsel %vm4553, %v4750, %v4752
    %4754 = vst [vmem:[#allocation8 + $0x4] sm:$0x1] %v4753
    %v4755 = vld [vmem:[#allocation7] sm:$0x20]
    %v4757 = vcombine.high %v4755, %v4755
    %v4759 = vunpack.c.l.s4 1966171168
    %v4760 = vunpack.c.0.s8 %v4759
    %v4761 = vlaneseq
    %v4762 = vshrl.u32 %v4761, 7
    %v4763 = vsub.s32 %v4760, %v4762
    %v4764 = vrot.slane %v4757, %v4763
    %v4765 = vcombine.high %v4764, %v4764
    %v4767 = vunpack.c.l.s4 1966171168
    %v4768 = vunpack.c.0.s8 %v4767
    %v4769 = vlaneseq
    %v4770 = vshrl.u32 %v4769, 7
    %v4771 = vsub.s32 %v4768, %v4770
    %v4772 = vrot.slane %v4765, %v4771
    %v4774 = vld [vmem:[#allocation8 + $0x5] sm:$0x1]
    %v4775 = vsel %vm4524, %v4772, %v4774
    %4776 = vst [vmem:[#allocation8 + $0x5] sm:$0x1] %v4775
    %v4777 = vld [vmem:[#allocation7] sm:$0x20]
    %v4779 = vcombine.high %v4777, %v4777
    %v4781 = vunpack.c.l.s4 1966171168
    %v4782 = vunpack.c.0.s8 %v4781
    %v4783 = vlaneseq
    %v4784 = vshrl.u32 %v4783, 7
    %v4785 = vsub.s32 %v4782, %v4784
    %v4786 = vrot.slane %v4779, %v4785
    %v4787 = vcombine.high %v4786, %v4786
    %v4789 = vunpack.c.l.s4 1966171168
    %v4790 = vunpack.c.0.s8 %v4789
    %v4791 = vlaneseq
    %v4792 = vshrl.u32 %v4791, 7
    %v4793 = vsub.s32 %v4790, %v4792
    %v4794 = vrot.slane %v4787, %v4793
    %v4796 = vshrl.u32 %v4794, 16
    %v4798 = vrot.slane %v4796, 7
    %v4799 = vrot.slane %v4798, 1
    %4800 = vrot.lane.b32.xlu0 %v4799, 64
    %v4801 = vpop.permute.xlu0 %4800
    %v4803 = vld [vmem:[#allocation8 + $0x5] sm:$0x1]
    %v4804 = vsel %vm4553, %v4801, %v4803
    %4805 = vst [vmem:[#allocation8 + $0x5] sm:$0x1] %v4804
    %v4806 = vld [vmem:[#allocation7] sm:$0x40]
    %v4808 = vcombine.high %v4806, %v4806
    %v4810 = vunpack.c.l.s4 1966171168
    %v4811 = vunpack.c.0.s8 %v4810
    %v4812 = vlaneseq
    %v4813 = vshrl.u32 %v4812, 7
    %v4814 = vsub.s32 %v4811, %v4813
    %v4815 = vrot.slane %v4808, %v4814
    %v4817 = vunpack.c.l.s4 1966171168
    %v4818 = vunpack.c.0.s8 %v4817
    %v4819 = vlaneseq
    %v4820 = vshrl.u32 %v4819, 7
    %v4821 = vsub.s32 %v4818, %v4820
    %v4822 = vrot.slane %v4815, %v4821
    %v4823 = vcombine.high %v4822, %v4822
    %v4825 = vld [vmem:[#allocation8 + $0x6] sm:$0x1]
    %v4826 = vsel %vm4524, %v4823, %v4825
    %4827 = vst [vmem:[#allocation8 + $0x6] sm:$0x1] %v4826
    %v4828 = vld [vmem:[#allocation7] sm:$0x40]
    %v4830 = vcombine.high %v4828, %v4828
    %v4832 = vunpack.c.l.s4 1966171168
    %v4833 = vunpack.c.0.s8 %v4832
    %v4834 = vlaneseq
    %v4835 = vshrl.u32 %v4834, 7
    %v4836 = vsub.s32 %v4833, %v4835
    %v4837 = vrot.slane %v4830, %v4836
    %v4839 = vunpack.c.l.s4 1966171168
    %v4840 = vunpack.c.0.s8 %v4839
    %v4841 = vlaneseq
    %v4842 = vshrl.u32 %v4841, 7
    %v4843 = vsub.s32 %v4840, %v4842
    %v4844 = vrot.slane %v4837, %v4843
    %v4845 = vcombine.high %v4844, %v4844
    %v4847 = vshrl.u32 %v4845, 16
    %v4849 = vrot.slane %v4847, 7
    %v4850 = vrot.slane %v4849, 1
    %4851 = vrot.lane.b32.xlu0 %v4850, 64
    %v4852 = vpop.permute.xlu0 %4851
    %v4854 = vld [vmem:[#allocation8 + $0x6] sm:$0x1]
    %v4855 = vsel %vm4553, %v4852, %v4854
    %4856 = vst [vmem:[#allocation8 + $0x6] sm:$0x1] %v4855
    %v4857 = vld [vmem:[#allocation7] sm:$0x80]
    %v4859 = vcombine.high %v4857, %v4857
    %v4861 = vunpack.c.l.s4 1966171168
    %v4862 = vunpack.c.0.s8 %v4861
    %v4863 = vlaneseq
    %v4864 = vshrl.u32 %v4863, 7
    %v4865 = vsub.s32 %v4862, %v4864
    %v4866 = vrot.slane %v4859, %v4865
    %v4867 = vcombine.high %v4866, %v4866
    %v4869 = vunpack.c.l.s4 1966171168
    %v4870 = vunpack.c.0.s8 %v4869
    %v4871 = vlaneseq
    %v4872 = vshrl.u32 %v4871, 7
    %v4873 = vsub.s32 %v4870, %v4872
    %v4874 = vrot.slane %v4867, %v4873
    %v4875 = vcombine.high %v4874, %v4874
    %v4877 = vld [vmem:[#allocation8 + $0x7] sm:$0x1]
    %v4878 = vsel %vm4524, %v4875, %v4877
    %4879 = vst [vmem:[#allocation8 + $0x7] sm:$0x1] %v4878
    %v4880 = vld [vmem:[#allocation7] sm:$0x80]
    %v4882 = vcombine.high %v4880, %v4880
    %v4884 = vunpack.c.l.s4 1966171168
    %v4885 = vunpack.c.0.s8 %v4884
    %v4886 = vlaneseq
    %v4887 = vshrl.u32 %v4886, 7
    %v4888 = vsub.s32 %v4885, %v4887
    %v4889 = vrot.slane %v4882, %v4888
    %v4890 = vcombine.high %v4889, %v4889
    %v4892 = vunpack.c.l.s4 1966171168
    %v4893 = vunpack.c.0.s8 %v4892
    %v4894 = vlaneseq
    %v4895 = vshrl.u32 %v4894, 7
    %v4896 = vsub.s32 %v4893, %v4895
    %v4897 = vrot.slane %v4890, %v4896
    %v4898 = vcombine.high %v4897, %v4897
    %v4900 = vshrl.u32 %v4898, 16
    %v4902 = vrot.slane %v4900, 7
    %v4903 = vrot.slane %v4902, 1
    %4904 = vrot.lane.b32.xlu0 %v4903, 64
    %v4905 = vpop.permute.xlu0 %4904
    %v4907 = vld [vmem:[#allocation8 + $0x7] sm:$0x1]
    %v4908 = vsel %vm4553, %v4905, %v4907
    %4909 = vst [vmem:[#allocation8 + $0x7] sm:$0x1] %v4908
    %v4910 = vld [vmem:[#allocation7 + $0x8] sm:$0x1]
    %v4913 = vunpack.c.l.s4 1966171168
    %v4914 = vunpack.c.0.s8 %v4913
    %v4915 = vlaneseq
    %v4916 = vshrl.u32 %v4915, 7
    %v4917 = vsub.s32 %v4914, %v4916
    %v4918 = vrot.slane %v4910, %v4917
    %v4920 = vunpack.c.l.s4 1966171168
    %v4921 = vunpack.c.0.s8 %v4920
    %v4922 = vlaneseq
    %v4923 = vshrl.u32 %v4922, 7
    %v4924 = vsub.s32 %v4921, %v4923
    %v4925 = vrot.slane %v4918, %v4924
    %v4927 = vshll.u32 %v4925, 16
    %vm4930 = vmand %vm4523, %vm444
    %v4931 = vld [vmem:[#allocation8] sm:$0x1]
    %v4932 = vsel %vm4930, %v4927, %v4931
    %4933 = vst [vmem:[#allocation8] sm:$0x1] %v4932
    %v4934 = vld [vmem:[#allocation7 + $0x8] sm:$0x1]
    %v4937 = vunpack.c.l.s4 1966171168
    %v4938 = vunpack.c.0.s8 %v4937
    %v4939 = vlaneseq
    %v4940 = vshrl.u32 %v4939, 7
    %v4941 = vsub.s32 %v4938, %v4940
    %v4942 = vrot.slane %v4934, %v4941
    %v4944 = vunpack.c.l.s4 1966171168
    %v4945 = vunpack.c.0.s8 %v4944
    %v4946 = vlaneseq
    %v4947 = vshrl.u32 %v4946, 7
    %v4948 = vsub.s32 %v4945, %v4947
    %v4949 = vrot.slane %v4942, %v4948
    %4950 = vrot.lane.b32.xlu0 %v4949, 64
    %v4951 = vpop.permute.xlu0 %4950
    %vm4953 = vmand %vm4552, %vm444
    %v4954 = vld [vmem:[#allocation8] sm:$0x1]
    %v4955 = vsel %vm4953, %v4951, %v4954
    %4956 = vst [vmem:[#allocation8] sm:$0x1] %v4955
    %v4957 = vld [vmem:[#allocation7 + $0x8] sm:$0x2]
    %v4960 = vunpack.c.l.s4 1966171168
    %v4961 = vunpack.c.0.s8 %v4960
    %v4962 = vlaneseq
    %v4963 = vshrl.u32 %v4962, 7
    %v4964 = vsub.s32 %v4961, %v4963
    %v4965 = vrot.slane %v4957, %v4964
    %v4966 = vcombine.high %v4965, %v4965
    %v4968 = vunpack.c.l.s4 1966171168
    %v4969 = vunpack.c.0.s8 %v4968
    %v4970 = vlaneseq
    %v4971 = vshrl.u32 %v4970, 7
    %v4972 = vsub.s32 %v4969, %v4971
    %v4973 = vrot.slane %v4966, %v4972
    %v4975 = vshll.u32 %v4973, 16
    %v4978 = vld [vmem:[#allocation8 + $0x1] sm:$0x1]
    %v4979 = vsel %vm4930, %v4975, %v4978
    %4980 = vst [vmem:[#allocation8 + $0x1] sm:$0x1] %v4979
    %v4981 = vld [vmem:[#allocation7 + $0x8] sm:$0x2]
    %v4984 = vunpack.c.l.s4 1966171168
    %v4985 = vunpack.c.0.s8 %v4984
    %v4986 = vlaneseq
    %v4987 = vshrl.u32 %v4986, 7
    %v4988 = vsub.s32 %v4985, %v4987
    %v4989 = vrot.slane %v4981, %v4988
    %v4990 = vcombine.high %v4989, %v4989
    %v4992 = vunpack.c.l.s4 1966171168
    %v4993 = vunpack.c.0.s8 %v4992
    %v4994 = vlaneseq
    %v4995 = vshrl.u32 %v4994, 7
    %v4996 = vsub.s32 %v4993, %v4995
    %v4997 = vrot.slane %v4990, %v4996
    %4998 = vrot.lane.b32.xlu0 %v4997, 64
    %v4999 = vpop.permute.xlu0 %4998
    %v5001 = vld [vmem:[#allocation8 + $0x1] sm:$0x1]
    %v5002 = vsel %vm4953, %v4999, %v5001
    %5003 = vst [vmem:[#allocation8 + $0x1] sm:$0x1] %v5002
    %v5004 = vld [vmem:[#allocation7 + $0x8] sm:$0x4]
    %v5007 = vunpack.c.l.s4 1966171168
    %v5008 = vunpack.c.0.s8 %v5007
    %v5009 = vlaneseq
    %v5010 = vshrl.u32 %v5009, 7
    %v5011 = vsub.s32 %v5008, %v5010
    %v5012 = vrot.slane %v5004, %v5011
    %v5014 = vunpack.c.l.s4 1966171168
    %v5015 = vunpack.c.0.s8 %v5014
    %v5016 = vlaneseq
    %v5017 = vshrl.u32 %v5016, 7
    %v5018 = vsub.s32 %v5015, %v5017
    %v5019 = vrot.slane %v5012, %v5018
    %v5020 = vcombine.high %v5019, %v5019
    %v5022 = vshll.u32 %v5020, 16
    %v5025 = vld [vmem:[#allocation8 + $0x2] sm:$0x1]
    %v5026 = vsel %vm4930, %v5022, %v5025
    %5027 = vst [vmem:[#allocation8 + $0x2] sm:$0x1] %v5026
    %v5028 = vld [vmem:[#allocation7 + $0x8] sm:$0x4]
    %v5031 = vunpack.c.l.s4 1966171168
    %v5032 = vunpack.c.0.s8 %v5031
    %v5033 = vlaneseq
    %v5034 = vshrl.u32 %v5033, 7
    %v5035 = vsub.s32 %v5032, %v5034
    %v5036 = vrot.slane %v5028, %v5035
    %v5038 = vunpack.c.l.s4 1966171168
    %v5039 = vunpack.c.0.s8 %v5038
    %v5040 = vlaneseq
    %v5041 = vshrl.u32 %v5040, 7
    %v5042 = vsub.s32 %v5039, %v5041
    %v5043 = vrot.slane %v5036, %v5042
    %v5044 = vcombine.high %v5043, %v5043
    %5045 = vrot.lane.b32.xlu0 %v5044, 64
    %v5046 = vpop.permute.xlu0 %5045
    %v5048 = vld [vmem:[#allocation8 + $0x2] sm:$0x1]
    %v5049 = vsel %vm4953, %v5046, %v5048
    %5050 = vst [vmem:[#allocation8 + $0x2] sm:$0x1] %v5049
    %v5051 = vld [vmem:[#allocation7 + $0x8] sm:$0x8]
    %v5054 = vunpack.c.l.s4 1966171168
    %v5055 = vunpack.c.0.s8 %v5054
    %v5056 = vlaneseq
    %v5057 = vshrl.u32 %v5056, 7
    %v5058 = vsub.s32 %v5055, %v5057
    %v5059 = vrot.slane %v5051, %v5058
    %v5060 = vcombine.high %v5059, %v5059
    %v5062 = vunpack.c.l.s4 1966171168
    %v5063 = vunpack.c.0.s8 %v5062
    %v5064 = vlaneseq
    %v5065 = vshrl.u32 %v5064, 7
    %v5066 = vsub.s32 %v5063, %v5065
    %v5067 = vrot.slane %v5060, %v5066
    %v5068 = vcombine.high %v5067, %v5067
    %v5070 = vshll.u32 %v5068, 16
    %v5073 = vld [vmem:[#allocation8 + $0x3] sm:$0x1]
    %v5074 = vsel %vm4930, %v5070, %v5073
    %5075 = vst [vmem:[#allocation8 + $0x3] sm:$0x1] %v5074
    %v5076 = vld [vmem:[#allocation7 + $0x8] sm:$0x8]
    %v5079 = vunpack.c.l.s4 1966171168
    %v5080 = vunpack.c.0.s8 %v5079
    %v5081 = vlaneseq
    %v5082 = vshrl.u32 %v5081, 7
    %v5083 = vsub.s32 %v5080, %v5082
    %v5084 = vrot.slane %v5076, %v5083
    %v5085 = vcombine.high %v5084, %v5084
    %v5087 = vunpack.c.l.s4 1966171168
    %v5088 = vunpack.c.0.s8 %v5087
    %v5089 = vlaneseq
    %v5090 = vshrl.u32 %v5089, 7
    %v5091 = vsub.s32 %v5088, %v5090
    %v5092 = vrot.slane %v5085, %v5091
    %v5093 = vcombine.high %v5092, %v5092
    %5094 = vrot.lane.b32.xlu0 %v5093, 64
    %v5095 = vpop.permute.xlu0 %5094
    %v5097 = vld [vmem:[#allocation8 + $0x3] sm:$0x1]
    %v5098 = vsel %vm4953, %v5095, %v5097
    %5099 = vst [vmem:[#allocation8 + $0x3] sm:$0x1] %v5098
    %v5100 = vld [vmem:[#allocation7 + $0x8] sm:$0x10]
    %v5102 = vcombine.high %v5100, %v5100
    %v5104 = vunpack.c.l.s4 1966171168
    %v5105 = vunpack.c.0.s8 %v5104
    %v5106 = vlaneseq
    %v5107 = vshrl.u32 %v5106, 7
    %v5108 = vsub.s32 %v5105, %v5107
    %v5109 = vrot.slane %v5102, %v5108
    %v5111 = vunpack.c.l.s4 1966171168
    %v5112 = vunpack.c.0.s8 %v5111
    %v5113 = vlaneseq
    %v5114 = vshrl.u32 %v5113, 7
    %v5115 = vsub.s32 %v5112, %v5114
    %v5116 = vrot.slane %v5109, %v5115
    %v5118 = vshll.u32 %v5116, 16
    %v5121 = vld [vmem:[#allocation8 + $0x4] sm:$0x1]
    %v5122 = vsel %vm4930, %v5118, %v5121
    %5123 = vst [vmem:[#allocation8 + $0x4] sm:$0x1] %v5122
    %v5124 = vld [vmem:[#allocation7 + $0x8] sm:$0x10]
    %v5126 = vcombine.high %v5124, %v5124
    %v5128 = vunpack.c.l.s4 1966171168
    %v5129 = vunpack.c.0.s8 %v5128
    %v5130 = vlaneseq
    %v5131 = vshrl.u32 %v5130, 7
    %v5132 = vsub.s32 %v5129, %v5131
    %v5133 = vrot.slane %v5126, %v5132
    %v5135 = vunpack.c.l.s4 1966171168
    %v5136 = vunpack.c.0.s8 %v5135
    %v5137 = vlaneseq
    %v5138 = vshrl.u32 %v5137, 7
    %v5139 = vsub.s32 %v5136, %v5138
    %v5140 = vrot.slane %v5133, %v5139
    %5141 = vrot.lane.b32.xlu0 %v5140, 64
    %v5142 = vpop.permute.xlu0 %5141
    %v5144 = vld [vmem:[#allocation8 + $0x4] sm:$0x1]
    %v5145 = vsel %vm4953, %v5142, %v5144
    %5146 = vst [vmem:[#allocation8 + $0x4] sm:$0x1] %v5145
    %v5147 = vld [vmem:[#allocation7 + $0x8] sm:$0x20]
    %v5149 = vcombine.high %v5147, %v5147
    %v5151 = vunpack.c.l.s4 1966171168
    %v5152 = vunpack.c.0.s8 %v5151
    %v5153 = vlaneseq
    %v5154 = vshrl.u32 %v5153, 7
    %v5155 = vsub.s32 %v5152, %v5154
    %v5156 = vrot.slane %v5149, %v5155
    %v5157 = vcombine.high %v5156, %v5156
    %v5159 = vunpack.c.l.s4 1966171168
    %v5160 = vunpack.c.0.s8 %v5159
    %v5161 = vlaneseq
    %v5162 = vshrl.u32 %v5161, 7
    %v5163 = vsub.s32 %v5160, %v5162
    %v5164 = vrot.slane %v5157, %v5163
    %v5166 = vshll.u32 %v5164, 16
    %v5169 = vld [vmem:[#allocation8 + $0x5] sm:$0x1]
    %v5170 = vsel %vm4930, %v5166, %v5169
    %5171 = vst [vmem:[#allocation8 + $0x5] sm:$0x1] %v5170
    %v5172 = vld [vmem:[#allocation7 + $0x8] sm:$0x20]
    %v5174 = vcombine.high %v5172, %v5172
    %v5176 = vunpack.c.l.s4 1966171168
    %v5177 = vunpack.c.0.s8 %v5176
    %v5178 = vlaneseq
    %v5179 = vshrl.u32 %v5178, 7
    %v5180 = vsub.s32 %v5177, %v5179
    %v5181 = vrot.slane %v5174, %v5180
    %v5182 = vcombine.high %v5181, %v5181
    %v5184 = vunpack.c.l.s4 1966171168
    %v5185 = vunpack.c.0.s8 %v5184
    %v5186 = vlaneseq
    %v5187 = vshrl.u32 %v5186, 7
    %v5188 = vsub.s32 %v5185, %v5187
    %v5189 = vrot.slane %v5182, %v5188
    %5190 = vrot.lane.b32.xlu0 %v5189, 64
    %v5191 = vpop.permute.xlu0 %5190
    %v5193 = vld [vmem:[#allocation8 + $0x5] sm:$0x1]
    %v5194 = vsel %vm4953, %v5191, %v5193
    %5195 = vst [vmem:[#allocation8 + $0x5] sm:$0x1] %v5194
    %v5196 = vld [vmem:[#allocation7 + $0x8] sm:$0x40]
    %v5198 = vcombine.high %v5196, %v5196
    %v5200 = vunpack.c.l.s4 1966171168
    %v5201 = vunpack.c.0.s8 %v5200
    %v5202 = vlaneseq
    %v5203 = vshrl.u32 %v5202, 7
    %v5204 = vsub.s32 %v5201, %v5203
    %v5205 = vrot.slane %v5198, %v5204
    %v5207 = vunpack.c.l.s4 1966171168
    %v5208 = vunpack.c.0.s8 %v5207
    %v5209 = vlaneseq
    %v5210 = vshrl.u32 %v5209, 7
    %v5211 = vsub.s32 %v5208, %v5210
    %v5212 = vrot.slane %v5205, %v5211
    %v5213 = vcombine.high %v5212, %v5212
    %v5215 = vshll.u32 %v5213, 16
    %v5218 = vld [vmem:[#allocation8 + $0x6] sm:$0x1]
    %v5219 = vsel %vm4930, %v5215, %v5218
    %5220 = vst [vmem:[#allocation8 + $0x6] sm:$0x1] %v5219
    %v5221 = vld [vmem:[#allocation7 + $0x8] sm:$0x40]
    %v5223 = vcombine.high %v5221, %v5221
    %v5225 = vunpack.c.l.s4 1966171168
    %v5226 = vunpack.c.0.s8 %v5225
    %v5227 = vlaneseq
    %v5228 = vshrl.u32 %v5227, 7
    %v5229 = vsub.s32 %v5226, %v5228
    %v5230 = vrot.slane %v5223, %v5229
    %v5232 = vunpack.c.l.s4 1966171168
    %v5233 = vunpack.c.0.s8 %v5232
    %v5234 = vlaneseq
    %v5235 = vshrl.u32 %v5234, 7
    %v5236 = vsub.s32 %v5233, %v5235
    %v5237 = vrot.slane %v5230, %v5236
    %v5238 = vcombine.high %v5237, %v5237
    %5239 = vrot.lane.b32.xlu0 %v5238, 64
    %v5240 = vpop.permute.xlu0 %5239
    %v5242 = vld [vmem:[#allocation8 + $0x6] sm:$0x1]
    %v5243 = vsel %vm4953, %v5240, %v5242
    %5244 = vst [vmem:[#allocation8 + $0x6] sm:$0x1] %v5243
    %v5245 = vld [vmem:[#allocation7 + $0x8] sm:$0x80]
    %v5247 = vcombine.high %v5245, %v5245
    %v5249 = vunpack.c.l.s4 1966171168
    %v5250 = vunpack.c.0.s8 %v5249
    %v5251 = vlaneseq
    %v5252 = vshrl.u32 %v5251, 7
    %v5253 = vsub.s32 %v5250, %v5252
    %v5254 = vrot.slane %v5247, %v5253
    %v5255 = vcombine.high %v5254, %v5254
    %v5257 = vunpack.c.l.s4 1966171168
    %v5258 = vunpack.c.0.s8 %v5257
    %v5259 = vlaneseq
    %v5260 = vshrl.u32 %v5259, 7
    %v5261 = vsub.s32 %v5258, %v5260
    %v5262 = vrot.slane %v5255, %v5261
    %v5263 = vcombine.high %v5262, %v5262
    %v5265 = vshll.u32 %v5263, 16
    %v5268 = vld [vmem:[#allocation8 + $0x7] sm:$0x1]
    %v5269 = vsel %vm4930, %v5265, %v5268
    %5270 = vst [vmem:[#allocation8 + $0x7] sm:$0x1] %v5269
    %v5271 = vld [vmem:[#allocation7 + $0x8] sm:$0x80]
    %v5273 = vcombine.high %v5271, %v5271
    %v5275 = vunpack.c.l.s4 1966171168
    %v5276 = vunpack.c.0.s8 %v5275
    %v5277 = vlaneseq
    %v5278 = vshrl.u32 %v5277, 7
    %v5279 = vsub.s32 %v5276, %v5278
    %v5280 = vrot.slane %v5273, %v5279
    %v5281 = vcombine.high %v5280, %v5280
    %v5283 = vunpack.c.l.s4 1966171168
    %v5284 = vunpack.c.0.s8 %v5283
    %v5285 = vlaneseq
    %v5286 = vshrl.u32 %v5285, 7
    %v5287 = vsub.s32 %v5284, %v5286
    %v5288 = vrot.slane %v5281, %v5287
    %v5289 = vcombine.high %v5288, %v5288
    %5290 = vrot.lane.b32.xlu0 %v5289, 64
    %v5291 = vpop.permute.xlu0 %5290
    %v5293 = vld [vmem:[#allocation8 + $0x7] sm:$0x1]
    %v5294 = vsel %vm4953, %v5291, %v5293
    %5295 = vst [vmem:[#allocation8 + $0x7] sm:$0x1] %v5294
    %v5296 = vld [vmem:[#allocation8] sm:$0xff]
    %v5297 = vld [vmem:[%s7] sm:$0xf]
    %v5298 = vld [vmem:[%s7 + $0x4] sm:$0xf]
    %v5299 = vld [vmem:[%s7 + $0x8] sm:$0xf]
    %v5300 = vld [vmem:[%s7 + $0xc] sm:$0xf]
    %v5301 = vld [vmem:[%s7 + $0x10] sm:$0xf]
    %v5302 = vld [vmem:[%s7 + $0x14] sm:$0xf]
    %v5303 = vld [vmem:[%s7 + $0x18] sm:$0xf]
    %v5304 = vld [vmem:[%s7 + $0x1c] sm:$0xf]
    %v5305 = vld [vmem:[%s7 + $0x20] sm:$0xf]
    %v5306 = vld [vmem:[%s7 + $0x24] sm:$0xf]
    %v5307 = vld [vmem:[%s7 + $0x28] sm:$0xf]
    %v5308 = vld [vmem:[%s7 + $0x2c] sm:$0xf]
    %v5309 = vld [vmem:[%s7 + $0x30] sm:$0xf]
    %v5310 = vld [vmem:[%s7 + $0x34] sm:$0xf]
    %v5311 = vld [vmem:[%s7 + $0x38] sm:$0xf]
    %v5312 = vld [vmem:[%s7 + $0x3c] sm:$0xf]
    %v5313 = vld [vmem:[%s7 + $0x40] sm:$0xf]
    %v5314 = vld [vmem:[%s7 + $0x44] sm:$0xf]
    %v5315 = vld [vmem:[%s7 + $0x48] sm:$0xf]
    %v5316 = vld [vmem:[%s7 + $0x4c] sm:$0xf]
    %v5317 = vld [vmem:[%s7 + $0x50] sm:$0xf]
    %v5318 = vld [vmem:[%s7 + $0x54] sm:$0xf]
    %v5319 = vld [vmem:[%s7 + $0x58] sm:$0xf]
    %v5320 = vld [vmem:[%s7 + $0x5c] sm:$0xf]
    %v5321 = vld [vmem:[%s7 + $0x60] sm:$0xf]
    %v5322 = vld [vmem:[%s7 + $0x64] sm:$0xf]
    %v5323 = vld [vmem:[%s7 + $0x68] sm:$0xf]
    %v5324 = vld [vmem:[%s7 + $0x6c] sm:$0xf]
    %v5325 = vld [vmem:[%s7 + $0x70] sm:$0xf]
    %v5326 = vld [vmem:[%s7 + $0x74] sm:$0xf]
    %v5327 = vld [vmem:[%s7 + $0x78] sm:$0xf]
    %v5328 = vld [vmem:[%s7 + $0x7c] sm:$0xf]
    %v5329 = vld [vmem:[%s7 + $0x80] sm:$0xf]
    %v5330 = vld [vmem:[%s7 + $0x84] sm:$0xf]
    %v5331 = vld [vmem:[%s7 + $0x88] sm:$0xf]
    %v5332 = vld [vmem:[%s7 + $0x8c] sm:$0xf]
    %v5333 = vld [vmem:[%s7 + $0x90] sm:$0xf]
    %v5334 = vld [vmem:[%s7 + $0x94] sm:$0xf]
    %v5335 = vld [vmem:[%s7 + $0x98] sm:$0xf]
    %v5336 = vld [vmem:[%s7 + $0x9c] sm:$0xf]
    %v5337 = vld [vmem:[%s7 + $0xa0] sm:$0xf]
    %v5338 = vld [vmem:[%s7 + $0xa4] sm:$0xf]
    %v5339 = vld [vmem:[%s7 + $0xa8] sm:$0xf]
    %v5340 = vld [vmem:[%s7 + $0xac] sm:$0xf]
    %v5341 = vld [vmem:[%s7 + $0xb0] sm:$0xf]
    %v5342 = vld [vmem:[%s7 + $0xb4] sm:$0xf]
    %v5343 = vld [vmem:[%s7 + $0xb8] sm:$0xf]
    %v5344 = vld [vmem:[%s7 + $0xbc] sm:$0xf]
    %v5345 = vld [vmem:[%s7 + $0xc0] sm:$0xf]
    %v5346 = vld [vmem:[%s7 + $0xc4] sm:$0xf]
    %v5347 = vld [vmem:[%s7 + $0xc8] sm:$0xf]
    %v5348 = vld [vmem:[%s7 + $0xcc] sm:$0xf]
    %v5349 = vld [vmem:[%s7 + $0xd0] sm:$0xf]
    %v5350 = vld [vmem:[%s7 + $0xd4] sm:$0xf]
    %v5351 = vld [vmem:[%s7 + $0xd8] sm:$0xf]
    %v5352 = vld [vmem:[%s7 + $0xdc] sm:$0xf]
    %v5353 = vld [vmem:[%s7 + $0xe0] sm:$0xf]
    %v5354 = vld [vmem:[%s7 + $0xe4] sm:$0xf]
    %v5355 = vld [vmem:[%s7 + $0xe8] sm:$0xf]
    %v5356 = vld [vmem:[%s7 + $0xec] sm:$0xf]
    %v5357 = vld [vmem:[%s7 + $0xf0] sm:$0xf]
    %v5358 = vld [vmem:[%s7 + $0xf4] sm:$0xf]
    %v5359 = vld [vmem:[%s7 + $0xf8] sm:$0xf]
    %v5360 = vld [vmem:[%s7 + $0xfc] sm:$0xf]
    %v5361 = vld [vmem:[%s7 + $0x100] sm:$0xf]
    %v5362 = vld [vmem:[%s7 + $0x104] sm:$0xf]
    %v5363 = vld [vmem:[%s7 + $0x108] sm:$0xf]
    %v5364 = vld [vmem:[%s7 + $0x10c] sm:$0xf]
    %v5365 = vld [vmem:[%s7 + $0x110] sm:$0xf]
    %v5366 = vld [vmem:[%s7 + $0x114] sm:$0xf]
    %v5367 = vld [vmem:[%s7 + $0x118] sm:$0xf]
    %v5368 = vld [vmem:[%s7 + $0x11c] sm:$0xf]
    %v5369 = vld [vmem:[%s7 + $0x120] sm:$0xf]
    %v5370 = vld [vmem:[%s7 + $0x124] sm:$0xf]
    %v5371 = vld [vmem:[%s7 + $0x128] sm:$0xf]
    %v5372 = vld [vmem:[%s7 + $0x12c] sm:$0xf]
    %v5373 = vld [vmem:[%s7 + $0x130] sm:$0xf]
    %v5374 = vld [vmem:[%s7 + $0x134] sm:$0xf]
    %v5375 = vld [vmem:[%s7 + $0x138] sm:$0xf]
    %v5376 = vld [vmem:[%s7 + $0x13c] sm:$0xf]
    %v5377 = vld [vmem:[%s7 + $0x140] sm:$0xf]
    %v5378 = vld [vmem:[%s7 + $0x144] sm:$0xf]
    %v5379 = vld [vmem:[%s7 + $0x148] sm:$0xf]
    %v5380 = vld [vmem:[%s7 + $0x14c] sm:$0xf]
    %v5381 = vld [vmem:[%s7 + $0x150] sm:$0xf]
    %v5382 = vld [vmem:[%s7 + $0x154] sm:$0xf]
    %v5383 = vld [vmem:[%s7 + $0x158] sm:$0xf]
    %v5384 = vld [vmem:[%s7 + $0x15c] sm:$0xf]
    %v5385 = vld [vmem:[%s7 + $0x160] sm:$0xf]
    %v5386 = vld [vmem:[%s7 + $0x164] sm:$0xf]
    %v5387 = vld [vmem:[%s7 + $0x168] sm:$0xf]
    %v5388 = vld [vmem:[%s7 + $0x16c] sm:$0xf]
    %v5389 = vld [vmem:[%s7 + $0x170] sm:$0xf]
    %v5390 = vld [vmem:[%s7 + $0x174] sm:$0xf]
    %v5391 = vld [vmem:[%s7 + $0x178] sm:$0xf]
    %v5392 = vld [vmem:[%s7 + $0x17c] sm:$0xf]
    %v5393 = vld [vmem:[%s7 + $0x180] sm:$0xf]
    %v5394 = vld [vmem:[%s7 + $0x184] sm:$0xf]
    %v5395 = vld [vmem:[%s7 + $0x188] sm:$0xf]
    %v5396 = vld [vmem:[%s7 + $0x18c] sm:$0xf]
    %v5397 = vld [vmem:[%s7 + $0x190] sm:$0xf]
    %v5398 = vld [vmem:[%s7 + $0x194] sm:$0xf]
    %v5399 = vld [vmem:[%s7 + $0x198] sm:$0xf]
    %v5400 = vld [vmem:[%s7 + $0x19c] sm:$0xf]
    %v5401 = vld [vmem:[%s7 + $0x1a0] sm:$0xf]
    %v5402 = vld [vmem:[%s7 + $0x1a4] sm:$0xf]
    %v5403 = vld [vmem:[%s7 + $0x1a8] sm:$0xf]
    %v5404 = vld [vmem:[%s7 + $0x1ac] sm:$0xf]
    %v5405 = vld [vmem:[%s7 + $0x1b0] sm:$0xf]
    %v5406 = vld [vmem:[%s7 + $0x1b4] sm:$0xf]
    %v5407 = vld [vmem:[%s7 + $0x1b8] sm:$0xf]
    %v5408 = vld [vmem:[%s7 + $0x1bc] sm:$0xf]
    %v5409 = vld [vmem:[%s7 + $0x1c0] sm:$0xf]
    %v5410 = vld [vmem:[%s7 + $0x1c4] sm:$0xf]
    %v5411 = vld [vmem:[%s7 + $0x1c8] sm:$0xf]
    %v5412 = vld [vmem:[%s7 + $0x1cc] sm:$0xf]
    %v5413 = vld [vmem:[%s7 + $0x1d0] sm:$0xf]
    %v5414 = vld [vmem:[%s7 + $0x1d4] sm:$0xf]
    %v5415 = vld [vmem:[%s7 + $0x1d8] sm:$0xf]
    %v5416 = vld [vmem:[%s7 + $0x1dc] sm:$0xf]
    %v5417 = vld [vmem:[%s7 + $0x1e0] sm:$0xf]
    %v5418 = vld [vmem:[%s7 + $0x1e4] sm:$0xf]
    %v5419 = vld [vmem:[%s7 + $0x1e8] sm:$0xf]
    %v5420 = vld [vmem:[%s7 + $0x1ec] sm:$0xf]
    %v5421 = vld [vmem:[%s7 + $0x1f0] sm:$0xf]
    %v5422 = vld [vmem:[%s7 + $0x1f4] sm:$0xf]
    %v5423 = vld [vmem:[%s7 + $0x1f8] sm:$0xf]
    %v5424 = vld [vmem:[%s7 + $0x1fc] sm:$0xf]
    %v5425 = vld [vmem:[%s8] sm:$0x1]
    %v5427 = vlaneseq
    %v5428 = vshrl.u32 %v5427, 7
    %v5429 = vsub.s32 0, %v5428
    %v5430 = vrot.slane %v5425, %v5429
    %v5433 = vcombine.high %v5296, %v5296
    %v5435 = vunpack.c.l.s4 1966171168
    %v5436 = vunpack.c.0.s8 %v5435
    %v5437 = vlaneseq
    %v5438 = vshrl.u32 %v5437, 7
    %v5439 = vsub.s32 %v5436, %v5438
    %v5440 = vrot.slane %v5296, %v5439
    %v5442 = vunpack.c.l.s4 1966171168
    %v5443 = vunpack.c.0.s8 %v5442
    %v5444 = vlaneseq
    %v5445 = vshrl.u32 %v5444, 7
    %v5446 = vsub.s32 %v5443, %v5445
    %v5447 = vrot.slane %v5433, %v5446
    %v5448 = vcombine.high %v5440, %v5440
    %v5449 = vcombine.high %v5447, %v5447
    %v5451 = vunpack.c.l.s4 1966171168
    %v5452 = vunpack.c.0.s8 %v5451
    %v5453 = vlaneseq
    %v5454 = vshrl.u32 %v5453, 7
    %v5455 = vsub.s32 %v5452, %v5454
    %v5456 = vrot.slane %v5440, %v5455
    %v5458 = vunpack.c.l.s4 1966171168
    %v5459 = vunpack.c.0.s8 %v5458
    %v5460 = vlaneseq
    %v5461 = vshrl.u32 %v5460, 7
    %v5462 = vsub.s32 %v5459, %v5461
    %v5463 = vrot.slane %v5447, %v5462
    %v5465 = vunpack.c.l.s4 1966171168
    %v5466 = vunpack.c.0.s8 %v5465
    %v5467 = vlaneseq
    %v5468 = vshrl.u32 %v5467, 7
    %v5469 = vsub.s32 %v5466, %v5468
    %v5470 = vrot.slane %v5448, %v5469
    %v5472 = vunpack.c.l.s4 1966171168
    %v5473 = vunpack.c.0.s8 %v5472
    %v5474 = vlaneseq
    %v5475 = vshrl.u32 %v5474, 7
    %v5476 = vsub.s32 %v5473, %v5475
    %v5477 = vrot.slane %v5449, %v5476
    %v5478 = vcombine.high %v5456, %v5456
    %v5479 = vcombine.high %v5463, %v5463
    %v5480 = vcombine.high %v5470, %v5470
    %v5481 = vcombine.high %v5477, %v5477
    %v5618 = vunpack.c.l.b16 %v5297
    %v5619 = vunpack.c.l.b16 %v5298
    %v5620 = vunpack.c.l.b16 %v5299
    %v5621 = vunpack.c.l.b16 %v5300
    %v5622 = vunpack.c.l.b16 %v5301
    %v5623 = vunpack.c.l.b16 %v5302
    %v5624 = vunpack.c.l.b16 %v5303
    %v5625 = vunpack.c.l.b16 %v5304
    %v5626 = vunpack.c.l.b16 %v5305
    %v5627 = vunpack.c.l.b16 %v5306
    %v5628 = vunpack.c.l.b16 %v5307
    %v5629 = vunpack.c.l.b16 %v5308
    %v5630 = vunpack.c.l.b16 %v5309
    %v5631 = vunpack.c.l.b16 %v5310
    %v5632 = vunpack.c.l.b16 %v5311
    %v5633 = vunpack.c.l.b16 %v5312
    %v5634 = vunpack.c.l.b16 %v5313
    %v5635 = vunpack.c.l.b16 %v5314
    %v5636 = vunpack.c.l.b16 %v5315
    %v5637 = vunpack.c.l.b16 %v5316
    %v5638 = vunpack.c.l.b16 %v5317
    %v5639 = vunpack.c.l.b16 %v5318
    %v5640 = vunpack.c.l.b16 %v5319
    %v5641 = vunpack.c.l.b16 %v5320
    %v5642 = vunpack.c.l.b16 %v5321
    %v5643 = vunpack.c.l.b16 %v5322
    %v5644 = vunpack.c.l.b16 %v5323
    %v5645 = vunpack.c.l.b16 %v5324
    %v5646 = vunpack.c.l.b16 %v5325
    %v5647 = vunpack.c.l.b16 %v5326
    %v5648 = vunpack.c.l.b16 %v5327
    %v5649 = vunpack.c.l.b16 %v5328
    %v5650 = vunpack.c.l.b16 %v5329
    %v5651 = vunpack.c.l.b16 %v5330
    %v5652 = vunpack.c.l.b16 %v5331
    %v5653 = vunpack.c.l.b16 %v5332
    %v5654 = vunpack.c.l.b16 %v5333
    %v5655 = vunpack.c.l.b16 %v5334
    %v5656 = vunpack.c.l.b16 %v5335
    %v5657 = vunpack.c.l.b16 %v5336
    %v5658 = vunpack.c.l.b16 %v5337
    %v5659 = vunpack.c.l.b16 %v5338
    %v5660 = vunpack.c.l.b16 %v5339
    %v5661 = vunpack.c.l.b16 %v5340
    %v5662 = vunpack.c.l.b16 %v5341
    %v5663 = vunpack.c.l.b16 %v5342
    %v5664 = vunpack.c.l.b16 %v5343
    %v5665 = vunpack.c.l.b16 %v5344
    %v5666 = vunpack.c.l.b16 %v5345
    %v5667 = vunpack.c.l.b16 %v5346
    %v5668 = vunpack.c.l.b16 %v5347
    %v5669 = vunpack.c.l.b16 %v5348
    %v5670 = vunpack.c.l.b16 %v5349
    %v5671 = vunpack.c.l.b16 %v5350
    %v5672 = vunpack.c.l.b16 %v5351
    %v5673 = vunpack.c.l.b16 %v5352
    %v5674 = vunpack.c.l.b16 %v5353
    %v5675 = vunpack.c.l.b16 %v5354
    %v5676 = vunpack.c.l.b16 %v5355
    %v5677 = vunpack.c.l.b16 %v5356
    %v5678 = vunpack.c.l.b16 %v5357
    %v5679 = vunpack.c.l.b16 %v5358
    %v5680 = vunpack.c.l.b16 %v5359
    %v5681 = vunpack.c.l.b16 %v5360
    %v5682 = vunpack.c.l.b16 %v5361
    %v5683 = vunpack.c.l.b16 %v5362
    %v5684 = vunpack.c.l.b16 %v5363
    %v5685 = vunpack.c.l.b16 %v5364
    %v5686 = vunpack.c.l.b16 %v5365
    %v5687 = vunpack.c.l.b16 %v5366
    %v5688 = vunpack.c.l.b16 %v5367
    %v5689 = vunpack.c.l.b16 %v5368
    %v5690 = vunpack.c.l.b16 %v5369
    %v5691 = vunpack.c.l.b16 %v5370
    %v5692 = vunpack.c.l.b16 %v5371
    %v5693 = vunpack.c.l.b16 %v5372
    %v5694 = vunpack.c.l.b16 %v5373
    %v5695 = vunpack.c.l.b16 %v5374
    %v5696 = vunpack.c.l.b16 %v5375
    %v5697 = vunpack.c.l.b16 %v5376
    %v5698 = vunpack.c.l.b16 %v5377
    %v5699 = vunpack.c.l.b16 %v5378
    %v5700 = vunpack.c.l.b16 %v5379
    %v5701 = vunpack.c.l.b16 %v5380
    %v5702 = vunpack.c.l.b16 %v5381
    %v5703 = vunpack.c.l.b16 %v5382
    %v5704 = vunpack.c.l.b16 %v5383
    %v5705 = vunpack.c.l.b16 %v5384
    %v5706 = vunpack.c.l.b16 %v5385
    %v5707 = vunpack.c.l.b16 %v5386
    %v5708 = vunpack.c.l.b16 %v5387
    %v5709 = vunpack.c.l.b16 %v5388
    %v5710 = vunpack.c.l.b16 %v5389
    %v5711 = vunpack.c.l.b16 %v5390
    %v5712 = vunpack.c.l.b16 %v5391
    %v5713 = vunpack.c.l.b16 %v5392
    %v5714 = vunpack.c.l.b16 %v5393
    %v5715 = vunpack.c.l.b16 %v5394
    %v5716 = vunpack.c.l.b16 %v5395
    %v5717 = vunpack.c.l.b16 %v5396
    %v5718 = vunpack.c.l.b16 %v5397
    %v5719 = vunpack.c.l.b16 %v5398
    %v5720 = vunpack.c.l.b16 %v5399
    %v5721 = vunpack.c.l.b16 %v5400
    %v5722 = vunpack.c.l.b16 %v5401
    %v5723 = vunpack.c.l.b16 %v5402
    %v5724 = vunpack.c.l.b16 %v5403
    %v5725 = vunpack.c.l.b16 %v5404
    %v5726 = vunpack.c.l.b16 %v5405
    %v5727 = vunpack.c.l.b16 %v5406
    %v5728 = vunpack.c.l.b16 %v5407
    %v5729 = vunpack.c.l.b16 %v5408
    %v5730 = vunpack.c.l.b16 %v5409
    %v5731 = vunpack.c.l.b16 %v5410
    %v5732 = vunpack.c.l.b16 %v5411
    %v5733 = vunpack.c.l.b16 %v5412
    %v5734 = vunpack.c.l.b16 %v5413
    %v5735 = vunpack.c.l.b16 %v5414
    %v5736 = vunpack.c.l.b16 %v5415
    %v5737 = vunpack.c.l.b16 %v5416
    %v5738 = vunpack.c.l.b16 %v5417
    %v5739 = vunpack.c.l.b16 %v5418
    %v5740 = vunpack.c.l.b16 %v5419
    %v5741 = vunpack.c.l.b16 %v5420
    %v5742 = vunpack.c.l.b16 %v5421
    %v5743 = vunpack.c.l.b16 %v5422
    %v5744 = vunpack.c.l.b16 %v5423
    %v5745 = vunpack.c.l.b16 %v5424
    %v5746 = vpack.c.b16 %v5619, %v5618
    %v5747 = vpack.c.b16 %v5621, %v5620
    %v5748 = vpack.c.b16 %v5623, %v5622
    %v5749 = vpack.c.b16 %v5625, %v5624
    %v5750 = vpack.c.b16 %v5627, %v5626
    %v5751 = vpack.c.b16 %v5629, %v5628
    %v5752 = vpack.c.b16 %v5631, %v5630
    %v5753 = vpack.c.b16 %v5633, %v5632
    %v5754 = vpack.c.b16 %v5635, %v5634
    %v5755 = vpack.c.b16 %v5637, %v5636
    %v5756 = vpack.c.b16 %v5639, %v5638
    %v5757 = vpack.c.b16 %v5641, %v5640
    %v5758 = vpack.c.b16 %v5643, %v5642
    %v5759 = vpack.c.b16 %v5645, %v5644
    %v5760 = vpack.c.b16 %v5647, %v5646
    %v5761 = vpack.c.b16 %v5649, %v5648
    %v5762 = vpack.c.b16 %v5651, %v5650
    %v5763 = vpack.c.b16 %v5653, %v5652
    %v5764 = vpack.c.b16 %v5655, %v5654
    %v5765 = vpack.c.b16 %v5657, %v5656
    %v5766 = vpack.c.b16 %v5659, %v5658
    %v5767 = vpack.c.b16 %v5661, %v5660
    %v5768 = vpack.c.b16 %v5663, %v5662
    %v5769 = vpack.c.b16 %v5665, %v5664
    %v5770 = vpack.c.b16 %v5667, %v5666
    %v5771 = vpack.c.b16 %v5669, %v5668
    %v5772 = vpack.c.b16 %v5671, %v5670
    %v5773 = vpack.c.b16 %v5673, %v5672
    %v5774 = vpack.c.b16 %v5675, %v5674
    %v5775 = vpack.c.b16 %v5677, %v5676
    %v5776 = vpack.c.b16 %v5679, %v5678
    %v5777 = vpack.c.b16 %v5681, %v5680
    %v5778 = vpack.c.b16 %v5683, %v5682
    %v5779 = vpack.c.b16 %v5685, %v5684
    %v5780 = vpack.c.b16 %v5687, %v5686
    %v5781 = vpack.c.b16 %v5689, %v5688
    %v5782 = vpack.c.b16 %v5691, %v5690
    %v5783 = vpack.c.b16 %v5693, %v5692
    %v5784 = vpack.c.b16 %v5695, %v5694
    %v5785 = vpack.c.b16 %v5697, %v5696
    %v5786 = vpack.c.b16 %v5699, %v5698
    %v5787 = vpack.c.b16 %v5701, %v5700
    %v5788 = vpack.c.b16 %v5703, %v5702
    %v5789 = vpack.c.b16 %v5705, %v5704
    %v5790 = vpack.c.b16 %v5707, %v5706
    %v5791 = vpack.c.b16 %v5709, %v5708
    %v5792 = vpack.c.b16 %v5711, %v5710
    %v5793 = vpack.c.b16 %v5713, %v5712
    %v5794 = vpack.c.b16 %v5715, %v5714
    %v5795 = vpack.c.b16 %v5717, %v5716
    %v5796 = vpack.c.b16 %v5719, %v5718
    %v5797 = vpack.c.b16 %v5721, %v5720
    %v5798 = vpack.c.b16 %v5723, %v5722
    %v5799 = vpack.c.b16 %v5725, %v5724
    %v5800 = vpack.c.b16 %v5727, %v5726
    %v5801 = vpack.c.b16 %v5729, %v5728
    %v5802 = vpack.c.b16 %v5731, %v5730
    %v5803 = vpack.c.b16 %v5733, %v5732
    %v5804 = vpack.c.b16 %v5735, %v5734
    %v5805 = vpack.c.b16 %v5737, %v5736
    %v5806 = vpack.c.b16 %v5739, %v5738
    %v5807 = vpack.c.b16 %v5741, %v5740
    %v5808 = vpack.c.b16 %v5743, %v5742
    %v5809 = vpack.c.b16 %v5745, %v5744
    %5874 = vmatprep.subr.bf16.mxu0 0
    %5875 = vmatpush1.bf16.msra.mxu0 %v5746
    %5876 = vmatprep.subr.bf16.mxu0 0
    %5877 = vmatpush1.bf16.msra.mxu0 %v5747
    %5878 = vmatprep.subr.bf16.mxu0 0
    %5879 = vmatpush1.bf16.msra.mxu0 %v5748
    %5880 = vmatprep.subr.bf16.mxu0 0
    %5881 = vmatpush1.bf16.msra.mxu0 %v5749
    %5882 = vmatprep.subr.bf16.mxu0 0
    %5883 = vmatpush1.bf16.msra.mxu0 %v5750
    %5884 = vmatprep.subr.bf16.mxu0 0
    %5885 = vmatpush1.bf16.msra.mxu0 %v5751
    %5886 = vmatprep.subr.bf16.mxu0 0
    %5887 = vmatpush1.bf16.msra.mxu0 %v5752
    %5888 = vmatprep.subr.bf16.mxu0 0
    %5889 = vmatpush1.bf16.msra.mxu0 %v5753
    %5890 = vmatprep.subr.bf16.mxu0 0
    %5891 = vmatpush1.bf16.msra.mxu0 %v5754
    %5892 = vmatprep.subr.bf16.mxu0 0
    %5893 = vmatpush1.bf16.msra.mxu0 %v5755
    %5894 = vmatprep.subr.bf16.mxu0 0
    %5895 = vmatpush1.bf16.msra.mxu0 %v5756
    %5896 = vmatprep.subr.bf16.mxu0 0
    %5897 = vmatpush1.bf16.msra.mxu0 %v5757
    %5898 = vmatprep.subr.bf16.mxu0 0
    %5899 = vmatpush1.bf16.msra.mxu0 %v5758
    %5900 = vmatprep.subr.bf16.mxu0 0
    %5901 = vmatpush1.bf16.msra.mxu0 %v5759
    %5902 = vmatprep.subr.bf16.mxu0 0
    %5903 = vmatpush1.bf16.msra.mxu0 %v5760
    %5904 = vmatprep.subr.bf16.mxu0 0
    %5905 = vmatpush1.bf16.msra.mxu0 %v5761
    %5906 = vmatprep.mubr.bf16.mxu0 %v5470
    %5907 = vmatmul.mubr.bf16.gmra.mrb[0].mxu0 %v5456
    %v5908 = vpop.f32.mrb[0].mxu0
    %v5909 = vadd.f32 %v5430, %v5908
    %v5910 = vpop.f32.mrb[0].mxu0
    %v5911 = vpop.f32.mrb[0].mxu0
    %v5912 = vpop.f32.mrb[0].mxu0
    %5913 = vdwg.mxu0
    %5914 = vmatprep.subr.bf16.mxu0 0
    %5915 = vmatpush1.bf16.msra.mxu0 %v5762
    %5916 = vmatprep.subr.bf16.mxu0 0
    %5917 = vmatpush1.bf16.msra.mxu0 %v5763
    %5918 = vmatprep.subr.bf16.mxu0 0
    %5919 = vmatpush1.bf16.msra.mxu0 %v5764
    %5920 = vmatprep.subr.bf16.mxu0 0
    %5921 = vmatpush1.bf16.msra.mxu0 %v5765
    %5922 = vmatprep.subr.bf16.mxu0 0
    %5923 = vmatpush1.bf16.msra.mxu0 %v5766
    %5924 = vmatprep.subr.bf16.mxu0 0
    %5925 = vmatpush1.bf16.msra.mxu0 %v5767
    %5926 = vmatprep.subr.bf16.mxu0 0
    %5927 = vmatpush1.bf16.msra.mxu0 %v5768
    %5928 = vmatprep.subr.bf16.mxu0 0
    %5929 = vmatpush1.bf16.msra.mxu0 %v5769
    %5930 = vmatprep.subr.bf16.mxu0 0
    %5931 = vmatpush1.bf16.msra.mxu0 %v5770
    %5932 = vmatprep.subr.bf16.mxu0 0
    %5933 = vmatpush1.bf16.msra.mxu0 %v5771
    %5934 = vmatprep.subr.bf16.mxu0 0
    %5935 = vmatpush1.bf16.msra.mxu0 %v5772
    %5936 = vmatprep.subr.bf16.mxu0 0
    %5937 = vmatpush1.bf16.msra.mxu0 %v5773
    %5938 = vmatprep.subr.bf16.mxu0 0
    %5939 = vmatpush1.bf16.msra.mxu0 %v5774
    %5940 = vmatprep.subr.bf16.mxu0 0
    %5941 = vmatpush1.bf16.msra.mxu0 %v5775
    %5942 = vmatprep.subr.bf16.mxu0 0
    %5943 = vmatpush1.bf16.msra.mxu0 %v5776
    %5944 = vmatprep.subr.bf16.mxu0 0
    %5945 = vmatpush1.bf16.msra.mxu0 %v5777
    %5946 = vmatprep.mubr.bf16.mxu0 %v5480
    %5947 = vmatmul.mubr.bf16.gmra.mrb[0].mxu0 %v5478
    %v5948 = vpop.f32.mrb[0].mxu0
    %v5949 = vadd.f32 %v5909, %v5948
    %v5950 = vpop.f32.mrb[0].mxu0
    %v5951 = vpop.f32.mrb[0].mxu0
    %v5952 = vpop.f32.mrb[0].mxu0
    %5953 = vdwg.mxu0
    %5954 = vmatprep.subr.bf16.mxu0 0
    %5955 = vmatpush1.bf16.msra.mxu0 %v5778
    %5956 = vmatprep.subr.bf16.mxu0 0
    %5957 = vmatpush1.bf16.msra.mxu0 %v5779
    %5958 = vmatprep.subr.bf16.mxu0 0
    %5959 = vmatpush1.bf16.msra.mxu0 %v5780
    %5960 = vmatprep.subr.bf16.mxu0 0
    %5961 = vmatpush1.bf16.msra.mxu0 %v5781
    %5962 = vmatprep.subr.bf16.mxu0 0
    %5963 = vmatpush1.bf16.msra.mxu0 %v5782
    %5964 = vmatprep.subr.bf16.mxu0 0
    %5965 = vmatpush1.bf16.msra.mxu0 %v5783
    %5966 = vmatprep.subr.bf16.mxu0 0
    %5967 = vmatpush1.bf16.msra.mxu0 %v5784
    %5968 = vmatprep.subr.bf16.mxu0 0
    %5969 = vmatpush1.bf16.msra.mxu0 %v5785
    %5970 = vmatprep.subr.bf16.mxu0 0
    %5971 = vmatpush1.bf16.msra.mxu0 %v5786
    %5972 = vmatprep.subr.bf16.mxu0 0
    %5973 = vmatpush1.bf16.msra.mxu0 %v5787
    %5974 = vmatprep.subr.bf16.mxu0 0
    %5975 = vmatpush1.bf16.msra.mxu0 %v5788
    %5976 = vmatprep.subr.bf16.mxu0 0
    %5977 = vmatpush1.bf16.msra.mxu0 %v5789
    %5978 = vmatprep.subr.bf16.mxu0 0
    %5979 = vmatpush1.bf16.msra.mxu0 %v5790
    %5980 = vmatprep.subr.bf16.mxu0 0
    %5981 = vmatpush1.bf16.msra.mxu0 %v5791
    %5982 = vmatprep.subr.bf16.mxu0 0
    %5983 = vmatpush1.bf16.msra.mxu0 %v5792
    %5984 = vmatprep.subr.bf16.mxu0 0
    %5985 = vmatpush1.bf16.msra.mxu0 %v5793
    %5986 = vmatprep.mubr.bf16.mxu0 %v5477
    %5987 = vmatmul.mubr.bf16.gmra.mrb[0].mxu0 %v5463
    %v5988 = vpop.f32.mrb[0].mxu0
    %v5989 = vadd.f32 %v5949, %v5988
    %v5990 = vpop.f32.mrb[0].mxu0
    %v5991 = vpop.f32.mrb[0].mxu0
    %v5992 = vpop.f32.mrb[0].mxu0
    %5993 = vdwg.mxu0
    %5994 = vmatprep.subr.bf16.mxu0 0
    %5995 = vmatpush1.bf16.msra.mxu0 %v5794
    %5996 = vmatprep.subr.bf16.mxu0 0
    %5997 = vmatpush1.bf16.msra.mxu0 %v5795
    %5998 = vmatprep.subr.bf16.mxu0 0
    %5999 = vmatpush1.bf16.msra.mxu0 %v5796
    %6000 = vmatprep.subr.bf16.mxu0 0
    %6001 = vmatpush1.bf16.msra.mxu0 %v5797
    %6002 = vmatprep.subr.bf16.mxu0 0
    %6003 = vmatpush1.bf16.msra.mxu0 %v5798
    %6004 = vmatprep.subr.bf16.mxu0 0
    %6005 = vmatpush1.bf16.msra.mxu0 %v5799
    %6006 = vmatprep.subr.bf16.mxu0 0
    %6007 = vmatpush1.bf16.msra.mxu0 %v5800
    %6008 = vmatprep.subr.bf16.mxu0 0
    %6009 = vmatpush1.bf16.msra.mxu0 %v5801
    %6010 = vmatprep.subr.bf16.mxu0 0
    %6011 = vmatpush1.bf16.msra.mxu0 %v5802
    %6012 = vmatprep.subr.bf16.mxu0 0
    %6013 = vmatpush1.bf16.msra.mxu0 %v5803
    %6014 = vmatprep.subr.bf16.mxu0 0
    %6015 = vmatpush1.bf16.msra.mxu0 %v5804
    %6016 = vmatprep.subr.bf16.mxu0 0
    %6017 = vmatpush1.bf16.msra.mxu0 %v5805
    %6018 = vmatprep.subr.bf16.mxu0 0
    %6019 = vmatpush1.bf16.msra.mxu0 %v5806
    %6020 = vmatprep.subr.bf16.mxu0 0
    %6021 = vmatpush1.bf16.msra.mxu0 %v5807
    %6022 = vmatprep.subr.bf16.mxu0 0
    %6023 = vmatpush1.bf16.msra.mxu0 %v5808
    %6024 = vmatprep.subr.bf16.mxu0 0
    %6025 = vmatpush1.bf16.msra.mxu0 %v5809
    %6026 = vmatprep.mubr.bf16.mxu0 %v5481
    %6027 = vmatmul.mubr.bf16.gmra.mrb[0].mxu0 %v5479
    %v6028 = vpop.f32.mrb[0].mxu0
    %v6029 = vadd.f32 %v5989, %v6028
    %v6030 = vpop.f32.mrb[0].mxu0
    %v6031 = vpop.f32.mrb[0].mxu0
    %v6032 = vpop.f32.mrb[0].mxu0
    %6033 = vdwg.mxu0
    %v6034 = vmax.f32 %v6029, 0.0
    %v6035 = vpack.c.bf16 %v6034, %v6034
    %v6036 = vld [vmem:[%s9] sm:$0xf]
    %v6037 = vld [vmem:[%s9 + $0x4] sm:$0xf]
    %v6038 = vld [vmem:[%s9 + $0x8] sm:$0xf]
    %v6039 = vld [vmem:[%s9 + $0xc] sm:$0xf]
    %v6040 = vld [vmem:[%s9 + $0x10] sm:$0xf]
    %v6041 = vld [vmem:[%s9 + $0x14] sm:$0xf]
    %v6042 = vld [vmem:[%s9 + $0x18] sm:$0xf]
    %v6043 = vld [vmem:[%s9 + $0x1c] sm:$0xf]
    %v6044 = vld [vmem:[%s9 + $0x20] sm:$0xf]
    %v6045 = vld [vmem:[%s9 + $0x24] sm:$0xf]
    %v6046 = vld [vmem:[%s9 + $0x28] sm:$0xf]
    %v6047 = vld [vmem:[%s9 + $0x2c] sm:$0xf]
    %v6048 = vld [vmem:[%s9 + $0x30] sm:$0xf]
    %v6049 = vld [vmem:[%s9 + $0x34] sm:$0xf]
    %v6050 = vld [vmem:[%s9 + $0x38] sm:$0xf]
    %v6051 = vld [vmem:[%s9 + $0x3c] sm:$0xf]
    %v6052 = vld [vmem:[%s10] sm:$0x1]
    %v6054 = vlaneseq
    %v6055 = vshrl.u32 %v6054, 7
    %v6056 = vsub.s32 0, %v6055
    %v6057 = vrot.slane %v6052, %v6056
    %v6075 = vunpack.c.l.b16 %v6036
    %v6076 = vunpack.c.l.b16 %v6037
    %v6077 = vunpack.c.l.b16 %v6038
    %v6078 = vunpack.c.l.b16 %v6039
    %v6079 = vunpack.c.l.b16 %v6040
    %v6080 = vunpack.c.l.b16 %v6041
    %v6081 = vunpack.c.l.b16 %v6042
    %v6082 = vunpack.c.l.b16 %v6043
    %v6083 = vunpack.c.l.b16 %v6044
    %v6084 = vunpack.c.l.b16 %v6045
    %v6085 = vunpack.c.l.b16 %v6046
    %v6086 = vunpack.c.l.b16 %v6047
    %v6087 = vunpack.c.l.b16 %v6048
    %v6088 = vunpack.c.l.b16 %v6049
    %v6089 = vunpack.c.l.b16 %v6050
    %v6090 = vunpack.c.l.b16 %v6051
    %v6091 = vpack.c.b16 %v6076, %v6075
    %v6092 = vpack.c.b16 %v6078, %v6077
    %v6093 = vpack.c.b16 %v6080, %v6079
    %v6094 = vpack.c.b16 %v6082, %v6081
    %v6095 = vpack.c.b16 %v6084, %v6083
    %v6096 = vpack.c.b16 %v6086, %v6085
    %v6097 = vpack.c.b16 %v6088, %v6087
    %v6098 = vpack.c.b16 %v6090, %v6089
    %6107 = vmatprep.subr.bf16.mxu0 0
    %6108 = vmatpush1.bf16.msra.mxu0 %v6091
    %6109 = vmatprep.subr.bf16.mxu0 0
    %6110 = vmatpush1.bf16.msra.mxu0 %v6092
    %6111 = vmatprep.subr.bf16.mxu0 0
    %6112 = vmatpush1.bf16.msra.mxu0 %v6093
    %6113 = vmatprep.subr.bf16.mxu0 0
    %6114 = vmatpush1.bf16.msra.mxu0 %v6094
    %6115 = vmatprep.subr.bf16.mxu0 0
    %6116 = vmatpush1.bf16.msra.mxu0 %v6095
    %6117 = vmatprep.subr.bf16.mxu0 0
    %6118 = vmatpush1.bf16.msra.mxu0 %v6096
    %6119 = vmatprep.subr.bf16.mxu0 0
    %6120 = vmatpush1.bf16.msra.mxu0 %v6097
    %6121 = vmatprep.subr.bf16.mxu0 0
    %6122 = vmatpush1.bf16.msra.mxu0 %v6098
    %6123 = vmatprep.subr.bf16.mxu0 0
    %6124 = vmatpush1.bf16.msra.mxu0 0
    %6125 = vmatprep.subr.bf16.mxu0 0
    %6126 = vmatpush1.bf16.msra.mxu0 0
    %6127 = vmatprep.subr.bf16.mxu0 0
    %6128 = vmatpush1.bf16.msra.mxu0 0
    %6129 = vmatprep.subr.bf16.mxu0 0
    %6130 = vmatpush1.bf16.msra.mxu0 0
    %6131 = vmatprep.subr.bf16.mxu0 0
    %6132 = vmatpush1.bf16.msra.mxu0 0
    %6133 = vmatprep.subr.bf16.mxu0 0
    %6134 = vmatpush1.bf16.msra.mxu0 0
    %6135 = vmatprep.subr.bf16.mxu0 0
    %6136 = vmatpush1.bf16.msra.mxu0 0
    %6137 = vmatprep.subr.bf16.mxu0 0
    %6138 = vmatpush1.bf16.msra.mxu0 0
    %6139 = vmatprep.mubr.bf16.mxu0 0
    %6140 = vmatmul.mubr.bf16.gmra.mrb[0].mxu0 %v6035
    %v6141 = vpop.f32.mrb[0].mxu0
    %v6142 = vadd.f32 %v6057, %v6141
    %v6143 = vpop.f32.mrb[0].mxu0
    %v6144 = vpop.f32.mrb[0].mxu0
    %v6145 = vpop.f32.mrb[0].mxu0
    %6146 = vdwg.mxu0
    %6147 = vst [vmem:[#allocation9] sm:$0x3] %v6142
    // Predicated region
    $region46: #{action_network_forward.1} parent=1 // pred_check
      _
    $region47: #{action_network_forward.1} parent=1 // pred_check_branch
      %6149 = sbr.rel (0) target = $region49
    $region48: #{action_network_forward.1} parent=1 // pred_region
      %s6151 = ssub.s32 32, 32
      %6152 = vsyncadd [#allocation10], %s6151
      %s6154 = sshll.u32 [#allocation9], 4
      %s6155 = int_to_ptr.vmem [resolvable:$true] %s6154
      %6157 = dma.vmem_to_hbm [thread:$0]  %s6155, 32, %s11, [#allocation10]
    $region49: #{action_network_forward.1} parent=1 // pred_fallthru
      _
    // Predicated region
    $region50: #{action_network_forward.1} parent=1 // pred_check
      _
    $region51: #{action_network_forward.1} parent=1 // pred_check_branch
      %6159 = sbr.rel (0) target = $region53
    $region52: #{action_network_forward.1} parent=1 // pred_region
      %6160 = dma.done [#allocation10], 32
    $region53: #{action_network_forward.1} parent=1 // pred_fallthru
      _
    %6161 = vsyncpa [#allocation10], 1

</llo_original>
